<compile_context>
chip_gen: v7x
topology: tpu7x:2x2x1
jax: 0.10.0
libtpu: 0.0.40
codegen_flags: <defaults>
</compile_context>

<pallas_src>
import jax
import jax.numpy as jnp
from jax.experimental import pallas as pl
from jax.experimental.pallas import tpu as pltpu


# -----------------------------------------------------------------------------
# Fused kernel: one batch element per grid step.
# -----------------------------------------------------------------------------
def _fused_kernel(sp_ref, x2_ref, w1_ref, w2_ref, whw1_ref, bn_ref,
                  wcat_ref, bcat_ref, wz_ref, bcw_ref, bhc_ref, msk_ref,
                  o_ref, pad_cw, pad_hc, exp_ref, slab_ref):
    f32 = jnp.float32
    bf16 = jnp.bfloat16
    C1, HW = exp_ref.shape
    Ch = wz_ref.shape[1]
    W = bcw_ref.shape[1]
    H = bhc_ref.shape[1]

    # ---- halo zeroing only (interiors fully rewritten below; no lane halo needed) ----
    zcw = jnp.zeros((3, W), f32)
    zhc = jnp.zeros((3, H), f32)
    for i in range(2):
        pad_cw[i, 0:3, :] = zcw
        pad_cw[i, 3 + C1:6 + C1, :] = zcw
        pad_hc[i, 0:3, :] = zhc
        pad_hc[i, 3 + C1:6 + C1, :] = zhc

    # ---- ZPools for the cw / hc gates: one pass over per-row slices of x ----------
    #   cw gate: reduce over H -> (C1, W) ;  hc gate: reduce over W -> (C1, H)
    v0 = x2_ref[0, :, 0:W]
    zmax_cw = v0
    zsum_cw = v0
    pad_hc[0, 3:3 + C1, 0:1] = jnp.max(v0, axis=1, keepdims=True)
    pad_hc[1, 3:3 + C1, 0:1] = jnp.sum(v0, axis=1, keepdims=True) * (1.0 / W)
    for h in range(1, H):
        v = x2_ref[0, :, h * W:(h + 1) * W]
        zmax_cw = jnp.maximum(zmax_cw, v)
        zsum_cw = zsum_cw + v
        pad_hc[0, 3:3 + C1, h:h + 1] = jnp.max(v, axis=1, keepdims=True)
        pad_hc[1, 3:3 + C1, h:h + 1] = jnp.sum(v, axis=1, keepdims=True) * (1.0 / W)
    pad_cw[0, 3:3 + C1, :] = zmax_cw
    pad_cw[1, 3:3 + C1, :] = zsum_cw * (1.0 / H)

    # ---- branch 1 (cw gate + Conv(c1,c2,1) + BN + SiLU) -----------------------------
    # 7x7 gate conv as 14 banded matmuls: sublane tap `a` via padded-scratch slice,
    # lane tap folded into the (W, W) banded matrix.
    acc1 = jnp.zeros((C1, W), f32)
    for i in range(2):
        for a in range(7):
            acc1 = acc1 + jnp.dot(pad_cw[i, a:a + C1, :], bcw_ref[i * 7 + a],
                                  preferred_element_type=f32)
    scale1 = jax.nn.sigmoid(acc1 * sp_ref[0] + sp_ref[1])            # (C1, W)

    # y1 = x * scale1 (broadcast over H): lane-broadcast via H static-offset stores.
    for h in range(H):
        exp_ref[:, h * W:(h + 1) * W] = x2_ref[0, :, h * W:(h + 1) * W] * scale1
    out11 = jnp.dot(w1_ref[...], exp_ref[...].astype(bf16),
                    preferred_element_type=f32)                       # (C2, HW)
    out11 = out11 * bn_ref[:, 0:1] + bn_ref[:, 1:2]
    out11 = out11 * jax.nn.sigmoid(out11)                             # SiLU
    o_ref[0] = sp_ref[9] * out11                                      # fusion weight[1]

    # ---- branch 2 (hc gate + Conv(c1,c2,3) + BN + SiLU) -----------------------------
    # hc gate: the conv's spatial axes are (H, C1) -> the C1 tap is the sublane shift and
    # the H tap is folded into the banded matrix (transposed orientation handled host-side).
    acc2 = jnp.zeros((C1, H), f32)
    for i in range(2):
        for kw in range(7):
            acc2 = acc2 + jnp.dot(pad_hc[i, kw:kw + C1, :], bhc_ref[i * 7 + kw],
                                  preferred_element_type=f32)
    scale2 = jax.nn.sigmoid(acc2 * sp_ref[2] + sp_ref[3])             # (C1, H)

    # y2 = x * scale2 (broadcast over W), reuse the flat scratch.
    for h in range(H):
        exp_ref[:, h * W:(h + 1) * W] = (x2_ref[0, :, h * W:(h + 1) * W]
                                         * scale2[:, h:h + 1])
    y2 = exp_ref[...]                                                 # (C1, HW)

    # 3x3 conv (pad=1): 9 lane-rolled + edge-masked slabs, ONE matmul with K = 9*C1.
    m_top = msk_ref[0:1, :]
    m_bot = msk_ref[1:2, :]
    m_left = msk_ref[2:3, :]
    m_right = msk_ref[3:4, :]
    for kh in range(3):
        for kw in range(3):
            s = (kh - 1) * W + (kw - 1)
            v = pltpu.roll(y2, (-s) % HW, axis=1) if s != 0 else y2
            if kh == 0:
                v = v * m_top
            elif kh == 2:
                v = v * m_bot
            if kw == 0:
                v = v * m_left
            elif kw == 2:
                v = v * m_right
            t = kh * 3 + kw
            slab_ref[t * C1:(t + 1) * C1, :] = v
    out21 = jnp.dot(w2_ref[...], slab_ref[...].astype(bf16),
                    preferred_element_type=f32)                       # (C2, HW)
    out21 = out21 * bn_ref[:, 2:3] + bn_ref[:, 3:4]
    out21 = out21 * jax.nn.sigmoid(out21)
    o_ref[0] = o_ref[0] + sp_ref[10] * out21                          # fusion weight[2]

    # ---- branch 3 (hw AttentionGate) -------------------------------------------------
    x2v = x2_ref[0]                                                   # (C1, HW)
    zmax3 = jnp.max(x2v, axis=0, keepdims=True)                       # channel ZPool
    zmean3 = jnp.sum(x2v, axis=0, keepdims=True) * (1.0 / C1)
    t3 = sp_ref[4] * zmax3 + sp_ref[5] * zmean3                       # 1x1 conv 2->1
    t3 = t3 * sp_ref[6] + sp_ref[7]                                   # folded BN(1)
    t3 = t3 * jax.nn.sigmoid(t3)                                      # SiLU (Conv default)
    scale3 = jax.nn.sigmoid(t3)                                       # (1, HW)
    hwy = jnp.dot(whw1_ref[...], x2v.astype(bf16),
                  preferred_element_type=f32)                         # (C2, HW)
    hwy = hwy * bn_ref[:, 4:5] + bn_ref[:, 5:6]
    hwy = hwy * jax.nn.sigmoid(hwy)
    o_ref[0] = o_ref[0] + sp_ref[8] * (hwy * scale3)                  # fusion weight[0]

    # ---- PolarizedSelfAttention on the fused sum (read back from the output block) ----
    xs = o_ref[0]                                                     # (C2, HW)
    proj = jnp.dot(wcat_ref[...], xs.astype(bf16),
                   preferred_element_type=f32) + bcat_ref[...]        # (Rp, HW)
    wv = proj[0:Ch]                                                   # ch_wv
    sv = proj[Ch:2 * Ch]                                              # sp_wv
    sq = proj[2 * Ch:3 * Ch]                                          # sp_wq
    q = proj[3 * Ch:3 * Ch + 1]                                       # ch_wq

    # channel branch: softmax over HW -> weighted sum -> 1x1 up-proj -> LN -> sigmoid
    q = q - jnp.max(q, axis=1, keepdims=True)
    q = jnp.exp(q)
    q = q * pl.reciprocal(jnp.sum(q, axis=1, keepdims=True), approx=True)
    z = jnp.sum(wv * q, axis=1, keepdims=True)                        # (Ch, 1)
    zz = jnp.dot(wz_ref[...], z, preferred_element_type=f32) + bn_ref[:, 8:9]
    mu = jnp.mean(zz, axis=0, keepdims=True)
    var = jnp.mean((zz - mu) ** 2, axis=0, keepdims=True)
    lnz = (zz - mu) * jax.lax.rsqrt(var + 1e-5) * bn_ref[:, 6:7] + bn_ref[:, 7:8]
    w_ch = jax.nn.sigmoid(lnz)                                        # (C2, 1)

    # spatial branch: global avg pool -> softmax over Ch -> weighted sum -> sigmoid
    sqm = jnp.sum(sq, axis=1, keepdims=True) * (1.0 / HW)             # (Ch, 1)
    sqm = sqm - jnp.max(sqm, axis=0, keepdims=True)
    sqm = jnp.exp(sqm)
    sqm = sqm * pl.reciprocal(jnp.sum(sqm, axis=0, keepdims=True), approx=True)
    swz = jnp.sum(sv * sqm, axis=0, keepdims=True)                    # (1, HW)
    w_sp = jax.nn.sigmoid(swz)

    o_ref[0] = xs * (w_ch + w_sp)                                     # channel_out + spatial_out


# -----------------------------------------------------------------------------
# Host-side helpers (tiny, built per call in the jitted wrapper).
# -----------------------------------------------------------------------------
def _banded(taps, n):
    """(n, n) banded matrix B with B[src, dst] = taps[src - dst + 3] inside the 7-band."""
    src = jnp.arange(n)[:, None]
    dst = jnp.arange(n)[None, :]
    d = src - dst + 3
    ok = (d >= 0) & (d <= 6)
    return jnp.where(ok, taps[jnp.clip(d, 0, 6)], 0.0).astype(jnp.float32)


def _banded_stack_cw(k7, n):
    # cw gate conv input is (2, C1, W): tap `a` (C1 axis) -> in-kernel sublane shift,
    # tap `e` (W axis) -> folded into the (W, W) band.
    return jnp.stack([_banded(k7[i, a, :], n) for i in range(2) for a in range(7)])


def _banded_stack_hc(k7, n):
    # hc gate conv input is (2, H, C1): tap `kw` (C1 axis) -> in-kernel sublane shift,
    # tap `kh` (H axis, FIRST kernel axis) -> folded into the (H, H) band.
    return jnp.stack([_banded(k7[i, :, kw], n) for i in range(2) for kw in range(7)])


def _edge_masks(H, W):
    pidx = jnp.arange(H * W, dtype=jnp.int32)
    row = pidx // W
    col = pidx % W
    return jnp.stack([(row != 0), (row != H - 1),
                      (col != 0), (col != W - 1)]).astype(jnp.float32)   # (4, HW)


def _pick_vmem_limit():
    # v5e/v6e: 128 MiB physical -> raise scoped limit toward ~96 MiB.
    # v7x: 64 MiB physical -> stay near ~48 MiB.  Fall back to the proven 32 MiB.
    try:
        cap = pltpu.get_tpu_info().vmem_capacity_bytes
        return int(min(cap * 3 // 4, 100 * 1024 * 1024))
    except Exception:
        return 32 * 1024 * 1024


# -----------------------------------------------------------------------------
# Parameter init (deterministic; fresh BN/LN stats folded to inference affine).
# -----------------------------------------------------------------------------
def init_params(key, c1, c2):
    ks = jax.random.split(key, 16)
    ch = c2 // 2
    bn_s = (1.0 + 1e-5) ** -0.5     # gamma=1, beta=0, mean=0, var=1, eps=1e-5

    def nrm(k, shape, s=0.1):
        return s * jax.random.normal(k, shape, jnp.float32)

    p = {}
    # AttentionGate2 7x7 convs (2 -> 1); banded matrices are built per-shape in the wrapper.
    p['k_cw'] = nrm(ks[0], (2, 7, 7))
    p['k_hc'] = nrm(ks[1], (2, 7, 7))

    hw2 = nrm(ks[2], (1, 2, 1, 1)).reshape(2)
    wfuse = jnp.ones((4,), jnp.float32)
    fw = wfuse / (jnp.sum(wfuse) + 1e-4)           # torch: w / (sum(w) + eps); first 3 used
    p['sp'] = jnp.concatenate([
        jnp.array([bn_s, 0.0, bn_s, 0.0], jnp.float32),   # cw gate BN, hc gate BN (s, b)
        hw2,                                              # hw gate 1x1 conv (max, mean)
        jnp.array([bn_s, 0.0], jnp.float32),              # hw gate BN (s, b)
        fw[:3]]).astype(jnp.float32)                      # fusion weights (hw, cw, hc)

    p['w1'] = nrm(ks[3], (c2, c1, 1, 1)).reshape(c2, c1).astype(jnp.bfloat16)
    w2 = nrm(ks[4], (c2, c1, 3, 3))
    # (C2, 9*C1) so the fused 3x3 matmul column (kh*3+kw)*C1 + c matches the slab layout.
    p['w2flat'] = jnp.transpose(w2, (0, 2, 3, 1)).reshape(c2, 9 * c1).astype(jnp.bfloat16)
    p['whw1'] = nrm(ks[5], (c2, c1, 1, 1)).reshape(c2, c1).astype(jnp.bfloat16)

    # PSA fused projection: rows = [ch_wv | sp_wv | sp_wq | ch_wq | zero-pad to mult of 8].
    wv, bv = nrm(ks[6], (ch, c2)), nrm(ks[7], (ch,))
    wsv, bsv = nrm(ks[8], (ch, c2)), nrm(ks[9], (ch,))
    wsq, bsq = nrm(ks[10], (ch, c2)), nrm(ks[11], (ch,))
    wq, bq = nrm(ks[12], (1, c2)), nrm(ks[13], (1,))
    rows = 3 * ch + 1
    rp = -(-rows // 8) * 8
    wcat = jnp.concatenate([wv, wsv, wsq, wq], axis=0)
    bcat = jnp.concatenate([bv, bsv, bsq, bq])
    p['wcat'] = jnp.zeros((rp, c2), jnp.float32).at[:rows].set(wcat).astype(jnp.bfloat16)
    p['bcat'] = jnp.zeros((rp, 1), jnp.float32).at[:rows, 0].set(bcat)
    p['wz'] = nrm(ks[14], (c2, ch))
    bz = nrm(ks[15], (c2,))

    # per-output-channel affine slab (c2, 9):
    # 0/1 conv1 BN, 2/3 conv2 BN, 4/5 hw.conv1 BN, 6/7 PSA LayerNorm gamma/beta, 8 ch_wz bias
    cols = [jnp.full((c2,), bn_s), jnp.zeros((c2,)),
            jnp.full((c2,), bn_s), jnp.zeros((c2,)),
            jnp.full((c2,), bn_s), jnp.zeros((c2,)),
            jnp.ones((c2,)), jnp.zeros((c2,)),
            bz]
    p['bnslab'] = jnp.stack(cols, axis=1).astype(jnp.float32)
    return p


# -----------------------------------------------------------------------------
# Forward wrapper: one pallas_call for the whole module.
# -----------------------------------------------------------------------------
def triplet_attention_conv4(x, p):
    B, C1, H, W = x.shape
    HW = H * W
    C2 = p['bnslab'].shape[0]

    x2 = x.reshape(B, C1, HW)                 # free view; the ONLY activation input
    bcw = _banded_stack_cw(p['k_cw'], W)      # (14, W, W)
    bhc = _banded_stack_hc(p['k_hc'], H)      # (14, H, H)
    msk = _edge_masks(H, W)                   # (4, HW) edge masks for the 3x3 rolls

    out = pl.pallas_call(
        _fused_kernel,
        out_shape=jax.ShapeDtypeStruct((B, C2, HW), jnp.float32),
        grid=(B,),
        in_specs=[
            pl.BlockSpec(memory_space=pltpu.MemorySpace.SMEM),        # packed scalars
            pl.BlockSpec((1, C1, HW), lambda b: (b, 0, 0)),           # x (flat pixels)
            pl.BlockSpec(p['w1'].shape, lambda b: (0, 0)),            # conv1 (1x1), bf16
            pl.BlockSpec(p['w2flat'].shape, lambda b: (0, 0)),        # conv2 (3x3 fused), bf16
            pl.BlockSpec(p['whw1'].shape, lambda b: (0, 0)),          # hw.conv1, bf16
            pl.BlockSpec(p['bnslab'].shape, lambda b: (0, 0)),        # per-channel affines
            pl.BlockSpec(p['wcat'].shape, lambda b: (0, 0)),          # PSA projection, bf16
            pl.BlockSpec(p['bcat'].shape, lambda b: (0, 0)),
            pl.BlockSpec(p['wz'].shape, lambda b: (0, 0)),            # PSA ch_wz
            pl.BlockSpec(bcw.shape, lambda b: (0, 0, 0)),             # cw 7x7 banded mats
            pl.BlockSpec(bhc.shape, lambda b: (0, 0, 0)),             # hc 7x7 banded mats
            pl.BlockSpec(msk.shape, lambda b: (0, 0)),                # 3x3 edge masks
        ],
        out_specs=pl.BlockSpec((1, C2, HW), lambda b: (b, 0, 0)),     # lane-dense output
        scratch_shapes=[
            pltpu.VMEM((2, C1 + 6, W), jnp.float32),                  # cw gate pad (sublane halo)
            pltpu.VMEM((2, C1 + 6, H), jnp.float32),                  # hc gate pad (sublane halo)
            pltpu.VMEM((C1, HW), jnp.float32),                        # y1 / y2 expansion buffer
            pltpu.VMEM((9 * C1, HW), jnp.float32),                    # fused 3x3 slabs
        ],
        compiler_params=pltpu.CompilerParams(
            dimension_semantics=("parallel",),
            vmem_limit_bytes=_pick_vmem_limit()),
    )(p['sp'], x2, p['w1'], p['w2flat'], p['whw1'], p['bnslab'],
      p['wcat'], p['bcat'], p['wz'], bcw, bhc, msk)

    return out.reshape(B, C2, H, W)


if __name__ == "__main__":
    key = jax.random.PRNGKey(0)
    B, C1, C2, H, W = 2, 4, 8, 16, 16
    kx, kp = jax.random.split(key)
    x = jax.random.normal(kx, (B, C1, H, W), jnp.float32)
    params = init_params(kp, C1, C2)

    out = jax.jit(triplet_attention_conv4)(x, params)
    out = jax.block_until_ready(out)
    assert out.shape == (B, C2, H, W) and out.dtype == jnp.float32
    assert bool(jnp.all(jnp.isfinite(out)))
    print("KERNEL_OK")
</pallas_src>

<mosaic_0001>
module attributes {stable_mosaic.version = 11 : i64} {
  func.func @_fused_kernel(%arg0: i32, %arg1: memref<11xf32, #tpu.memory_space<smem>>, %arg2: memref<1x4x256xf32, #tpu.memory_space<vmem>>, %arg3: memref<8x4xbf16, #tpu.memory_space<vmem>>, %arg4: memref<8x36xbf16, #tpu.memory_space<vmem>>, %arg5: memref<8x4xbf16, #tpu.memory_space<vmem>>, %arg6: memref<8x9xf32, #tpu.memory_space<vmem>>, %arg7: memref<16x8xbf16, #tpu.memory_space<vmem>>, %arg8: memref<16x1xf32, #tpu.memory_space<vmem>>, %arg9: memref<8x4xf32, #tpu.memory_space<vmem>>, %arg10: memref<14x16x16xf32, #tpu.memory_space<vmem>>, %arg11: memref<14x16x16xf32, #tpu.memory_space<vmem>>, %arg12: memref<4x256xf32, #tpu.memory_space<vmem>>, %arg13: memref<1x8x256xf32, #tpu.memory_space<vmem>>, %arg14: memref<2x10x16xf32, #tpu.memory_space<vmem>>, %arg15: memref<2x10x16xf32, #tpu.memory_space<vmem>>, %arg16: memref<4x256xf32, #tpu.memory_space<vmem>>, %arg17: memref<36x256xf32, #tpu.memory_space<vmem>>) attributes {dimension_semantics = [#tpu.dimension_semantics<parallel>], iteration_bounds = array<i64: 2>, scalar_prefetch = 0 : i64, scratch_operands = 4 : i64, tpu.core_type = #tpu.core_type<tc>, window_params = [{transform_indices = @transform_0, window_bounds = array<i64: 11>}, {transform_indices = @transform_1, window_bounds = array<i64: 1, 4, 256>}, {pipeline_mode = #tpu.pipeline_mode<synchronous>, transform_indices = @transform_2, window_bounds = array<i64: 8, 4>}, {pipeline_mode = #tpu.pipeline_mode<synchronous>, transform_indices = @transform_3, window_bounds = array<i64: 8, 36>}, {pipeline_mode = #tpu.pipeline_mode<synchronous>, transform_indices = @transform_4, window_bounds = array<i64: 8, 4>}, {pipeline_mode = #tpu.pipeline_mode<synchronous>, transform_indices = @transform_5, window_bounds = array<i64: 8, 9>}, {pipeline_mode = #tpu.pipeline_mode<synchronous>, transform_indices = @transform_6, window_bounds = array<i64: 16, 8>}, {pipeline_mode = #tpu.pipeline_mode<synchronous>, transform_indices = @transform_7, window_bounds = array<i64: 16, 1>}, {pipeline_mode = #tpu.pipeline_mode<synchronous>, transform_indices = @transform_8, window_bounds = array<i64: 8, 4>}, {pipeline_mode = #tpu.pipeline_mode<synchronous>, transform_indices = @transform_9, window_bounds = array<i64: 14, 16, 16>}, {pipeline_mode = #tpu.pipeline_mode<synchronous>, transform_indices = @transform_10, window_bounds = array<i64: 14, 16, 16>}, {pipeline_mode = #tpu.pipeline_mode<synchronous>, transform_indices = @transform_11, window_bounds = array<i64: 4, 256>}, {transform_indices = @transform_12, window_bounds = array<i64: 1, 8, 256>}]} {
    %cst = arith.constant 0.000000e+00 : f32
    %0 = vector.broadcast %cst : f32 to vector<3x16xf32>
    %cst_0 = arith.constant 0.000000e+00 : f32
    %1 = vector.broadcast %cst_0 : f32 to vector<3x16xf32>
    %c0 = arith.constant 0 : index
    %c0_1 = arith.constant 0 : index
    %c0_2 = arith.constant 0 : index
    %2 = vector.load %arg14[%c0, %c0_1, %c0_2] : memref<2x10x16xf32, #tpu.memory_space<vmem>>, vector<1x3x16xf32>
    %3 = vector.shape_cast %2 : vector<1x3x16xf32> to vector<3x16xf32>
    %4 = vector.shape_cast %0 : vector<3x16xf32> to vector<1x3x16xf32>
    tpu.vector_store %arg14[%c0, %c0_1, %c0_2], %4 {strides = array<i32>} : memref<2x10x16xf32, #tpu.memory_space<vmem>>, vector<1x3x16xf32>,
    %c0_3 = arith.constant 0 : index
    %c7 = arith.constant 7 : index
    %c0_4 = arith.constant 0 : index
    %5 = vector.load %arg14[%c0_3, %c7, %c0_4] : memref<2x10x16xf32, #tpu.memory_space<vmem>>, vector<1x3x16xf32>
    %6 = vector.shape_cast %5 : vector<1x3x16xf32> to vector<3x16xf32>
    %7 = vector.shape_cast %0 : vector<3x16xf32> to vector<1x3x16xf32>
    tpu.vector_store %arg14[%c0_3, %c7, %c0_4], %7 {strides = array<i32>} : memref<2x10x16xf32, #tpu.memory_space<vmem>>, vector<1x3x16xf32>,
    %c0_5 = arith.constant 0 : index
    %c0_6 = arith.constant 0 : index
    %c0_7 = arith.constant 0 : index
    %8 = vector.load %arg15[%c0_5, %c0_6, %c0_7] : memref<2x10x16xf32, #tpu.memory_space<vmem>>, vector<1x3x16xf32>
    %9 = vector.shape_cast %8 : vector<1x3x16xf32> to vector<3x16xf32>
    %10 = vector.shape_cast %1 : vector<3x16xf32> to vector<1x3x16xf32>
    tpu.vector_store %arg15[%c0_5, %c0_6, %c0_7], %10 {strides = array<i32>} : memref<2x10x16xf32, #tpu.memory_space<vmem>>, vector<1x3x16xf32>,
    %c0_8 = arith.constant 0 : index
    %c7_9 = arith.constant 7 : index
    %c0_10 = arith.constant 0 : index
    %11 = vector.load %arg15[%c0_8, %c7_9, %c0_10] : memref<2x10x16xf32, #tpu.memory_space<vmem>>, vector<1x3x16xf32>
    %12 = vector.shape_cast %11 : vector<1x3x16xf32> to vector<3x16xf32>
    %13 = vector.shape_cast %1 : vector<3x16xf32> to vector<1x3x16xf32>
    tpu.vector_store %arg15[%c0_8, %c7_9, %c0_10], %13 {strides = array<i32>} : memref<2x10x16xf32, #tpu.memory_space<vmem>>, vector<1x3x16xf32>,
    %c1 = arith.constant 1 : index
    %c0_11 = arith.constant 0 : index
    %c0_12 = arith.constant 0 : index
    %14 = vector.load %arg14[%c1, %c0_11, %c0_12] : memref<2x10x16xf32, #tpu.memory_space<vmem>>, vector<1x3x16xf32>
    %15 = vector.shape_cast %14 : vector<1x3x16xf32> to vector<3x16xf32>
    %16 = vector.shape_cast %0 : vector<3x16xf32> to vector<1x3x16xf32>
    tpu.vector_store %arg14[%c1, %c0_11, %c0_12], %16 {strides = array<i32>} : memref<2x10x16xf32, #tpu.memory_space<vmem>>, vector<1x3x16xf32>,
    %c1_13 = arith.constant 1 : index
    %c7_14 = arith.constant 7 : index
    %c0_15 = arith.constant 0 : index
    %17 = vector.load %arg14[%c1_13, %c7_14, %c0_15] : memref<2x10x16xf32, #tpu.memory_space<vmem>>, vector<1x3x16xf32>
    %18 = vector.shape_cast %17 : vector<1x3x16xf32> to vector<3x16xf32>
    %19 = vector.shape_cast %0 : vector<3x16xf32> to vector<1x3x16xf32>
    tpu.vector_store %arg14[%c1_13, %c7_14, %c0_15], %19 {strides = array<i32>} : memref<2x10x16xf32, #tpu.memory_space<vmem>>, vector<1x3x16xf32>,
    %c1_16 = arith.constant 1 : index
    %c0_17 = arith.constant 0 : index
    %c0_18 = arith.constant 0 : index
    %20 = vector.load %arg15[%c1_16, %c0_17, %c0_18] : memref<2x10x16xf32, #tpu.memory_space<vmem>>, vector<1x3x16xf32>
    %21 = vector.shape_cast %20 : vector<1x3x16xf32> to vector<3x16xf32>
    %22 = vector.shape_cast %1 : vector<3x16xf32> to vector<1x3x16xf32>
    tpu.vector_store %arg15[%c1_16, %c0_17, %c0_18], %22 {strides = array<i32>} : memref<2x10x16xf32, #tpu.memory_space<vmem>>, vector<1x3x16xf32>,
    %c1_19 = arith.constant 1 : index
    %c7_20 = arith.constant 7 : index
    %c0_21 = arith.constant 0 : index
    %23 = vector.load %arg15[%c1_19, %c7_20, %c0_21] : memref<2x10x16xf32, #tpu.memory_space<vmem>>, vector<1x3x16xf32>
    %24 = vector.shape_cast %23 : vector<1x3x16xf32> to vector<3x16xf32>
    %25 = vector.shape_cast %1 : vector<3x16xf32> to vector<1x3x16xf32>
    tpu.vector_store %arg15[%c1_19, %c7_20, %c0_21], %25 {strides = array<i32>} : memref<2x10x16xf32, #tpu.memory_space<vmem>>, vector<1x3x16xf32>,
    %c0_22 = arith.constant 0 : index
    %c0_23 = arith.constant 0 : index
    %c0_24 = arith.constant 0 : index
    %26 = vector.load %arg2[%c0_22, %c0_23, %c0_24] : memref<1x4x256xf32, #tpu.memory_space<vmem>>, vector<1x4x16xf32>
    %27 = vector.shape_cast %26 : vector<1x4x16xf32> to vector<4x16xf32>
    %cst_25 = arith.constant dense<0xFF800000> : vector<4xf32>
    %28 = vector.multi_reduction <maximumf>, %27, %cst_25 [1] : vector<4x16xf32> to vector<4xf32>
    %29 = vector.shape_cast %28 : vector<4xf32> to vector<4x1xf32>
    %c0_26 = arith.constant 0 : index
    %c3 = arith.constant 3 : index
    %c0_27 = arith.constant 0 : index
    %30 = vector.load %arg15[%c0_26, %c3, %c0_27] : memref<2x10x16xf32, #tpu.memory_space<vmem>>, vector<1x4x1xf32>
    %31 = vector.shape_cast %30 : vector<1x4x1xf32> to vector<4x1xf32>
    %32 = vector.shape_cast %29 : vector<4x1xf32> to vector<1x4x1xf32>
    tpu.vector_store %arg15[%c0_26, %c3, %c0_27], %32 {strides = array<i32>} : memref<2x10x16xf32, #tpu.memory_space<vmem>>, vector<1x4x1xf32>,
    %cst_28 = arith.constant dense<0.000000e+00> : vector<4xf32>
    %33 = vector.multi_reduction <add>, %27, %cst_28 [1] : vector<4x16xf32> to vector<4xf32>
    %34 = vector.shape_cast %33 : vector<4xf32> to vector<4x1xf32>
    %cst_29 = arith.constant 6.250000e-02 : f32
    %35 = vector.broadcast %cst_29 : f32 to vector<4x1xf32>
    %36 = arith.mulf %34, %35 : vector<4x1xf32>
    %c1_30 = arith.constant 1 : index
    %c3_31 = arith.constant 3 : index
    %c0_32 = arith.constant 0 : index
    %37 = vector.load %arg15[%c1_30, %c3_31, %c0_32] : memref<2x10x16xf32, #tpu.memory_space<vmem>>, vector<1x4x1xf32>
    %38 = vector.shape_cast %37 : vector<1x4x1xf32> to vector<4x1xf32>
    %39 = vector.shape_cast %36 : vector<4x1xf32> to vector<1x4x1xf32>
    tpu.vector_store %arg15[%c1_30, %c3_31, %c0_32], %39 {strides = array<i32>} : memref<2x10x16xf32, #tpu.memory_space<vmem>>, vector<1x4x1xf32>,
    %c0_33 = arith.constant 0 : index
    %c0_34 = arith.constant 0 : index
    %c16 = arith.constant 16 : index
    %40 = vector.load %arg2[%c0_33, %c0_34, %c16] : memref<1x4x256xf32, #tpu.memory_space<vmem>>, vector<1x4x16xf32>
    %41 = vector.shape_cast %40 : vector<1x4x16xf32> to vector<4x16xf32>
    %42 = arith.maximumf %27, %41 : vector<4x16xf32>
    %43 = arith.addf %27, %41 : vector<4x16xf32>
    %cst_35 = arith.constant dense<0xFF800000> : vector<4xf32>
    %44 = vector.multi_reduction <maximumf>, %41, %cst_35 [1] : vector<4x16xf32> to vector<4xf32>
    %45 = vector.shape_cast %44 : vector<4xf32> to vector<4x1xf32>
    %c0_36 = arith.constant 0 : index
    %c3_37 = arith.constant 3 : index
    %c1_38 = arith.constant 1 : index
    %46 = vector.load %arg15[%c0_36, %c3_37, %c1_38] : memref<2x10x16xf32, #tpu.memory_space<vmem>>, vector<1x4x1xf32>
    %47 = vector.shape_cast %46 : vector<1x4x1xf32> to vector<4x1xf32>
    %48 = vector.shape_cast %45 : vector<4x1xf32> to vector<1x4x1xf32>
    tpu.vector_store %arg15[%c0_36, %c3_37, %c1_38], %48 {strides = array<i32>} : memref<2x10x16xf32, #tpu.memory_space<vmem>>, vector<1x4x1xf32>,
    %cst_39 = arith.constant dense<0.000000e+00> : vector<4xf32>
    %49 = vector.multi_reduction <add>, %41, %cst_39 [1] : vector<4x16xf32> to vector<4xf32>
    %50 = vector.shape_cast %49 : vector<4xf32> to vector<4x1xf32>
    %cst_40 = arith.constant 6.250000e-02 : f32
    %51 = vector.broadcast %cst_40 : f32 to vector<4x1xf32>
    %52 = arith.mulf %50, %51 : vector<4x1xf32>
    %c1_41 = arith.constant 1 : index
    %c3_42 = arith.constant 3 : index
    %c1_43 = arith.constant 1 : index
    %53 = vector.load %arg15[%c1_41, %c3_42, %c1_43] : memref<2x10x16xf32, #tpu.memory_space<vmem>>, vector<1x4x1xf32>
    %54 = vector.shape_cast %53 : vector<1x4x1xf32> to vector<4x1xf32>
    %55 = vector.shape_cast %52 : vector<4x1xf32> to vector<1x4x1xf32>
    tpu.vector_store %arg15[%c1_41, %c3_42, %c1_43], %55 {strides = array<i32>} : memref<2x10x16xf32, #tpu.memory_space<vmem>>, vector<1x4x1xf32>,
    %c0_44 = arith.constant 0 : index
    %c0_45 = arith.constant 0 : index
    %c32 = arith.constant 32 : index
    %56 = vector.load %arg2[%c0_44, %c0_45, %c32] : memref<1x4x256xf32, #tpu.memory_space<vmem>>, vector<1x4x16xf32>
    %57 = vector.shape_cast %56 : vector<1x4x16xf32> to vector<4x16xf32>
    %58 = arith.maximumf %42, %57 : vector<4x16xf32>
    %59 = arith.addf %43, %57 : vector<4x16xf32>
    %cst_46 = arith.constant dense<0xFF800000> : vector<4xf32>
    %60 = vector.multi_reduction <maximumf>, %57, %cst_46 [1] : vector<4x16xf32> to vector<4xf32>
    %61 = vector.shape_cast %60 : vector<4xf32> to vector<4x1xf32>
    %c0_47 = arith.constant 0 : index
    %c3_48 = arith.constant 3 : index
    %c2 = arith.constant 2 : index
    %62 = vector.load %arg15[%c0_47, %c3_48, %c2] : memref<2x10x16xf32, #tpu.memory_space<vmem>>, vector<1x4x1xf32>
    %63 = vector.shape_cast %62 : vector<1x4x1xf32> to vector<4x1xf32>
    %64 = vector.shape_cast %61 : vector<4x1xf32> to vector<1x4x1xf32>
    tpu.vector_store %arg15[%c0_47, %c3_48, %c2], %64 {strides = array<i32>} : memref<2x10x16xf32, #tpu.memory_space<vmem>>, vector<1x4x1xf32>,
    %cst_49 = arith.constant dense<0.000000e+00> : vector<4xf32>
    %65 = vector.multi_reduction <add>, %57, %cst_49 [1] : vector<4x16xf32> to vector<4xf32>
    %66 = vector.shape_cast %65 : vector<4xf32> to vector<4x1xf32>
    %cst_50 = arith.constant 6.250000e-02 : f32
    %67 = vector.broadcast %cst_50 : f32 to vector<4x1xf32>
    %68 = arith.mulf %66, %67 : vector<4x1xf32>
    %c1_51 = arith.constant 1 : index
    %c3_52 = arith.constant 3 : index
    %c2_53 = arith.constant 2 : index
    %69 = vector.load %arg15[%c1_51, %c3_52, %c2_53] : memref<2x10x16xf32, #tpu.memory_space<vmem>>, vector<1x4x1xf32>
    %70 = vector.shape_cast %69 : vector<1x4x1xf32> to vector<4x1xf32>
    %71 = vector.shape_cast %68 : vector<4x1xf32> to vector<1x4x1xf32>
    tpu.vector_store %arg15[%c1_51, %c3_52, %c2_53], %71 {strides = array<i32>} : memref<2x10x16xf32, #tpu.memory_space<vmem>>, vector<1x4x1xf32>,
    %c0_54 = arith.constant 0 : index
    %c0_55 = arith.constant 0 : index
    %c48 = arith.constant 48 : index
    %72 = vector.load %arg2[%c0_54, %c0_55, %c48] : memref<1x4x256xf32, #tpu.memory_space<vmem>>, vector<1x4x16xf32>
    %73 = vector.shape_cast %72 : vector<1x4x16xf32> to vector<4x16xf32>
    %74 = arith.maximumf %58, %73 : vector<4x16xf32>
    %75 = arith.addf %59, %73 : vector<4x16xf32>
    %cst_56 = arith.constant dense<0xFF800000> : vector<4xf32>
    %76 = vector.multi_reduction <maximumf>, %73, %cst_56 [1] : vector<4x16xf32> to vector<4xf32>
    %77 = vector.shape_cast %76 : vector<4xf32> to vector<4x1xf32>
    %c0_57 = arith.constant 0 : index
    %c3_58 = arith.constant 3 : index
    %c3_59 = arith.constant 3 : index
    %78 = vector.load %arg15[%c0_57, %c3_58, %c3_59] : memref<2x10x16xf32, #tpu.memory_space<vmem>>, vector<1x4x1xf32>
    %79 = vector.shape_cast %78 : vector<1x4x1xf32> to vector<4x1xf32>
    %80 = vector.shape_cast %77 : vector<4x1xf32> to vector<1x4x1xf32>
    tpu.vector_store %arg15[%c0_57, %c3_58, %c3_59], %80 {strides = array<i32>} : memref<2x10x16xf32, #tpu.memory_space<vmem>>, vector<1x4x1xf32>,
    %cst_60 = arith.constant dense<0.000000e+00> : vector<4xf32>
    %81 = vector.multi_reduction <add>, %73, %cst_60 [1] : vector<4x16xf32> to vector<4xf32>
    %82 = vector.shape_cast %81 : vector<4xf32> to vector<4x1xf32>
    %cst_61 = arith.constant 6.250000e-02 : f32
    %83 = vector.broadcast %cst_61 : f32 to vector<4x1xf32>
    %84 = arith.mulf %82, %83 : vector<4x1xf32>
    %c1_62 = arith.constant 1 : index
    %c3_63 = arith.constant 3 : index
    %c3_64 = arith.constant 3 : index
    %85 = vector.load %arg15[%c1_62, %c3_63, %c3_64] : memref<2x10x16xf32, #tpu.memory_space<vmem>>, vector<1x4x1xf32>
    %86 = vector.shape_cast %85 : vector<1x4x1xf32> to vector<4x1xf32>
    %87 = vector.shape_cast %84 : vector<4x1xf32> to vector<1x4x1xf32>
    tpu.vector_store %arg15[%c1_62, %c3_63, %c3_64], %87 {strides = array<i32>} : memref<2x10x16xf32, #tpu.memory_space<vmem>>, vector<1x4x1xf32>,
    %c0_65 = arith.constant 0 : index
    %c0_66 = arith.constant 0 : index
    %c64 = arith.constant 64 : index
    %88 = vector.load %arg2[%c0_65, %c0_66, %c64] : memref<1x4x256xf32, #tpu.memory_space<vmem>>, vector<1x4x16xf32>
    %89 = vector.shape_cast %88 : vector<1x4x16xf32> to vector<4x16xf32>
    %90 = arith.maximumf %74, %89 : vector<4x16xf32>
    %91 = arith.addf %75, %89 : vector<4x16xf32>
    %cst_67 = arith.constant dense<0xFF800000> : vector<4xf32>
    %92 = vector.multi_reduction <maximumf>, %89, %cst_67 [1] : vector<4x16xf32> to vector<4xf32>
    %93 = vector.shape_cast %92 : vector<4xf32> to vector<4x1xf32>
    %c0_68 = arith.constant 0 : index
    %c3_69 = arith.constant 3 : index
    %c4 = arith.constant 4 : index
    %94 = vector.load %arg15[%c0_68, %c3_69, %c4] : memref<2x10x16xf32, #tpu.memory_space<vmem>>, vector<1x4x1xf32>
    %95 = vector.shape_cast %94 : vector<1x4x1xf32> to vector<4x1xf32>
    %96 = vector.shape_cast %93 : vector<4x1xf32> to vector<1x4x1xf32>
    tpu.vector_store %arg15[%c0_68, %c3_69, %c4], %96 {strides = array<i32>} : memref<2x10x16xf32, #tpu.memory_space<vmem>>, vector<1x4x1xf32>,
    %cst_70 = arith.constant dense<0.000000e+00> : vector<4xf32>
    %97 = vector.multi_reduction <add>, %89, %cst_70 [1] : vector<4x16xf32> to vector<4xf32>
    %98 = vector.shape_cast %97 : vector<4xf32> to vector<4x1xf32>
    %cst_71 = arith.constant 6.250000e-02 : f32
    %99 = vector.broadcast %cst_71 : f32 to vector<4x1xf32>
    %100 = arith.mulf %98, %99 : vector<4x1xf32>
    %c1_72 = arith.constant 1 : index
    %c3_73 = arith.constant 3 : index
    %c4_74 = arith.constant 4 : index
    %101 = vector.load %arg15[%c1_72, %c3_73, %c4_74] : memref<2x10x16xf32, #tpu.memory_space<vmem>>, vector<1x4x1xf32>
    %102 = vector.shape_cast %101 : vector<1x4x1xf32> to vector<4x1xf32>
    %103 = vector.shape_cast %100 : vector<4x1xf32> to vector<1x4x1xf32>
    tpu.vector_store %arg15[%c1_72, %c3_73, %c4_74], %103 {strides = array<i32>} : memref<2x10x16xf32, #tpu.memory_space<vmem>>, vector<1x4x1xf32>,
    %c0_75 = arith.constant 0 : index
    %c0_76 = arith.constant 0 : index
    %c80 = arith.constant 80 : index
    %104 = vector.load %arg2[%c0_75, %c0_76, %c80] : memref<1x4x256xf32, #tpu.memory_space<vmem>>, vector<1x4x16xf32>
    %105 = vector.shape_cast %104 : vector<1x4x16xf32> to vector<4x16xf32>
    %106 = arith.maximumf %90, %105 : vector<4x16xf32>
    %107 = arith.addf %91, %105 : vector<4x16xf32>
    %cst_77 = arith.constant dense<0xFF800000> : vector<4xf32>
    %108 = vector.multi_reduction <maximumf>, %105, %cst_77 [1] : vector<4x16xf32> to vector<4xf32>
    %109 = vector.shape_cast %108 : vector<4xf32> to vector<4x1xf32>
    %c0_78 = arith.constant 0 : index
    %c3_79 = arith.constant 3 : index
    %c5 = arith.constant 5 : index
    %110 = vector.load %arg15[%c0_78, %c3_79, %c5] : memref<2x10x16xf32, #tpu.memory_space<vmem>>, vector<1x4x1xf32>
    %111 = vector.shape_cast %110 : vector<1x4x1xf32> to vector<4x1xf32>
    %112 = vector.shape_cast %109 : vector<4x1xf32> to vector<1x4x1xf32>
    tpu.vector_store %arg15[%c0_78, %c3_79, %c5], %112 {strides = array<i32>} : memref<2x10x16xf32, #tpu.memory_space<vmem>>, vector<1x4x1xf32>,
    %cst_80 = arith.constant dense<0.000000e+00> : vector<4xf32>
    %113 = vector.multi_reduction <add>, %105, %cst_80 [1] : vector<4x16xf32> to vector<4xf32>
    %114 = vector.shape_cast %113 : vector<4xf32> to vector<4x1xf32>
    %cst_81 = arith.constant 6.250000e-02 : f32
    %115 = vector.broadcast %cst_81 : f32 to vector<4x1xf32>
    %116 = arith.mulf %114, %115 : vector<4x1xf32>
    %c1_82 = arith.constant 1 : index
    %c3_83 = arith.constant 3 : index
    %c5_84 = arith.constant 5 : index
    %117 = vector.load %arg15[%c1_82, %c3_83, %c5_84] : memref<2x10x16xf32, #tpu.memory_space<vmem>>, vector<1x4x1xf32>
    %118 = vector.shape_cast %117 : vector<1x4x1xf32> to vector<4x1xf32>
    %119 = vector.shape_cast %116 : vector<4x1xf32> to vector<1x4x1xf32>
    tpu.vector_store %arg15[%c1_82, %c3_83, %c5_84], %119 {strides = array<i32>} : memref<2x10x16xf32, #tpu.memory_space<vmem>>, vector<1x4x1xf32>,
    %c0_85 = arith.constant 0 : index
    %c0_86 = arith.constant 0 : index
    %c96 = arith.constant 96 : index
    %120 = vector.load %arg2[%c0_85, %c0_86, %c96] : memref<1x4x256xf32, #tpu.memory_space<vmem>>, vector<1x4x16xf32>
    %121 = vector.shape_cast %120 : vector<1x4x16xf32> to vector<4x16xf32>
    %122 = arith.maximumf %106, %121 : vector<4x16xf32>
    %123 = arith.addf %107, %121 : vector<4x16xf32>
    %cst_87 = arith.constant dense<0xFF800000> : vector<4xf32>
    %124 = vector.multi_reduction <maximumf>, %121, %cst_87 [1] : vector<4x16xf32> to vector<4xf32>
    %125 = vector.shape_cast %124 : vector<4xf32> to vector<4x1xf32>
    %c0_88 = arith.constant 0 : index
    %c3_89 = arith.constant 3 : index
    %c6 = arith.constant 6 : index
    %126 = vector.load %arg15[%c0_88, %c3_89, %c6] : memref<2x10x16xf32, #tpu.memory_space<vmem>>, vector<1x4x1xf32>
    %127 = vector.shape_cast %126 : vector<1x4x1xf32> to vector<4x1xf32>
    %128 = vector.shape_cast %125 : vector<4x1xf32> to vector<1x4x1xf32>
    tpu.vector_store %arg15[%c0_88, %c3_89, %c6], %128 {strides = array<i32>} : memref<2x10x16xf32, #tpu.memory_space<vmem>>, vector<1x4x1xf32>,
    %cst_90 = arith.constant dense<0.000000e+00> : vector<4xf32>
    %129 = vector.multi_reduction <add>, %121, %cst_90 [1] : vector<4x16xf32> to vector<4xf32>
    %130 = vector.shape_cast %129 : vector<4xf32> to vector<4x1xf32>
    %cst_91 = arith.constant 6.250000e-02 : f32
    %131 = vector.broadcast %cst_91 : f32 to vector<4x1xf32>
    %132 = arith.mulf %130, %131 : vector<4x1xf32>
    %c1_92 = arith.constant 1 : index
    %c3_93 = arith.constant 3 : index
    %c6_94 = arith.constant 6 : index
    %133 = vector.load %arg15[%c1_92, %c3_93, %c6_94] : memref<2x10x16xf32, #tpu.memory_space<vmem>>, vector<1x4x1xf32>
    %134 = vector.shape_cast %133 : vector<1x4x1xf32> to vector<4x1xf32>
    %135 = vector.shape_cast %132 : vector<4x1xf32> to vector<1x4x1xf32>
    tpu.vector_store %arg15[%c1_92, %c3_93, %c6_94], %135 {strides = array<i32>} : memref<2x10x16xf32, #tpu.memory_space<vmem>>, vector<1x4x1xf32>,
    %c0_95 = arith.constant 0 : index
    %c0_96 = arith.constant 0 : index
    %c112 = arith.constant 112 : index
    %136 = vector.load %arg2[%c0_95, %c0_96, %c112] : memref<1x4x256xf32, #tpu.memory_space<vmem>>, vector<1x4x16xf32>
    %137 = vector.shape_cast %136 : vector<1x4x16xf32> to vector<4x16xf32>
    %138 = arith.maximumf %122, %137 : vector<4x16xf32>
    %139 = arith.addf %123, %137 : vector<4x16xf32>
    %cst_97 = arith.constant dense<0xFF800000> : vector<4xf32>
    %140 = vector.multi_reduction <maximumf>, %137, %cst_97 [1] : vector<4x16xf32> to vector<4xf32>
    %141 = vector.shape_cast %140 : vector<4xf32> to vector<4x1xf32>
    %c0_98 = arith.constant 0 : index
    %c3_99 = arith.constant 3 : index
    %c7_100 = arith.constant 7 : index
    %142 = vector.load %arg15[%c0_98, %c3_99, %c7_100] : memref<2x10x16xf32, #tpu.memory_space<vmem>>, vector<1x4x1xf32>
    %143 = vector.shape_cast %142 : vector<1x4x1xf32> to vector<4x1xf32>
    %144 = vector.shape_cast %141 : vector<4x1xf32> to vector<1x4x1xf32>
    tpu.vector_store %arg15[%c0_98, %c3_99, %c7_100], %144 {strides = array<i32>} : memref<2x10x16xf32, #tpu.memory_space<vmem>>, vector<1x4x1xf32>,
    %cst_101 = arith.constant dense<0.000000e+00> : vector<4xf32>
    %145 = vector.multi_reduction <add>, %137, %cst_101 [1] : vector<4x16xf32> to vector<4xf32>
    %146 = vector.shape_cast %145 : vector<4xf32> to vector<4x1xf32>
    %cst_102 = arith.constant 6.250000e-02 : f32
    %147 = vector.broadcast %cst_102 : f32 to vector<4x1xf32>
    %148 = arith.mulf %146, %147 : vector<4x1xf32>
    %c1_103 = arith.constant 1 : index
    %c3_104 = arith.constant 3 : index
    %c7_105 = arith.constant 7 : index
    %149 = vector.load %arg15[%c1_103, %c3_104, %c7_105] : memref<2x10x16xf32, #tpu.memory_space<vmem>>, vector<1x4x1xf32>
    %150 = vector.shape_cast %149 : vector<1x4x1xf32> to vector<4x1xf32>
    %151 = vector.shape_cast %148 : vector<4x1xf32> to vector<1x4x1xf32>
    tpu.vector_store %arg15[%c1_103, %c3_104, %c7_105], %151 {strides = array<i32>} : memref<2x10x16xf32, #tpu.memory_space<vmem>>, vector<1x4x1xf32>,
    %c0_106 = arith.constant 0 : index
    %c0_107 = arith.constant 0 : index
    %c128 = arith.constant 128 : index
    %152 = vector.load %arg2[%c0_106, %c0_107, %c128] : memref<1x4x256xf32, #tpu.memory_space<vmem>>, vector<1x4x16xf32>
    %153 = vector.shape_cast %152 : vector<1x4x16xf32> to vector<4x16xf32>
    %154 = arith.maximumf %138, %153 : vector<4x16xf32>
    %155 = arith.addf %139, %153 : vector<4x16xf32>
    %cst_108 = arith.constant dense<0xFF800000> : vector<4xf32>
    %156 = vector.multi_reduction <maximumf>, %153, %cst_108 [1] : vector<4x16xf32> to vector<4xf32>
    %157 = vector.shape_cast %156 : vector<4xf32> to vector<4x1xf32>
    %c0_109 = arith.constant 0 : index
    %c3_110 = arith.constant 3 : index
    %c8 = arith.constant 8 : index
    %158 = vector.load %arg15[%c0_109, %c3_110, %c8] : memref<2x10x16xf32, #tpu.memory_space<vmem>>, vector<1x4x1xf32>
    %159 = vector.shape_cast %158 : vector<1x4x1xf32> to vector<4x1xf32>
    %160 = vector.shape_cast %157 : vector<4x1xf32> to vector<1x4x1xf32>
    tpu.vector_store %arg15[%c0_109, %c3_110, %c8], %160 {strides = array<i32>} : memref<2x10x16xf32, #tpu.memory_space<vmem>>, vector<1x4x1xf32>,
    %cst_111 = arith.constant dense<0.000000e+00> : vector<4xf32>
    %161 = vector.multi_reduction <add>, %153, %cst_111 [1] : vector<4x16xf32> to vector<4xf32>
    %162 = vector.shape_cast %161 : vector<4xf32> to vector<4x1xf32>
    %cst_112 = arith.constant 6.250000e-02 : f32
    %163 = vector.broadcast %cst_112 : f32 to vector<4x1xf32>
    %164 = arith.mulf %162, %163 : vector<4x1xf32>
    %c1_113 = arith.constant 1 : index
    %c3_114 = arith.constant 3 : index
    %c8_115 = arith.constant 8 : index
    %165 = vector.load %arg15[%c1_113, %c3_114, %c8_115] : memref<2x10x16xf32, #tpu.memory_space<vmem>>, vector<1x4x1xf32>
    %166 = vector.shape_cast %165 : vector<1x4x1xf32> to vector<4x1xf32>
    %167 = vector.shape_cast %164 : vector<4x1xf32> to vector<1x4x1xf32>
    tpu.vector_store %arg15[%c1_113, %c3_114, %c8_115], %167 {strides = array<i32>} : memref<2x10x16xf32, #tpu.memory_space<vmem>>, vector<1x4x1xf32>,
    %c0_116 = arith.constant 0 : index
    %c0_117 = arith.constant 0 : index
    %c144 = arith.constant 144 : index
    %168 = vector.load %arg2[%c0_116, %c0_117, %c144] : memref<1x4x256xf32, #tpu.memory_space<vmem>>, vector<1x4x16xf32>
    %169 = vector.shape_cast %168 : vector<1x4x16xf32> to vector<4x16xf32>
    %170 = arith.maximumf %154, %169 : vector<4x16xf32>
    %171 = arith.addf %155, %169 : vector<4x16xf32>
    %cst_118 = arith.constant dense<0xFF800000> : vector<4xf32>
    %172 = vector.multi_reduction <maximumf>, %169, %cst_118 [1] : vector<4x16xf32> to vector<4xf32>
    %173 = vector.shape_cast %172 : vector<4xf32> to vector<4x1xf32>
    %c0_119 = arith.constant 0 : index
    %c3_120 = arith.constant 3 : index
    %c9 = arith.constant 9 : index
    %174 = vector.load %arg15[%c0_119, %c3_120, %c9] : memref<2x10x16xf32, #tpu.memory_space<vmem>>, vector<1x4x1xf32>
    %175 = vector.shape_cast %174 : vector<1x4x1xf32> to vector<4x1xf32>
    %176 = vector.shape_cast %173 : vector<4x1xf32> to vector<1x4x1xf32>
    tpu.vector_store %arg15[%c0_119, %c3_120, %c9], %176 {strides = array<i32>} : memref<2x10x16xf32, #tpu.memory_space<vmem>>, vector<1x4x1xf32>,
    %cst_121 = arith.constant dense<0.000000e+00> : vector<4xf32>
    %177 = vector.multi_reduction <add>, %169, %cst_121 [1] : vector<4x16xf32> to vector<4xf32>
    %178 = vector.shape_cast %177 : vector<4xf32> to vector<4x1xf32>
    %cst_122 = arith.constant 6.250000e-02 : f32
    %179 = vector.broadcast %cst_122 : f32 to vector<4x1xf32>
    %180 = arith.mulf %178, %179 : vector<4x1xf32>
    %c1_123 = arith.constant 1 : index
    %c3_124 = arith.constant 3 : index
    %c9_125 = arith.constant 9 : index
    %181 = vector.load %arg15[%c1_123, %c3_124, %c9_125] : memref<2x10x16xf32, #tpu.memory_space<vmem>>, vector<1x4x1xf32>
    %182 = vector.shape_cast %181 : vector<1x4x1xf32> to vector<4x1xf32>
    %183 = vector.shape_cast %180 : vector<4x1xf32> to vector<1x4x1xf32>
    tpu.vector_store %arg15[%c1_123, %c3_124, %c9_125], %183 {strides = array<i32>} : memref<2x10x16xf32, #tpu.memory_space<vmem>>, vector<1x4x1xf32>,
    %c0_126 = arith.constant 0 : index
    %c0_127 = arith.constant 0 : index
    %c160 = arith.constant 160 : index
    %184 = vector.load %arg2[%c0_126, %c0_127, %c160] : memref<1x4x256xf32, #tpu.memory_space<vmem>>, vector<1x4x16xf32>
    %185 = vector.shape_cast %184 : vector<1x4x16xf32> to vector<4x16xf32>
    %186 = arith.maximumf %170, %185 : vector<4x16xf32>
    %187 = arith.addf %171, %185 : vector<4x16xf32>
    %cst_128 = arith.constant dense<0xFF800000> : vector<4xf32>
    %188 = vector.multi_reduction <maximumf>, %185, %cst_128 [1] : vector<4x16xf32> to vector<4xf32>
    %189 = vector.shape_cast %188 : vector<4xf32> to vector<4x1xf32>
    %c0_129 = arith.constant 0 : index
    %c3_130 = arith.constant 3 : index
    %c10 = arith.constant 10 : index
    %190 = vector.load %arg15[%c0_129, %c3_130, %c10] : memref<2x10x16xf32, #tpu.memory_space<vmem>>, vector<1x4x1xf32>
    %191 = vector.shape_cast %190 : vector<1x4x1xf32> to vector<4x1xf32>
    %192 = vector.shape_cast %189 : vector<4x1xf32> to vector<1x4x1xf32>
    tpu.vector_store %arg15[%c0_129, %c3_130, %c10], %192 {strides = array<i32>} : memref<2x10x16xf32, #tpu.memory_space<vmem>>, vector<1x4x1xf32>,
    %cst_131 = arith.constant dense<0.000000e+00> : vector<4xf32>
    %193 = vector.multi_reduction <add>, %185, %cst_131 [1] : vector<4x16xf32> to vector<4xf32>
    %194 = vector.shape_cast %193 : vector<4xf32> to vector<4x1xf32>
    %cst_132 = arith.constant 6.250000e-02 : f32
    %195 = vector.broadcast %cst_132 : f32 to vector<4x1xf32>
    %196 = arith.mulf %194, %195 : vector<4x1xf32>
    %c1_133 = arith.constant 1 : index
    %c3_134 = arith.constant 3 : index
    %c10_135 = arith.constant 10 : index
    %197 = vector.load %arg15[%c1_133, %c3_134, %c10_135] : memref<2x10x16xf32, #tpu.memory_space<vmem>>, vector<1x4x1xf32>
    %198 = vector.shape_cast %197 : vector<1x4x1xf32> to vector<4x1xf32>
    %199 = vector.shape_cast %196 : vector<4x1xf32> to vector<1x4x1xf32>
    tpu.vector_store %arg15[%c1_133, %c3_134, %c10_135], %199 {strides = array<i32>} : memref<2x10x16xf32, #tpu.memory_space<vmem>>, vector<1x4x1xf32>,
    %c0_136 = arith.constant 0 : index
    %c0_137 = arith.constant 0 : index
    %c176 = arith.constant 176 : index
    %200 = vector.load %arg2[%c0_136, %c0_137, %c176] : memref<1x4x256xf32, #tpu.memory_space<vmem>>, vector<1x4x16xf32>
    %201 = vector.shape_cast %200 : vector<1x4x16xf32> to vector<4x16xf32>
    %202 = arith.maximumf %186, %201 : vector<4x16xf32>
    %203 = arith.addf %187, %201 : vector<4x16xf32>
    %cst_138 = arith.constant dense<0xFF800000> : vector<4xf32>
    %204 = vector.multi_reduction <maximumf>, %201, %cst_138 [1] : vector<4x16xf32> to vector<4xf32>
    %205 = vector.shape_cast %204 : vector<4xf32> to vector<4x1xf32>
    %c0_139 = arith.constant 0 : index
    %c3_140 = arith.constant 3 : index
    %c11 = arith.constant 11 : index
    %206 = vector.load %arg15[%c0_139, %c3_140, %c11] : memref<2x10x16xf32, #tpu.memory_space<vmem>>, vector<1x4x1xf32>
    %207 = vector.shape_cast %206 : vector<1x4x1xf32> to vector<4x1xf32>
    %208 = vector.shape_cast %205 : vector<4x1xf32> to vector<1x4x1xf32>
    tpu.vector_store %arg15[%c0_139, %c3_140, %c11], %208 {strides = array<i32>} : memref<2x10x16xf32, #tpu.memory_space<vmem>>, vector<1x4x1xf32>,
    %cst_141 = arith.constant dense<0.000000e+00> : vector<4xf32>
    %209 = vector.multi_reduction <add>, %201, %cst_141 [1] : vector<4x16xf32> to vector<4xf32>
    %210 = vector.shape_cast %209 : vector<4xf32> to vector<4x1xf32>
    %cst_142 = arith.constant 6.250000e-02 : f32
    %211 = vector.broadcast %cst_142 : f32 to vector<4x1xf32>
    %212 = arith.mulf %210, %211 : vector<4x1xf32>
    %c1_143 = arith.constant 1 : index
    %c3_144 = arith.constant 3 : index
    %c11_145 = arith.constant 11 : index
    %213 = vector.load %arg15[%c1_143, %c3_144, %c11_145] : memref<2x10x16xf32, #tpu.memory_space<vmem>>, vector<1x4x1xf32>
    %214 = vector.shape_cast %213 : vector<1x4x1xf32> to vector<4x1xf32>
    %215 = vector.shape_cast %212 : vector<4x1xf32> to vector<1x4x1xf32>
    tpu.vector_store %arg15[%c1_143, %c3_144, %c11_145], %215 {strides = array<i32>} : memref<2x10x16xf32, #tpu.memory_space<vmem>>, vector<1x4x1xf32>,
    %c0_146 = arith.constant 0 : index
    %c0_147 = arith.constant 0 : index
    %c192 = arith.constant 192 : index
    %216 = vector.load %arg2[%c0_146, %c0_147, %c192] : memref<1x4x256xf32, #tpu.memory_space<vmem>>, vector<1x4x16xf32>
    %217 = vector.shape_cast %216 : vector<1x4x16xf32> to vector<4x16xf32>
    %218 = arith.maximumf %202, %217 : vector<4x16xf32>
    %219 = arith.addf %203, %217 : vector<4x16xf32>
    %cst_148 = arith.constant dense<0xFF800000> : vector<4xf32>
    %220 = vector.multi_reduction <maximumf>, %217, %cst_148 [1] : vector<4x16xf32> to vector<4xf32>
    %221 = vector.shape_cast %220 : vector<4xf32> to vector<4x1xf32>
    %c0_149 = arith.constant 0 : index
    %c3_150 = arith.constant 3 : index
    %c12 = arith.constant 12 : index
    %222 = vector.load %arg15[%c0_149, %c3_150, %c12] : memref<2x10x16xf32, #tpu.memory_space<vmem>>, vector<1x4x1xf32>
    %223 = vector.shape_cast %222 : vector<1x4x1xf32> to vector<4x1xf32>
    %224 = vector.shape_cast %221 : vector<4x1xf32> to vector<1x4x1xf32>
    tpu.vector_store %arg15[%c0_149, %c3_150, %c12], %224 {strides = array<i32>} : memref<2x10x16xf32, #tpu.memory_space<vmem>>, vector<1x4x1xf32>,
    %cst_151 = arith.constant dense<0.000000e+00> : vector<4xf32>
    %225 = vector.multi_reduction <add>, %217, %cst_151 [1] : vector<4x16xf32> to vector<4xf32>
    %226 = vector.shape_cast %225 : vector<4xf32> to vector<4x1xf32>
    %cst_152 = arith.constant 6.250000e-02 : f32
    %227 = vector.broadcast %cst_152 : f32 to vector<4x1xf32>
    %228 = arith.mulf %226, %227 : vector<4x1xf32>
    %c1_153 = arith.constant 1 : index
    %c3_154 = arith.constant 3 : index
    %c12_155 = arith.constant 12 : index
    %229 = vector.load %arg15[%c1_153, %c3_154, %c12_155] : memref<2x10x16xf32, #tpu.memory_space<vmem>>, vector<1x4x1xf32>
    %230 = vector.shape_cast %229 : vector<1x4x1xf32> to vector<4x1xf32>
    %231 = vector.shape_cast %228 : vector<4x1xf32> to vector<1x4x1xf32>
    tpu.vector_store %arg15[%c1_153, %c3_154, %c12_155], %231 {strides = array<i32>} : memref<2x10x16xf32, #tpu.memory_space<vmem>>, vector<1x4x1xf32>,
    %c0_156 = arith.constant 0 : index
    %c0_157 = arith.constant 0 : index
    %c208 = arith.constant 208 : index
    %232 = vector.load %arg2[%c0_156, %c0_157, %c208] : memref<1x4x256xf32, #tpu.memory_space<vmem>>, vector<1x4x16xf32>
    %233 = vector.shape_cast %232 : vector<1x4x16xf32> to vector<4x16xf32>
    %234 = arith.maximumf %218, %233 : vector<4x16xf32>
    %235 = arith.addf %219, %233 : vector<4x16xf32>
    %cst_158 = arith.constant dense<0xFF800000> : vector<4xf32>
    %236 = vector.multi_reduction <maximumf>, %233, %cst_158 [1] : vector<4x16xf32> to vector<4xf32>
    %237 = vector.shape_cast %236 : vector<4xf32> to vector<4x1xf32>
    %c0_159 = arith.constant 0 : index
    %c3_160 = arith.constant 3 : index
    %c13 = arith.constant 13 : index
    %238 = vector.load %arg15[%c0_159, %c3_160, %c13] : memref<2x10x16xf32, #tpu.memory_space<vmem>>, vector<1x4x1xf32>
    %239 = vector.shape_cast %238 : vector<1x4x1xf32> to vector<4x1xf32>
    %240 = vector.shape_cast %237 : vector<4x1xf32> to vector<1x4x1xf32>
    tpu.vector_store %arg15[%c0_159, %c3_160, %c13], %240 {strides = array<i32>} : memref<2x10x16xf32, #tpu.memory_space<vmem>>, vector<1x4x1xf32>,
    %cst_161 = arith.constant dense<0.000000e+00> : vector<4xf32>
    %241 = vector.multi_reduction <add>, %233, %cst_161 [1] : vector<4x16xf32> to vector<4xf32>
    %242 = vector.shape_cast %241 : vector<4xf32> to vector<4x1xf32>
    %cst_162 = arith.constant 6.250000e-02 : f32
    %243 = vector.broadcast %cst_162 : f32 to vector<4x1xf32>
    %244 = arith.mulf %242, %243 : vector<4x1xf32>
    %c1_163 = arith.constant 1 : index
    %c3_164 = arith.constant 3 : index
    %c13_165 = arith.constant 13 : index
    %245 = vector.load %arg15[%c1_163, %c3_164, %c13_165] : memref<2x10x16xf32, #tpu.memory_space<vmem>>, vector<1x4x1xf32>
    %246 = vector.shape_cast %245 : vector<1x4x1xf32> to vector<4x1xf32>
    %247 = vector.shape_cast %244 : vector<4x1xf32> to vector<1x4x1xf32>
    tpu.vector_store %arg15[%c1_163, %c3_164, %c13_165], %247 {strides = array<i32>} : memref<2x10x16xf32, #tpu.memory_space<vmem>>, vector<1x4x1xf32>,
    %c0_166 = arith.constant 0 : index
    %c0_167 = arith.constant 0 : index
    %c224 = arith.constant 224 : index
    %248 = vector.load %arg2[%c0_166, %c0_167, %c224] : memref<1x4x256xf32, #tpu.memory_space<vmem>>, vector<1x4x16xf32>
    %249 = vector.shape_cast %248 : vector<1x4x16xf32> to vector<4x16xf32>
    %250 = arith.maximumf %234, %249 : vector<4x16xf32>
    %251 = arith.addf %235, %249 : vector<4x16xf32>
    %cst_168 = arith.constant dense<0xFF800000> : vector<4xf32>
    %252 = vector.multi_reduction <maximumf>, %249, %cst_168 [1] : vector<4x16xf32> to vector<4xf32>
    %253 = vector.shape_cast %252 : vector<4xf32> to vector<4x1xf32>
    %c0_169 = arith.constant 0 : index
    %c3_170 = arith.constant 3 : index
    %c14 = arith.constant 14 : index
    %254 = vector.load %arg15[%c0_169, %c3_170, %c14] : memref<2x10x16xf32, #tpu.memory_space<vmem>>, vector<1x4x1xf32>
    %255 = vector.shape_cast %254 : vector<1x4x1xf32> to vector<4x1xf32>
    %256 = vector.shape_cast %253 : vector<4x1xf32> to vector<1x4x1xf32>
    tpu.vector_store %arg15[%c0_169, %c3_170, %c14], %256 {strides = array<i32>} : memref<2x10x16xf32, #tpu.memory_space<vmem>>, vector<1x4x1xf32>,
    %cst_171 = arith.constant dense<0.000000e+00> : vector<4xf32>
    %257 = vector.multi_reduction <add>, %249, %cst_171 [1] : vector<4x16xf32> to vector<4xf32>
    %258 = vector.shape_cast %257 : vector<4xf32> to vector<4x1xf32>
    %cst_172 = arith.constant 6.250000e-02 : f32
    %259 = vector.broadcast %cst_172 : f32 to vector<4x1xf32>
    %260 = arith.mulf %258, %259 : vector<4x1xf32>
    %c1_173 = arith.constant 1 : index
    %c3_174 = arith.constant 3 : index
    %c14_175 = arith.constant 14 : index
    %261 = vector.load %arg15[%c1_173, %c3_174, %c14_175] : memref<2x10x16xf32, #tpu.memory_space<vmem>>, vector<1x4x1xf32>
    %262 = vector.shape_cast %261 : vector<1x4x1xf32> to vector<4x1xf32>
    %263 = vector.shape_cast %260 : vector<4x1xf32> to vector<1x4x1xf32>
    tpu.vector_store %arg15[%c1_173, %c3_174, %c14_175], %263 {strides = array<i32>} : memref<2x10x16xf32, #tpu.memory_space<vmem>>, vector<1x4x1xf32>,
    %c0_176 = arith.constant 0 : index
    %c0_177 = arith.constant 0 : index
    %c240 = arith.constant 240 : index
    %264 = vector.load %arg2[%c0_176, %c0_177, %c240] : memref<1x4x256xf32, #tpu.memory_space<vmem>>, vector<1x4x16xf32>
    %265 = vector.shape_cast %264 : vector<1x4x16xf32> to vector<4x16xf32>
    %266 = arith.maximumf %250, %265 : vector<4x16xf32>
    %267 = arith.addf %251, %265 : vector<4x16xf32>
    %cst_178 = arith.constant dense<0xFF800000> : vector<4xf32>
    %268 = vector.multi_reduction <maximumf>, %265, %cst_178 [1] : vector<4x16xf32> to vector<4xf32>
    %269 = vector.shape_cast %268 : vector<4xf32> to vector<4x1xf32>
    %c0_179 = arith.constant 0 : index
    %c3_180 = arith.constant 3 : index
    %c15 = arith.constant 15 : index
    %270 = vector.load %arg15[%c0_179, %c3_180, %c15] : memref<2x10x16xf32, #tpu.memory_space<vmem>>, vector<1x4x1xf32>
    %271 = vector.shape_cast %270 : vector<1x4x1xf32> to vector<4x1xf32>
    %272 = vector.shape_cast %269 : vector<4x1xf32> to vector<1x4x1xf32>
    tpu.vector_store %arg15[%c0_179, %c3_180, %c15], %272 {strides = array<i32>} : memref<2x10x16xf32, #tpu.memory_space<vmem>>, vector<1x4x1xf32>,
    %cst_181 = arith.constant dense<0.000000e+00> : vector<4xf32>
    %273 = vector.multi_reduction <add>, %265, %cst_181 [1] : vector<4x16xf32> to vector<4xf32>
    %274 = vector.shape_cast %273 : vector<4xf32> to vector<4x1xf32>
    %cst_182 = arith.constant 6.250000e-02 : f32
    %275 = vector.broadcast %cst_182 : f32 to vector<4x1xf32>
    %276 = arith.mulf %274, %275 : vector<4x1xf32>
    %c1_183 = arith.constant 1 : index
    %c3_184 = arith.constant 3 : index
    %c15_185 = arith.constant 15 : index
    %277 = vector.load %arg15[%c1_183, %c3_184, %c15_185] : memref<2x10x16xf32, #tpu.memory_space<vmem>>, vector<1x4x1xf32>
    %278 = vector.shape_cast %277 : vector<1x4x1xf32> to vector<4x1xf32>
    %279 = vector.shape_cast %276 : vector<4x1xf32> to vector<1x4x1xf32>
    tpu.vector_store %arg15[%c1_183, %c3_184, %c15_185], %279 {strides = array<i32>} : memref<2x10x16xf32, #tpu.memory_space<vmem>>, vector<1x4x1xf32>,
    %c0_186 = arith.constant 0 : index
    %c3_187 = arith.constant 3 : index
    %c0_188 = arith.constant 0 : index
    %280 = vector.load %arg14[%c0_186, %c3_187, %c0_188] : memref<2x10x16xf32, #tpu.memory_space<vmem>>, vector<1x4x16xf32>
    %281 = vector.shape_cast %280 : vector<1x4x16xf32> to vector<4x16xf32>
    %282 = vector.shape_cast %266 : vector<4x16xf32> to vector<1x4x16xf32>
    tpu.vector_store %arg14[%c0_186, %c3_187, %c0_188], %282 {strides = array<i32>} : memref<2x10x16xf32, #tpu.memory_space<vmem>>, vector<1x4x16xf32>,
    %cst_189 = arith.constant 6.250000e-02 : f32
    %283 = vector.broadcast %cst_189 : f32 to vector<4x16xf32>
    %284 = arith.mulf %267, %283 : vector<4x16xf32>
    %c1_190 = arith.constant 1 : index
    %c3_191 = arith.constant 3 : index
    %c0_192 = arith.constant 0 : index
    %285 = vector.load %arg14[%c1_190, %c3_191, %c0_192] : memref<2x10x16xf32, #tpu.memory_space<vmem>>, vector<1x4x16xf32>
    %286 = vector.shape_cast %285 : vector<1x4x16xf32> to vector<4x16xf32>
    %287 = vector.shape_cast %284 : vector<4x16xf32> to vector<1x4x16xf32>
    tpu.vector_store %arg14[%c1_190, %c3_191, %c0_192], %287 {strides = array<i32>} : memref<2x10x16xf32, #tpu.memory_space<vmem>>, vector<1x4x16xf32>,
    %cst_193 = arith.constant 0.000000e+00 : f32
    %288 = vector.broadcast %cst_193 : f32 to vector<4x16xf32>
    %c0_194 = arith.constant 0 : index
    %c0_195 = arith.constant 0 : index
    %c0_196 = arith.constant 0 : index
    %289 = vector.load %arg14[%c0_194, %c0_195, %c0_196] : memref<2x10x16xf32, #tpu.memory_space<vmem>>, vector<1x4x16xf32>
    %290 = vector.shape_cast %289 : vector<1x4x16xf32> to vector<4x16xf32>
    %c0_197 = arith.constant 0 : index
    %c0_198 = arith.constant 0 : index
    %c0_199 = arith.constant 0 : index
    %291 = vector.load %arg10[%c0_197, %c0_198, %c0_199] : memref<14x16x16xf32, #tpu.memory_space<vmem>>, vector<1x16x16xf32>
    %292 = vector.shape_cast %291 : vector<1x16x16xf32> to vector<16x16xf32>
    %cst_200 = arith.constant dense<0.000000e+00> : vector<4x16xf32>
    %293 = tpu.matmul %290, %292, %cst_200 {dimension_numbers = #tpu.dot_dimension_numbers<[1], [0], [0], [1], [0, 0, 1, 1], [], []>} : vector<4x16xf32>, vector<16x16xf32>, vector<4x16xf32> -> vector<4x16xf32>
    %294 = arith.addf %288, %293 : vector<4x16xf32>
    %c0_201 = arith.constant 0 : index
    %c1_202 = arith.constant 1 : index
    %c0_203 = arith.constant 0 : index
    %295 = vector.load %arg14[%c0_201, %c1_202, %c0_203] : memref<2x10x16xf32, #tpu.memory_space<vmem>>, vector<1x4x16xf32>
    %296 = vector.shape_cast %295 : vector<1x4x16xf32> to vector<4x16xf32>
    %c1_204 = arith.constant 1 : index
    %c0_205 = arith.constant 0 : index
    %c0_206 = arith.constant 0 : index
    %297 = vector.load %arg10[%c1_204, %c0_205, %c0_206] : memref<14x16x16xf32, #tpu.memory_space<vmem>>, vector<1x16x16xf32>
    %298 = vector.shape_cast %297 : vector<1x16x16xf32> to vector<16x16xf32>
    %cst_207 = arith.constant dense<0.000000e+00> : vector<4x16xf32>
    %299 = tpu.matmul %296, %298, %cst_207 {dimension_numbers = #tpu.dot_dimension_numbers<[1], [0], [0], [1], [0, 0, 1, 1], [], []>} : vector<4x16xf32>, vector<16x16xf32>, vector<4x16xf32> -> vector<4x16xf32>
    %300 = arith.addf %294, %299 : vector<4x16xf32>
    %c0_208 = arith.constant 0 : index
    %c2_209 = arith.constant 2 : index
    %c0_210 = arith.constant 0 : index
    %301 = vector.load %arg14[%c0_208, %c2_209, %c0_210] : memref<2x10x16xf32, #tpu.memory_space<vmem>>, vector<1x4x16xf32>
    %302 = vector.shape_cast %301 : vector<1x4x16xf32> to vector<4x16xf32>
    %c2_211 = arith.constant 2 : index
    %c0_212 = arith.constant 0 : index
    %c0_213 = arith.constant 0 : index
    %303 = vector.load %arg10[%c2_211, %c0_212, %c0_213] : memref<14x16x16xf32, #tpu.memory_space<vmem>>, vector<1x16x16xf32>
    %304 = vector.shape_cast %303 : vector<1x16x16xf32> to vector<16x16xf32>
    %cst_214 = arith.constant dense<0.000000e+00> : vector<4x16xf32>
    %305 = tpu.matmul %302, %304, %cst_214 {dimension_numbers = #tpu.dot_dimension_numbers<[1], [0], [0], [1], [0, 0, 1, 1], [], []>} : vector<4x16xf32>, vector<16x16xf32>, vector<4x16xf32> -> vector<4x16xf32>
    %306 = arith.addf %300, %305 : vector<4x16xf32>
    %c0_215 = arith.constant 0 : index
    %c3_216 = arith.constant 3 : index
    %c0_217 = arith.constant 0 : index
    %307 = vector.load %arg14[%c0_215, %c3_216, %c0_217] : memref<2x10x16xf32, #tpu.memory_space<vmem>>, vector<1x4x16xf32>
    %308 = vector.shape_cast %307 : vector<1x4x16xf32> to vector<4x16xf32>
    %c3_218 = arith.constant 3 : index
    %c0_219 = arith.constant 0 : index
    %c0_220 = arith.constant 0 : index
    %309 = vector.load %arg10[%c3_218, %c0_219, %c0_220] : memref<14x16x16xf32, #tpu.memory_space<vmem>>, vector<1x16x16xf32>
    %310 = vector.shape_cast %309 : vector<1x16x16xf32> to vector<16x16xf32>
    %cst_221 = arith.constant dense<0.000000e+00> : vector<4x16xf32>
    %311 = tpu.matmul %308, %310, %cst_221 {dimension_numbers = #tpu.dot_dimension_numbers<[1], [0], [0], [1], [0, 0, 1, 1], [], []>} : vector<4x16xf32>, vector<16x16xf32>, vector<4x16xf32> -> vector<4x16xf32>
    %312 = arith.addf %306, %311 : vector<4x16xf32>
    %c0_222 = arith.constant 0 : index
    %c4_223 = arith.constant 4 : index
    %c0_224 = arith.constant 0 : index
    %313 = vector.load %arg14[%c0_222, %c4_223, %c0_224] : memref<2x10x16xf32, #tpu.memory_space<vmem>>, vector<1x4x16xf32>
    %314 = vector.shape_cast %313 : vector<1x4x16xf32> to vector<4x16xf32>
    %c4_225 = arith.constant 4 : index
    %c0_226 = arith.constant 0 : index
    %c0_227 = arith.constant 0 : index
    %315 = vector.load %arg10[%c4_225, %c0_226, %c0_227] : memref<14x16x16xf32, #tpu.memory_space<vmem>>, vector<1x16x16xf32>
    %316 = vector.shape_cast %315 : vector<1x16x16xf32> to vector<16x16xf32>
    %cst_228 = arith.constant dense<0.000000e+00> : vector<4x16xf32>
    %317 = tpu.matmul %314, %316, %cst_228 {dimension_numbers = #tpu.dot_dimension_numbers<[1], [0], [0], [1], [0, 0, 1, 1], [], []>} : vector<4x16xf32>, vector<16x16xf32>, vector<4x16xf32> -> vector<4x16xf32>
    %318 = arith.addf %312, %317 : vector<4x16xf32>
    %c0_229 = arith.constant 0 : index
    %c5_230 = arith.constant 5 : index
    %c0_231 = arith.constant 0 : index
    %319 = vector.load %arg14[%c0_229, %c5_230, %c0_231] : memref<2x10x16xf32, #tpu.memory_space<vmem>>, vector<1x4x16xf32>
    %320 = vector.shape_cast %319 : vector<1x4x16xf32> to vector<4x16xf32>
    %c5_232 = arith.constant 5 : index
    %c0_233 = arith.constant 0 : index
    %c0_234 = arith.constant 0 : index
    %321 = vector.load %arg10[%c5_232, %c0_233, %c0_234] : memref<14x16x16xf32, #tpu.memory_space<vmem>>, vector<1x16x16xf32>
    %322 = vector.shape_cast %321 : vector<1x16x16xf32> to vector<16x16xf32>
    %cst_235 = arith.constant dense<0.000000e+00> : vector<4x16xf32>
    %323 = tpu.matmul %320, %322, %cst_235 {dimension_numbers = #tpu.dot_dimension_numbers<[1], [0], [0], [1], [0, 0, 1, 1], [], []>} : vector<4x16xf32>, vector<16x16xf32>, vector<4x16xf32> -> vector<4x16xf32>
    %324 = arith.addf %318, %323 : vector<4x16xf32>
    %c0_236 = arith.constant 0 : index
    %c6_237 = arith.constant 6 : index
    %c0_238 = arith.constant 0 : index
    %325 = vector.load %arg14[%c0_236, %c6_237, %c0_238] : memref<2x10x16xf32, #tpu.memory_space<vmem>>, vector<1x4x16xf32>
    %326 = vector.shape_cast %325 : vector<1x4x16xf32> to vector<4x16xf32>
    %c6_239 = arith.constant 6 : index
    %c0_240 = arith.constant 0 : index
    %c0_241 = arith.constant 0 : index
    %327 = vector.load %arg10[%c6_239, %c0_240, %c0_241] : memref<14x16x16xf32, #tpu.memory_space<vmem>>, vector<1x16x16xf32>
    %328 = vector.shape_cast %327 : vector<1x16x16xf32> to vector<16x16xf32>
    %cst_242 = arith.constant dense<0.000000e+00> : vector<4x16xf32>
    %329 = tpu.matmul %326, %328, %cst_242 {dimension_numbers = #tpu.dot_dimension_numbers<[1], [0], [0], [1], [0, 0, 1, 1], [], []>} : vector<4x16xf32>, vector<16x16xf32>, vector<4x16xf32> -> vector<4x16xf32>
    %330 = arith.addf %324, %329 : vector<4x16xf32>
    %c1_243 = arith.constant 1 : index
    %c0_244 = arith.constant 0 : index
    %c0_245 = arith.constant 0 : index
    %331 = vector.load %arg14[%c1_243, %c0_244, %c0_245] : memref<2x10x16xf32, #tpu.memory_space<vmem>>, vector<1x4x16xf32>
    %332 = vector.shape_cast %331 : vector<1x4x16xf32> to vector<4x16xf32>
    %c7_246 = arith.constant 7 : index
    %c0_247 = arith.constant 0 : index
    %c0_248 = arith.constant 0 : index
    %333 = vector.load %arg10[%c7_246, %c0_247, %c0_248] : memref<14x16x16xf32, #tpu.memory_space<vmem>>, vector<1x16x16xf32>
    %334 = vector.shape_cast %333 : vector<1x16x16xf32> to vector<16x16xf32>
    %cst_249 = arith.constant dense<0.000000e+00> : vector<4x16xf32>
    %335 = tpu.matmul %332, %334, %cst_249 {dimension_numbers = #tpu.dot_dimension_numbers<[1], [0], [0], [1], [0, 0, 1, 1], [], []>} : vector<4x16xf32>, vector<16x16xf32>, vector<4x16xf32> -> vector<4x16xf32>
    %336 = arith.addf %330, %335 : vector<4x16xf32>
    %c1_250 = arith.constant 1 : index
    %c1_251 = arith.constant 1 : index
    %c0_252 = arith.constant 0 : index
    %337 = vector.load %arg14[%c1_250, %c1_251, %c0_252] : memref<2x10x16xf32, #tpu.memory_space<vmem>>, vector<1x4x16xf32>
    %338 = vector.shape_cast %337 : vector<1x4x16xf32> to vector<4x16xf32>
    %c8_253 = arith.constant 8 : index
    %c0_254 = arith.constant 0 : index
    %c0_255 = arith.constant 0 : index
    %339 = vector.load %arg10[%c8_253, %c0_254, %c0_255] : memref<14x16x16xf32, #tpu.memory_space<vmem>>, vector<1x16x16xf32>
    %340 = vector.shape_cast %339 : vector<1x16x16xf32> to vector<16x16xf32>
    %cst_256 = arith.constant dense<0.000000e+00> : vector<4x16xf32>
    %341 = tpu.matmul %338, %340, %cst_256 {dimension_numbers = #tpu.dot_dimension_numbers<[1], [0], [0], [1], [0, 0, 1, 1], [], []>} : vector<4x16xf32>, vector<16x16xf32>, vector<4x16xf32> -> vector<4x16xf32>
    %342 = arith.addf %336, %341 : vector<4x16xf32>
    %c1_257 = arith.constant 1 : index
    %c2_258 = arith.constant 2 : index
    %c0_259 = arith.constant 0 : index
    %343 = vector.load %arg14[%c1_257, %c2_258, %c0_259] : memref<2x10x16xf32, #tpu.memory_space<vmem>>, vector<1x4x16xf32>
    %344 = vector.shape_cast %343 : vector<1x4x16xf32> to vector<4x16xf32>
    %c9_260 = arith.constant 9 : index
    %c0_261 = arith.constant 0 : index
    %c0_262 = arith.constant 0 : index
    %345 = vector.load %arg10[%c9_260, %c0_261, %c0_262] : memref<14x16x16xf32, #tpu.memory_space<vmem>>, vector<1x16x16xf32>
    %346 = vector.shape_cast %345 : vector<1x16x16xf32> to vector<16x16xf32>
    %cst_263 = arith.constant dense<0.000000e+00> : vector<4x16xf32>
    %347 = tpu.matmul %344, %346, %cst_263 {dimension_numbers = #tpu.dot_dimension_numbers<[1], [0], [0], [1], [0, 0, 1, 1], [], []>} : vector<4x16xf32>, vector<16x16xf32>, vector<4x16xf32> -> vector<4x16xf32>
    %348 = arith.addf %342, %347 : vector<4x16xf32>
    %c1_264 = arith.constant 1 : index
    %c3_265 = arith.constant 3 : index
    %c0_266 = arith.constant 0 : index
    %349 = vector.load %arg14[%c1_264, %c3_265, %c0_266] : memref<2x10x16xf32, #tpu.memory_space<vmem>>, vector<1x4x16xf32>
    %350 = vector.shape_cast %349 : vector<1x4x16xf32> to vector<4x16xf32>
    %c10_267 = arith.constant 10 : index
    %c0_268 = arith.constant 0 : index
    %c0_269 = arith.constant 0 : index
    %351 = vector.load %arg10[%c10_267, %c0_268, %c0_269] : memref<14x16x16xf32, #tpu.memory_space<vmem>>, vector<1x16x16xf32>
    %352 = vector.shape_cast %351 : vector<1x16x16xf32> to vector<16x16xf32>
    %cst_270 = arith.constant dense<0.000000e+00> : vector<4x16xf32>
    %353 = tpu.matmul %350, %352, %cst_270 {dimension_numbers = #tpu.dot_dimension_numbers<[1], [0], [0], [1], [0, 0, 1, 1], [], []>} : vector<4x16xf32>, vector<16x16xf32>, vector<4x16xf32> -> vector<4x16xf32>
    %354 = arith.addf %348, %353 : vector<4x16xf32>
    %c1_271 = arith.constant 1 : index
    %c4_272 = arith.constant 4 : index
    %c0_273 = arith.constant 0 : index
    %355 = vector.load %arg14[%c1_271, %c4_272, %c0_273] : memref<2x10x16xf32, #tpu.memory_space<vmem>>, vector<1x4x16xf32>
    %356 = vector.shape_cast %355 : vector<1x4x16xf32> to vector<4x16xf32>
    %c11_274 = arith.constant 11 : index
    %c0_275 = arith.constant 0 : index
    %c0_276 = arith.constant 0 : index
    %357 = vector.load %arg10[%c11_274, %c0_275, %c0_276] : memref<14x16x16xf32, #tpu.memory_space<vmem>>, vector<1x16x16xf32>
    %358 = vector.shape_cast %357 : vector<1x16x16xf32> to vector<16x16xf32>
    %cst_277 = arith.constant dense<0.000000e+00> : vector<4x16xf32>
    %359 = tpu.matmul %356, %358, %cst_277 {dimension_numbers = #tpu.dot_dimension_numbers<[1], [0], [0], [1], [0, 0, 1, 1], [], []>} : vector<4x16xf32>, vector<16x16xf32>, vector<4x16xf32> -> vector<4x16xf32>
    %360 = arith.addf %354, %359 : vector<4x16xf32>
    %c1_278 = arith.constant 1 : index
    %c5_279 = arith.constant 5 : index
    %c0_280 = arith.constant 0 : index
    %361 = vector.load %arg14[%c1_278, %c5_279, %c0_280] : memref<2x10x16xf32, #tpu.memory_space<vmem>>, vector<1x4x16xf32>
    %362 = vector.shape_cast %361 : vector<1x4x16xf32> to vector<4x16xf32>
    %c12_281 = arith.constant 12 : index
    %c0_282 = arith.constant 0 : index
    %c0_283 = arith.constant 0 : index
    %363 = vector.load %arg10[%c12_281, %c0_282, %c0_283] : memref<14x16x16xf32, #tpu.memory_space<vmem>>, vector<1x16x16xf32>
    %364 = vector.shape_cast %363 : vector<1x16x16xf32> to vector<16x16xf32>
    %cst_284 = arith.constant dense<0.000000e+00> : vector<4x16xf32>
    %365 = tpu.matmul %362, %364, %cst_284 {dimension_numbers = #tpu.dot_dimension_numbers<[1], [0], [0], [1], [0, 0, 1, 1], [], []>} : vector<4x16xf32>, vector<16x16xf32>, vector<4x16xf32> -> vector<4x16xf32>
    %366 = arith.addf %360, %365 : vector<4x16xf32>
    %c1_285 = arith.constant 1 : index
    %c6_286 = arith.constant 6 : index
    %c0_287 = arith.constant 0 : index
    %367 = vector.load %arg14[%c1_285, %c6_286, %c0_287] : memref<2x10x16xf32, #tpu.memory_space<vmem>>, vector<1x4x16xf32>
    %368 = vector.shape_cast %367 : vector<1x4x16xf32> to vector<4x16xf32>
    %c13_288 = arith.constant 13 : index
    %c0_289 = arith.constant 0 : index
    %c0_290 = arith.constant 0 : index
    %369 = vector.load %arg10[%c13_288, %c0_289, %c0_290] : memref<14x16x16xf32, #tpu.memory_space<vmem>>, vector<1x16x16xf32>
    %370 = vector.shape_cast %369 : vector<1x16x16xf32> to vector<16x16xf32>
    %cst_291 = arith.constant dense<0.000000e+00> : vector<4x16xf32>
    %371 = tpu.matmul %368, %370, %cst_291 {dimension_numbers = #tpu.dot_dimension_numbers<[1], [0], [0], [1], [0, 0, 1, 1], [], []>} : vector<4x16xf32>, vector<16x16xf32>, vector<4x16xf32> -> vector<4x16xf32>
    %372 = arith.addf %366, %371 : vector<4x16xf32>
    %c0_292 = arith.constant 0 : index
    %373 = memref.load %arg1[%c0_292] : memref<11xf32, #tpu.memory_space<smem>>
    %374 = vector.broadcast %373 : f32 to vector<4x16xf32>
    %375 = arith.mulf %372, %374 : vector<4x16xf32>
    %c1_293 = arith.constant 1 : index
    %376 = memref.load %arg1[%c1_293] : memref<11xf32, #tpu.memory_space<smem>>
    %377 = vector.broadcast %376 : f32 to vector<4x16xf32>
    %378 = arith.addf %375, %377 : vector<4x16xf32>
    %379 = arith.negf %378 : vector<4x16xf32>
    %380 = math.exp %379 : vector<4x16xf32>
    %cst_294 = arith.constant 1.000000e+00 : f32
    %381 = vector.broadcast %cst_294 : f32 to vector<4x16xf32>
    %382 = arith.addf %381, %380 : vector<4x16xf32>
    %383 = arith.divf %381, %382 : vector<4x16xf32>
    %c0_295 = arith.constant 0 : index
    %c0_296 = arith.constant 0 : index
    %c0_297 = arith.constant 0 : index
    %384 = vector.load %arg2[%c0_295, %c0_296, %c0_297] : memref<1x4x256xf32, #tpu.memory_space<vmem>>, vector<1x4x16xf32>
    %385 = vector.shape_cast %384 : vector<1x4x16xf32> to vector<4x16xf32>
    %386 = arith.mulf %385, %383 : vector<4x16xf32>
    %c0_298 = arith.constant 0 : index
    %c0_299 = arith.constant 0 : index
    %387 = vector.load %arg16[%c0_298, %c0_299] : memref<4x256xf32, #tpu.memory_space<vmem>>, vector<4x16xf32>
    tpu.vector_store %arg16[%c0_298, %c0_299], %386 {strides = array<i32>} : memref<4x256xf32, #tpu.memory_space<vmem>>, vector<4x16xf32>,
    %c0_300 = arith.constant 0 : index
    %c0_301 = arith.constant 0 : index
    %c16_302 = arith.constant 16 : index
    %388 = vector.load %arg2[%c0_300, %c0_301, %c16_302] : memref<1x4x256xf32, #tpu.memory_space<vmem>>, vector<1x4x16xf32>
    %389 = vector.shape_cast %388 : vector<1x4x16xf32> to vector<4x16xf32>
    %390 = arith.mulf %389, %383 : vector<4x16xf32>
    %c0_303 = arith.constant 0 : index
    %c16_304 = arith.constant 16 : index
    %391 = vector.load %arg16[%c0_303, %c16_304] : memref<4x256xf32, #tpu.memory_space<vmem>>, vector<4x16xf32>
    tpu.vector_store %arg16[%c0_303, %c16_304], %390 {strides = array<i32>} : memref<4x256xf32, #tpu.memory_space<vmem>>, vector<4x16xf32>,
    %c0_305 = arith.constant 0 : index
    %c0_306 = arith.constant 0 : index
    %c32_307 = arith.constant 32 : index
    %392 = vector.load %arg2[%c0_305, %c0_306, %c32_307] : memref<1x4x256xf32, #tpu.memory_space<vmem>>, vector<1x4x16xf32>
    %393 = vector.shape_cast %392 : vector<1x4x16xf32> to vector<4x16xf32>
    %394 = arith.mulf %393, %383 : vector<4x16xf32>
    %c0_308 = arith.constant 0 : index
    %c32_309 = arith.constant 32 : index
    %395 = vector.load %arg16[%c0_308, %c32_309] : memref<4x256xf32, #tpu.memory_space<vmem>>, vector<4x16xf32>
    tpu.vector_store %arg16[%c0_308, %c32_309], %394 {strides = array<i32>} : memref<4x256xf32, #tpu.memory_space<vmem>>, vector<4x16xf32>,
    %c0_310 = arith.constant 0 : index
    %c0_311 = arith.constant 0 : index
    %c48_312 = arith.constant 48 : index
    %396 = vector.load %arg2[%c0_310, %c0_311, %c48_312] : memref<1x4x256xf32, #tpu.memory_space<vmem>>, vector<1x4x16xf32>
    %397 = vector.shape_cast %396 : vector<1x4x16xf32> to vector<4x16xf32>
    %398 = arith.mulf %397, %383 : vector<4x16xf32>
    %c0_313 = arith.constant 0 : index
    %c48_314 = arith.constant 48 : index
    %399 = vector.load %arg16[%c0_313, %c48_314] : memref<4x256xf32, #tpu.memory_space<vmem>>, vector<4x16xf32>
    tpu.vector_store %arg16[%c0_313, %c48_314], %398 {strides = array<i32>} : memref<4x256xf32, #tpu.memory_space<vmem>>, vector<4x16xf32>,
    %c0_315 = arith.constant 0 : index
    %c0_316 = arith.constant 0 : index
    %c64_317 = arith.constant 64 : index
    %400 = vector.load %arg2[%c0_315, %c0_316, %c64_317] : memref<1x4x256xf32, #tpu.memory_space<vmem>>, vector<1x4x16xf32>
    %401 = vector.shape_cast %400 : vector<1x4x16xf32> to vector<4x16xf32>
    %402 = arith.mulf %401, %383 : vector<4x16xf32>
    %c0_318 = arith.constant 0 : index
    %c64_319 = arith.constant 64 : index
    %403 = vector.load %arg16[%c0_318, %c64_319] : memref<4x256xf32, #tpu.memory_space<vmem>>, vector<4x16xf32>
    tpu.vector_store %arg16[%c0_318, %c64_319], %402 {strides = array<i32>} : memref<4x256xf32, #tpu.memory_space<vmem>>, vector<4x16xf32>,
    %c0_320 = arith.constant 0 : index
    %c0_321 = arith.constant 0 : index
    %c80_322 = arith.constant 80 : index
    %404 = vector.load %arg2[%c0_320, %c0_321, %c80_322] : memref<1x4x256xf32, #tpu.memory_space<vmem>>, vector<1x4x16xf32>
    %405 = vector.shape_cast %404 : vector<1x4x16xf32> to vector<4x16xf32>
    %406 = arith.mulf %405, %383 : vector<4x16xf32>
    %c0_323 = arith.constant 0 : index
    %c80_324 = arith.constant 80 : index
    %407 = vector.load %arg16[%c0_323, %c80_324] : memref<4x256xf32, #tpu.memory_space<vmem>>, vector<4x16xf32>
    tpu.vector_store %arg16[%c0_323, %c80_324], %406 {strides = array<i32>} : memref<4x256xf32, #tpu.memory_space<vmem>>, vector<4x16xf32>,
    %c0_325 = arith.constant 0 : index
    %c0_326 = arith.constant 0 : index
    %c96_327 = arith.constant 96 : index
    %408 = vector.load %arg2[%c0_325, %c0_326, %c96_327] : memref<1x4x256xf32, #tpu.memory_space<vmem>>, vector<1x4x16xf32>
    %409 = vector.shape_cast %408 : vector<1x4x16xf32> to vector<4x16xf32>
    %410 = arith.mulf %409, %383 : vector<4x16xf32>
    %c0_328 = arith.constant 0 : index
    %c96_329 = arith.constant 96 : index
    %411 = vector.load %arg16[%c0_328, %c96_329] : memref<4x256xf32, #tpu.memory_space<vmem>>, vector<4x16xf32>
    tpu.vector_store %arg16[%c0_328, %c96_329], %410 {strides = array<i32>} : memref<4x256xf32, #tpu.memory_space<vmem>>, vector<4x16xf32>,
    %c0_330 = arith.constant 0 : index
    %c0_331 = arith.constant 0 : index
    %c112_332 = arith.constant 112 : index
    %412 = vector.load %arg2[%c0_330, %c0_331, %c112_332] : memref<1x4x256xf32, #tpu.memory_space<vmem>>, vector<1x4x16xf32>
    %413 = vector.shape_cast %412 : vector<1x4x16xf32> to vector<4x16xf32>
    %414 = arith.mulf %413, %383 : vector<4x16xf32>
    %c0_333 = arith.constant 0 : index
    %c112_334 = arith.constant 112 : index
    %415 = vector.load %arg16[%c0_333, %c112_334] : memref<4x256xf32, #tpu.memory_space<vmem>>, vector<4x16xf32>
    tpu.vector_store %arg16[%c0_333, %c112_334], %414 {strides = array<i32>} : memref<4x256xf32, #tpu.memory_space<vmem>>, vector<4x16xf32>,
    %c0_335 = arith.constant 0 : index
    %c0_336 = arith.constant 0 : index
    %c128_337 = arith.constant 128 : index
    %416 = vector.load %arg2[%c0_335, %c0_336, %c128_337] : memref<1x4x256xf32, #tpu.memory_space<vmem>>, vector<1x4x16xf32>
    %417 = vector.shape_cast %416 : vector<1x4x16xf32> to vector<4x16xf32>
    %418 = arith.mulf %417, %383 : vector<4x16xf32>
    %c0_338 = arith.constant 0 : index
    %c128_339 = arith.constant 128 : index
    %419 = vector.load %arg16[%c0_338, %c128_339] : memref<4x256xf32, #tpu.memory_space<vmem>>, vector<4x16xf32>
    tpu.vector_store %arg16[%c0_338, %c128_339], %418 {strides = array<i32>} : memref<4x256xf32, #tpu.memory_space<vmem>>, vector<4x16xf32>,
    %c0_340 = arith.constant 0 : index
    %c0_341 = arith.constant 0 : index
    %c144_342 = arith.constant 144 : index
    %420 = vector.load %arg2[%c0_340, %c0_341, %c144_342] : memref<1x4x256xf32, #tpu.memory_space<vmem>>, vector<1x4x16xf32>
    %421 = vector.shape_cast %420 : vector<1x4x16xf32> to vector<4x16xf32>
    %422 = arith.mulf %421, %383 : vector<4x16xf32>
    %c0_343 = arith.constant 0 : index
    %c144_344 = arith.constant 144 : index
    %423 = vector.load %arg16[%c0_343, %c144_344] : memref<4x256xf32, #tpu.memory_space<vmem>>, vector<4x16xf32>
    tpu.vector_store %arg16[%c0_343, %c144_344], %422 {strides = array<i32>} : memref<4x256xf32, #tpu.memory_space<vmem>>, vector<4x16xf32>,
    %c0_345 = arith.constant 0 : index
    %c0_346 = arith.constant 0 : index
    %c160_347 = arith.constant 160 : index
    %424 = vector.load %arg2[%c0_345, %c0_346, %c160_347] : memref<1x4x256xf32, #tpu.memory_space<vmem>>, vector<1x4x16xf32>
    %425 = vector.shape_cast %424 : vector<1x4x16xf32> to vector<4x16xf32>
    %426 = arith.mulf %425, %383 : vector<4x16xf32>
    %c0_348 = arith.constant 0 : index
    %c160_349 = arith.constant 160 : index
    %427 = vector.load %arg16[%c0_348, %c160_349] : memref<4x256xf32, #tpu.memory_space<vmem>>, vector<4x16xf32>
    tpu.vector_store %arg16[%c0_348, %c160_349], %426 {strides = array<i32>} : memref<4x256xf32, #tpu.memory_space<vmem>>, vector<4x16xf32>,
    %c0_350 = arith.constant 0 : index
    %c0_351 = arith.constant 0 : index
    %c176_352 = arith.constant 176 : index
    %428 = vector.load %arg2[%c0_350, %c0_351, %c176_352] : memref<1x4x256xf32, #tpu.memory_space<vmem>>, vector<1x4x16xf32>
    %429 = vector.shape_cast %428 : vector<1x4x16xf32> to vector<4x16xf32>
    %430 = arith.mulf %429, %383 : vector<4x16xf32>
    %c0_353 = arith.constant 0 : index
    %c176_354 = arith.constant 176 : index
    %431 = vector.load %arg16[%c0_353, %c176_354] : memref<4x256xf32, #tpu.memory_space<vmem>>, vector<4x16xf32>
    tpu.vector_store %arg16[%c0_353, %c176_354], %430 {strides = array<i32>} : memref<4x256xf32, #tpu.memory_space<vmem>>, vector<4x16xf32>,
    %c0_355 = arith.constant 0 : index
    %c0_356 = arith.constant 0 : index
    %c192_357 = arith.constant 192 : index
    %432 = vector.load %arg2[%c0_355, %c0_356, %c192_357] : memref<1x4x256xf32, #tpu.memory_space<vmem>>, vector<1x4x16xf32>
    %433 = vector.shape_cast %432 : vector<1x4x16xf32> to vector<4x16xf32>
    %434 = arith.mulf %433, %383 : vector<4x16xf32>
    %c0_358 = arith.constant 0 : index
    %c192_359 = arith.constant 192 : index
    %435 = vector.load %arg16[%c0_358, %c192_359] : memref<4x256xf32, #tpu.memory_space<vmem>>, vector<4x16xf32>
    tpu.vector_store %arg16[%c0_358, %c192_359], %434 {strides = array<i32>} : memref<4x256xf32, #tpu.memory_space<vmem>>, vector<4x16xf32>,
    %c0_360 = arith.constant 0 : index
    %c0_361 = arith.constant 0 : index
    %c208_362 = arith.constant 208 : index
    %436 = vector.load %arg2[%c0_360, %c0_361, %c208_362] : memref<1x4x256xf32, #tpu.memory_space<vmem>>, vector<1x4x16xf32>
    %437 = vector.shape_cast %436 : vector<1x4x16xf32> to vector<4x16xf32>
    %438 = arith.mulf %437, %383 : vector<4x16xf32>
    %c0_363 = arith.constant 0 : index
    %c208_364 = arith.constant 208 : index
    %439 = vector.load %arg16[%c0_363, %c208_364] : memref<4x256xf32, #tpu.memory_space<vmem>>, vector<4x16xf32>
    tpu.vector_store %arg16[%c0_363, %c208_364], %438 {strides = array<i32>} : memref<4x256xf32, #tpu.memory_space<vmem>>, vector<4x16xf32>,
    %c0_365 = arith.constant 0 : index
    %c0_366 = arith.constant 0 : index
    %c224_367 = arith.constant 224 : index
    %440 = vector.load %arg2[%c0_365, %c0_366, %c224_367] : memref<1x4x256xf32, #tpu.memory_space<vmem>>, vector<1x4x16xf32>
    %441 = vector.shape_cast %440 : vector<1x4x16xf32> to vector<4x16xf32>
    %442 = arith.mulf %441, %383 : vector<4x16xf32>
    %c0_368 = arith.constant 0 : index
    %c224_369 = arith.constant 224 : index
    %443 = vector.load %arg16[%c0_368, %c224_369] : memref<4x256xf32, #tpu.memory_space<vmem>>, vector<4x16xf32>
    tpu.vector_store %arg16[%c0_368, %c224_369], %442 {strides = array<i32>} : memref<4x256xf32, #tpu.memory_space<vmem>>, vector<4x16xf32>,
    %c0_370 = arith.constant 0 : index
    %c0_371 = arith.constant 0 : index
    %c240_372 = arith.constant 240 : index
    %444 = vector.load %arg2[%c0_370, %c0_371, %c240_372] : memref<1x4x256xf32, #tpu.memory_space<vmem>>, vector<1x4x16xf32>
    %445 = vector.shape_cast %444 : vector<1x4x16xf32> to vector<4x16xf32>
    %446 = arith.mulf %445, %383 : vector<4x16xf32>
    %c0_373 = arith.constant 0 : index
    %c240_374 = arith.constant 240 : index
    %447 = vector.load %arg16[%c0_373, %c240_374] : memref<4x256xf32, #tpu.memory_space<vmem>>, vector<4x16xf32>
    tpu.vector_store %arg16[%c0_373, %c240_374], %446 {strides = array<i32>} : memref<4x256xf32, #tpu.memory_space<vmem>>, vector<4x16xf32>,
    %c0_375 = arith.constant 0 : index
    %c0_376 = arith.constant 0 : index
    %448 = vector.load %arg3[%c0_375, %c0_376] : memref<8x4xbf16, #tpu.memory_space<vmem>>, vector<8x4xbf16>
    %c0_377 = arith.constant 0 : index
    %c0_378 = arith.constant 0 : index
    %449 = vector.load %arg16[%c0_377, %c0_378] : memref<4x256xf32, #tpu.memory_space<vmem>>, vector<4x256xf32>
    %450 = arith.truncf %449 : vector<4x256xf32> to vector<4x256xbf16>
    %cst_379 = arith.constant dense<0.000000e+00> : vector<8x256xf32>
    %451 = tpu.matmul %448, %450, %cst_379 {dimension_numbers = #tpu.dot_dimension_numbers<[1], [0], [0], [1], [0, 0, 1, 1], [], []>} : vector<8x4xbf16>, vector<4x256xbf16>, vector<8x256xf32> -> vector<8x256xf32>
    %c0_380 = arith.constant 0 : index
    %c0_381 = arith.constant 0 : index
    %452 = vector.load %arg6[%c0_380, %c0_381] : memref<8x9xf32, #tpu.memory_space<vmem>>, vector<8x1xf32>
    %453 = vector.broadcast %452 : vector<8x1xf32> to vector<8x256xf32>
    %454 = arith.mulf %451, %453 : vector<8x256xf32>
    %c0_382 = arith.constant 0 : index
    %c1_383 = arith.constant 1 : index
    %455 = vector.load %arg6[%c0_382, %c1_383] : memref<8x9xf32, #tpu.memory_space<vmem>>, vector<8x1xf32>
    %456 = vector.broadcast %455 : vector<8x1xf32> to vector<8x256xf32>
    %457 = arith.addf %454, %456 : vector<8x256xf32>
    %458 = arith.negf %457 : vector<8x256xf32>
    %459 = math.exp %458 : vector<8x256xf32>
    %cst_384 = arith.constant 1.000000e+00 : f32
    %460 = vector.broadcast %cst_384 : f32 to vector<8x256xf32>
    %461 = arith.addf %460, %459 : vector<8x256xf32>
    %462 = arith.divf %460, %461 : vector<8x256xf32>
    %463 = arith.mulf %457, %462 : vector<8x256xf32>
    %c9_385 = arith.constant 9 : index
    %464 = memref.load %arg1[%c9_385] : memref<11xf32, #tpu.memory_space<smem>>
    %465 = vector.broadcast %464 : f32 to vector<8x256xf32>
    %466 = arith.mulf %465, %463 : vector<8x256xf32>
    %c0_386 = arith.constant 0 : index
    %c0_387 = arith.constant 0 : index
    %c0_388 = arith.constant 0 : index
    %467 = vector.load %arg13[%c0_386, %c0_387, %c0_388] : memref<1x8x256xf32, #tpu.memory_space<vmem>>, vector<1x8x256xf32>
    %468 = vector.shape_cast %467 : vector<1x8x256xf32> to vector<8x256xf32>
    %469 = vector.shape_cast %466 : vector<8x256xf32> to vector<1x8x256xf32>
    tpu.vector_store %arg13[%c0_386, %c0_387, %c0_388], %469 {strides = array<i32>} : memref<1x8x256xf32, #tpu.memory_space<vmem>>, vector<1x8x256xf32>,
    %cst_389 = arith.constant 0.000000e+00 : f32
    %470 = vector.broadcast %cst_389 : f32 to vector<4x16xf32>
    %c0_390 = arith.constant 0 : index
    %c0_391 = arith.constant 0 : index
    %c0_392 = arith.constant 0 : index
    %471 = vector.load %arg15[%c0_390, %c0_391, %c0_392] : memref<2x10x16xf32, #tpu.memory_space<vmem>>, vector<1x4x16xf32>
    %472 = vector.shape_cast %471 : vector<1x4x16xf32> to vector<4x16xf32>
    %c0_393 = arith.constant 0 : index
    %c0_394 = arith.constant 0 : index
    %c0_395 = arith.constant 0 : index
    %473 = vector.load %arg11[%c0_393, %c0_394, %c0_395] : memref<14x16x16xf32, #tpu.memory_space<vmem>>, vector<1x16x16xf32>
    %474 = vector.shape_cast %473 : vector<1x16x16xf32> to vector<16x16xf32>
    %cst_396 = arith.constant dense<0.000000e+00> : vector<4x16xf32>
    %475 = tpu.matmul %472, %474, %cst_396 {dimension_numbers = #tpu.dot_dimension_numbers<[1], [0], [0], [1], [0, 0, 1, 1], [], []>} : vector<4x16xf32>, vector<16x16xf32>, vector<4x16xf32> -> vector<4x16xf32>
    %476 = arith.addf %470, %475 : vector<4x16xf32>
    %c0_397 = arith.constant 0 : index
    %c1_398 = arith.constant 1 : index
    %c0_399 = arith.constant 0 : index
    %477 = vector.load %arg15[%c0_397, %c1_398, %c0_399] : memref<2x10x16xf32, #tpu.memory_space<vmem>>, vector<1x4x16xf32>
    %478 = vector.shape_cast %477 : vector<1x4x16xf32> to vector<4x16xf32>
    %c1_400 = arith.constant 1 : index
    %c0_401 = arith.constant 0 : index
    %c0_402 = arith.constant 0 : index
    %479 = vector.load %arg11[%c1_400, %c0_401, %c0_402] : memref<14x16x16xf32, #tpu.memory_space<vmem>>, vector<1x16x16xf32>
    %480 = vector.shape_cast %479 : vector<1x16x16xf32> to vector<16x16xf32>
    %cst_403 = arith.constant dense<0.000000e+00> : vector<4x16xf32>
    %481 = tpu.matmul %478, %480, %cst_403 {dimension_numbers = #tpu.dot_dimension_numbers<[1], [0], [0], [1], [0, 0, 1, 1], [], []>} : vector<4x16xf32>, vector<16x16xf32>, vector<4x16xf32> -> vector<4x16xf32>
    %482 = arith.addf %476, %481 : vector<4x16xf32>
    %c0_404 = arith.constant 0 : index
    %c2_405 = arith.constant 2 : index
    %c0_406 = arith.constant 0 : index
    %483 = vector.load %arg15[%c0_404, %c2_405, %c0_406] : memref<2x10x16xf32, #tpu.memory_space<vmem>>, vector<1x4x16xf32>
    %484 = vector.shape_cast %483 : vector<1x4x16xf32> to vector<4x16xf32>
    %c2_407 = arith.constant 2 : index
    %c0_408 = arith.constant 0 : index
    %c0_409 = arith.constant 0 : index
    %485 = vector.load %arg11[%c2_407, %c0_408, %c0_409] : memref<14x16x16xf32, #tpu.memory_space<vmem>>, vector<1x16x16xf32>
    %486 = vector.shape_cast %485 : vector<1x16x16xf32> to vector<16x16xf32>
    %cst_410 = arith.constant dense<0.000000e+00> : vector<4x16xf32>
    %487 = tpu.matmul %484, %486, %cst_410 {dimension_numbers = #tpu.dot_dimension_numbers<[1], [0], [0], [1], [0, 0, 1, 1], [], []>} : vector<4x16xf32>, vector<16x16xf32>, vector<4x16xf32> -> vector<4x16xf32>
    %488 = arith.addf %482, %487 : vector<4x16xf32>
    %c0_411 = arith.constant 0 : index
    %c3_412 = arith.constant 3 : index
    %c0_413 = arith.constant 0 : index
    %489 = vector.load %arg15[%c0_411, %c3_412, %c0_413] : memref<2x10x16xf32, #tpu.memory_space<vmem>>, vector<1x4x16xf32>
    %490 = vector.shape_cast %489 : vector<1x4x16xf32> to vector<4x16xf32>
    %c3_414 = arith.constant 3 : index
    %c0_415 = arith.constant 0 : index
    %c0_416 = arith.constant 0 : index
    %491 = vector.load %arg11[%c3_414, %c0_415, %c0_416] : memref<14x16x16xf32, #tpu.memory_space<vmem>>, vector<1x16x16xf32>
    %492 = vector.shape_cast %491 : vector<1x16x16xf32> to vector<16x16xf32>
    %cst_417 = arith.constant dense<0.000000e+00> : vector<4x16xf32>
    %493 = tpu.matmul %490, %492, %cst_417 {dimension_numbers = #tpu.dot_dimension_numbers<[1], [0], [0], [1], [0, 0, 1, 1], [], []>} : vector<4x16xf32>, vector<16x16xf32>, vector<4x16xf32> -> vector<4x16xf32>
    %494 = arith.addf %488, %493 : vector<4x16xf32>
    %c0_418 = arith.constant 0 : index
    %c4_419 = arith.constant 4 : index
    %c0_420 = arith.constant 0 : index
    %495 = vector.load %arg15[%c0_418, %c4_419, %c0_420] : memref<2x10x16xf32, #tpu.memory_space<vmem>>, vector<1x4x16xf32>
    %496 = vector.shape_cast %495 : vector<1x4x16xf32> to vector<4x16xf32>
    %c4_421 = arith.constant 4 : index
    %c0_422 = arith.constant 0 : index
    %c0_423 = arith.constant 0 : index
    %497 = vector.load %arg11[%c4_421, %c0_422, %c0_423] : memref<14x16x16xf32, #tpu.memory_space<vmem>>, vector<1x16x16xf32>
    %498 = vector.shape_cast %497 : vector<1x16x16xf32> to vector<16x16xf32>
    %cst_424 = arith.constant dense<0.000000e+00> : vector<4x16xf32>
    %499 = tpu.matmul %496, %498, %cst_424 {dimension_numbers = #tpu.dot_dimension_numbers<[1], [0], [0], [1], [0, 0, 1, 1], [], []>} : vector<4x16xf32>, vector<16x16xf32>, vector<4x16xf32> -> vector<4x16xf32>
    %500 = arith.addf %494, %499 : vector<4x16xf32>
    %c0_425 = arith.constant 0 : index
    %c5_426 = arith.constant 5 : index
    %c0_427 = arith.constant 0 : index
    %501 = vector.load %arg15[%c0_425, %c5_426, %c0_427] : memref<2x10x16xf32, #tpu.memory_space<vmem>>, vector<1x4x16xf32>
    %502 = vector.shape_cast %501 : vector<1x4x16xf32> to vector<4x16xf32>
    %c5_428 = arith.constant 5 : index
    %c0_429 = arith.constant 0 : index
    %c0_430 = arith.constant 0 : index
    %503 = vector.load %arg11[%c5_428, %c0_429, %c0_430] : memref<14x16x16xf32, #tpu.memory_space<vmem>>, vector<1x16x16xf32>
    %504 = vector.shape_cast %503 : vector<1x16x16xf32> to vector<16x16xf32>
    %cst_431 = arith.constant dense<0.000000e+00> : vector<4x16xf32>
    %505 = tpu.matmul %502, %504, %cst_431 {dimension_numbers = #tpu.dot_dimension_numbers<[1], [0], [0], [1], [0, 0, 1, 1], [], []>} : vector<4x16xf32>, vector<16x16xf32>, vector<4x16xf32> -> vector<4x16xf32>
    %506 = arith.addf %500, %505 : vector<4x16xf32>
    %c0_432 = arith.constant 0 : index
    %c6_433 = arith.constant 6 : index
    %c0_434 = arith.constant 0 : index
    %507 = vector.load %arg15[%c0_432, %c6_433, %c0_434] : memref<2x10x16xf32, #tpu.memory_space<vmem>>, vector<1x4x16xf32>
    %508 = vector.shape_cast %507 : vector<1x4x16xf32> to vector<4x16xf32>
    %c6_435 = arith.constant 6 : index
    %c0_436 = arith.constant 0 : index
    %c0_437 = arith.constant 0 : index
    %509 = vector.load %arg11[%c6_435, %c0_436, %c0_437] : memref<14x16x16xf32, #tpu.memory_space<vmem>>, vector<1x16x16xf32>
    %510 = vector.shape_cast %509 : vector<1x16x16xf32> to vector<16x16xf32>
    %cst_438 = arith.constant dense<0.000000e+00> : vector<4x16xf32>
    %511 = tpu.matmul %508, %510, %cst_438 {dimension_numbers = #tpu.dot_dimension_numbers<[1], [0], [0], [1], [0, 0, 1, 1], [], []>} : vector<4x16xf32>, vector<16x16xf32>, vector<4x16xf32> -> vector<4x16xf32>
    %512 = arith.addf %506, %511 : vector<4x16xf32>
    %c1_439 = arith.constant 1 : index
    %c0_440 = arith.constant 0 : index
    %c0_441 = arith.constant 0 : index
    %513 = vector.load %arg15[%c1_439, %c0_440, %c0_441] : memref<2x10x16xf32, #tpu.memory_space<vmem>>, vector<1x4x16xf32>
    %514 = vector.shape_cast %513 : vector<1x4x16xf32> to vector<4x16xf32>
    %c7_442 = arith.constant 7 : index
    %c0_443 = arith.constant 0 : index
    %c0_444 = arith.constant 0 : index
    %515 = vector.load %arg11[%c7_442, %c0_443, %c0_444] : memref<14x16x16xf32, #tpu.memory_space<vmem>>, vector<1x16x16xf32>
    %516 = vector.shape_cast %515 : vector<1x16x16xf32> to vector<16x16xf32>
    %cst_445 = arith.constant dense<0.000000e+00> : vector<4x16xf32>
    %517 = tpu.matmul %514, %516, %cst_445 {dimension_numbers = #tpu.dot_dimension_numbers<[1], [0], [0], [1], [0, 0, 1, 1], [], []>} : vector<4x16xf32>, vector<16x16xf32>, vector<4x16xf32> -> vector<4x16xf32>
    %518 = arith.addf %512, %517 : vector<4x16xf32>
    %c1_446 = arith.constant 1 : index
    %c1_447 = arith.constant 1 : index
    %c0_448 = arith.constant 0 : index
    %519 = vector.load %arg15[%c1_446, %c1_447, %c0_448] : memref<2x10x16xf32, #tpu.memory_space<vmem>>, vector<1x4x16xf32>
    %520 = vector.shape_cast %519 : vector<1x4x16xf32> to vector<4x16xf32>
    %c8_449 = arith.constant 8 : index
    %c0_450 = arith.constant 0 : index
    %c0_451 = arith.constant 0 : index
    %521 = vector.load %arg11[%c8_449, %c0_450, %c0_451] : memref<14x16x16xf32, #tpu.memory_space<vmem>>, vector<1x16x16xf32>
    %522 = vector.shape_cast %521 : vector<1x16x16xf32> to vector<16x16xf32>
    %cst_452 = arith.constant dense<0.000000e+00> : vector<4x16xf32>
    %523 = tpu.matmul %520, %522, %cst_452 {dimension_numbers = #tpu.dot_dimension_numbers<[1], [0], [0], [1], [0, 0, 1, 1], [], []>} : vector<4x16xf32>, vector<16x16xf32>, vector<4x16xf32> -> vector<4x16xf32>
    %524 = arith.addf %518, %523 : vector<4x16xf32>
    %c1_453 = arith.constant 1 : index
    %c2_454 = arith.constant 2 : index
    %c0_455 = arith.constant 0 : index
    %525 = vector.load %arg15[%c1_453, %c2_454, %c0_455] : memref<2x10x16xf32, #tpu.memory_space<vmem>>, vector<1x4x16xf32>
    %526 = vector.shape_cast %525 : vector<1x4x16xf32> to vector<4x16xf32>
    %c9_456 = arith.constant 9 : index
    %c0_457 = arith.constant 0 : index
    %c0_458 = arith.constant 0 : index
    %527 = vector.load %arg11[%c9_456, %c0_457, %c0_458] : memref<14x16x16xf32, #tpu.memory_space<vmem>>, vector<1x16x16xf32>
    %528 = vector.shape_cast %527 : vector<1x16x16xf32> to vector<16x16xf32>
    %cst_459 = arith.constant dense<0.000000e+00> : vector<4x16xf32>
    %529 = tpu.matmul %526, %528, %cst_459 {dimension_numbers = #tpu.dot_dimension_numbers<[1], [0], [0], [1], [0, 0, 1, 1], [], []>} : vector<4x16xf32>, vector<16x16xf32>, vector<4x16xf32> -> vector<4x16xf32>
    %530 = arith.addf %524, %529 : vector<4x16xf32>
    %c1_460 = arith.constant 1 : index
    %c3_461 = arith.constant 3 : index
    %c0_462 = arith.constant 0 : index
    %531 = vector.load %arg15[%c1_460, %c3_461, %c0_462] : memref<2x10x16xf32, #tpu.memory_space<vmem>>, vector<1x4x16xf32>
    %532 = vector.shape_cast %531 : vector<1x4x16xf32> to vector<4x16xf32>
    %c10_463 = arith.constant 10 : index
    %c0_464 = arith.constant 0 : index
    %c0_465 = arith.constant 0 : index
    %533 = vector.load %arg11[%c10_463, %c0_464, %c0_465] : memref<14x16x16xf32, #tpu.memory_space<vmem>>, vector<1x16x16xf32>
    %534 = vector.shape_cast %533 : vector<1x16x16xf32> to vector<16x16xf32>
    %cst_466 = arith.constant dense<0.000000e+00> : vector<4x16xf32>
    %535 = tpu.matmul %532, %534, %cst_466 {dimension_numbers = #tpu.dot_dimension_numbers<[1], [0], [0], [1], [0, 0, 1, 1], [], []>} : vector<4x16xf32>, vector<16x16xf32>, vector<4x16xf32> -> vector<4x16xf32>
    %536 = arith.addf %530, %535 : vector<4x16xf32>
    %c1_467 = arith.constant 1 : index
    %c4_468 = arith.constant 4 : index
    %c0_469 = arith.constant 0 : index
    %537 = vector.load %arg15[%c1_467, %c4_468, %c0_469] : memref<2x10x16xf32, #tpu.memory_space<vmem>>, vector<1x4x16xf32>
    %538 = vector.shape_cast %537 : vector<1x4x16xf32> to vector<4x16xf32>
    %c11_470 = arith.constant 11 : index
    %c0_471 = arith.constant 0 : index
    %c0_472 = arith.constant 0 : index
    %539 = vector.load %arg11[%c11_470, %c0_471, %c0_472] : memref<14x16x16xf32, #tpu.memory_space<vmem>>, vector<1x16x16xf32>
    %540 = vector.shape_cast %539 : vector<1x16x16xf32> to vector<16x16xf32>
    %cst_473 = arith.constant dense<0.000000e+00> : vector<4x16xf32>
    %541 = tpu.matmul %538, %540, %cst_473 {dimension_numbers = #tpu.dot_dimension_numbers<[1], [0], [0], [1], [0, 0, 1, 1], [], []>} : vector<4x16xf32>, vector<16x16xf32>, vector<4x16xf32> -> vector<4x16xf32>
    %542 = arith.addf %536, %541 : vector<4x16xf32>
    %c1_474 = arith.constant 1 : index
    %c5_475 = arith.constant 5 : index
    %c0_476 = arith.constant 0 : index
    %543 = vector.load %arg15[%c1_474, %c5_475, %c0_476] : memref<2x10x16xf32, #tpu.memory_space<vmem>>, vector<1x4x16xf32>
    %544 = vector.shape_cast %543 : vector<1x4x16xf32> to vector<4x16xf32>
    %c12_477 = arith.constant 12 : index
    %c0_478 = arith.constant 0 : index
    %c0_479 = arith.constant 0 : index
    %545 = vector.load %arg11[%c12_477, %c0_478, %c0_479] : memref<14x16x16xf32, #tpu.memory_space<vmem>>, vector<1x16x16xf32>
    %546 = vector.shape_cast %545 : vector<1x16x16xf32> to vector<16x16xf32>
    %cst_480 = arith.constant dense<0.000000e+00> : vector<4x16xf32>
    %547 = tpu.matmul %544, %546, %cst_480 {dimension_numbers = #tpu.dot_dimension_numbers<[1], [0], [0], [1], [0, 0, 1, 1], [], []>} : vector<4x16xf32>, vector<16x16xf32>, vector<4x16xf32> -> vector<4x16xf32>
    %548 = arith.addf %542, %547 : vector<4x16xf32>
    %c1_481 = arith.constant 1 : index
    %c6_482 = arith.constant 6 : index
    %c0_483 = arith.constant 0 : index
    %549 = vector.load %arg15[%c1_481, %c6_482, %c0_483] : memref<2x10x16xf32, #tpu.memory_space<vmem>>, vector<1x4x16xf32>
    %550 = vector.shape_cast %549 : vector<1x4x16xf32> to vector<4x16xf32>
    %c13_484 = arith.constant 13 : index
    %c0_485 = arith.constant 0 : index
    %c0_486 = arith.constant 0 : index
    %551 = vector.load %arg11[%c13_484, %c0_485, %c0_486] : memref<14x16x16xf32, #tpu.memory_space<vmem>>, vector<1x16x16xf32>
    %552 = vector.shape_cast %551 : vector<1x16x16xf32> to vector<16x16xf32>
    %cst_487 = arith.constant dense<0.000000e+00> : vector<4x16xf32>
    %553 = tpu.matmul %550, %552, %cst_487 {dimension_numbers = #tpu.dot_dimension_numbers<[1], [0], [0], [1], [0, 0, 1, 1], [], []>} : vector<4x16xf32>, vector<16x16xf32>, vector<4x16xf32> -> vector<4x16xf32>
    %554 = arith.addf %548, %553 : vector<4x16xf32>
    %c2_488 = arith.constant 2 : index
    %555 = memref.load %arg1[%c2_488] : memref<11xf32, #tpu.memory_space<smem>>
    %556 = vector.broadcast %555 : f32 to vector<4x16xf32>
    %557 = arith.mulf %554, %556 : vector<4x16xf32>
    %c3_489 = arith.constant 3 : index
    %558 = memref.load %arg1[%c3_489] : memref<11xf32, #tpu.memory_space<smem>>
    %559 = vector.broadcast %558 : f32 to vector<4x16xf32>
    %560 = arith.addf %557, %559 : vector<4x16xf32>
    %561 = arith.negf %560 : vector<4x16xf32>
    %562 = math.exp %561 : vector<4x16xf32>
    %cst_490 = arith.constant 1.000000e+00 : f32
    %563 = vector.broadcast %cst_490 : f32 to vector<4x16xf32>
    %564 = arith.addf %563, %562 : vector<4x16xf32>
    %565 = arith.divf %563, %564 : vector<4x16xf32>
    %c0_491 = arith.constant 0 : index
    %c0_492 = arith.constant 0 : index
    %c0_493 = arith.constant 0 : index
    %566 = vector.load %arg2[%c0_491, %c0_492, %c0_493] : memref<1x4x256xf32, #tpu.memory_space<vmem>>, vector<1x4x16xf32>
    %567 = vector.shape_cast %566 : vector<1x4x16xf32> to vector<4x16xf32>
    %568 = vector.extract_strided_slice %565 {offsets = [0, 0], sizes = [4, 1], strides = [1, 1]} : vector<4x16xf32> to vector<4x1xf32>
    %569 = vector.broadcast %568 : vector<4x1xf32> to vector<4x16xf32>
    %570 = arith.mulf %567, %569 : vector<4x16xf32>
    %c0_494 = arith.constant 0 : index
    %c0_495 = arith.constant 0 : index
    %571 = vector.load %arg16[%c0_494, %c0_495] : memref<4x256xf32, #tpu.memory_space<vmem>>, vector<4x16xf32>
    tpu.vector_store %arg16[%c0_494, %c0_495], %570 {strides = array<i32>} : memref<4x256xf32, #tpu.memory_space<vmem>>, vector<4x16xf32>,
    %c0_496 = arith.constant 0 : index
    %c0_497 = arith.constant 0 : index
    %c16_498 = arith.constant 16 : index
    %572 = vector.load %arg2[%c0_496, %c0_497, %c16_498] : memref<1x4x256xf32, #tpu.memory_space<vmem>>, vector<1x4x16xf32>
    %573 = vector.shape_cast %572 : vector<1x4x16xf32> to vector<4x16xf32>
    %574 = vector.extract_strided_slice %565 {offsets = [0, 1], sizes = [4, 1], strides = [1, 1]} : vector<4x16xf32> to vector<4x1xf32>
    %575 = vector.broadcast %574 : vector<4x1xf32> to vector<4x16xf32>
    %576 = arith.mulf %573, %575 : vector<4x16xf32>
    %c0_499 = arith.constant 0 : index
    %c16_500 = arith.constant 16 : index
    %577 = vector.load %arg16[%c0_499, %c16_500] : memref<4x256xf32, #tpu.memory_space<vmem>>, vector<4x16xf32>
    tpu.vector_store %arg16[%c0_499, %c16_500], %576 {strides = array<i32>} : memref<4x256xf32, #tpu.memory_space<vmem>>, vector<4x16xf32>,
    %c0_501 = arith.constant 0 : index
    %c0_502 = arith.constant 0 : index
    %c32_503 = arith.constant 32 : index
    %578 = vector.load %arg2[%c0_501, %c0_502, %c32_503] : memref<1x4x256xf32, #tpu.memory_space<vmem>>, vector<1x4x16xf32>
    %579 = vector.shape_cast %578 : vector<1x4x16xf32> to vector<4x16xf32>
    %580 = vector.extract_strided_slice %565 {offsets = [0, 2], sizes = [4, 1], strides = [1, 1]} : vector<4x16xf32> to vector<4x1xf32>
    %581 = vector.broadcast %580 : vector<4x1xf32> to vector<4x16xf32>
    %582 = arith.mulf %579, %581 : vector<4x16xf32>
    %c0_504 = arith.constant 0 : index
    %c32_505 = arith.constant 32 : index
    %583 = vector.load %arg16[%c0_504, %c32_505] : memref<4x256xf32, #tpu.memory_space<vmem>>, vector<4x16xf32>
    tpu.vector_store %arg16[%c0_504, %c32_505], %582 {strides = array<i32>} : memref<4x256xf32, #tpu.memory_space<vmem>>, vector<4x16xf32>,
    %c0_506 = arith.constant 0 : index
    %c0_507 = arith.constant 0 : index
    %c48_508 = arith.constant 48 : index
    %584 = vector.load %arg2[%c0_506, %c0_507, %c48_508] : memref<1x4x256xf32, #tpu.memory_space<vmem>>, vector<1x4x16xf32>
    %585 = vector.shape_cast %584 : vector<1x4x16xf32> to vector<4x16xf32>
    %586 = vector.extract_strided_slice %565 {offsets = [0, 3], sizes = [4, 1], strides = [1, 1]} : vector<4x16xf32> to vector<4x1xf32>
    %587 = vector.broadcast %586 : vector<4x1xf32> to vector<4x16xf32>
    %588 = arith.mulf %585, %587 : vector<4x16xf32>
    %c0_509 = arith.constant 0 : index
    %c48_510 = arith.constant 48 : index
    %589 = vector.load %arg16[%c0_509, %c48_510] : memref<4x256xf32, #tpu.memory_space<vmem>>, vector<4x16xf32>
    tpu.vector_store %arg16[%c0_509, %c48_510], %588 {strides = array<i32>} : memref<4x256xf32, #tpu.memory_space<vmem>>, vector<4x16xf32>,
    %c0_511 = arith.constant 0 : index
    %c0_512 = arith.constant 0 : index
    %c64_513 = arith.constant 64 : index
    %590 = vector.load %arg2[%c0_511, %c0_512, %c64_513] : memref<1x4x256xf32, #tpu.memory_space<vmem>>, vector<1x4x16xf32>
    %591 = vector.shape_cast %590 : vector<1x4x16xf32> to vector<4x16xf32>
    %592 = vector.extract_strided_slice %565 {offsets = [0, 4], sizes = [4, 1], strides = [1, 1]} : vector<4x16xf32> to vector<4x1xf32>
    %593 = vector.broadcast %592 : vector<4x1xf32> to vector<4x16xf32>
    %594 = arith.mulf %591, %593 : vector<4x16xf32>
    %c0_514 = arith.constant 0 : index
    %c64_515 = arith.constant 64 : index
    %595 = vector.load %arg16[%c0_514, %c64_515] : memref<4x256xf32, #tpu.memory_space<vmem>>, vector<4x16xf32>
    tpu.vector_store %arg16[%c0_514, %c64_515], %594 {strides = array<i32>} : memref<4x256xf32, #tpu.memory_space<vmem>>, vector<4x16xf32>,
    %c0_516 = arith.constant 0 : index
    %c0_517 = arith.constant 0 : index
    %c80_518 = arith.constant 80 : index
    %596 = vector.load %arg2[%c0_516, %c0_517, %c80_518] : memref<1x4x256xf32, #tpu.memory_space<vmem>>, vector<1x4x16xf32>
    %597 = vector.shape_cast %596 : vector<1x4x16xf32> to vector<4x16xf32>
    %598 = vector.extract_strided_slice %565 {offsets = [0, 5], sizes = [4, 1], strides = [1, 1]} : vector<4x16xf32> to vector<4x1xf32>
    %599 = vector.broadcast %598 : vector<4x1xf32> to vector<4x16xf32>
    %600 = arith.mulf %597, %599 : vector<4x16xf32>
    %c0_519 = arith.constant 0 : index
    %c80_520 = arith.constant 80 : index
    %601 = vector.load %arg16[%c0_519, %c80_520] : memref<4x256xf32, #tpu.memory_space<vmem>>, vector<4x16xf32>
    tpu.vector_store %arg16[%c0_519, %c80_520], %600 {strides = array<i32>} : memref<4x256xf32, #tpu.memory_space<vmem>>, vector<4x16xf32>,
    %c0_521 = arith.constant 0 : index
    %c0_522 = arith.constant 0 : index
    %c96_523 = arith.constant 96 : index
    %602 = vector.load %arg2[%c0_521, %c0_522, %c96_523] : memref<1x4x256xf32, #tpu.memory_space<vmem>>, vector<1x4x16xf32>
    %603 = vector.shape_cast %602 : vector<1x4x16xf32> to vector<4x16xf32>
    %604 = vector.extract_strided_slice %565 {offsets = [0, 6], sizes = [4, 1], strides = [1, 1]} : vector<4x16xf32> to vector<4x1xf32>
    %605 = vector.broadcast %604 : vector<4x1xf32> to vector<4x16xf32>
    %606 = arith.mulf %603, %605 : vector<4x16xf32>
    %c0_524 = arith.constant 0 : index
    %c96_525 = arith.constant 96 : index
    %607 = vector.load %arg16[%c0_524, %c96_525] : memref<4x256xf32, #tpu.memory_space<vmem>>, vector<4x16xf32>
    tpu.vector_store %arg16[%c0_524, %c96_525], %606 {strides = array<i32>} : memref<4x256xf32, #tpu.memory_space<vmem>>, vector<4x16xf32>,
    %c0_526 = arith.constant 0 : index
    %c0_527 = arith.constant 0 : index
    %c112_528 = arith.constant 112 : index
    %608 = vector.load %arg2[%c0_526, %c0_527, %c112_528] : memref<1x4x256xf32, #tpu.memory_space<vmem>>, vector<1x4x16xf32>
    %609 = vector.shape_cast %608 : vector<1x4x16xf32> to vector<4x16xf32>
    %610 = vector.extract_strided_slice %565 {offsets = [0, 7], sizes = [4, 1], strides = [1, 1]} : vector<4x16xf32> to vector<4x1xf32>
    %611 = vector.broadcast %610 : vector<4x1xf32> to vector<4x16xf32>
    %612 = arith.mulf %609, %611 : vector<4x16xf32>
    %c0_529 = arith.constant 0 : index
    %c112_530 = arith.constant 112 : index
    %613 = vector.load %arg16[%c0_529, %c112_530] : memref<4x256xf32, #tpu.memory_space<vmem>>, vector<4x16xf32>
    tpu.vector_store %arg16[%c0_529, %c112_530], %612 {strides = array<i32>} : memref<4x256xf32, #tpu.memory_space<vmem>>, vector<4x16xf32>,
    %c0_531 = arith.constant 0 : index
    %c0_532 = arith.constant 0 : index
    %c128_533 = arith.constant 128 : index
    %614 = vector.load %arg2[%c0_531, %c0_532, %c128_533] : memref<1x4x256xf32, #tpu.memory_space<vmem>>, vector<1x4x16xf32>
    %615 = vector.shape_cast %614 : vector<1x4x16xf32> to vector<4x16xf32>
    %616 = vector.extract_strided_slice %565 {offsets = [0, 8], sizes = [4, 1], strides = [1, 1]} : vector<4x16xf32> to vector<4x1xf32>
    %617 = vector.broadcast %616 : vector<4x1xf32> to vector<4x16xf32>
    %618 = arith.mulf %615, %617 : vector<4x16xf32>
    %c0_534 = arith.constant 0 : index
    %c128_535 = arith.constant 128 : index
    %619 = vector.load %arg16[%c0_534, %c128_535] : memref<4x256xf32, #tpu.memory_space<vmem>>, vector<4x16xf32>
    tpu.vector_store %arg16[%c0_534, %c128_535], %618 {strides = array<i32>} : memref<4x256xf32, #tpu.memory_space<vmem>>, vector<4x16xf32>,
    %c0_536 = arith.constant 0 : index
    %c0_537 = arith.constant 0 : index
    %c144_538 = arith.constant 144 : index
    %620 = vector.load %arg2[%c0_536, %c0_537, %c144_538] : memref<1x4x256xf32, #tpu.memory_space<vmem>>, vector<1x4x16xf32>
    %621 = vector.shape_cast %620 : vector<1x4x16xf32> to vector<4x16xf32>
    %622 = vector.extract_strided_slice %565 {offsets = [0, 9], sizes = [4, 1], strides = [1, 1]} : vector<4x16xf32> to vector<4x1xf32>
    %623 = vector.broadcast %622 : vector<4x1xf32> to vector<4x16xf32>
    %624 = arith.mulf %621, %623 : vector<4x16xf32>
    %c0_539 = arith.constant 0 : index
    %c144_540 = arith.constant 144 : index
    %625 = vector.load %arg16[%c0_539, %c144_540] : memref<4x256xf32, #tpu.memory_space<vmem>>, vector<4x16xf32>
    tpu.vector_store %arg16[%c0_539, %c144_540], %624 {strides = array<i32>} : memref<4x256xf32, #tpu.memory_space<vmem>>, vector<4x16xf32>,
    %c0_541 = arith.constant 0 : index
    %c0_542 = arith.constant 0 : index
    %c160_543 = arith.constant 160 : index
    %626 = vector.load %arg2[%c0_541, %c0_542, %c160_543] : memref<1x4x256xf32, #tpu.memory_space<vmem>>, vector<1x4x16xf32>
    %627 = vector.shape_cast %626 : vector<1x4x16xf32> to vector<4x16xf32>
    %628 = vector.extract_strided_slice %565 {offsets = [0, 10], sizes = [4, 1], strides = [1, 1]} : vector<4x16xf32> to vector<4x1xf32>
    %629 = vector.broadcast %628 : vector<4x1xf32> to vector<4x16xf32>
    %630 = arith.mulf %627, %629 : vector<4x16xf32>
    %c0_544 = arith.constant 0 : index
    %c160_545 = arith.constant 160 : index
    %631 = vector.load %arg16[%c0_544, %c160_545] : memref<4x256xf32, #tpu.memory_space<vmem>>, vector<4x16xf32>
    tpu.vector_store %arg16[%c0_544, %c160_545], %630 {strides = array<i32>} : memref<4x256xf32, #tpu.memory_space<vmem>>, vector<4x16xf32>,
    %c0_546 = arith.constant 0 : index
    %c0_547 = arith.constant 0 : index
    %c176_548 = arith.constant 176 : index
    %632 = vector.load %arg2[%c0_546, %c0_547, %c176_548] : memref<1x4x256xf32, #tpu.memory_space<vmem>>, vector<1x4x16xf32>
    %633 = vector.shape_cast %632 : vector<1x4x16xf32> to vector<4x16xf32>
    %634 = vector.extract_strided_slice %565 {offsets = [0, 11], sizes = [4, 1], strides = [1, 1]} : vector<4x16xf32> to vector<4x1xf32>
    %635 = vector.broadcast %634 : vector<4x1xf32> to vector<4x16xf32>
    %636 = arith.mulf %633, %635 : vector<4x16xf32>
    %c0_549 = arith.constant 0 : index
    %c176_550 = arith.constant 176 : index
    %637 = vector.load %arg16[%c0_549, %c176_550] : memref<4x256xf32, #tpu.memory_space<vmem>>, vector<4x16xf32>
    tpu.vector_store %arg16[%c0_549, %c176_550], %636 {strides = array<i32>} : memref<4x256xf32, #tpu.memory_space<vmem>>, vector<4x16xf32>,
    %c0_551 = arith.constant 0 : index
    %c0_552 = arith.constant 0 : index
    %c192_553 = arith.constant 192 : index
    %638 = vector.load %arg2[%c0_551, %c0_552, %c192_553] : memref<1x4x256xf32, #tpu.memory_space<vmem>>, vector<1x4x16xf32>
    %639 = vector.shape_cast %638 : vector<1x4x16xf32> to vector<4x16xf32>
    %640 = vector.extract_strided_slice %565 {offsets = [0, 12], sizes = [4, 1], strides = [1, 1]} : vector<4x16xf32> to vector<4x1xf32>
    %641 = vector.broadcast %640 : vector<4x1xf32> to vector<4x16xf32>
    %642 = arith.mulf %639, %641 : vector<4x16xf32>
    %c0_554 = arith.constant 0 : index
    %c192_555 = arith.constant 192 : index
    %643 = vector.load %arg16[%c0_554, %c192_555] : memref<4x256xf32, #tpu.memory_space<vmem>>, vector<4x16xf32>
    tpu.vector_store %arg16[%c0_554, %c192_555], %642 {strides = array<i32>} : memref<4x256xf32, #tpu.memory_space<vmem>>, vector<4x16xf32>,
    %c0_556 = arith.constant 0 : index
    %c0_557 = arith.constant 0 : index
    %c208_558 = arith.constant 208 : index
    %644 = vector.load %arg2[%c0_556, %c0_557, %c208_558] : memref<1x4x256xf32, #tpu.memory_space<vmem>>, vector<1x4x16xf32>
    %645 = vector.shape_cast %644 : vector<1x4x16xf32> to vector<4x16xf32>
    %646 = vector.extract_strided_slice %565 {offsets = [0, 13], sizes = [4, 1], strides = [1, 1]} : vector<4x16xf32> to vector<4x1xf32>
    %647 = vector.broadcast %646 : vector<4x1xf32> to vector<4x16xf32>
    %648 = arith.mulf %645, %647 : vector<4x16xf32>
    %c0_559 = arith.constant 0 : index
    %c208_560 = arith.constant 208 : index
    %649 = vector.load %arg16[%c0_559, %c208_560] : memref<4x256xf32, #tpu.memory_space<vmem>>, vector<4x16xf32>
    tpu.vector_store %arg16[%c0_559, %c208_560], %648 {strides = array<i32>} : memref<4x256xf32, #tpu.memory_space<vmem>>, vector<4x16xf32>,
    %c0_561 = arith.constant 0 : index
    %c0_562 = arith.constant 0 : index
    %c224_563 = arith.constant 224 : index
    %650 = vector.load %arg2[%c0_561, %c0_562, %c224_563] : memref<1x4x256xf32, #tpu.memory_space<vmem>>, vector<1x4x16xf32>
    %651 = vector.shape_cast %650 : vector<1x4x16xf32> to vector<4x16xf32>
    %652 = vector.extract_strided_slice %565 {offsets = [0, 14], sizes = [4, 1], strides = [1, 1]} : vector<4x16xf32> to vector<4x1xf32>
    %653 = vector.broadcast %652 : vector<4x1xf32> to vector<4x16xf32>
    %654 = arith.mulf %651, %653 : vector<4x16xf32>
    %c0_564 = arith.constant 0 : index
    %c224_565 = arith.constant 224 : index
    %655 = vector.load %arg16[%c0_564, %c224_565] : memref<4x256xf32, #tpu.memory_space<vmem>>, vector<4x16xf32>
    tpu.vector_store %arg16[%c0_564, %c224_565], %654 {strides = array<i32>} : memref<4x256xf32, #tpu.memory_space<vmem>>, vector<4x16xf32>,
    %c0_566 = arith.constant 0 : index
    %c0_567 = arith.constant 0 : index
    %c240_568 = arith.constant 240 : index
    %656 = vector.load %arg2[%c0_566, %c0_567, %c240_568] : memref<1x4x256xf32, #tpu.memory_space<vmem>>, vector<1x4x16xf32>
    %657 = vector.shape_cast %656 : vector<1x4x16xf32> to vector<4x16xf32>
    %658 = vector.extract_strided_slice %565 {offsets = [0, 15], sizes = [4, 1], strides = [1, 1]} : vector<4x16xf32> to vector<4x1xf32>
    %659 = vector.broadcast %658 : vector<4x1xf32> to vector<4x16xf32>
    %660 = arith.mulf %657, %659 : vector<4x16xf32>
    %c0_569 = arith.constant 0 : index
    %c240_570 = arith.constant 240 : index
    %661 = vector.load %arg16[%c0_569, %c240_570] : memref<4x256xf32, #tpu.memory_space<vmem>>, vector<4x16xf32>
    tpu.vector_store %arg16[%c0_569, %c240_570], %660 {strides = array<i32>} : memref<4x256xf32, #tpu.memory_space<vmem>>, vector<4x16xf32>,
    %c0_571 = arith.constant 0 : index
    %c0_572 = arith.constant 0 : index
    %662 = vector.load %arg16[%c0_571, %c0_572] : memref<4x256xf32, #tpu.memory_space<vmem>>, vector<4x256xf32>
    %c0_573 = arith.constant 0 : index
    %c0_574 = arith.constant 0 : index
    %663 = vector.load %arg12[%c0_573, %c0_574] : memref<4x256xf32, #tpu.memory_space<vmem>>, vector<1x256xf32>
    %c1_575 = arith.constant 1 : index
    %c0_576 = arith.constant 0 : index
    %664 = vector.load %arg12[%c1_575, %c0_576] : memref<4x256xf32, #tpu.memory_space<vmem>>, vector<1x256xf32>
    %c2_577 = arith.constant 2 : index
    %c0_578 = arith.constant 0 : index
    %665 = vector.load %arg12[%c2_577, %c0_578] : memref<4x256xf32, #tpu.memory_space<vmem>>, vector<1x256xf32>
    %c3_579 = arith.constant 3 : index
    %c0_580 = arith.constant 0 : index
    %666 = vector.load %arg12[%c3_579, %c0_580] : memref<4x256xf32, #tpu.memory_space<vmem>>, vector<1x256xf32>
    %c17_i32 = arith.constant 17 : i32
    %667 = tpu.dynamic_rotate %662 by %c17_i32 dim 1 : vector<4x256xf32>, i32 -> vector<4x256xf32>
    %668 = vector.broadcast %663 : vector<1x256xf32> to vector<4x256xf32>
    %669 = arith.mulf %667, %668 : vector<4x256xf32>
    %670 = vector.broadcast %665 : vector<1x256xf32> to vector<4x256xf32>
    %671 = arith.mulf %669, %670 : vector<4x256xf32>
    %c0_581 = arith.constant 0 : index
    %c0_582 = arith.constant 0 : index
    %672 = vector.load %arg17[%c0_581, %c0_582] : memref<36x256xf32, #tpu.memory_space<vmem>>, vector<4x256xf32>
    tpu.vector_store %arg17[%c0_581, %c0_582], %671 {strides = array<i32>} : memref<36x256xf32, #tpu.memory_space<vmem>>, vector<4x256xf32>,
    %c16_i32 = arith.constant 16 : i32
    %673 = tpu.dynamic_rotate %662 by %c16_i32 dim 1 : vector<4x256xf32>, i32 -> vector<4x256xf32>
    %674 = vector.broadcast %663 : vector<1x256xf32> to vector<4x256xf32>
    %675 = arith.mulf %673, %674 : vector<4x256xf32>
    %c4_583 = arith.constant 4 : index
    %c0_584 = arith.constant 0 : index
    %676 = vector.load %arg17[%c4_583, %c0_584] : memref<36x256xf32, #tpu.memory_space<vmem>>, vector<4x256xf32>
    tpu.vector_store %arg17[%c4_583, %c0_584], %675 {strides = array<i32>} : memref<36x256xf32, #tpu.memory_space<vmem>>, vector<4x256xf32>,
    %c15_i32 = arith.constant 15 : i32
    %677 = tpu.dynamic_rotate %662 by %c15_i32 dim 1 : vector<4x256xf32>, i32 -> vector<4x256xf32>
    %678 = vector.broadcast %663 : vector<1x256xf32> to vector<4x256xf32>
    %679 = arith.mulf %677, %678 : vector<4x256xf32>
    %680 = vector.broadcast %666 : vector<1x256xf32> to vector<4x256xf32>
    %681 = arith.mulf %679, %680 : vector<4x256xf32>
    %c8_585 = arith.constant 8 : index
    %c0_586 = arith.constant 0 : index
    %682 = vector.load %arg17[%c8_585, %c0_586] : memref<36x256xf32, #tpu.memory_space<vmem>>, vector<4x256xf32>
    tpu.vector_store %arg17[%c8_585, %c0_586], %681 {strides = array<i32>} : memref<36x256xf32, #tpu.memory_space<vmem>>, vector<4x256xf32>,
    %c1_i32 = arith.constant 1 : i32
    %683 = tpu.dynamic_rotate %662 by %c1_i32 dim 1 : vector<4x256xf32>, i32 -> vector<4x256xf32>
    %684 = vector.broadcast %665 : vector<1x256xf32> to vector<4x256xf32>
    %685 = arith.mulf %683, %684 : vector<4x256xf32>
    %c12_587 = arith.constant 12 : index
    %c0_588 = arith.constant 0 : index
    %686 = vector.load %arg17[%c12_587, %c0_588] : memref<36x256xf32, #tpu.memory_space<vmem>>, vector<4x256xf32>
    tpu.vector_store %arg17[%c12_587, %c0_588], %685 {strides = array<i32>} : memref<36x256xf32, #tpu.memory_space<vmem>>, vector<4x256xf32>,
    %c16_589 = arith.constant 16 : index
    %c0_590 = arith.constant 0 : index
    %687 = vector.load %arg17[%c16_589, %c0_590] : memref<36x256xf32, #tpu.memory_space<vmem>>, vector<4x256xf32>
    tpu.vector_store %arg17[%c16_589, %c0_590], %662 {strides = array<i32>} : memref<36x256xf32, #tpu.memory_space<vmem>>, vector<4x256xf32>,
    %c255_i32 = arith.constant 255 : i32
    %688 = tpu.dynamic_rotate %662 by %c255_i32 dim 1 : vector<4x256xf32>, i32 -> vector<4x256xf32>
    %689 = vector.broadcast %666 : vector<1x256xf32> to vector<4x256xf32>
    %690 = arith.mulf %688, %689 : vector<4x256xf32>
    %c20 = arith.constant 20 : index
    %c0_591 = arith.constant 0 : index
    %691 = vector.load %arg17[%c20, %c0_591] : memref<36x256xf32, #tpu.memory_space<vmem>>, vector<4x256xf32>
    tpu.vector_store %arg17[%c20, %c0_591], %690 {strides = array<i32>} : memref<36x256xf32, #tpu.memory_space<vmem>>, vector<4x256xf32>,
    %c241_i32 = arith.constant 241 : i32
    %692 = tpu.dynamic_rotate %662 by %c241_i32 dim 1 : vector<4x256xf32>, i32 -> vector<4x256xf32>
    %693 = vector.broadcast %664 : vector<1x256xf32> to vector<4x256xf32>
    %694 = arith.mulf %692, %693 : vector<4x256xf32>
    %695 = vector.broadcast %665 : vector<1x256xf32> to vector<4x256xf32>
    %696 = arith.mulf %694, %695 : vector<4x256xf32>
    %c24 = arith.constant 24 : index
    %c0_592 = arith.constant 0 : index
    %697 = vector.load %arg17[%c24, %c0_592] : memref<36x256xf32, #tpu.memory_space<vmem>>, vector<4x256xf32>
    tpu.vector_store %arg17[%c24, %c0_592], %696 {strides = array<i32>} : memref<36x256xf32, #tpu.memory_space<vmem>>, vector<4x256xf32>,
    %c240_i32 = arith.constant 240 : i32
    %698 = tpu.dynamic_rotate %662 by %c240_i32 dim 1 : vector<4x256xf32>, i32 -> vector<4x256xf32>
    %699 = vector.broadcast %664 : vector<1x256xf32> to vector<4x256xf32>
    %700 = arith.mulf %698, %699 : vector<4x256xf32>
    %c28 = arith.constant 28 : index
    %c0_593 = arith.constant 0 : index
    %701 = vector.load %arg17[%c28, %c0_593] : memref<36x256xf32, #tpu.memory_space<vmem>>, vector<4x256xf32>
    tpu.vector_store %arg17[%c28, %c0_593], %700 {strides = array<i32>} : memref<36x256xf32, #tpu.memory_space<vmem>>, vector<4x256xf32>,
    %c239_i32 = arith.constant 239 : i32
    %702 = tpu.dynamic_rotate %662 by %c239_i32 dim 1 : vector<4x256xf32>, i32 -> vector<4x256xf32>
    %703 = vector.broadcast %664 : vector<1x256xf32> to vector<4x256xf32>
    %704 = arith.mulf %702, %703 : vector<4x256xf32>
    %705 = vector.broadcast %666 : vector<1x256xf32> to vector<4x256xf32>
    %706 = arith.mulf %704, %705 : vector<4x256xf32>
    %c32_594 = arith.constant 32 : index
    %c0_595 = arith.constant 0 : index
    %707 = vector.load %arg17[%c32_594, %c0_595] : memref<36x256xf32, #tpu.memory_space<vmem>>, vector<4x256xf32>
    tpu.vector_store %arg17[%c32_594, %c0_595], %706 {strides = array<i32>} : memref<36x256xf32, #tpu.memory_space<vmem>>, vector<4x256xf32>,
    %c0_596 = arith.constant 0 : index
    %c0_597 = arith.constant 0 : index
    %708 = vector.load %arg4[%c0_596, %c0_597] : memref<8x36xbf16, #tpu.memory_space<vmem>>, vector<8x36xbf16>
    %c0_598 = arith.constant 0 : index
    %c0_599 = arith.constant 0 : index
    %709 = vector.load %arg17[%c0_598, %c0_599] : memref<36x256xf32, #tpu.memory_space<vmem>>, vector<36x256xf32>
    %710 = arith.truncf %709 : vector<36x256xf32> to vector<36x256xbf16>
    %cst_600 = arith.constant dense<0.000000e+00> : vector<8x256xf32>
    %711 = tpu.matmul %708, %710, %cst_600 {dimension_numbers = #tpu.dot_dimension_numbers<[1], [0], [0], [1], [0, 0, 1, 1], [], []>} : vector<8x36xbf16>, vector<36x256xbf16>, vector<8x256xf32> -> vector<8x256xf32>
    %c0_601 = arith.constant 0 : index
    %c2_602 = arith.constant 2 : index
    %712 = vector.load %arg6[%c0_601, %c2_602] : memref<8x9xf32, #tpu.memory_space<vmem>>, vector<8x1xf32>
    %713 = vector.broadcast %712 : vector<8x1xf32> to vector<8x256xf32>
    %714 = arith.mulf %711, %713 : vector<8x256xf32>
    %c0_603 = arith.constant 0 : index
    %c3_604 = arith.constant 3 : index
    %715 = vector.load %arg6[%c0_603, %c3_604] : memref<8x9xf32, #tpu.memory_space<vmem>>, vector<8x1xf32>
    %716 = vector.broadcast %715 : vector<8x1xf32> to vector<8x256xf32>
    %717 = arith.addf %714, %716 : vector<8x256xf32>
    %718 = arith.negf %717 : vector<8x256xf32>
    %719 = math.exp %718 : vector<8x256xf32>
    %cst_605 = arith.constant 1.000000e+00 : f32
    %720 = vector.broadcast %cst_605 : f32 to vector<8x256xf32>
    %721 = arith.addf %720, %719 : vector<8x256xf32>
    %722 = arith.divf %720, %721 : vector<8x256xf32>
    %723 = arith.mulf %717, %722 : vector<8x256xf32>
    %c0_606 = arith.constant 0 : index
    %c0_607 = arith.constant 0 : index
    %c0_608 = arith.constant 0 : index
    %724 = vector.load %arg13[%c0_606, %c0_607, %c0_608] : memref<1x8x256xf32, #tpu.memory_space<vmem>>, vector<1x8x256xf32>
    %725 = vector.shape_cast %724 : vector<1x8x256xf32> to vector<8x256xf32>
    %c10_609 = arith.constant 10 : index
    %726 = memref.load %arg1[%c10_609] : memref<11xf32, #tpu.memory_space<smem>>
    %727 = vector.broadcast %726 : f32 to vector<8x256xf32>
    %728 = arith.mulf %727, %723 : vector<8x256xf32>
    %729 = arith.addf %725, %728 : vector<8x256xf32>
    %c0_610 = arith.constant 0 : index
    %c0_611 = arith.constant 0 : index
    %c0_612 = arith.constant 0 : index
    %730 = vector.load %arg13[%c0_610, %c0_611, %c0_612] : memref<1x8x256xf32, #tpu.memory_space<vmem>>, vector<1x8x256xf32>
    %731 = vector.shape_cast %730 : vector<1x8x256xf32> to vector<8x256xf32>
    %732 = vector.shape_cast %729 : vector<8x256xf32> to vector<1x8x256xf32>
    tpu.vector_store %arg13[%c0_610, %c0_611, %c0_612], %732 {strides = array<i32>} : memref<1x8x256xf32, #tpu.memory_space<vmem>>, vector<1x8x256xf32>,
    %c0_613 = arith.constant 0 : index
    %c0_614 = arith.constant 0 : index
    %c0_615 = arith.constant 0 : index
    %733 = vector.load %arg2[%c0_613, %c0_614, %c0_615] : memref<1x4x256xf32, #tpu.memory_space<vmem>>, vector<1x4x256xf32>
    %734 = vector.shape_cast %733 : vector<1x4x256xf32> to vector<4x256xf32>
    %cst_616 = arith.constant dense<0xFF800000> : vector<256xf32>
    %735 = vector.multi_reduction <maximumf>, %734, %cst_616 [0] : vector<4x256xf32> to vector<256xf32>
    %736 = vector.shape_cast %735 : vector<256xf32> to vector<1x256xf32>
    %cst_617 = arith.constant dense<0.000000e+00> : vector<256xf32>
    %737 = vector.multi_reduction <add>, %734, %cst_617 [0] : vector<4x256xf32> to vector<256xf32>
    %738 = vector.shape_cast %737 : vector<256xf32> to vector<1x256xf32>
    %cst_618 = arith.constant 2.500000e-01 : f32
    %739 = vector.broadcast %cst_618 : f32 to vector<1x256xf32>
    %740 = arith.mulf %738, %739 : vector<1x256xf32>
    %c4_619 = arith.constant 4 : index
    %741 = memref.load %arg1[%c4_619] : memref<11xf32, #tpu.memory_space<smem>>
    %742 = vector.broadcast %741 : f32 to vector<1x256xf32>
    %743 = arith.mulf %742, %736 : vector<1x256xf32>
    %c5_620 = arith.constant 5 : index
    %744 = memref.load %arg1[%c5_620] : memref<11xf32, #tpu.memory_space<smem>>
    %745 = vector.broadcast %744 : f32 to vector<1x256xf32>
    %746 = arith.mulf %745, %740 : vector<1x256xf32>
    %747 = arith.addf %743, %746 : vector<1x256xf32>
    %c6_621 = arith.constant 6 : index
    %748 = memref.load %arg1[%c6_621] : memref<11xf32, #tpu.memory_space<smem>>
    %749 = vector.broadcast %748 : f32 to vector<1x256xf32>
    %750 = arith.mulf %747, %749 : vector<1x256xf32>
    %c7_622 = arith.constant 7 : index
    %751 = memref.load %arg1[%c7_622] : memref<11xf32, #tpu.memory_space<smem>>
    %752 = vector.broadcast %751 : f32 to vector<1x256xf32>
    %753 = arith.addf %750, %752 : vector<1x256xf32>
    %754 = arith.negf %753 : vector<1x256xf32>
    %755 = math.exp %754 : vector<1x256xf32>
    %cst_623 = arith.constant 1.000000e+00 : f32
    %756 = vector.broadcast %cst_623 : f32 to vector<1x256xf32>
    %757 = arith.addf %756, %755 : vector<1x256xf32>
    %758 = arith.divf %756, %757 : vector<1x256xf32>
    %759 = arith.mulf %753, %758 : vector<1x256xf32>
    %760 = arith.negf %759 : vector<1x256xf32>
    %761 = math.exp %760 : vector<1x256xf32>
    %cst_624 = arith.constant 1.000000e+00 : f32
    %762 = vector.broadcast %cst_624 : f32 to vector<1x256xf32>
    %763 = arith.addf %762, %761 : vector<1x256xf32>
    %764 = arith.divf %762, %763 : vector<1x256xf32>
    %c0_625 = arith.constant 0 : index
    %c0_626 = arith.constant 0 : index
    %765 = vector.load %arg5[%c0_625, %c0_626] : memref<8x4xbf16, #tpu.memory_space<vmem>>, vector<8x4xbf16>
    %766 = arith.truncf %734 : vector<4x256xf32> to vector<4x256xbf16>
    %cst_627 = arith.constant dense<0.000000e+00> : vector<8x256xf32>
    %767 = tpu.matmul %765, %766, %cst_627 {dimension_numbers = #tpu.dot_dimension_numbers<[1], [0], [0], [1], [0, 0, 1, 1], [], []>} : vector<8x4xbf16>, vector<4x256xbf16>, vector<8x256xf32> -> vector<8x256xf32>
    %c0_628 = arith.constant 0 : index
    %c4_629 = arith.constant 4 : index
    %768 = vector.load %arg6[%c0_628, %c4_629] : memref<8x9xf32, #tpu.memory_space<vmem>>, vector<8x1xf32>
    %769 = vector.broadcast %768 : vector<8x1xf32> to vector<8x256xf32>
    %770 = arith.mulf %767, %769 : vector<8x256xf32>
    %c0_630 = arith.constant 0 : index
    %c5_631 = arith.constant 5 : index
    %771 = vector.load %arg6[%c0_630, %c5_631] : memref<8x9xf32, #tpu.memory_space<vmem>>, vector<8x1xf32>
    %772 = vector.broadcast %771 : vector<8x1xf32> to vector<8x256xf32>
    %773 = arith.addf %770, %772 : vector<8x256xf32>
    %774 = arith.negf %773 : vector<8x256xf32>
    %775 = math.exp %774 : vector<8x256xf32>
    %cst_632 = arith.constant 1.000000e+00 : f32
    %776 = vector.broadcast %cst_632 : f32 to vector<8x256xf32>
    %777 = arith.addf %776, %775 : vector<8x256xf32>
    %778 = arith.divf %776, %777 : vector<8x256xf32>
    %779 = arith.mulf %773, %778 : vector<8x256xf32>
    %c0_633 = arith.constant 0 : index
    %c0_634 = arith.constant 0 : index
    %c0_635 = arith.constant 0 : index
    %780 = vector.load %arg13[%c0_633, %c0_634, %c0_635] : memref<1x8x256xf32, #tpu.memory_space<vmem>>, vector<1x8x256xf32>
    %781 = vector.shape_cast %780 : vector<1x8x256xf32> to vector<8x256xf32>
    %c8_636 = arith.constant 8 : index
    %782 = memref.load %arg1[%c8_636] : memref<11xf32, #tpu.memory_space<smem>>
    %783 = vector.broadcast %764 : vector<1x256xf32> to vector<8x256xf32>
    %784 = arith.mulf %779, %783 : vector<8x256xf32>
    %785 = vector.broadcast %782 : f32 to vector<8x256xf32>
    %786 = arith.mulf %785, %784 : vector<8x256xf32>
    %787 = arith.addf %781, %786 : vector<8x256xf32>
    %c0_637 = arith.constant 0 : index
    %c0_638 = arith.constant 0 : index
    %c0_639 = arith.constant 0 : index
    %788 = vector.load %arg13[%c0_637, %c0_638, %c0_639] : memref<1x8x256xf32, #tpu.memory_space<vmem>>, vector<1x8x256xf32>
    %789 = vector.shape_cast %788 : vector<1x8x256xf32> to vector<8x256xf32>
    %790 = vector.shape_cast %787 : vector<8x256xf32> to vector<1x8x256xf32>
    tpu.vector_store %arg13[%c0_637, %c0_638, %c0_639], %790 {strides = array<i32>} : memref<1x8x256xf32, #tpu.memory_space<vmem>>, vector<1x8x256xf32>,
    %c0_640 = arith.constant 0 : index
    %c0_641 = arith.constant 0 : index
    %c0_642 = arith.constant 0 : index
    %791 = vector.load %arg13[%c0_640, %c0_641, %c0_642] : memref<1x8x256xf32, #tpu.memory_space<vmem>>, vector<1x8x256xf32>
    %792 = vector.shape_cast %791 : vector<1x8x256xf32> to vector<8x256xf32>
    %c0_643 = arith.constant 0 : index
    %c0_644 = arith.constant 0 : index
    %793 = vector.load %arg7[%c0_643, %c0_644] : memref<16x8xbf16, #tpu.memory_space<vmem>>, vector<16x8xbf16>
    %794 = arith.truncf %792 : vector<8x256xf32> to vector<8x256xbf16>
    %cst_645 = arith.constant dense<0.000000e+00> : vector<16x256xf32>
    %795 = tpu.matmul %793, %794, %cst_645 {dimension_numbers = #tpu.dot_dimension_numbers<[1], [0], [0], [1], [0, 0, 1, 1], [], []>} : vector<16x8xbf16>, vector<8x256xbf16>, vector<16x256xf32> -> vector<16x256xf32>
    %c0_646 = arith.constant 0 : index
    %c0_647 = arith.constant 0 : index
    %796 = vector.load %arg8[%c0_646, %c0_647] : memref<16x1xf32, #tpu.memory_space<vmem>>, vector<16x1xf32>
    %797 = vector.broadcast %796 : vector<16x1xf32> to vector<16x256xf32>
    %798 = arith.addf %795, %797 : vector<16x256xf32>
    %799 = vector.extract_strided_slice %798 {offsets = [0, 0], sizes = [4, 256], strides = [1, 1]} : vector<16x256xf32> to vector<4x256xf32>
    %800 = vector.extract_strided_slice %798 {offsets = [4, 0], sizes = [4, 256], strides = [1, 1]} : vector<16x256xf32> to vector<4x256xf32>
    %801 = vector.extract_strided_slice %798 {offsets = [8, 0], sizes = [4, 256], strides = [1, 1]} : vector<16x256xf32> to vector<4x256xf32>
    %802 = vector.extract_strided_slice %798 {offsets = [12, 0], sizes = [1, 256], strides = [1, 1]} : vector<16x256xf32> to vector<1x256xf32>
    %cst_648 = arith.constant dense<0xFF800000> : vector<1xf32>
    %803 = vector.multi_reduction <maximumf>, %802, %cst_648 [1] : vector<1x256xf32> to vector<1xf32>
    %804 = vector.shape_cast %803 : vector<1xf32> to vector<1x1xf32>
    %805 = vector.broadcast %804 : vector<1x1xf32> to vector<1x256xf32>
    %806 = arith.subf %802, %805 : vector<1x256xf32>
    %807 = math.exp %806 : vector<1x256xf32>
    %cst_649 = arith.constant dense<0.000000e+00> : vector<1xf32>
    %808 = vector.multi_reduction <add>, %807, %cst_649 [1] : vector<1x256xf32> to vector<1xf32>
    %809 = vector.shape_cast %808 : vector<1xf32> to vector<1x1xf32>
    %810 = tpu.reciprocal %809 {approx = true} : vector<1x1xf32> -> vector<1x1xf32>
    %811 = vector.broadcast %810 : vector<1x1xf32> to vector<1x256xf32>
    %812 = arith.mulf %807, %811 : vector<1x256xf32>
    %813 = vector.broadcast %812 : vector<1x256xf32> to vector<4x256xf32>
    %814 = arith.mulf %799, %813 : vector<4x256xf32>
    %cst_650 = arith.constant dense<0.000000e+00> : vector<4xf32>
    %815 = vector.multi_reduction <add>, %814, %cst_650 [1] : vector<4x256xf32> to vector<4xf32>
    %816 = vector.shape_cast %815 : vector<4xf32> to vector<4x1xf32>
    %c0_651 = arith.constant 0 : index
    %c0_652 = arith.constant 0 : index
    %817 = vector.load %arg9[%c0_651, %c0_652] : memref<8x4xf32, #tpu.memory_space<vmem>>, vector<8x4xf32>
    %cst_653 = arith.constant dense<0.000000e+00> : vector<8x1xf32>
    %818 = tpu.matmul %817, %816, %cst_653 {dimension_numbers = #tpu.dot_dimension_numbers<[1], [0], [0], [1], [0, 0, 1, 1], [], []>} : vector<8x4xf32>, vector<4x1xf32>, vector<8x1xf32> -> vector<8x1xf32>
    %c0_654 = arith.constant 0 : index
    %c8_655 = arith.constant 8 : index
    %819 = vector.load %arg6[%c0_654, %c8_655] : memref<8x9xf32, #tpu.memory_space<vmem>>, vector<8x1xf32>
    %820 = arith.addf %818, %819 : vector<8x1xf32>
    %cst_656 = arith.constant dense<0.000000e+00> : vector<1xf32>
    %821 = vector.multi_reduction <add>, %820, %cst_656 [0] : vector<8x1xf32> to vector<1xf32>
    %822 = vector.shape_cast %821 : vector<1xf32> to vector<1x1xf32>
    %cst_657 = arith.constant 8.000000e+00 : f32
    %823 = vector.broadcast %cst_657 : f32 to vector<1x1xf32>
    %824 = arith.divf %822, %823 : vector<1x1xf32>
    %825 = vector.broadcast %824 : vector<1x1xf32> to vector<8x1xf32>
    %826 = arith.subf %820, %825 : vector<8x1xf32>
    %827 = arith.mulf %826, %826 : vector<8x1xf32>
    %cst_658 = arith.constant dense<0.000000e+00> : vector<1xf32>
    %828 = vector.multi_reduction <add>, %827, %cst_658 [0] : vector<8x1xf32> to vector<1xf32>
    %829 = vector.shape_cast %828 : vector<1xf32> to vector<1x1xf32>
    %cst_659 = arith.constant 8.000000e+00 : f32
    %830 = vector.broadcast %cst_659 : f32 to vector<1x1xf32>
    %831 = arith.divf %829, %830 : vector<1x1xf32>
    %832 = vector.broadcast %824 : vector<1x1xf32> to vector<8x1xf32>
    %833 = arith.subf %820, %832 : vector<8x1xf32>
    %cst_660 = arith.constant 9.99999974E-6 : f32
    %834 = vector.broadcast %cst_660 : f32 to vector<1x1xf32>
    %835 = arith.addf %831, %834 : vector<1x1xf32>
    %836 = math.rsqrt %835 : vector<1x1xf32>
    %837 = vector.broadcast %836 : vector<1x1xf32> to vector<8x1xf32>
    %838 = arith.mulf %833, %837 : vector<8x1xf32>
    %c0_661 = arith.constant 0 : index
    %c6_662 = arith.constant 6 : index
    %839 = vector.load %arg6[%c0_661, %c6_662] : memref<8x9xf32, #tpu.memory_space<vmem>>, vector<8x1xf32>
    %840 = arith.mulf %838, %839 : vector<8x1xf32>
    %c0_663 = arith.constant 0 : index
    %c7_664 = arith.constant 7 : index
    %841 = vector.load %arg6[%c0_663, %c7_664] : memref<8x9xf32, #tpu.memory_space<vmem>>, vector<8x1xf32>
    %842 = arith.addf %840, %841 : vector<8x1xf32>
    %843 = arith.negf %842 : vector<8x1xf32>
    %844 = math.exp %843 : vector<8x1xf32>
    %cst_665 = arith.constant 1.000000e+00 : f32
    %845 = vector.broadcast %cst_665 : f32 to vector<8x1xf32>
    %846 = arith.addf %845, %844 : vector<8x1xf32>
    %847 = arith.divf %845, %846 : vector<8x1xf32>
    %cst_666 = arith.constant dense<0.000000e+00> : vector<4xf32>
    %848 = vector.multi_reduction <add>, %801, %cst_666 [1] : vector<4x256xf32> to vector<4xf32>
    %849 = vector.shape_cast %848 : vector<4xf32> to vector<4x1xf32>
    %cst_667 = arith.constant 3.906250e-03 : f32
    %850 = vector.broadcast %cst_667 : f32 to vector<4x1xf32>
    %851 = arith.mulf %849, %850 : vector<4x1xf32>
    %cst_668 = arith.constant dense<0xFF800000> : vector<1xf32>
    %852 = vector.multi_reduction <maximumf>, %851, %cst_668 [0] : vector<4x1xf32> to vector<1xf32>
    %853 = vector.shape_cast %852 : vector<1xf32> to vector<1x1xf32>
    %854 = vector.broadcast %853 : vector<1x1xf32> to vector<4x1xf32>
    %855 = arith.subf %851, %854 : vector<4x1xf32>
    %856 = math.exp %855 : vector<4x1xf32>
    %cst_669 = arith.constant dense<0.000000e+00> : vector<1xf32>
    %857 = vector.multi_reduction <add>, %856, %cst_669 [0] : vector<4x1xf32> to vector<1xf32>
    %858 = vector.shape_cast %857 : vector<1xf32> to vector<1x1xf32>
    %859 = tpu.reciprocal %858 {approx = true} : vector<1x1xf32> -> vector<1x1xf32>
    %860 = vector.broadcast %859 : vector<1x1xf32> to vector<4x1xf32>
    %861 = arith.mulf %856, %860 : vector<4x1xf32>
    %862 = vector.broadcast %861 : vector<4x1xf32> to vector<4x256xf32>
    %863 = arith.mulf %800, %862 : vector<4x256xf32>
    %cst_670 = arith.constant dense<0.000000e+00> : vector<256xf32>
    %864 = vector.multi_reduction <add>, %863, %cst_670 [0] : vector<4x256xf32> to vector<256xf32>
    %865 = vector.shape_cast %864 : vector<256xf32> to vector<1x256xf32>
    %866 = arith.negf %865 : vector<1x256xf32>
    %867 = math.exp %866 : vector<1x256xf32>
    %cst_671 = arith.constant 1.000000e+00 : f32
    %868 = vector.broadcast %cst_671 : f32 to vector<1x256xf32>
    %869 = arith.addf %868, %867 : vector<1x256xf32>
    %870 = arith.divf %868, %869 : vector<1x256xf32>
    %871 = vector.broadcast %847 : vector<8x1xf32> to vector<8x256xf32>
    %872 = vector.broadcast %870 : vector<1x256xf32> to vector<8x256xf32>
    %873 = arith.addf %871, %872 : vector<8x256xf32>
    %874 = arith.mulf %792, %873 : vector<8x256xf32>
    %c0_672 = arith.constant 0 : index
    %c0_673 = arith.constant 0 : index
    %c0_674 = arith.constant 0 : index
    %875 = vector.load %arg13[%c0_672, %c0_673, %c0_674] : memref<1x8x256xf32, #tpu.memory_space<vmem>>, vector<1x8x256xf32>
    %876 = vector.shape_cast %875 : vector<1x8x256xf32> to vector<8x256xf32>
    %877 = vector.shape_cast %874 : vector<8x256xf32> to vector<1x8x256xf32>
    tpu.vector_store %arg13[%c0_672, %c0_673, %c0_674], %877 {strides = array<i32>} : memref<1x8x256xf32, #tpu.memory_space<vmem>>, vector<1x8x256xf32>,
    return
  }
  func.func @transform_0(%arg0: i32) -> i32 {
    %c0_i32 = arith.constant 0 : i32
    %c0_i32_0 = arith.constant 0 : i32
    return %c0_i32 : i32
  }
  func.func @transform_1(%arg0: i32) -> (i32, i32, i32) {
    %c0_i32 = arith.constant 0 : i32
    %c0_i32_0 = arith.constant 0 : i32
    %c0_i32_1 = arith.constant 0 : i32
    return %arg0, %c0_i32, %c0_i32_0 : i32, i32, i32
  }
  func.func @transform_2(%arg0: i32) -> (i32, i32) {
    %c0_i32 = arith.constant 0 : i32
    %c0_i32_0 = arith.constant 0 : i32
    %c0_i32_1 = arith.constant 0 : i32
    return %c0_i32, %c0_i32_0 : i32, i32
  }
  func.func @transform_3(%arg0: i32) -> (i32, i32) {
    %c0_i32 = arith.constant 0 : i32
    %c0_i32_0 = arith.constant 0 : i32
    %c0_i32_1 = arith.constant 0 : i32
    return %c0_i32, %c0_i32_0 : i32, i32
  }
  func.func @transform_4(%arg0: i32) -> (i32, i32) {
    %c0_i32 = arith.constant 0 : i32
    %c0_i32_0 = arith.constant 0 : i32
    %c0_i32_1 = arith.constant 0 : i32
    return %c0_i32, %c0_i32_0 : i32, i32
  }
  func.func @transform_5(%arg0: i32) -> (i32, i32) {
    %c0_i32 = arith.constant 0 : i32
    %c0_i32_0 = arith.constant 0 : i32
    %c0_i32_1 = arith.constant 0 : i32
    return %c0_i32, %c0_i32_0 : i32, i32
  }
  func.func @transform_6(%arg0: i32) -> (i32, i32) {
    %c0_i32 = arith.constant 0 : i32
    %c0_i32_0 = arith.constant 0 : i32
    %c0_i32_1 = arith.constant 0 : i32
    return %c0_i32, %c0_i32_0 : i32, i32
  }
  func.func @transform_7(%arg0: i32) -> (i32, i32) {
    %c0_i32 = arith.constant 0 : i32
    %c0_i32_0 = arith.constant 0 : i32
    %c0_i32_1 = arith.constant 0 : i32
    return %c0_i32, %c0_i32_0 : i32, i32
  }
  func.func @transform_8(%arg0: i32) -> (i32, i32) {
    %c0_i32 = arith.constant 0 : i32
    %c0_i32_0 = arith.constant 0 : i32
    %c0_i32_1 = arith.constant 0 : i32
    return %c0_i32, %c0_i32_0 : i32, i32
  }
  func.func @transform_9(%arg0: i32) -> (i32, i32, i32) {
    %c0_i32 = arith.constant 0 : i32
    %c0_i32_0 = arith.constant 0 : i32
    %c0_i32_1 = arith.constant 0 : i32
    %c0_i32_2 = arith.constant 0 : i32
    return %c0_i32, %c0_i32_0, %c0_i32_1 : i32, i32, i32
  }
  func.func @transform_10(%arg0: i32) -> (i32, i32, i32) {
    %c0_i32 = arith.constant 0 : i32
    %c0_i32_0 = arith.constant 0 : i32
    %c0_i32_1 = arith.constant 0 : i32
    %c0_i32_2 = arith.constant 0 : i32
    return %c0_i32, %c0_i32_0, %c0_i32_1 : i32, i32, i32
  }
  func.func @transform_11(%arg0: i32) -> (i32, i32) {
    %c0_i32 = arith.constant 0 : i32
    %c0_i32_0 = arith.constant 0 : i32
    %c0_i32_1 = arith.constant 0 : i32
    return %c0_i32, %c0_i32_0 : i32, i32
  }
  func.func @transform_12(%arg0: i32) -> (i32, i32, i32) {
    %c0_i32 = arith.constant 0 : i32
    %c0_i32_0 = arith.constant 0 : i32
    %c0_i32_1 = arith.constant 0 : i32
    return %arg0, %c0_i32, %c0_i32_0 : i32, i32, i32
  }
}

</mosaic_0001>

<llo_original>
// kernel: triplet_attention_conv4.1
$region0: #{triplet_attention_conv4.1}
  #allocation0 [shape = 'u32[]', space=smem, size = 0x4, offset = 0x4, fixed_abs, tag = 'smem constant byte address 0x4 - core index']
  #allocation1 [shape = 'u32[144,128]{1,0:T(1,128)}', space=vmem, size = 0x12000, scoped, tag = 'internal scratch']
  #allocation2 [shape = 'f32[2,10,16]{2,1,0:T(8,128)}', space=vmem, size = 0x4000, scoped, tag = 'scratch operand']
  #allocation3 [shape = 'f32[2,10,16]{2,1,0:T(8,128)}', space=vmem, size = 0x4000, scoped, tag = 'scratch operand']
  #allocation4 [shape = 'f32[4,256]{1,0:T(4,128)}', space=vmem, size = 0x1000, scoped, tag = 'scratch operand']
  #allocation5 [shape = 'f32[36,256]{1,0:T(8,128)}', space=vmem, size = 0xa000, scoped, tag = 'scratch operand']
  %s0 = inlined_call_operand.vmem [shape: f32[11], index: 0, kind: input, shape index: {}]
  %s1 = inlined_call_operand.vmem [shape: f32[2,4,256], index: 1, kind: input, shape index: {}]
  %s2 = inlined_call_operand.vmem [shape: bf16[8,4], index: 2, kind: input, shape index: {}]
  %s3 = inlined_call_operand.vmem [shape: bf16[8,36], index: 3, kind: input, shape index: {}]
  %s4 = inlined_call_operand.vmem [shape: bf16[8,4], index: 4, kind: input, shape index: {}]
  %s5 = inlined_call_operand.vmem [shape: f32[8,9], index: 5, kind: input, shape index: {}]
  %s6 = inlined_call_operand.vmem [shape: bf16[16,8], index: 6, kind: input, shape index: {}]
  %s7 = inlined_call_operand.vmem [shape: f32[16,1], index: 7, kind: input, shape index: {}]
  %s8 = inlined_call_operand.vmem [shape: f32[8,4], index: 8, kind: input, shape index: {}]
  %s9 = inlined_call_operand.vmem [shape: f32[14,16,16], index: 9, kind: input, shape index: {}]
  %s10 = inlined_call_operand.vmem [shape: f32[14,16,16], index: 10, kind: input, shape index: {}]
  %s11 = inlined_call_operand.vmem [shape: f32[4,256], index: 11, kind: input, shape index: {}]
  %s12 = inlined_call_operand.vmem [shape: f32[2,8,256], index: 12, kind: output, shape index: {}]
  %s13 = sld [smem:[#allocation0]]
  $region85: #{triplet_attention_conv4.1} parent=0
    _
  %s15 = ssub.s32 1, %s13
  %s16 = scalar_select 0, %s15, %s13
  $region1: #{triplet_attention_conv4.1} parent=0
    #allocation6 [shape = 'u8[512]{0}', space=smem, size = 0x200, scoped, tag = 'input window, operand 0, single buffered']
    #allocation7 [shape = 's32[2]{0}', space=sflag, size = 0x8, scoped, tag = 'scoped memory for triplet_attention_conv4.1']
    %17 = vsyncpa [#allocation7], 0
    loop: start=0, step=1, limit=4
    $region2: #{triplet_attention_conv4.1} parent=1 // loop_pre_header
      _
    $region3: #{triplet_attention_conv4.1} parent=1 // loop_header
      %s19 = sphi 0, %s23
      %p20 = scmp.ge.s32.totalorder %s19, 4
      %s27 = sphi 0, %s27
      %s29 = sphi 0, %s27
      %s30 = sphi 0, %s29
      %s44 = sphi 0, %s30
      %s50 = sphi 0, %s52
      %s53 = sphi 0, %s50
      %s54 = sphi 0, %s53
      %s70 = sphi 0, %s54
      %s74 = sphi 0, %s74
      %s76 = sphi 0, %s74
      %s77 = sphi 0, %s76
      %s91 = sphi 0, %s77
      %s95 = sphi 0, %s95
      %s97 = sphi 0, %s95
      %s98 = sphi 0, %s97
      %s112 = sphi 0, %s98
      %s116 = sphi 0, %s116
      %s118 = sphi 0, %s116
      %s119 = sphi 0, %s118
      %s133 = sphi 0, %s119
      %s137 = sphi 0, %s137
      %s139 = sphi 0, %s137
      %s140 = sphi 0, %s139
      %s154 = sphi 0, %s140
      %s158 = sphi 0, %s158
      %s160 = sphi 0, %s158
      %s161 = sphi 0, %s160
      %s175 = sphi 0, %s161
      %s179 = sphi 0, %s179
      %s181 = sphi 0, %s179
      %s182 = sphi 0, %s181
      %s196 = sphi 0, %s182
      %s200 = sphi 0, %s200
      %s202 = sphi 0, %s200
      %s203 = sphi 0, %s202
      %s217 = sphi 0, %s203
      %s221 = sphi 0, %s221
      %s223 = sphi 0, %s221
      %s224 = sphi 0, %s223
      %s238 = sphi 0, %s224
      %s242 = sphi 0, %s242
      %s244 = sphi 0, %s242
      %s245 = sphi 0, %s244
      %s259 = sphi 0, %s245
      %s263 = sphi 0, %s263
      %s265 = sphi 0, %s263
      %s266 = sphi 0, %s265
      %s280 = sphi 0, %s266
      %s286 = sphi 0, %s288
      %s289 = sphi 0, %s286
      %s290 = sphi 0, %s289
      %s306 = sphi 0, %s290
    $region4: #{triplet_attention_conv4.1} parent=1 // loop_header_branch
      %22 = sbr.rel (%p20) target = $region8
    $region5: #{triplet_attention_conv4.1} parent=1 // loop_body
      %s24 = ssub.s32 %s19, 1
      %s25 = ssub.s32 %s19, 2
      %s26 = sadd.s32 %s19, 1
      %s28 = sadd.s32 %s27, 1
      %p31 = scmp.eq.s32.totalorder %s19, 1
      %p32 = scmp.ne.s32.totalorder %s27, %s29
      %p33 = scmp.eq.s32.totalorder %s19, 0
      %p34 = por %p32, %p33
      %p35 = scmp.ne.s32.totalorder %s27, %s29
      %p36 = scmp.eq.s32.totalorder %s24, 1
      %p37 = por %p35, %p36
      %p38 = scmp.ne.s32.totalorder %s29, %s30
      %p39 = scmp.eq.s32.totalorder %s24, 0
      %p40 = por %p38, %p39
      %p41 = scmp.ne.s32.totalorder %s29, %s30
      %p42 = scmp.eq.s32.totalorder %s25, 1
      %p43 = por %p41, %p42
      %p45 = scmp.ne.s32.totalorder %s30, %s44
      %p46 = scmp.eq.s32.totalorder %s25, 0
      %p47 = por %p45, %p46
      %s48 = ssub.s32 %s19, %s26
      %p49 = scmp.eq.s32.totalorder %s48, 0
      %s51 = sadd.s32 %s50, 1
      %s52 = scalar_select %p49, %s50, %s51
      %p55 = pneg %p49
      %p56 = scmp.eq.s32.totalorder %s19, 1
      %p57 = por %p55, %p56
      %p58 = scmp.ne.s32.totalorder %s50, %s53
      %p59 = scmp.eq.s32.totalorder %s19, 0
      %p60 = por %p58, %p59
      %p61 = scmp.ne.s32.totalorder %s50, %s53
      %p62 = scmp.eq.s32.totalorder %s24, 1
      %p63 = por %p61, %p62
      %p64 = scmp.ne.s32.totalorder %s53, %s54
      %p65 = scmp.eq.s32.totalorder %s24, 0
      %p66 = por %p64, %p65
      %p67 = scmp.ne.s32.totalorder %s53, %s54
      %p68 = scmp.eq.s32.totalorder %s25, 1
      %p69 = por %p67, %p68
      %p71 = scmp.ne.s32.totalorder %s54, %s70
      %p72 = scmp.eq.s32.totalorder %s25, 0
      %p73 = por %p71, %p72
      %s75 = sadd.s32 %s74, 1
      %p78 = scmp.eq.s32.totalorder %s19, 1
      %p79 = scmp.ne.s32.totalorder %s74, %s76
      %p80 = scmp.eq.s32.totalorder %s19, 0
      %p81 = por %p79, %p80
      %p82 = scmp.ne.s32.totalorder %s74, %s76
      %p83 = scmp.eq.s32.totalorder %s24, 1
      %p84 = por %p82, %p83
      %p85 = scmp.ne.s32.totalorder %s76, %s77
      %p86 = scmp.eq.s32.totalorder %s24, 0
      %p87 = por %p85, %p86
      %p88 = scmp.ne.s32.totalorder %s76, %s77
      %p89 = scmp.eq.s32.totalorder %s25, 1
      %p90 = por %p88, %p89
      %p92 = scmp.ne.s32.totalorder %s77, %s91
      %p93 = scmp.eq.s32.totalorder %s25, 0
      %p94 = por %p92, %p93
      %s96 = sadd.s32 %s95, 1
      %p99 = scmp.eq.s32.totalorder %s19, 1
      %p100 = scmp.ne.s32.totalorder %s95, %s97
      %p101 = scmp.eq.s32.totalorder %s19, 0
      %p102 = por %p100, %p101
      %p103 = scmp.ne.s32.totalorder %s95, %s97
      %p104 = scmp.eq.s32.totalorder %s24, 1
      %p105 = por %p103, %p104
      %p106 = scmp.ne.s32.totalorder %s97, %s98
      %p107 = scmp.eq.s32.totalorder %s24, 0
      %p108 = por %p106, %p107
      %p109 = scmp.ne.s32.totalorder %s97, %s98
      %p110 = scmp.eq.s32.totalorder %s25, 1
      %p111 = por %p109, %p110
      %p113 = scmp.ne.s32.totalorder %s98, %s112
      %p114 = scmp.eq.s32.totalorder %s25, 0
      %p115 = por %p113, %p114
      %s117 = sadd.s32 %s116, 1
      %p120 = scmp.eq.s32.totalorder %s19, 1
      %p121 = scmp.ne.s32.totalorder %s116, %s118
      %p122 = scmp.eq.s32.totalorder %s19, 0
      %p123 = por %p121, %p122
      %p124 = scmp.ne.s32.totalorder %s116, %s118
      %p125 = scmp.eq.s32.totalorder %s24, 1
      %p126 = por %p124, %p125
      %p127 = scmp.ne.s32.totalorder %s118, %s119
      %p128 = scmp.eq.s32.totalorder %s24, 0
      %p129 = por %p127, %p128
      %p130 = scmp.ne.s32.totalorder %s118, %s119
      %p131 = scmp.eq.s32.totalorder %s25, 1
      %p132 = por %p130, %p131
      %p134 = scmp.ne.s32.totalorder %s119, %s133
      %p135 = scmp.eq.s32.totalorder %s25, 0
      %p136 = por %p134, %p135
      %s138 = sadd.s32 %s137, 1
      %p141 = scmp.eq.s32.totalorder %s19, 1
      %p142 = scmp.ne.s32.totalorder %s137, %s139
      %p143 = scmp.eq.s32.totalorder %s19, 0
      %p144 = por %p142, %p143
      %p145 = scmp.ne.s32.totalorder %s137, %s139
      %p146 = scmp.eq.s32.totalorder %s24, 1
      %p147 = por %p145, %p146
      %p148 = scmp.ne.s32.totalorder %s139, %s140
      %p149 = scmp.eq.s32.totalorder %s24, 0
      %p150 = por %p148, %p149
      %p151 = scmp.ne.s32.totalorder %s139, %s140
      %p152 = scmp.eq.s32.totalorder %s25, 1
      %p153 = por %p151, %p152
      %p155 = scmp.ne.s32.totalorder %s140, %s154
      %p156 = scmp.eq.s32.totalorder %s25, 0
      %p157 = por %p155, %p156
      %s159 = sadd.s32 %s158, 1
      %p162 = scmp.eq.s32.totalorder %s19, 1
      %p163 = scmp.ne.s32.totalorder %s158, %s160
      %p164 = scmp.eq.s32.totalorder %s19, 0
      %p165 = por %p163, %p164
      %p166 = scmp.ne.s32.totalorder %s158, %s160
      %p167 = scmp.eq.s32.totalorder %s24, 1
      %p168 = por %p166, %p167
      %p169 = scmp.ne.s32.totalorder %s160, %s161
      %p170 = scmp.eq.s32.totalorder %s24, 0
      %p171 = por %p169, %p170
      %p172 = scmp.ne.s32.totalorder %s160, %s161
      %p173 = scmp.eq.s32.totalorder %s25, 1
      %p174 = por %p172, %p173
      %p176 = scmp.ne.s32.totalorder %s161, %s175
      %p177 = scmp.eq.s32.totalorder %s25, 0
      %p178 = por %p176, %p177
      %s180 = sadd.s32 %s179, 1
      %p183 = scmp.eq.s32.totalorder %s19, 1
      %p184 = scmp.ne.s32.totalorder %s179, %s181
      %p185 = scmp.eq.s32.totalorder %s19, 0
      %p186 = por %p184, %p185
      %p187 = scmp.ne.s32.totalorder %s179, %s181
      %p188 = scmp.eq.s32.totalorder %s24, 1
      %p189 = por %p187, %p188
      %p190 = scmp.ne.s32.totalorder %s181, %s182
      %p191 = scmp.eq.s32.totalorder %s24, 0
      %p192 = por %p190, %p191
      %p193 = scmp.ne.s32.totalorder %s181, %s182
      %p194 = scmp.eq.s32.totalorder %s25, 1
      %p195 = por %p193, %p194
      %p197 = scmp.ne.s32.totalorder %s182, %s196
      %p198 = scmp.eq.s32.totalorder %s25, 0
      %p199 = por %p197, %p198
      %s201 = sadd.s32 %s200, 1
      %p204 = scmp.eq.s32.totalorder %s19, 1
      %p205 = scmp.ne.s32.totalorder %s200, %s202
      %p206 = scmp.eq.s32.totalorder %s19, 0
      %p207 = por %p205, %p206
      %p208 = scmp.ne.s32.totalorder %s200, %s202
      %p209 = scmp.eq.s32.totalorder %s24, 1
      %p210 = por %p208, %p209
      %p211 = scmp.ne.s32.totalorder %s202, %s203
      %p212 = scmp.eq.s32.totalorder %s24, 0
      %p213 = por %p211, %p212
      %p214 = scmp.ne.s32.totalorder %s202, %s203
      %p215 = scmp.eq.s32.totalorder %s25, 1
      %p216 = por %p214, %p215
      %p218 = scmp.ne.s32.totalorder %s203, %s217
      %p219 = scmp.eq.s32.totalorder %s25, 0
      %p220 = por %p218, %p219
      %s222 = sadd.s32 %s221, 1
      %p225 = scmp.eq.s32.totalorder %s19, 1
      %p226 = scmp.ne.s32.totalorder %s221, %s223
      %p227 = scmp.eq.s32.totalorder %s19, 0
      %p228 = por %p226, %p227
      %p229 = scmp.ne.s32.totalorder %s221, %s223
      %p230 = scmp.eq.s32.totalorder %s24, 1
      %p231 = por %p229, %p230
      %p232 = scmp.ne.s32.totalorder %s223, %s224
      %p233 = scmp.eq.s32.totalorder %s24, 0
      %p234 = por %p232, %p233
      %p235 = scmp.ne.s32.totalorder %s223, %s224
      %p236 = scmp.eq.s32.totalorder %s25, 1
      %p237 = por %p235, %p236
      %p239 = scmp.ne.s32.totalorder %s224, %s238
      %p240 = scmp.eq.s32.totalorder %s25, 0
      %p241 = por %p239, %p240
      %s243 = sadd.s32 %s242, 1
      %p246 = scmp.eq.s32.totalorder %s19, 1
      %p247 = scmp.ne.s32.totalorder %s242, %s244
      %p248 = scmp.eq.s32.totalorder %s19, 0
      %p249 = por %p247, %p248
      %p250 = scmp.ne.s32.totalorder %s242, %s244
      %p251 = scmp.eq.s32.totalorder %s24, 1
      %p252 = por %p250, %p251
      %p253 = scmp.ne.s32.totalorder %s244, %s245
      %p254 = scmp.eq.s32.totalorder %s24, 0
      %p255 = por %p253, %p254
      %p256 = scmp.ne.s32.totalorder %s244, %s245
      %p257 = scmp.eq.s32.totalorder %s25, 1
      %p258 = por %p256, %p257
      %p260 = scmp.ne.s32.totalorder %s245, %s259
      %p261 = scmp.eq.s32.totalorder %s25, 0
      %p262 = por %p260, %p261
      %s264 = sadd.s32 %s263, 1
      %p267 = scmp.eq.s32.totalorder %s19, 1
      %p268 = scmp.ne.s32.totalorder %s263, %s265
      %p269 = scmp.eq.s32.totalorder %s19, 0
      %p270 = por %p268, %p269
      %p271 = scmp.ne.s32.totalorder %s263, %s265
      %p272 = scmp.eq.s32.totalorder %s24, 1
      %p273 = por %p271, %p272
      %p274 = scmp.ne.s32.totalorder %s265, %s266
      %p275 = scmp.eq.s32.totalorder %s24, 0
      %p276 = por %p274, %p275
      %p277 = scmp.ne.s32.totalorder %s265, %s266
      %p278 = scmp.eq.s32.totalorder %s25, 1
      %p279 = por %p277, %p278
      %p281 = scmp.ne.s32.totalorder %s266, %s280
      %p282 = scmp.eq.s32.totalorder %s25, 0
      %p283 = por %p281, %p282
      %s284 = ssub.s32 %s19, %s26
      %p285 = scmp.eq.s32.totalorder %s284, 0
      %s287 = sadd.s32 %s286, 1
      %s288 = scalar_select %p285, %s286, %s287
      %p291 = pneg %p285
      %p292 = scmp.eq.s32.totalorder %s19, 1
      %p293 = por %p291, %p292
      %p294 = scmp.ne.s32.totalorder %s286, %s289
      %p295 = scmp.eq.s32.totalorder %s19, 0
      %p296 = por %p294, %p295
      %p297 = scmp.ne.s32.totalorder %s286, %s289
      %p298 = scmp.eq.s32.totalorder %s24, 1
      %p299 = por %p297, %p298
      %p300 = scmp.ne.s32.totalorder %s289, %s290
      %p301 = scmp.eq.s32.totalorder %s24, 0
      %p302 = por %p300, %p301
      %p303 = scmp.ne.s32.totalorder %s289, %s290
      %p304 = scmp.eq.s32.totalorder %s25, 1
      %p305 = por %p303, %p304
      %p307 = scmp.ne.s32.totalorder %s290, %s306
      %p308 = scmp.eq.s32.totalorder %s25, 0
      %p309 = por %p307, %p308
      %p310 = scmp.le.s32.totalorder 1, %s19
      %p311 = scmp.lt.s32.totalorder %s19, 3
      %p312 = pnand %p310, %p311
      %p313 = pneg %p312
      // Predicated region
      $region9: #{triplet_attention_conv4.1} parent=5 // pred_check
        _
      $region10: #{triplet_attention_conv4.1} parent=5 // pred_check_branch
        %315 = sbr.rel (%p312) target = $region12
      $region11: #{triplet_attention_conv4.1} parent=5 // pred_region
        %s316 = ssub.s32 %s19, 1
        // Predicated region
        $region13: #{triplet_attention_conv4.1} parent=11 // pred_check
          %p317 = pneg %p40
        $region14: #{triplet_attention_conv4.1} parent=11 // pred_check_branch
          %319 = sbr.rel (%p317) target = $region16
        $region15: #{triplet_attention_conv4.1} parent=11 // pred_region
          %s321 = ssub.s32 16, 16
          %322 = vsyncadd [#allocation7], %s321
          %s324 = sshll.u32 %s0, 4
          %s325 = int_to_ptr.vmem [resolvable:$true] %s324
          %327 = dma.vmem_to_smem %s325, 16, [#allocation6], [#allocation7]
        $region16: #{triplet_attention_conv4.1} parent=11 // pred_fallthru
          _
        // Predicated region
        $region17: #{triplet_attention_conv4.1} parent=11 // pred_check
          %p328 = pneg %p87
        $region18: #{triplet_attention_conv4.1} parent=11 // pred_check_branch
          %330 = sbr.rel (%p328) target = $region20
        $region19: #{triplet_attention_conv4.1} parent=11 // pred_region
          _
        $region20: #{triplet_attention_conv4.1} parent=11 // pred_fallthru
          _
        // Predicated region
        $region21: #{triplet_attention_conv4.1} parent=11 // pred_check
          %p331 = pneg %p108
        $region22: #{triplet_attention_conv4.1} parent=11 // pred_check_branch
          %333 = sbr.rel (%p331) target = $region24
        $region23: #{triplet_attention_conv4.1} parent=11 // pred_region
          _
        $region24: #{triplet_attention_conv4.1} parent=11 // pred_fallthru
          _
        // Predicated region
        $region25: #{triplet_attention_conv4.1} parent=11 // pred_check
          %p334 = pneg %p129
        $region26: #{triplet_attention_conv4.1} parent=11 // pred_check_branch
          %336 = sbr.rel (%p334) target = $region28
        $region27: #{triplet_attention_conv4.1} parent=11 // pred_region
          _
        $region28: #{triplet_attention_conv4.1} parent=11 // pred_fallthru
          _
        // Predicated region
        $region29: #{triplet_attention_conv4.1} parent=11 // pred_check
          %p337 = pneg %p150
        $region30: #{triplet_attention_conv4.1} parent=11 // pred_check_branch
          %339 = sbr.rel (%p337) target = $region32
        $region31: #{triplet_attention_conv4.1} parent=11 // pred_region
          _
        $region32: #{triplet_attention_conv4.1} parent=11 // pred_fallthru
          _
        // Predicated region
        $region33: #{triplet_attention_conv4.1} parent=11 // pred_check
          %p340 = pneg %p171
        $region34: #{triplet_attention_conv4.1} parent=11 // pred_check_branch
          %342 = sbr.rel (%p340) target = $region36
        $region35: #{triplet_attention_conv4.1} parent=11 // pred_region
          _
        $region36: #{triplet_attention_conv4.1} parent=11 // pred_fallthru
          _
        // Predicated region
        $region37: #{triplet_attention_conv4.1} parent=11 // pred_check
          %p343 = pneg %p192
        $region38: #{triplet_attention_conv4.1} parent=11 // pred_check_branch
          %345 = sbr.rel (%p343) target = $region40
        $region39: #{triplet_attention_conv4.1} parent=11 // pred_region
          _
        $region40: #{triplet_attention_conv4.1} parent=11 // pred_fallthru
          _
        // Predicated region
        $region41: #{triplet_attention_conv4.1} parent=11 // pred_check
          %p346 = pneg %p213
        $region42: #{triplet_attention_conv4.1} parent=11 // pred_check_branch
          %348 = sbr.rel (%p346) target = $region44
        $region43: #{triplet_attention_conv4.1} parent=11 // pred_region
          _
        $region44: #{triplet_attention_conv4.1} parent=11 // pred_fallthru
          _
        // Predicated region
        $region45: #{triplet_attention_conv4.1} parent=11 // pred_check
          %p349 = pneg %p234
        $region46: #{triplet_attention_conv4.1} parent=11 // pred_check_branch
          %351 = sbr.rel (%p349) target = $region48
        $region47: #{triplet_attention_conv4.1} parent=11 // pred_region
          _
        $region48: #{triplet_attention_conv4.1} parent=11 // pred_fallthru
          _
        // Predicated region
        $region49: #{triplet_attention_conv4.1} parent=11 // pred_check
          %p352 = pneg %p255
        $region50: #{triplet_attention_conv4.1} parent=11 // pred_check_branch
          %354 = sbr.rel (%p352) target = $region52
        $region51: #{triplet_attention_conv4.1} parent=11 // pred_region
          _
        $region52: #{triplet_attention_conv4.1} parent=11 // pred_fallthru
          _
        // Predicated region
        $region53: #{triplet_attention_conv4.1} parent=11 // pred_check
          %p355 = pneg %p276
        $region54: #{triplet_attention_conv4.1} parent=11 // pred_check_branch
          %357 = sbr.rel (%p355) target = $region56
        $region55: #{triplet_attention_conv4.1} parent=11 // pred_region
          _
        $region56: #{triplet_attention_conv4.1} parent=11 // pred_fallthru
          _
      $region12: #{triplet_attention_conv4.1} parent=5 // pred_fallthru
        _
      %p358 = scmp.lt.s32.totalorder %s19, 2
      // Predicated region
      $region57: #{triplet_attention_conv4.1} parent=5 // pred_check
        %p359 = pneg %p358
      $region58: #{triplet_attention_conv4.1} parent=5 // pred_check_branch
        %361 = sbr.rel (%p359) target = $region60
      $region59: #{triplet_attention_conv4.1} parent=5 // pred_region
        // Predicated region
        $region61: #{triplet_attention_conv4.1} parent=59 // pred_check
          %p362 = pneg %p60
        $region62: #{triplet_attention_conv4.1} parent=59 // pred_check_branch
          %364 = sbr.rel (%p362) target = $region64
        $region63: #{triplet_attention_conv4.1} parent=59 // pred_region
          %p365 = scmp.lt.s32.totalorder %s19, 1
          %s366 = scalar_select %p365, %s19, 1
          %s367 = smul.addr %s366, 2
          %s368 = smul.addr %s367, 4
          %s369 = scalar_lea.vmem %s1, %s368
        $region64: #{triplet_attention_conv4.1} parent=59 // pred_fallthru
          _
      $region60: #{triplet_attention_conv4.1} parent=5 // pred_fallthru
        _
      %p370 = scmp.le.s32.totalorder 1, %s19
      %p371 = scmp.lt.s32.totalorder %s19, 3
      %p372 = pnand %p370, %p371
      %p373 = pneg %p372
      // Predicated region
      $region65: #{triplet_attention_conv4.1} parent=5 // pred_check
        _
      $region66: #{triplet_attention_conv4.1} parent=5 // pred_check_branch
        %375 = sbr.rel (%p372) target = $region68
      $region67: #{triplet_attention_conv4.1} parent=5 // pred_region
        %s376 = ssub.s32 %s19, 1
        // Predicated region
        $region69: #{triplet_attention_conv4.1} parent=67 // pred_check
          %p377 = pneg %p40
        $region70: #{triplet_attention_conv4.1} parent=67 // pred_check_branch
          %379 = sbr.rel (%p377) target = $region72
        $region71: #{triplet_attention_conv4.1} parent=67 // pred_region
          %380 = dma.done [#allocation7], 16
        $region72: #{triplet_attention_conv4.1} parent=67 // pred_fallthru
          _
        %381 = sfence
        %p382 = pneg %p40
        %p383 = pneg %p37
        %p384 = scmp.lt.s32.totalorder %s24, 1
        %s385 = scalar_select %p384, %s24, 1
        %s386 = smul.addr %s385, 2
        %s387 = smul.addr %s386, 4
        %s388 = scalar_lea.vmem %s1, %s387
        %p389 = pneg %p66
        %p390 = pneg %p63
        %p391 = pneg %p87
        %p392 = pneg %p84
        %p393 = pneg %p108
        %p394 = pneg %p105
        %p395 = pneg %p129
        %p396 = pneg %p126
        %p397 = pneg %p150
        %p398 = pneg %p147
        %p399 = pneg %p171
        %p400 = pneg %p168
        %p401 = pneg %p192
        %p402 = pneg %p189
        %p403 = pneg %p213
        %p404 = pneg %p210
        %p405 = pneg %p234
        %p406 = pneg %p231
        %p407 = pneg %p255
        %p408 = pneg %p252
        %p409 = pneg %p276
        %p410 = pneg %p273
        %p411 = pneg %p302
        %p412 = pneg %p299
        %p413 = scmp.lt.s32.totalorder %s24, 1
        %s414 = scalar_select %p413, %s24, 1
        %s415 = smul.addr %s414, 2
        %s416 = smul.addr %s415, 8
        %s417 = scalar_lea.vmem %s12, %s416
        %p418 = scmp.lt.s32.totalorder %s24, 1
        %s419 = scalar_select %p418, %s24, 1
        %s420 = smul.addr %s419, 2
        %s421 = smul.addr %s420, 4
        %s422 = scalar_lea.vmem %s1, %s421
        %p423 = scmp.lt.s32.totalorder %s24, 1
        %s424 = scalar_select %p423, %s24, 1
        %s425 = smul.addr %s424, 2
        %s426 = smul.addr %s425, 8
        %s427 = scalar_lea.vmem %s12, %s426
        %vm429 = vcmask 124928
        %430 = vst.msk [vmem:[#allocation2] sm:$0x7] %vm429, 0.0
        %431 = vst.msk [vmem:[#allocation2 + $0x7] sm:$0x7] %vm429, 0.0
        %432 = vst.msk [vmem:[#allocation3] sm:$0x7] %vm429, 0.0
        %433 = vst.msk [vmem:[#allocation3 + $0x7] sm:$0x7] %vm429, 0.0
        %s434 = scalar_lea.vmem [#allocation2], 16
        %435 = vst.msk [vmem:[%s434] sm:$0x7] %vm429, 0.0
        %436 = vst.msk [vmem:[%s434 + $0x7] sm:$0x7] %vm429, 0.0
        %s437 = scalar_lea.vmem [#allocation3], 16
        %438 = vst.msk [vmem:[%s437] sm:$0x7] %vm429, 0.0
        %439 = vst.msk [vmem:[%s437 + $0x7] sm:$0x7] %vm429, 0.0
        %v440 = vld [vmem:[%s422] sm:$0xf]
        %vm441 = vcmask 125952
        %v442 = vsel %vm441, %v440, -inf
        %443 = vmax.xlane.f32.xlu0 %v442
        %v444 = vpop.xlane.xlu0 %443
        %vm445 = vcmask 3072
        %446 = vst.msk [vmem:[#allocation3 + $0x3] sm:$0xf] %vm445, %v444
        %v447 = vsel %vm441, %v440, 0.0
        %448 = vadd.xlane.f32.xlu0 %v447
        %v449 = vpop.xlane.xlu0 %448
        %v450 = vmul.f32 %v449, 0.0625
        %451 = vst.msk [vmem:[%s437 + $0x3] sm:$0xf] %vm445, %v450
        %v452 = vld [vmem:[%s422] sm:$0xf]
        %454 = vrot.lane.b32.xlu0 %v452, 112
        %v455 = vpop.permute.xlu0 %454
        %v457 = vmax.f32 %v440, %v455
        %v458 = vadd.f32 %v440, %v455
        %vm459 = vcmask 257152
        %v460 = vsel %vm459, %v452, -inf
        %461 = vmax.xlane.f32.xlu0 %v460
        %v462 = vpop.xlane.xlu0 %461
        %vm463 = vcmask 11272
        %464 = vst.msk [vmem:[#allocation3 + $0x3] sm:$0xf] %vm463, %v462
        %v465 = vsel %vm441, %v455, 0.0
        %466 = vadd.xlane.f32.xlu0 %v465
        %v467 = vpop.xlane.xlu0 %466
        %v468 = vmul.f32 %v467, 0.0625
        %469 = vst.msk [vmem:[%s437 + $0x3] sm:$0xf] %vm463, %v468
        %v470 = vld [vmem:[%s422] sm:$0xf]
        %472 = vrot.lane.b32.xlu0 %v470, 96
        %v473 = vpop.permute.xlu0 %472
        %v475 = vmax.f32 %v457, %v473
        %v476 = vadd.f32 %v458, %v473
        %vm477 = vcmask 388352
        %v478 = vsel %vm477, %v470, -inf
        %479 = vmax.xlane.f32.xlu0 %v478
        %v480 = vpop.xlane.xlu0 %479
        %vm481 = vcmask 19472
        %482 = vst.msk [vmem:[#allocation3 + $0x3] sm:$0xf] %vm481, %v480
        %v483 = vsel %vm441, %v473, 0.0
        %484 = vadd.xlane.f32.xlu0 %v483
        %v485 = vpop.xlane.xlu0 %484
        %v486 = vmul.f32 %v485, 0.0625
        %487 = vst.msk [vmem:[%s437 + $0x3] sm:$0xf] %vm481, %v486
        %v488 = vld [vmem:[%s422] sm:$0xf]
        %490 = vrot.lane.b32.xlu0 %v488, 80
        %v491 = vpop.permute.xlu0 %490
        %v493 = vmax.f32 %v475, %v491
        %v494 = vadd.f32 %v476, %v491
        %vm495 = vcmask 519552
        %v496 = vsel %vm495, %v488, -inf
        %497 = vmax.xlane.f32.xlu0 %v496
        %v498 = vpop.xlane.xlu0 %497
        %vm499 = vcmask 27672
        %500 = vst.msk [vmem:[#allocation3 + $0x3] sm:$0xf] %vm499, %v498
        %v501 = vsel %vm441, %v491, 0.0
        %502 = vadd.xlane.f32.xlu0 %v501
        %v503 = vpop.xlane.xlu0 %502
        %v504 = vmul.f32 %v503, 0.0625
        %505 = vst.msk [vmem:[%s437 + $0x3] sm:$0xf] %vm499, %v504
        %v506 = vld [vmem:[%s422] sm:$0xf]
        %508 = vrot.lane.b32.xlu0 %v506, 64
        %v509 = vpop.permute.xlu0 %508
        %v511 = vmax.f32 %v493, %v509
        %v512 = vadd.f32 %v494, %v509
        %vm513 = vcmask 650752
        %v514 = vsel %vm513, %v506, -inf
        %515 = vmax.xlane.f32.xlu0 %v514
        %v516 = vpop.xlane.xlu0 %515
        %vm517 = vcmask 35872
        %518 = vst.msk [vmem:[#allocation3 + $0x3] sm:$0xf] %vm517, %v516
        %v519 = vsel %vm441, %v509, 0.0
        %520 = vadd.xlane.f32.xlu0 %v519
        %v521 = vpop.xlane.xlu0 %520
        %v522 = vmul.f32 %v521, 0.0625
        %523 = vst.msk [vmem:[%s437 + $0x3] sm:$0xf] %vm517, %v522
        %v524 = vld [vmem:[%s422] sm:$0xf]
        %526 = vrot.lane.b32.xlu0 %v524, 48
        %v527 = vpop.permute.xlu0 %526
        %v529 = vmax.f32 %v511, %v527
        %v530 = vadd.f32 %v512, %v527
        %vm531 = vcmask 781952
        %v532 = vsel %vm531, %v524, -inf
        %533 = vmax.xlane.f32.xlu0 %v532
        %v534 = vpop.xlane.xlu0 %533
        %vm535 = vcmask 44072
        %536 = vst.msk [vmem:[#allocation3 + $0x3] sm:$0xf] %vm535, %v534
        %v537 = vsel %vm441, %v527, 0.0
        %538 = vadd.xlane.f32.xlu0 %v537
        %v539 = vpop.xlane.xlu0 %538
        %v540 = vmul.f32 %v539, 0.0625
        %541 = vst.msk [vmem:[%s437 + $0x3] sm:$0xf] %vm535, %v540
        %v542 = vld [vmem:[%s422] sm:$0xf]
        %544 = vrot.lane.b32.xlu0 %v542, 32
        %v545 = vpop.permute.xlu0 %544
        %v547 = vmax.f32 %v529, %v545
        %v548 = vadd.f32 %v530, %v545
        %vm549 = vcmask 913152
        %v550 = vsel %vm549, %v542, -inf
        %551 = vmax.xlane.f32.xlu0 %v550
        %v552 = vpop.xlane.xlu0 %551
        %vm553 = vcmask 52272
        %554 = vst.msk [vmem:[#allocation3 + $0x3] sm:$0xf] %vm553, %v552
        %v555 = vsel %vm441, %v545, 0.0
        %556 = vadd.xlane.f32.xlu0 %v555
        %v557 = vpop.xlane.xlu0 %556
        %v558 = vmul.f32 %v557, 0.0625
        %559 = vst.msk [vmem:[%s437 + $0x3] sm:$0xf] %vm553, %v558
        %v560 = vld [vmem:[%s422] sm:$0xf]
        %562 = vrot.lane.b32.xlu0 %v560, 16
        %v563 = vpop.permute.xlu0 %562
        %v565 = vmax.f32 %v547, %v563
        %v566 = vadd.f32 %v548, %v563
        %vm567 = vcmask 1044352
        %v568 = vsel %vm567, %v560, -inf
        %569 = vmax.xlane.f32.xlu0 %v568
        %v570 = vpop.xlane.xlu0 %569
        %vm571 = vcmask 60472
        %572 = vst.msk [vmem:[#allocation3 + $0x3] sm:$0xf] %vm571, %v570
        %v573 = vsel %vm441, %v563, 0.0
        %574 = vadd.xlane.f32.xlu0 %v573
        %v575 = vpop.xlane.xlu0 %574
        %v576 = vmul.f32 %v575, 0.0625
        %577 = vst.msk [vmem:[%s437 + $0x3] sm:$0xf] %vm571, %v576
        %v578 = vld [vmem:[%s422 + $0x4] sm:$0xf]
        %v579 = vmax.f32 %v565, %v578
        %v580 = vadd.f32 %v566, %v578
        %v581 = vsel %vm441, %v578, -inf
        %582 = vmax.xlane.f32.xlu0 %v581
        %v583 = vpop.xlane.xlu0 %582
        %vm584 = vcmask 68672
        %585 = vst.msk [vmem:[#allocation3 + $0x3] sm:$0xf] %vm584, %v583
        %v586 = vsel %vm441, %v578, 0.0
        %587 = vadd.xlane.f32.xlu0 %v586
        %v588 = vpop.xlane.xlu0 %587
        %v589 = vmul.f32 %v588, 0.0625
        %590 = vst.msk [vmem:[%s437 + $0x3] sm:$0xf] %vm584, %v589
        %v591 = vld [vmem:[%s422 + $0x4] sm:$0xf]
        %593 = vrot.lane.b32.xlu0 %v591, 112
        %v594 = vpop.permute.xlu0 %593
        %v596 = vmax.f32 %v579, %v594
        %v597 = vadd.f32 %v580, %v594
        %v598 = vsel %vm459, %v591, -inf
        %599 = vmax.xlane.f32.xlu0 %v598
        %v600 = vpop.xlane.xlu0 %599
        %vm601 = vcmask 76872
        %602 = vst.msk [vmem:[#allocation3 + $0x3] sm:$0xf] %vm601, %v600
        %v603 = vsel %vm441, %v594, 0.0
        %604 = vadd.xlane.f32.xlu0 %v603
        %v605 = vpop.xlane.xlu0 %604
        %v606 = vmul.f32 %v605, 0.0625
        %607 = vst.msk [vmem:[%s437 + $0x3] sm:$0xf] %vm601, %v606
        %v608 = vld [vmem:[%s422 + $0x4] sm:$0xf]
        %610 = vrot.lane.b32.xlu0 %v608, 96
        %v611 = vpop.permute.xlu0 %610
        %v613 = vmax.f32 %v596, %v611
        %v614 = vadd.f32 %v597, %v611
        %v615 = vsel %vm477, %v608, -inf
        %616 = vmax.xlane.f32.xlu0 %v615
        %v617 = vpop.xlane.xlu0 %616
        %vm618 = vcmask 85072
        %619 = vst.msk [vmem:[#allocation3 + $0x3] sm:$0xf] %vm618, %v617
        %v620 = vsel %vm441, %v611, 0.0
        %621 = vadd.xlane.f32.xlu0 %v620
        %v622 = vpop.xlane.xlu0 %621
        %v623 = vmul.f32 %v622, 0.0625
        %624 = vst.msk [vmem:[%s437 + $0x3] sm:$0xf] %vm618, %v623
        %v625 = vld [vmem:[%s422 + $0x4] sm:$0xf]
        %627 = vrot.lane.b32.xlu0 %v625, 80
        %v628 = vpop.permute.xlu0 %627
        %v630 = vmax.f32 %v613, %v628
        %v631 = vadd.f32 %v614, %v628
        %v632 = vsel %vm495, %v625, -inf
        %633 = vmax.xlane.f32.xlu0 %v632
        %v634 = vpop.xlane.xlu0 %633
        %vm635 = vcmask 93272
        %636 = vst.msk [vmem:[#allocation3 + $0x3] sm:$0xf] %vm635, %v634
        %v637 = vsel %vm441, %v628, 0.0
        %638 = vadd.xlane.f32.xlu0 %v637
        %v639 = vpop.xlane.xlu0 %638
        %v640 = vmul.f32 %v639, 0.0625
        %641 = vst.msk [vmem:[%s437 + $0x3] sm:$0xf] %vm635, %v640
        %v642 = vld [vmem:[%s422 + $0x4] sm:$0xf]
        %644 = vrot.lane.b32.xlu0 %v642, 64
        %v645 = vpop.permute.xlu0 %644
        %v647 = vmax.f32 %v630, %v645
        %v648 = vadd.f32 %v631, %v645
        %v649 = vsel %vm513, %v642, -inf
        %650 = vmax.xlane.f32.xlu0 %v649
        %v651 = vpop.xlane.xlu0 %650
        %vm652 = vcmask 101472
        %653 = vst.msk [vmem:[#allocation3 + $0x3] sm:$0xf] %vm652, %v651
        %v654 = vsel %vm441, %v645, 0.0
        %655 = vadd.xlane.f32.xlu0 %v654
        %v656 = vpop.xlane.xlu0 %655
        %v657 = vmul.f32 %v656, 0.0625
        %658 = vst.msk [vmem:[%s437 + $0x3] sm:$0xf] %vm652, %v657
        %v659 = vld [vmem:[%s422 + $0x4] sm:$0xf]
        %661 = vrot.lane.b32.xlu0 %v659, 48
        %v662 = vpop.permute.xlu0 %661
        %v664 = vmax.f32 %v647, %v662
        %v665 = vadd.f32 %v648, %v662
        %v666 = vsel %vm531, %v659, -inf
        %667 = vmax.xlane.f32.xlu0 %v666
        %v668 = vpop.xlane.xlu0 %667
        %vm669 = vcmask 109672
        %670 = vst.msk [vmem:[#allocation3 + $0x3] sm:$0xf] %vm669, %v668
        %v671 = vsel %vm441, %v662, 0.0
        %672 = vadd.xlane.f32.xlu0 %v671
        %v673 = vpop.xlane.xlu0 %672
        %v674 = vmul.f32 %v673, 0.0625
        %675 = vst.msk [vmem:[%s437 + $0x3] sm:$0xf] %vm669, %v674
        %v676 = vld [vmem:[%s422 + $0x4] sm:$0xf]
        %678 = vrot.lane.b32.xlu0 %v676, 32
        %v679 = vpop.permute.xlu0 %678
        %v681 = vmax.f32 %v664, %v679
        %v682 = vadd.f32 %v665, %v679
        %v683 = vsel %vm549, %v676, -inf
        %684 = vmax.xlane.f32.xlu0 %v683
        %v685 = vpop.xlane.xlu0 %684
        %vm686 = vcmask 117872
        %687 = vst.msk [vmem:[#allocation3 + $0x3] sm:$0xf] %vm686, %v685
        %v688 = vsel %vm441, %v679, 0.0
        %689 = vadd.xlane.f32.xlu0 %v688
        %v690 = vpop.xlane.xlu0 %689
        %v691 = vmul.f32 %v690, 0.0625
        %692 = vst.msk [vmem:[%s437 + $0x3] sm:$0xf] %vm686, %v691
        %v693 = vld [vmem:[%s422 + $0x4] sm:$0xf]
        %695 = vrot.lane.b32.xlu0 %v693, 16
        %v696 = vpop.permute.xlu0 %695
        %v698 = vmax.f32 %v681, %v696
        %v699 = vadd.f32 %v682, %v696
        %v700 = vsel %vm567, %v693, -inf
        %701 = vmax.xlane.f32.xlu0 %v700
        %v702 = vpop.xlane.xlu0 %701
        %vm703 = vcmask 126072
        %704 = vst.msk [vmem:[#allocation3 + $0x3] sm:$0xf] %vm703, %v702
        %v705 = vsel %vm441, %v696, 0.0
        %706 = vadd.xlane.f32.xlu0 %v705
        %v707 = vpop.xlane.xlu0 %706
        %v708 = vmul.f32 %v707, 0.0625
        %709 = vst.msk [vmem:[%s437 + $0x3] sm:$0xf] %vm703, %v708
        %710 = vst.msk [vmem:[#allocation2 + $0x3] sm:$0xf] %vm441, %v698
        %v711 = vmul.f32 %v699, 0.0625
        %712 = vst.msk [vmem:[%s434 + $0x3] sm:$0xf] %vm441, %v711
        %v713 = vld [vmem:[#allocation2] sm:$0xf]
        %v714 = vld [vmem:[%s9] sm:$0xff]
        %v715 = vld [vmem:[%s9 + $0x8] sm:$0xff]
        %v716 = vld [vmem:[#allocation2 + $0x1] sm:$0xf]
        %s717 = scalar_lea.vmem %s9, 16
        %v718 = vld [vmem:[%s717] sm:$0xff]
        %v719 = vld [vmem:[%s717 + $0x8] sm:$0xff]
        %vm720 = vcmask 130048
        %v722 = vsel %vm720, %v716, 0
        %724 = vmatprep.subr.mxu0 0.0
        %725 = vmatpush1.msra.mxu0 %v718
        %726 = vmatprep.subr.mxu0 0.0
        %727 = vmatpush1.msra.mxu0 %v719
        %728 = vmatprep.subr.mxu0 0.0
        %729 = vmatpush1.msra.mxu0 0.0
        %730 = vmatprep.subr.mxu0 0.0
        %731 = vmatpush1.msra.mxu0 0.0
        %732 = vmatprep.subr.mxu0 0.0
        %733 = vmatpush1.msra.mxu0 0.0
        %734 = vmatprep.subr.mxu0 0.0
        %735 = vmatpush1.msra.mxu0 0.0
        %736 = vmatprep.subr.mxu0 0.0
        %737 = vmatpush1.msra.mxu0 0.0
        %738 = vmatprep.subr.mxu0 0.0
        %739 = vmatpush1.msra.mxu0 0.0
        %740 = vmatprep.subr.mxu0 0.0
        %741 = vmatpush1.msra.mxu0 0.0
        %742 = vmatprep.subr.mxu0 0.0
        %743 = vmatpush1.msra.mxu0 0.0
        %744 = vmatprep.subr.mxu0 0.0
        %745 = vmatpush1.msra.mxu0 0.0
        %746 = vmatprep.subr.mxu0 0.0
        %747 = vmatpush1.msra.mxu0 0.0
        %748 = vmatprep.subr.mxu0 0.0
        %749 = vmatpush1.msra.mxu0 0.0
        %750 = vmatprep.subr.mxu0 0.0
        %751 = vmatpush1.msra.mxu0 0.0
        %752 = vmatprep.subr.mxu0 0.0
        %753 = vmatpush1.msra.mxu0 0.0
        %754 = vmatprep.subr.mxu0 0.0
        %755 = vmatpush1.msra.mxu0 0.0
        %756 = vmatprep.subr.mxu0 0.0
        %757 = vmatpush1.msra.mxu0 0.0
        %758 = vmatprep.subr.mxu0 0.0
        %759 = vmatpush1.msra.mxu0 0.0
        %760 = vmatprep.subr.mxu0 0.0
        %761 = vmatpush1.msra.mxu0 0.0
        %762 = vmatprep.subr.mxu0 0.0
        %763 = vmatpush1.msra.mxu0 0.0
        %764 = vmatprep.subr.mxu0 0.0
        %765 = vmatpush1.msra.mxu0 0.0
        %766 = vmatprep.subr.mxu0 0.0
        %767 = vmatpush1.msra.mxu0 0.0
        %768 = vmatprep.subr.mxu0 0.0
        %769 = vmatpush1.msra.mxu0 0.0
        %770 = vmatprep.subr.mxu0 0.0
        %771 = vmatpush1.msra.mxu0 0.0
        %772 = vmatprep.subr.mxu0 0.0
        %773 = vmatpush1.msra.mxu0 0.0
        %774 = vmatprep.subr.mxu0 0.0
        %775 = vmatpush1.msra.mxu0 0.0
        %776 = vmatprep.subr.mxu0 0.0
        %777 = vmatpush1.msra.mxu0 0.0
        %778 = vmatprep.subr.mxu0 0.0
        %779 = vmatpush1.msra.mxu0 0.0
        %780 = vmatprep.subr.mxu0 0.0
        %781 = vmatpush1.msra.mxu0 0.0
        %782 = vmatprep.subr.mxu0 0.0
        %783 = vmatpush1.msra.mxu0 0.0
        %784 = vmatprep.subr.mxu0 0.0
        %785 = vmatpush1.msra.mxu0 0.0
        %786 = vmatprep.subr.mxu0 0.0
        %787 = vmatpush1.msra.mxu0 0.0
        %788 = vmatprep.mubr.f32.mxu0 0.0
        %789 = vmatmul.mubr.f32.gmra.mrb[0].mxu0 %v722
        %v790 = vpop.f32.mrb[0].mxu0
        %v791 = vadd.f32 0.0, %v790
        %v792 = vpop.f32.mrb[0].mxu0
        %793 = vdwg.mxu0
        %v795 = vsel %vm720, %v713, 0
        %797 = vmatprep.subr.mxu0 0.0
        %798 = vmatpush1.msra.mxu0 %v714
        %799 = vmatprep.subr.mxu0 0.0
        %800 = vmatpush1.msra.mxu0 %v715
        %801 = vmatprep.subr.mxu0 0.0
        %802 = vmatpush1.msra.mxu0 0.0
        %803 = vmatprep.subr.mxu0 0.0
        %804 = vmatpush1.msra.mxu0 0.0
        %805 = vmatprep.subr.mxu0 0.0
        %806 = vmatpush1.msra.mxu0 0.0
        %807 = vmatprep.subr.mxu0 0.0
        %808 = vmatpush1.msra.mxu0 0.0
        %809 = vmatprep.subr.mxu0 0.0
        %810 = vmatpush1.msra.mxu0 0.0
        %811 = vmatprep.subr.mxu0 0.0
        %812 = vmatpush1.msra.mxu0 0.0
        %813 = vmatprep.subr.mxu0 0.0
        %814 = vmatpush1.msra.mxu0 0.0
        %815 = vmatprep.subr.mxu0 0.0
        %816 = vmatpush1.msra.mxu0 0.0
        %817 = vmatprep.subr.mxu0 0.0
        %818 = vmatpush1.msra.mxu0 0.0
        %819 = vmatprep.subr.mxu0 0.0
        %820 = vmatpush1.msra.mxu0 0.0
        %821 = vmatprep.subr.mxu0 0.0
        %822 = vmatpush1.msra.mxu0 0.0
        %823 = vmatprep.subr.mxu0 0.0
        %824 = vmatpush1.msra.mxu0 0.0
        %825 = vmatprep.subr.mxu0 0.0
        %826 = vmatpush1.msra.mxu0 0.0
        %827 = vmatprep.subr.mxu0 0.0
        %828 = vmatpush1.msra.mxu0 0.0
        %829 = vmatprep.subr.mxu0 0.0
        %830 = vmatpush1.msra.mxu0 0.0
        %831 = vmatprep.subr.mxu0 0.0
        %832 = vmatpush1.msra.mxu0 0.0
        %833 = vmatprep.subr.mxu0 0.0
        %834 = vmatpush1.msra.mxu0 0.0
        %835 = vmatprep.subr.mxu0 0.0
        %836 = vmatpush1.msra.mxu0 0.0
        %837 = vmatprep.subr.mxu0 0.0
        %838 = vmatpush1.msra.mxu0 0.0
        %839 = vmatprep.subr.mxu0 0.0
        %840 = vmatpush1.msra.mxu0 0.0
        %841 = vmatprep.subr.mxu0 0.0
        %842 = vmatpush1.msra.mxu0 0.0
        %843 = vmatprep.subr.mxu0 0.0
        %844 = vmatpush1.msra.mxu0 0.0
        %845 = vmatprep.subr.mxu0 0.0
        %846 = vmatpush1.msra.mxu0 0.0
        %847 = vmatprep.subr.mxu0 0.0
        %848 = vmatpush1.msra.mxu0 0.0
        %849 = vmatprep.subr.mxu0 0.0
        %850 = vmatpush1.msra.mxu0 0.0
        %851 = vmatprep.subr.mxu0 0.0
        %852 = vmatpush1.msra.mxu0 0.0
        %853 = vmatprep.subr.mxu0 0.0
        %854 = vmatpush1.msra.mxu0 0.0
        %855 = vmatprep.subr.mxu0 0.0
        %856 = vmatpush1.msra.mxu0 0.0
        %857 = vmatprep.subr.mxu0 0.0
        %858 = vmatpush1.msra.mxu0 0.0
        %859 = vmatprep.subr.mxu0 0.0
        %860 = vmatpush1.msra.mxu0 0.0
        %861 = vmatprep.mubr.f32.mxu0 0.0
        %862 = vmatmul.mubr.f32.gmra.mrb[0].mxu0 %v795
        %v863 = vpop.f32.mrb[0].mxu0
        %v864 = vadd.f32 %v791, %v863
        %v865 = vpop.f32.mrb[0].mxu0
        %866 = vdwg.mxu0
        %v867 = vld [vmem:[#allocation2 + $0x2] sm:$0xf]
        %s868 = scalar_lea.vmem %s9, 32
        %v869 = vld [vmem:[%s868] sm:$0xff]
        %v870 = vld [vmem:[%s868 + $0x8] sm:$0xff]
        %v872 = vsel %vm720, %v867, 0
        %874 = vmatprep.subr.mxu0 0.0
        %875 = vmatpush1.msra.mxu0 %v869
        %876 = vmatprep.subr.mxu0 0.0
        %877 = vmatpush1.msra.mxu0 %v870
        %878 = vmatprep.subr.mxu0 0.0
        %879 = vmatpush1.msra.mxu0 0.0
        %880 = vmatprep.subr.mxu0 0.0
        %881 = vmatpush1.msra.mxu0 0.0
        %882 = vmatprep.subr.mxu0 0.0
        %883 = vmatpush1.msra.mxu0 0.0
        %884 = vmatprep.subr.mxu0 0.0
        %885 = vmatpush1.msra.mxu0 0.0
        %886 = vmatprep.subr.mxu0 0.0
        %887 = vmatpush1.msra.mxu0 0.0
        %888 = vmatprep.subr.mxu0 0.0
        %889 = vmatpush1.msra.mxu0 0.0
        %890 = vmatprep.subr.mxu0 0.0
        %891 = vmatpush1.msra.mxu0 0.0
        %892 = vmatprep.subr.mxu0 0.0
        %893 = vmatpush1.msra.mxu0 0.0
        %894 = vmatprep.subr.mxu0 0.0
        %895 = vmatpush1.msra.mxu0 0.0
        %896 = vmatprep.subr.mxu0 0.0
        %897 = vmatpush1.msra.mxu0 0.0
        %898 = vmatprep.subr.mxu0 0.0
        %899 = vmatpush1.msra.mxu0 0.0
        %900 = vmatprep.subr.mxu0 0.0
        %901 = vmatpush1.msra.mxu0 0.0
        %902 = vmatprep.subr.mxu0 0.0
        %903 = vmatpush1.msra.mxu0 0.0
        %904 = vmatprep.subr.mxu0 0.0
        %905 = vmatpush1.msra.mxu0 0.0
        %906 = vmatprep.subr.mxu0 0.0
        %907 = vmatpush1.msra.mxu0 0.0
        %908 = vmatprep.subr.mxu0 0.0
        %909 = vmatpush1.msra.mxu0 0.0
        %910 = vmatprep.subr.mxu0 0.0
        %911 = vmatpush1.msra.mxu0 0.0
        %912 = vmatprep.subr.mxu0 0.0
        %913 = vmatpush1.msra.mxu0 0.0
        %914 = vmatprep.subr.mxu0 0.0
        %915 = vmatpush1.msra.mxu0 0.0
        %916 = vmatprep.subr.mxu0 0.0
        %917 = vmatpush1.msra.mxu0 0.0
        %918 = vmatprep.subr.mxu0 0.0
        %919 = vmatpush1.msra.mxu0 0.0
        %920 = vmatprep.subr.mxu0 0.0
        %921 = vmatpush1.msra.mxu0 0.0
        %922 = vmatprep.subr.mxu0 0.0
        %923 = vmatpush1.msra.mxu0 0.0
        %924 = vmatprep.subr.mxu0 0.0
        %925 = vmatpush1.msra.mxu0 0.0
        %926 = vmatprep.subr.mxu0 0.0
        %927 = vmatpush1.msra.mxu0 0.0
        %928 = vmatprep.subr.mxu0 0.0
        %929 = vmatpush1.msra.mxu0 0.0
        %930 = vmatprep.subr.mxu0 0.0
        %931 = vmatpush1.msra.mxu0 0.0
        %932 = vmatprep.subr.mxu0 0.0
        %933 = vmatpush1.msra.mxu0 0.0
        %934 = vmatprep.subr.mxu0 0.0
        %935 = vmatpush1.msra.mxu0 0.0
        %936 = vmatprep.subr.mxu0 0.0
        %937 = vmatpush1.msra.mxu0 0.0
        %938 = vmatprep.mubr.f32.mxu0 0.0
        %939 = vmatmul.mubr.f32.gmra.mrb[0].mxu0 %v872
        %v940 = vpop.f32.mrb[0].mxu0
        %v941 = vadd.f32 0.0, %v940
        %v942 = vpop.f32.mrb[0].mxu0
        %943 = vdwg.mxu0
        %v944 = vadd.f32 %v864, %v941
        %v945 = vld [vmem:[#allocation2 + $0x3] sm:$0xf]
        %s946 = scalar_lea.vmem %s9, 48
        %v947 = vld [vmem:[%s946] sm:$0xff]
        %v948 = vld [vmem:[%s946 + $0x8] sm:$0xff]
        %v950 = vsel %vm720, %v945, 0
        %952 = vmatprep.subr.mxu0 0.0
        %953 = vmatpush1.msra.mxu0 %v947
        %954 = vmatprep.subr.mxu0 0.0
        %955 = vmatpush1.msra.mxu0 %v948
        %956 = vmatprep.subr.mxu0 0.0
        %957 = vmatpush1.msra.mxu0 0.0
        %958 = vmatprep.subr.mxu0 0.0
        %959 = vmatpush1.msra.mxu0 0.0
        %960 = vmatprep.subr.mxu0 0.0
        %961 = vmatpush1.msra.mxu0 0.0
        %962 = vmatprep.subr.mxu0 0.0
        %963 = vmatpush1.msra.mxu0 0.0
        %964 = vmatprep.subr.mxu0 0.0
        %965 = vmatpush1.msra.mxu0 0.0
        %966 = vmatprep.subr.mxu0 0.0
        %967 = vmatpush1.msra.mxu0 0.0
        %968 = vmatprep.subr.mxu0 0.0
        %969 = vmatpush1.msra.mxu0 0.0
        %970 = vmatprep.subr.mxu0 0.0
        %971 = vmatpush1.msra.mxu0 0.0
        %972 = vmatprep.subr.mxu0 0.0
        %973 = vmatpush1.msra.mxu0 0.0
        %974 = vmatprep.subr.mxu0 0.0
        %975 = vmatpush1.msra.mxu0 0.0
        %976 = vmatprep.subr.mxu0 0.0
        %977 = vmatpush1.msra.mxu0 0.0
        %978 = vmatprep.subr.mxu0 0.0
        %979 = vmatpush1.msra.mxu0 0.0
        %980 = vmatprep.subr.mxu0 0.0
        %981 = vmatpush1.msra.mxu0 0.0
        %982 = vmatprep.subr.mxu0 0.0
        %983 = vmatpush1.msra.mxu0 0.0
        %984 = vmatprep.subr.mxu0 0.0
        %985 = vmatpush1.msra.mxu0 0.0
        %986 = vmatprep.subr.mxu0 0.0
        %987 = vmatpush1.msra.mxu0 0.0
        %988 = vmatprep.subr.mxu0 0.0
        %989 = vmatpush1.msra.mxu0 0.0
        %990 = vmatprep.subr.mxu0 0.0
        %991 = vmatpush1.msra.mxu0 0.0
        %992 = vmatprep.subr.mxu0 0.0
        %993 = vmatpush1.msra.mxu0 0.0
        %994 = vmatprep.subr.mxu0 0.0
        %995 = vmatpush1.msra.mxu0 0.0
        %996 = vmatprep.subr.mxu0 0.0
        %997 = vmatpush1.msra.mxu0 0.0
        %998 = vmatprep.subr.mxu0 0.0
        %999 = vmatpush1.msra.mxu0 0.0
        %1000 = vmatprep.subr.mxu0 0.0
        %1001 = vmatpush1.msra.mxu0 0.0
        %1002 = vmatprep.subr.mxu0 0.0
        %1003 = vmatpush1.msra.mxu0 0.0
        %1004 = vmatprep.subr.mxu0 0.0
        %1005 = vmatpush1.msra.mxu0 0.0
        %1006 = vmatprep.subr.mxu0 0.0
        %1007 = vmatpush1.msra.mxu0 0.0
        %1008 = vmatprep.subr.mxu0 0.0
        %1009 = vmatpush1.msra.mxu0 0.0
        %1010 = vmatprep.subr.mxu0 0.0
        %1011 = vmatpush1.msra.mxu0 0.0
        %1012 = vmatprep.subr.mxu0 0.0
        %1013 = vmatpush1.msra.mxu0 0.0
        %1014 = vmatprep.subr.mxu0 0.0
        %1015 = vmatpush1.msra.mxu0 0.0
        %1016 = vmatprep.mubr.f32.mxu0 0.0
        %1017 = vmatmul.mubr.f32.gmra.mrb[0].mxu0 %v950
        %v1018 = vpop.f32.mrb[0].mxu0
        %v1019 = vadd.f32 0.0, %v1018
        %v1020 = vpop.f32.mrb[0].mxu0
        %1021 = vdwg.mxu0
        %v1022 = vadd.f32 %v944, %v1019
        %v1023 = vld [vmem:[#allocation2 + $0x4] sm:$0xf]
        %s1024 = scalar_lea.vmem %s9, 64
        %v1025 = vld [vmem:[%s1024] sm:$0xff]
        %v1026 = vld [vmem:[%s1024 + $0x8] sm:$0xff]
        %v1028 = vsel %vm720, %v1023, 0
        %1030 = vmatprep.subr.mxu0 0.0
        %1031 = vmatpush1.msra.mxu0 %v1025
        %1032 = vmatprep.subr.mxu0 0.0
        %1033 = vmatpush1.msra.mxu0 %v1026
        %1034 = vmatprep.subr.mxu0 0.0
        %1035 = vmatpush1.msra.mxu0 0.0
        %1036 = vmatprep.subr.mxu0 0.0
        %1037 = vmatpush1.msra.mxu0 0.0
        %1038 = vmatprep.subr.mxu0 0.0
        %1039 = vmatpush1.msra.mxu0 0.0
        %1040 = vmatprep.subr.mxu0 0.0
        %1041 = vmatpush1.msra.mxu0 0.0
        %1042 = vmatprep.subr.mxu0 0.0
        %1043 = vmatpush1.msra.mxu0 0.0
        %1044 = vmatprep.subr.mxu0 0.0
        %1045 = vmatpush1.msra.mxu0 0.0
        %1046 = vmatprep.subr.mxu0 0.0
        %1047 = vmatpush1.msra.mxu0 0.0
        %1048 = vmatprep.subr.mxu0 0.0
        %1049 = vmatpush1.msra.mxu0 0.0
        %1050 = vmatprep.subr.mxu0 0.0
        %1051 = vmatpush1.msra.mxu0 0.0
        %1052 = vmatprep.subr.mxu0 0.0
        %1053 = vmatpush1.msra.mxu0 0.0
        %1054 = vmatprep.subr.mxu0 0.0
        %1055 = vmatpush1.msra.mxu0 0.0
        %1056 = vmatprep.subr.mxu0 0.0
        %1057 = vmatpush1.msra.mxu0 0.0
        %1058 = vmatprep.subr.mxu0 0.0
        %1059 = vmatpush1.msra.mxu0 0.0
        %1060 = vmatprep.subr.mxu0 0.0
        %1061 = vmatpush1.msra.mxu0 0.0
        %1062 = vmatprep.subr.mxu0 0.0
        %1063 = vmatpush1.msra.mxu0 0.0
        %1064 = vmatprep.subr.mxu0 0.0
        %1065 = vmatpush1.msra.mxu0 0.0
        %1066 = vmatprep.subr.mxu0 0.0
        %1067 = vmatpush1.msra.mxu0 0.0
        %1068 = vmatprep.subr.mxu0 0.0
        %1069 = vmatpush1.msra.mxu0 0.0
        %1070 = vmatprep.subr.mxu0 0.0
        %1071 = vmatpush1.msra.mxu0 0.0
        %1072 = vmatprep.subr.mxu0 0.0
        %1073 = vmatpush1.msra.mxu0 0.0
        %1074 = vmatprep.subr.mxu0 0.0
        %1075 = vmatpush1.msra.mxu0 0.0
        %1076 = vmatprep.subr.mxu0 0.0
        %1077 = vmatpush1.msra.mxu0 0.0
        %1078 = vmatprep.subr.mxu0 0.0
        %1079 = vmatpush1.msra.mxu0 0.0
        %1080 = vmatprep.subr.mxu0 0.0
        %1081 = vmatpush1.msra.mxu0 0.0
        %1082 = vmatprep.subr.mxu0 0.0
        %1083 = vmatpush1.msra.mxu0 0.0
        %1084 = vmatprep.subr.mxu0 0.0
        %1085 = vmatpush1.msra.mxu0 0.0
        %1086 = vmatprep.subr.mxu0 0.0
        %1087 = vmatpush1.msra.mxu0 0.0
        %1088 = vmatprep.subr.mxu0 0.0
        %1089 = vmatpush1.msra.mxu0 0.0
        %1090 = vmatprep.subr.mxu0 0.0
        %1091 = vmatpush1.msra.mxu0 0.0
        %1092 = vmatprep.subr.mxu0 0.0
        %1093 = vmatpush1.msra.mxu0 0.0
        %1094 = vmatprep.mubr.f32.mxu0 0.0
        %1095 = vmatmul.mubr.f32.gmra.mrb[0].mxu0 %v1028
        %v1096 = vpop.f32.mrb[0].mxu0
        %v1097 = vadd.f32 0.0, %v1096
        %v1098 = vpop.f32.mrb[0].mxu0
        %1099 = vdwg.mxu0
        %v1100 = vadd.f32 %v1022, %v1097
        %v1101 = vld [vmem:[#allocation2 + $0x5] sm:$0xf]
        %s1102 = scalar_lea.vmem %s9, 80
        %v1103 = vld [vmem:[%s1102] sm:$0xff]
        %v1104 = vld [vmem:[%s1102 + $0x8] sm:$0xff]
        %v1106 = vsel %vm720, %v1101, 0
        %1108 = vmatprep.subr.mxu0 0.0
        %1109 = vmatpush1.msra.mxu0 %v1103
        %1110 = vmatprep.subr.mxu0 0.0
        %1111 = vmatpush1.msra.mxu0 %v1104
        %1112 = vmatprep.subr.mxu0 0.0
        %1113 = vmatpush1.msra.mxu0 0.0
        %1114 = vmatprep.subr.mxu0 0.0
        %1115 = vmatpush1.msra.mxu0 0.0
        %1116 = vmatprep.subr.mxu0 0.0
        %1117 = vmatpush1.msra.mxu0 0.0
        %1118 = vmatprep.subr.mxu0 0.0
        %1119 = vmatpush1.msra.mxu0 0.0
        %1120 = vmatprep.subr.mxu0 0.0
        %1121 = vmatpush1.msra.mxu0 0.0
        %1122 = vmatprep.subr.mxu0 0.0
        %1123 = vmatpush1.msra.mxu0 0.0
        %1124 = vmatprep.subr.mxu0 0.0
        %1125 = vmatpush1.msra.mxu0 0.0
        %1126 = vmatprep.subr.mxu0 0.0
        %1127 = vmatpush1.msra.mxu0 0.0
        %1128 = vmatprep.subr.mxu0 0.0
        %1129 = vmatpush1.msra.mxu0 0.0
        %1130 = vmatprep.subr.mxu0 0.0
        %1131 = vmatpush1.msra.mxu0 0.0
        %1132 = vmatprep.subr.mxu0 0.0
        %1133 = vmatpush1.msra.mxu0 0.0
        %1134 = vmatprep.subr.mxu0 0.0
        %1135 = vmatpush1.msra.mxu0 0.0
        %1136 = vmatprep.subr.mxu0 0.0
        %1137 = vmatpush1.msra.mxu0 0.0
        %1138 = vmatprep.subr.mxu0 0.0
        %1139 = vmatpush1.msra.mxu0 0.0
        %1140 = vmatprep.subr.mxu0 0.0
        %1141 = vmatpush1.msra.mxu0 0.0
        %1142 = vmatprep.subr.mxu0 0.0
        %1143 = vmatpush1.msra.mxu0 0.0
        %1144 = vmatprep.subr.mxu0 0.0
        %1145 = vmatpush1.msra.mxu0 0.0
        %1146 = vmatprep.subr.mxu0 0.0
        %1147 = vmatpush1.msra.mxu0 0.0
        %1148 = vmatprep.subr.mxu0 0.0
        %1149 = vmatpush1.msra.mxu0 0.0
        %1150 = vmatprep.subr.mxu0 0.0
        %1151 = vmatpush1.msra.mxu0 0.0
        %1152 = vmatprep.subr.mxu0 0.0
        %1153 = vmatpush1.msra.mxu0 0.0
        %1154 = vmatprep.subr.mxu0 0.0
        %1155 = vmatpush1.msra.mxu0 0.0
        %1156 = vmatprep.subr.mxu0 0.0
        %1157 = vmatpush1.msra.mxu0 0.0
        %1158 = vmatprep.subr.mxu0 0.0
        %1159 = vmatpush1.msra.mxu0 0.0
        %1160 = vmatprep.subr.mxu0 0.0
        %1161 = vmatpush1.msra.mxu0 0.0
        %1162 = vmatprep.subr.mxu0 0.0
        %1163 = vmatpush1.msra.mxu0 0.0
        %1164 = vmatprep.subr.mxu0 0.0
        %1165 = vmatpush1.msra.mxu0 0.0
        %1166 = vmatprep.subr.mxu0 0.0
        %1167 = vmatpush1.msra.mxu0 0.0
        %1168 = vmatprep.subr.mxu0 0.0
        %1169 = vmatpush1.msra.mxu0 0.0
        %1170 = vmatprep.subr.mxu0 0.0
        %1171 = vmatpush1.msra.mxu0 0.0
        %1172 = vmatprep.mubr.f32.mxu0 0.0
        %1173 = vmatmul.mubr.f32.gmra.mrb[0].mxu0 %v1106
        %v1174 = vpop.f32.mrb[0].mxu0
        %v1175 = vadd.f32 0.0, %v1174
        %v1176 = vpop.f32.mrb[0].mxu0
        %1177 = vdwg.mxu0
        %v1178 = vadd.f32 %v1100, %v1175
        %v1179 = vld [vmem:[#allocation2 + $0x6] sm:$0xf]
        %s1180 = scalar_lea.vmem %s9, 96
        %v1181 = vld [vmem:[%s1180] sm:$0xff]
        %v1182 = vld [vmem:[%s1180 + $0x8] sm:$0xff]
        %v1184 = vsel %vm720, %v1179, 0
        %1186 = vmatprep.subr.mxu0 0.0
        %1187 = vmatpush1.msra.mxu0 %v1181
        %1188 = vmatprep.subr.mxu0 0.0
        %1189 = vmatpush1.msra.mxu0 %v1182
        %1190 = vmatprep.subr.mxu0 0.0
        %1191 = vmatpush1.msra.mxu0 0.0
        %1192 = vmatprep.subr.mxu0 0.0
        %1193 = vmatpush1.msra.mxu0 0.0
        %1194 = vmatprep.subr.mxu0 0.0
        %1195 = vmatpush1.msra.mxu0 0.0
        %1196 = vmatprep.subr.mxu0 0.0
        %1197 = vmatpush1.msra.mxu0 0.0
        %1198 = vmatprep.subr.mxu0 0.0
        %1199 = vmatpush1.msra.mxu0 0.0
        %1200 = vmatprep.subr.mxu0 0.0
        %1201 = vmatpush1.msra.mxu0 0.0
        %1202 = vmatprep.subr.mxu0 0.0
        %1203 = vmatpush1.msra.mxu0 0.0
        %1204 = vmatprep.subr.mxu0 0.0
        %1205 = vmatpush1.msra.mxu0 0.0
        %1206 = vmatprep.subr.mxu0 0.0
        %1207 = vmatpush1.msra.mxu0 0.0
        %1208 = vmatprep.subr.mxu0 0.0
        %1209 = vmatpush1.msra.mxu0 0.0
        %1210 = vmatprep.subr.mxu0 0.0
        %1211 = vmatpush1.msra.mxu0 0.0
        %1212 = vmatprep.subr.mxu0 0.0
        %1213 = vmatpush1.msra.mxu0 0.0
        %1214 = vmatprep.subr.mxu0 0.0
        %1215 = vmatpush1.msra.mxu0 0.0
        %1216 = vmatprep.subr.mxu0 0.0
        %1217 = vmatpush1.msra.mxu0 0.0
        %1218 = vmatprep.subr.mxu0 0.0
        %1219 = vmatpush1.msra.mxu0 0.0
        %1220 = vmatprep.subr.mxu0 0.0
        %1221 = vmatpush1.msra.mxu0 0.0
        %1222 = vmatprep.subr.mxu0 0.0
        %1223 = vmatpush1.msra.mxu0 0.0
        %1224 = vmatprep.subr.mxu0 0.0
        %1225 = vmatpush1.msra.mxu0 0.0
        %1226 = vmatprep.subr.mxu0 0.0
        %1227 = vmatpush1.msra.mxu0 0.0
        %1228 = vmatprep.subr.mxu0 0.0
        %1229 = vmatpush1.msra.mxu0 0.0
        %1230 = vmatprep.subr.mxu0 0.0
        %1231 = vmatpush1.msra.mxu0 0.0
        %1232 = vmatprep.subr.mxu0 0.0
        %1233 = vmatpush1.msra.mxu0 0.0
        %1234 = vmatprep.subr.mxu0 0.0
        %1235 = vmatpush1.msra.mxu0 0.0
        %1236 = vmatprep.subr.mxu0 0.0
        %1237 = vmatpush1.msra.mxu0 0.0
        %1238 = vmatprep.subr.mxu0 0.0
        %1239 = vmatpush1.msra.mxu0 0.0
        %1240 = vmatprep.subr.mxu0 0.0
        %1241 = vmatpush1.msra.mxu0 0.0
        %1242 = vmatprep.subr.mxu0 0.0
        %1243 = vmatpush1.msra.mxu0 0.0
        %1244 = vmatprep.subr.mxu0 0.0
        %1245 = vmatpush1.msra.mxu0 0.0
        %1246 = vmatprep.subr.mxu0 0.0
        %1247 = vmatpush1.msra.mxu0 0.0
        %1248 = vmatprep.subr.mxu0 0.0
        %1249 = vmatpush1.msra.mxu0 0.0
        %1250 = vmatprep.mubr.f32.mxu0 0.0
        %1251 = vmatmul.mubr.f32.gmra.mrb[0].mxu0 %v1184
        %v1252 = vpop.f32.mrb[0].mxu0
        %v1253 = vadd.f32 0.0, %v1252
        %v1254 = vpop.f32.mrb[0].mxu0
        %1255 = vdwg.mxu0
        %v1256 = vadd.f32 %v1178, %v1253
        %v1257 = vld [vmem:[%s434] sm:$0xf]
        %s1258 = scalar_lea.vmem %s9, 112
        %v1259 = vld [vmem:[%s1258] sm:$0xff]
        %v1260 = vld [vmem:[%s1258 + $0x8] sm:$0xff]
        %v1262 = vsel %vm720, %v1257, 0
        %1264 = vmatprep.subr.mxu0 0.0
        %1265 = vmatpush1.msra.mxu0 %v1259
        %1266 = vmatprep.subr.mxu0 0.0
        %1267 = vmatpush1.msra.mxu0 %v1260
        %1268 = vmatprep.subr.mxu0 0.0
        %1269 = vmatpush1.msra.mxu0 0.0
        %1270 = vmatprep.subr.mxu0 0.0
        %1271 = vmatpush1.msra.mxu0 0.0
        %1272 = vmatprep.subr.mxu0 0.0
        %1273 = vmatpush1.msra.mxu0 0.0
        %1274 = vmatprep.subr.mxu0 0.0
        %1275 = vmatpush1.msra.mxu0 0.0
        %1276 = vmatprep.subr.mxu0 0.0
        %1277 = vmatpush1.msra.mxu0 0.0
        %1278 = vmatprep.subr.mxu0 0.0
        %1279 = vmatpush1.msra.mxu0 0.0
        %1280 = vmatprep.subr.mxu0 0.0
        %1281 = vmatpush1.msra.mxu0 0.0
        %1282 = vmatprep.subr.mxu0 0.0
        %1283 = vmatpush1.msra.mxu0 0.0
        %1284 = vmatprep.subr.mxu0 0.0
        %1285 = vmatpush1.msra.mxu0 0.0
        %1286 = vmatprep.subr.mxu0 0.0
        %1287 = vmatpush1.msra.mxu0 0.0
        %1288 = vmatprep.subr.mxu0 0.0
        %1289 = vmatpush1.msra.mxu0 0.0
        %1290 = vmatprep.subr.mxu0 0.0
        %1291 = vmatpush1.msra.mxu0 0.0
        %1292 = vmatprep.subr.mxu0 0.0
        %1293 = vmatpush1.msra.mxu0 0.0
        %1294 = vmatprep.subr.mxu0 0.0
        %1295 = vmatpush1.msra.mxu0 0.0
        %1296 = vmatprep.subr.mxu0 0.0
        %1297 = vmatpush1.msra.mxu0 0.0
        %1298 = vmatprep.subr.mxu0 0.0
        %1299 = vmatpush1.msra.mxu0 0.0
        %1300 = vmatprep.subr.mxu0 0.0
        %1301 = vmatpush1.msra.mxu0 0.0
        %1302 = vmatprep.subr.mxu0 0.0
        %1303 = vmatpush1.msra.mxu0 0.0
        %1304 = vmatprep.subr.mxu0 0.0
        %1305 = vmatpush1.msra.mxu0 0.0
        %1306 = vmatprep.subr.mxu0 0.0
        %1307 = vmatpush1.msra.mxu0 0.0
        %1308 = vmatprep.subr.mxu0 0.0
        %1309 = vmatpush1.msra.mxu0 0.0
        %1310 = vmatprep.subr.mxu0 0.0
        %1311 = vmatpush1.msra.mxu0 0.0
        %1312 = vmatprep.subr.mxu0 0.0
        %1313 = vmatpush1.msra.mxu0 0.0
        %1314 = vmatprep.subr.mxu0 0.0
        %1315 = vmatpush1.msra.mxu0 0.0
        %1316 = vmatprep.subr.mxu0 0.0
        %1317 = vmatpush1.msra.mxu0 0.0
        %1318 = vmatprep.subr.mxu0 0.0
        %1319 = vmatpush1.msra.mxu0 0.0
        %1320 = vmatprep.subr.mxu0 0.0
        %1321 = vmatpush1.msra.mxu0 0.0
        %1322 = vmatprep.subr.mxu0 0.0
        %1323 = vmatpush1.msra.mxu0 0.0
        %1324 = vmatprep.subr.mxu0 0.0
        %1325 = vmatpush1.msra.mxu0 0.0
        %1326 = vmatprep.subr.mxu0 0.0
        %1327 = vmatpush1.msra.mxu0 0.0
        %1328 = vmatprep.mubr.f32.mxu0 0.0
        %1329 = vmatmul.mubr.f32.gmra.mrb[0].mxu0 %v1262
        %v1330 = vpop.f32.mrb[0].mxu0
        %v1331 = vadd.f32 0.0, %v1330
        %v1332 = vpop.f32.mrb[0].mxu0
        %1333 = vdwg.mxu0
        %v1334 = vadd.f32 %v1256, %v1331
        %v1335 = vld [vmem:[%s434 + $0x1] sm:$0xf]
        %s1336 = scalar_lea.vmem %s9, 128
        %v1337 = vld [vmem:[%s1336] sm:$0xff]
        %v1338 = vld [vmem:[%s1336 + $0x8] sm:$0xff]
        %v1340 = vsel %vm720, %v1335, 0
        %1342 = vmatprep.subr.mxu0 0.0
        %1343 = vmatpush1.msra.mxu0 %v1337
        %1344 = vmatprep.subr.mxu0 0.0
        %1345 = vmatpush1.msra.mxu0 %v1338
        %1346 = vmatprep.subr.mxu0 0.0
        %1347 = vmatpush1.msra.mxu0 0.0
        %1348 = vmatprep.subr.mxu0 0.0
        %1349 = vmatpush1.msra.mxu0 0.0
        %1350 = vmatprep.subr.mxu0 0.0
        %1351 = vmatpush1.msra.mxu0 0.0
        %1352 = vmatprep.subr.mxu0 0.0
        %1353 = vmatpush1.msra.mxu0 0.0
        %1354 = vmatprep.subr.mxu0 0.0
        %1355 = vmatpush1.msra.mxu0 0.0
        %1356 = vmatprep.subr.mxu0 0.0
        %1357 = vmatpush1.msra.mxu0 0.0
        %1358 = vmatprep.subr.mxu0 0.0
        %1359 = vmatpush1.msra.mxu0 0.0
        %1360 = vmatprep.subr.mxu0 0.0
        %1361 = vmatpush1.msra.mxu0 0.0
        %1362 = vmatprep.subr.mxu0 0.0
        %1363 = vmatpush1.msra.mxu0 0.0
        %1364 = vmatprep.subr.mxu0 0.0
        %1365 = vmatpush1.msra.mxu0 0.0
        %1366 = vmatprep.subr.mxu0 0.0
        %1367 = vmatpush1.msra.mxu0 0.0
        %1368 = vmatprep.subr.mxu0 0.0
        %1369 = vmatpush1.msra.mxu0 0.0
        %1370 = vmatprep.subr.mxu0 0.0
        %1371 = vmatpush1.msra.mxu0 0.0
        %1372 = vmatprep.subr.mxu0 0.0
        %1373 = vmatpush1.msra.mxu0 0.0
        %1374 = vmatprep.subr.mxu0 0.0
        %1375 = vmatpush1.msra.mxu0 0.0
        %1376 = vmatprep.subr.mxu0 0.0
        %1377 = vmatpush1.msra.mxu0 0.0
        %1378 = vmatprep.subr.mxu0 0.0
        %1379 = vmatpush1.msra.mxu0 0.0
        %1380 = vmatprep.subr.mxu0 0.0
        %1381 = vmatpush1.msra.mxu0 0.0
        %1382 = vmatprep.subr.mxu0 0.0
        %1383 = vmatpush1.msra.mxu0 0.0
        %1384 = vmatprep.subr.mxu0 0.0
        %1385 = vmatpush1.msra.mxu0 0.0
        %1386 = vmatprep.subr.mxu0 0.0
        %1387 = vmatpush1.msra.mxu0 0.0
        %1388 = vmatprep.subr.mxu0 0.0
        %1389 = vmatpush1.msra.mxu0 0.0
        %1390 = vmatprep.subr.mxu0 0.0
        %1391 = vmatpush1.msra.mxu0 0.0
        %1392 = vmatprep.subr.mxu0 0.0
        %1393 = vmatpush1.msra.mxu0 0.0
        %1394 = vmatprep.subr.mxu0 0.0
        %1395 = vmatpush1.msra.mxu0 0.0
        %1396 = vmatprep.subr.mxu0 0.0
        %1397 = vmatpush1.msra.mxu0 0.0
        %1398 = vmatprep.subr.mxu0 0.0
        %1399 = vmatpush1.msra.mxu0 0.0
        %1400 = vmatprep.subr.mxu0 0.0
        %1401 = vmatpush1.msra.mxu0 0.0
        %1402 = vmatprep.subr.mxu0 0.0
        %1403 = vmatpush1.msra.mxu0 0.0
        %1404 = vmatprep.subr.mxu0 0.0
        %1405 = vmatpush1.msra.mxu0 0.0
        %1406 = vmatprep.mubr.f32.mxu0 0.0
        %1407 = vmatmul.mubr.f32.gmra.mrb[0].mxu0 %v1340
        %v1408 = vpop.f32.mrb[0].mxu0
        %v1409 = vadd.f32 0.0, %v1408
        %v1410 = vpop.f32.mrb[0].mxu0
        %1411 = vdwg.mxu0
        %v1412 = vadd.f32 %v1334, %v1409
        %v1413 = vld [vmem:[%s434 + $0x2] sm:$0xf]
        %s1414 = scalar_lea.vmem %s9, 144
        %v1415 = vld [vmem:[%s1414] sm:$0xff]
        %v1416 = vld [vmem:[%s1414 + $0x8] sm:$0xff]
        %v1418 = vsel %vm720, %v1413, 0
        %1420 = vmatprep.subr.mxu0 0.0
        %1421 = vmatpush1.msra.mxu0 %v1415
        %1422 = vmatprep.subr.mxu0 0.0
        %1423 = vmatpush1.msra.mxu0 %v1416
        %1424 = vmatprep.subr.mxu0 0.0
        %1425 = vmatpush1.msra.mxu0 0.0
        %1426 = vmatprep.subr.mxu0 0.0
        %1427 = vmatpush1.msra.mxu0 0.0
        %1428 = vmatprep.subr.mxu0 0.0
        %1429 = vmatpush1.msra.mxu0 0.0
        %1430 = vmatprep.subr.mxu0 0.0
        %1431 = vmatpush1.msra.mxu0 0.0
        %1432 = vmatprep.subr.mxu0 0.0
        %1433 = vmatpush1.msra.mxu0 0.0
        %1434 = vmatprep.subr.mxu0 0.0
        %1435 = vmatpush1.msra.mxu0 0.0
        %1436 = vmatprep.subr.mxu0 0.0
        %1437 = vmatpush1.msra.mxu0 0.0
        %1438 = vmatprep.subr.mxu0 0.0
        %1439 = vmatpush1.msra.mxu0 0.0
        %1440 = vmatprep.subr.mxu0 0.0
        %1441 = vmatpush1.msra.mxu0 0.0
        %1442 = vmatprep.subr.mxu0 0.0
        %1443 = vmatpush1.msra.mxu0 0.0
        %1444 = vmatprep.subr.mxu0 0.0
        %1445 = vmatpush1.msra.mxu0 0.0
        %1446 = vmatprep.subr.mxu0 0.0
        %1447 = vmatpush1.msra.mxu0 0.0
        %1448 = vmatprep.subr.mxu0 0.0
        %1449 = vmatpush1.msra.mxu0 0.0
        %1450 = vmatprep.subr.mxu0 0.0
        %1451 = vmatpush1.msra.mxu0 0.0
        %1452 = vmatprep.subr.mxu0 0.0
        %1453 = vmatpush1.msra.mxu0 0.0
        %1454 = vmatprep.subr.mxu0 0.0
        %1455 = vmatpush1.msra.mxu0 0.0
        %1456 = vmatprep.subr.mxu0 0.0
        %1457 = vmatpush1.msra.mxu0 0.0
        %1458 = vmatprep.subr.mxu0 0.0
        %1459 = vmatpush1.msra.mxu0 0.0
        %1460 = vmatprep.subr.mxu0 0.0
        %1461 = vmatpush1.msra.mxu0 0.0
        %1462 = vmatprep.subr.mxu0 0.0
        %1463 = vmatpush1.msra.mxu0 0.0
        %1464 = vmatprep.subr.mxu0 0.0
        %1465 = vmatpush1.msra.mxu0 0.0
        %1466 = vmatprep.subr.mxu0 0.0
        %1467 = vmatpush1.msra.mxu0 0.0
        %1468 = vmatprep.subr.mxu0 0.0
        %1469 = vmatpush1.msra.mxu0 0.0
        %1470 = vmatprep.subr.mxu0 0.0
        %1471 = vmatpush1.msra.mxu0 0.0
        %1472 = vmatprep.subr.mxu0 0.0
        %1473 = vmatpush1.msra.mxu0 0.0
        %1474 = vmatprep.subr.mxu0 0.0
        %1475 = vmatpush1.msra.mxu0 0.0
        %1476 = vmatprep.subr.mxu0 0.0
        %1477 = vmatpush1.msra.mxu0 0.0
        %1478 = vmatprep.subr.mxu0 0.0
        %1479 = vmatpush1.msra.mxu0 0.0
        %1480 = vmatprep.subr.mxu0 0.0
        %1481 = vmatpush1.msra.mxu0 0.0
        %1482 = vmatprep.subr.mxu0 0.0
        %1483 = vmatpush1.msra.mxu0 0.0
        %1484 = vmatprep.mubr.f32.mxu0 0.0
        %1485 = vmatmul.mubr.f32.gmra.mrb[0].mxu0 %v1418
        %v1486 = vpop.f32.mrb[0].mxu0
        %v1487 = vadd.f32 0.0, %v1486
        %v1488 = vpop.f32.mrb[0].mxu0
        %1489 = vdwg.mxu0
        %v1490 = vadd.f32 %v1412, %v1487
        %v1491 = vld [vmem:[%s434 + $0x3] sm:$0xf]
        %s1492 = scalar_lea.vmem %s9, 160
        %v1493 = vld [vmem:[%s1492] sm:$0xff]
        %v1494 = vld [vmem:[%s1492 + $0x8] sm:$0xff]
        %v1496 = vsel %vm720, %v1491, 0
        %1498 = vmatprep.subr.mxu0 0.0
        %1499 = vmatpush1.msra.mxu0 %v1493
        %1500 = vmatprep.subr.mxu0 0.0
        %1501 = vmatpush1.msra.mxu0 %v1494
        %1502 = vmatprep.subr.mxu0 0.0
        %1503 = vmatpush1.msra.mxu0 0.0
        %1504 = vmatprep.subr.mxu0 0.0
        %1505 = vmatpush1.msra.mxu0 0.0
        %1506 = vmatprep.subr.mxu0 0.0
        %1507 = vmatpush1.msra.mxu0 0.0
        %1508 = vmatprep.subr.mxu0 0.0
        %1509 = vmatpush1.msra.mxu0 0.0
        %1510 = vmatprep.subr.mxu0 0.0
        %1511 = vmatpush1.msra.mxu0 0.0
        %1512 = vmatprep.subr.mxu0 0.0
        %1513 = vmatpush1.msra.mxu0 0.0
        %1514 = vmatprep.subr.mxu0 0.0
        %1515 = vmatpush1.msra.mxu0 0.0
        %1516 = vmatprep.subr.mxu0 0.0
        %1517 = vmatpush1.msra.mxu0 0.0
        %1518 = vmatprep.subr.mxu0 0.0
        %1519 = vmatpush1.msra.mxu0 0.0
        %1520 = vmatprep.subr.mxu0 0.0
        %1521 = vmatpush1.msra.mxu0 0.0
        %1522 = vmatprep.subr.mxu0 0.0
        %1523 = vmatpush1.msra.mxu0 0.0
        %1524 = vmatprep.subr.mxu0 0.0
        %1525 = vmatpush1.msra.mxu0 0.0
        %1526 = vmatprep.subr.mxu0 0.0
        %1527 = vmatpush1.msra.mxu0 0.0
        %1528 = vmatprep.subr.mxu0 0.0
        %1529 = vmatpush1.msra.mxu0 0.0
        %1530 = vmatprep.subr.mxu0 0.0
        %1531 = vmatpush1.msra.mxu0 0.0
        %1532 = vmatprep.subr.mxu0 0.0
        %1533 = vmatpush1.msra.mxu0 0.0
        %1534 = vmatprep.subr.mxu0 0.0
        %1535 = vmatpush1.msra.mxu0 0.0
        %1536 = vmatprep.subr.mxu0 0.0
        %1537 = vmatpush1.msra.mxu0 0.0
        %1538 = vmatprep.subr.mxu0 0.0
        %1539 = vmatpush1.msra.mxu0 0.0
        %1540 = vmatprep.subr.mxu0 0.0
        %1541 = vmatpush1.msra.mxu0 0.0
        %1542 = vmatprep.subr.mxu0 0.0
        %1543 = vmatpush1.msra.mxu0 0.0
        %1544 = vmatprep.subr.mxu0 0.0
        %1545 = vmatpush1.msra.mxu0 0.0
        %1546 = vmatprep.subr.mxu0 0.0
        %1547 = vmatpush1.msra.mxu0 0.0
        %1548 = vmatprep.subr.mxu0 0.0
        %1549 = vmatpush1.msra.mxu0 0.0
        %1550 = vmatprep.subr.mxu0 0.0
        %1551 = vmatpush1.msra.mxu0 0.0
        %1552 = vmatprep.subr.mxu0 0.0
        %1553 = vmatpush1.msra.mxu0 0.0
        %1554 = vmatprep.subr.mxu0 0.0
        %1555 = vmatpush1.msra.mxu0 0.0
        %1556 = vmatprep.subr.mxu0 0.0
        %1557 = vmatpush1.msra.mxu0 0.0
        %1558 = vmatprep.subr.mxu0 0.0
        %1559 = vmatpush1.msra.mxu0 0.0
        %1560 = vmatprep.subr.mxu0 0.0
        %1561 = vmatpush1.msra.mxu0 0.0
        %1562 = vmatprep.mubr.f32.mxu0 0.0
        %1563 = vmatmul.mubr.f32.gmra.mrb[0].mxu0 %v1496
        %v1564 = vpop.f32.mrb[0].mxu0
        %v1565 = vadd.f32 0.0, %v1564
        %v1566 = vpop.f32.mrb[0].mxu0
        %1567 = vdwg.mxu0
        %v1568 = vadd.f32 %v1490, %v1565
        %v1569 = vld [vmem:[%s434 + $0x4] sm:$0xf]
        %s1570 = scalar_lea.vmem %s9, 176
        %v1571 = vld [vmem:[%s1570] sm:$0xff]
        %v1572 = vld [vmem:[%s1570 + $0x8] sm:$0xff]
        %v1574 = vsel %vm720, %v1569, 0
        %1576 = vmatprep.subr.mxu0 0.0
        %1577 = vmatpush1.msra.mxu0 %v1571
        %1578 = vmatprep.subr.mxu0 0.0
        %1579 = vmatpush1.msra.mxu0 %v1572
        %1580 = vmatprep.subr.mxu0 0.0
        %1581 = vmatpush1.msra.mxu0 0.0
        %1582 = vmatprep.subr.mxu0 0.0
        %1583 = vmatpush1.msra.mxu0 0.0
        %1584 = vmatprep.subr.mxu0 0.0
        %1585 = vmatpush1.msra.mxu0 0.0
        %1586 = vmatprep.subr.mxu0 0.0
        %1587 = vmatpush1.msra.mxu0 0.0
        %1588 = vmatprep.subr.mxu0 0.0
        %1589 = vmatpush1.msra.mxu0 0.0
        %1590 = vmatprep.subr.mxu0 0.0
        %1591 = vmatpush1.msra.mxu0 0.0
        %1592 = vmatprep.subr.mxu0 0.0
        %1593 = vmatpush1.msra.mxu0 0.0
        %1594 = vmatprep.subr.mxu0 0.0
        %1595 = vmatpush1.msra.mxu0 0.0
        %1596 = vmatprep.subr.mxu0 0.0
        %1597 = vmatpush1.msra.mxu0 0.0
        %1598 = vmatprep.subr.mxu0 0.0
        %1599 = vmatpush1.msra.mxu0 0.0
        %1600 = vmatprep.subr.mxu0 0.0
        %1601 = vmatpush1.msra.mxu0 0.0
        %1602 = vmatprep.subr.mxu0 0.0
        %1603 = vmatpush1.msra.mxu0 0.0
        %1604 = vmatprep.subr.mxu0 0.0
        %1605 = vmatpush1.msra.mxu0 0.0
        %1606 = vmatprep.subr.mxu0 0.0
        %1607 = vmatpush1.msra.mxu0 0.0
        %1608 = vmatprep.subr.mxu0 0.0
        %1609 = vmatpush1.msra.mxu0 0.0
        %1610 = vmatprep.subr.mxu0 0.0
        %1611 = vmatpush1.msra.mxu0 0.0
        %1612 = vmatprep.subr.mxu0 0.0
        %1613 = vmatpush1.msra.mxu0 0.0
        %1614 = vmatprep.subr.mxu0 0.0
        %1615 = vmatpush1.msra.mxu0 0.0
        %1616 = vmatprep.subr.mxu0 0.0
        %1617 = vmatpush1.msra.mxu0 0.0
        %1618 = vmatprep.subr.mxu0 0.0
        %1619 = vmatpush1.msra.mxu0 0.0
        %1620 = vmatprep.subr.mxu0 0.0
        %1621 = vmatpush1.msra.mxu0 0.0
        %1622 = vmatprep.subr.mxu0 0.0
        %1623 = vmatpush1.msra.mxu0 0.0
        %1624 = vmatprep.subr.mxu0 0.0
        %1625 = vmatpush1.msra.mxu0 0.0
        %1626 = vmatprep.subr.mxu0 0.0
        %1627 = vmatpush1.msra.mxu0 0.0
        %1628 = vmatprep.subr.mxu0 0.0
        %1629 = vmatpush1.msra.mxu0 0.0
        %1630 = vmatprep.subr.mxu0 0.0
        %1631 = vmatpush1.msra.mxu0 0.0
        %1632 = vmatprep.subr.mxu0 0.0
        %1633 = vmatpush1.msra.mxu0 0.0
        %1634 = vmatprep.subr.mxu0 0.0
        %1635 = vmatpush1.msra.mxu0 0.0
        %1636 = vmatprep.subr.mxu0 0.0
        %1637 = vmatpush1.msra.mxu0 0.0
        %1638 = vmatprep.subr.mxu0 0.0
        %1639 = vmatpush1.msra.mxu0 0.0
        %1640 = vmatprep.mubr.f32.mxu0 0.0
        %1641 = vmatmul.mubr.f32.gmra.mrb[0].mxu0 %v1574
        %v1642 = vpop.f32.mrb[0].mxu0
        %v1643 = vadd.f32 0.0, %v1642
        %v1644 = vpop.f32.mrb[0].mxu0
        %1645 = vdwg.mxu0
        %v1646 = vadd.f32 %v1568, %v1643
        %v1647 = vld [vmem:[%s434 + $0x5] sm:$0xf]
        %s1648 = scalar_lea.vmem %s9, 192
        %v1649 = vld [vmem:[%s1648] sm:$0xff]
        %v1650 = vld [vmem:[%s1648 + $0x8] sm:$0xff]
        %v1652 = vsel %vm720, %v1647, 0
        %1654 = vmatprep.subr.mxu0 0.0
        %1655 = vmatpush1.msra.mxu0 %v1649
        %1656 = vmatprep.subr.mxu0 0.0
        %1657 = vmatpush1.msra.mxu0 %v1650
        %1658 = vmatprep.subr.mxu0 0.0
        %1659 = vmatpush1.msra.mxu0 0.0
        %1660 = vmatprep.subr.mxu0 0.0
        %1661 = vmatpush1.msra.mxu0 0.0
        %1662 = vmatprep.subr.mxu0 0.0
        %1663 = vmatpush1.msra.mxu0 0.0
        %1664 = vmatprep.subr.mxu0 0.0
        %1665 = vmatpush1.msra.mxu0 0.0
        %1666 = vmatprep.subr.mxu0 0.0
        %1667 = vmatpush1.msra.mxu0 0.0
        %1668 = vmatprep.subr.mxu0 0.0
        %1669 = vmatpush1.msra.mxu0 0.0
        %1670 = vmatprep.subr.mxu0 0.0
        %1671 = vmatpush1.msra.mxu0 0.0
        %1672 = vmatprep.subr.mxu0 0.0
        %1673 = vmatpush1.msra.mxu0 0.0
        %1674 = vmatprep.subr.mxu0 0.0
        %1675 = vmatpush1.msra.mxu0 0.0
        %1676 = vmatprep.subr.mxu0 0.0
        %1677 = vmatpush1.msra.mxu0 0.0
        %1678 = vmatprep.subr.mxu0 0.0
        %1679 = vmatpush1.msra.mxu0 0.0
        %1680 = vmatprep.subr.mxu0 0.0
        %1681 = vmatpush1.msra.mxu0 0.0
        %1682 = vmatprep.subr.mxu0 0.0
        %1683 = vmatpush1.msra.mxu0 0.0
        %1684 = vmatprep.subr.mxu0 0.0
        %1685 = vmatpush1.msra.mxu0 0.0
        %1686 = vmatprep.subr.mxu0 0.0
        %1687 = vmatpush1.msra.mxu0 0.0
        %1688 = vmatprep.subr.mxu0 0.0
        %1689 = vmatpush1.msra.mxu0 0.0
        %1690 = vmatprep.subr.mxu0 0.0
        %1691 = vmatpush1.msra.mxu0 0.0
        %1692 = vmatprep.subr.mxu0 0.0
        %1693 = vmatpush1.msra.mxu0 0.0
        %1694 = vmatprep.subr.mxu0 0.0
        %1695 = vmatpush1.msra.mxu0 0.0
        %1696 = vmatprep.subr.mxu0 0.0
        %1697 = vmatpush1.msra.mxu0 0.0
        %1698 = vmatprep.subr.mxu0 0.0
        %1699 = vmatpush1.msra.mxu0 0.0
        %1700 = vmatprep.subr.mxu0 0.0
        %1701 = vmatpush1.msra.mxu0 0.0
        %1702 = vmatprep.subr.mxu0 0.0
        %1703 = vmatpush1.msra.mxu0 0.0
        %1704 = vmatprep.subr.mxu0 0.0
        %1705 = vmatpush1.msra.mxu0 0.0
        %1706 = vmatprep.subr.mxu0 0.0
        %1707 = vmatpush1.msra.mxu0 0.0
        %1708 = vmatprep.subr.mxu0 0.0
        %1709 = vmatpush1.msra.mxu0 0.0
        %1710 = vmatprep.subr.mxu0 0.0
        %1711 = vmatpush1.msra.mxu0 0.0
        %1712 = vmatprep.subr.mxu0 0.0
        %1713 = vmatpush1.msra.mxu0 0.0
        %1714 = vmatprep.subr.mxu0 0.0
        %1715 = vmatpush1.msra.mxu0 0.0
        %1716 = vmatprep.subr.mxu0 0.0
        %1717 = vmatpush1.msra.mxu0 0.0
        %1718 = vmatprep.mubr.f32.mxu0 0.0
        %1719 = vmatmul.mubr.f32.gmra.mrb[0].mxu0 %v1652
        %v1720 = vpop.f32.mrb[0].mxu0
        %v1721 = vadd.f32 0.0, %v1720
        %v1722 = vpop.f32.mrb[0].mxu0
        %1723 = vdwg.mxu0
        %v1724 = vadd.f32 %v1646, %v1721
        %v1725 = vld [vmem:[%s434 + $0x6] sm:$0xf]
        %s1726 = scalar_lea.vmem %s9, 208
        %v1727 = vld [vmem:[%s1726] sm:$0xff]
        %v1728 = vld [vmem:[%s1726 + $0x8] sm:$0xff]
        %v1730 = vsel %vm720, %v1725, 0
        %1732 = vmatprep.subr.mxu0 0.0
        %1733 = vmatpush1.msra.mxu0 %v1727
        %1734 = vmatprep.subr.mxu0 0.0
        %1735 = vmatpush1.msra.mxu0 %v1728
        %1736 = vmatprep.subr.mxu0 0.0
        %1737 = vmatpush1.msra.mxu0 0.0
        %1738 = vmatprep.subr.mxu0 0.0
        %1739 = vmatpush1.msra.mxu0 0.0
        %1740 = vmatprep.subr.mxu0 0.0
        %1741 = vmatpush1.msra.mxu0 0.0
        %1742 = vmatprep.subr.mxu0 0.0
        %1743 = vmatpush1.msra.mxu0 0.0
        %1744 = vmatprep.subr.mxu0 0.0
        %1745 = vmatpush1.msra.mxu0 0.0
        %1746 = vmatprep.subr.mxu0 0.0
        %1747 = vmatpush1.msra.mxu0 0.0
        %1748 = vmatprep.subr.mxu0 0.0
        %1749 = vmatpush1.msra.mxu0 0.0
        %1750 = vmatprep.subr.mxu0 0.0
        %1751 = vmatpush1.msra.mxu0 0.0
        %1752 = vmatprep.subr.mxu0 0.0
        %1753 = vmatpush1.msra.mxu0 0.0
        %1754 = vmatprep.subr.mxu0 0.0
        %1755 = vmatpush1.msra.mxu0 0.0
        %1756 = vmatprep.subr.mxu0 0.0
        %1757 = vmatpush1.msra.mxu0 0.0
        %1758 = vmatprep.subr.mxu0 0.0
        %1759 = vmatpush1.msra.mxu0 0.0
        %1760 = vmatprep.subr.mxu0 0.0
        %1761 = vmatpush1.msra.mxu0 0.0
        %1762 = vmatprep.subr.mxu0 0.0
        %1763 = vmatpush1.msra.mxu0 0.0
        %1764 = vmatprep.subr.mxu0 0.0
        %1765 = vmatpush1.msra.mxu0 0.0
        %1766 = vmatprep.subr.mxu0 0.0
        %1767 = vmatpush1.msra.mxu0 0.0
        %1768 = vmatprep.subr.mxu0 0.0
        %1769 = vmatpush1.msra.mxu0 0.0
        %1770 = vmatprep.subr.mxu0 0.0
        %1771 = vmatpush1.msra.mxu0 0.0
        %1772 = vmatprep.subr.mxu0 0.0
        %1773 = vmatpush1.msra.mxu0 0.0
        %1774 = vmatprep.subr.mxu0 0.0
        %1775 = vmatpush1.msra.mxu0 0.0
        %1776 = vmatprep.subr.mxu0 0.0
        %1777 = vmatpush1.msra.mxu0 0.0
        %1778 = vmatprep.subr.mxu0 0.0
        %1779 = vmatpush1.msra.mxu0 0.0
        %1780 = vmatprep.subr.mxu0 0.0
        %1781 = vmatpush1.msra.mxu0 0.0
        %1782 = vmatprep.subr.mxu0 0.0
        %1783 = vmatpush1.msra.mxu0 0.0
        %1784 = vmatprep.subr.mxu0 0.0
        %1785 = vmatpush1.msra.mxu0 0.0
        %1786 = vmatprep.subr.mxu0 0.0
        %1787 = vmatpush1.msra.mxu0 0.0
        %1788 = vmatprep.subr.mxu0 0.0
        %1789 = vmatpush1.msra.mxu0 0.0
        %1790 = vmatprep.subr.mxu0 0.0
        %1791 = vmatpush1.msra.mxu0 0.0
        %1792 = vmatprep.subr.mxu0 0.0
        %1793 = vmatpush1.msra.mxu0 0.0
        %1794 = vmatprep.subr.mxu0 0.0
        %1795 = vmatpush1.msra.mxu0 0.0
        %1796 = vmatprep.mubr.f32.mxu0 0.0
        %1797 = vmatmul.mubr.f32.gmra.mrb[0].mxu0 %v1730
        %v1798 = vpop.f32.mrb[0].mxu0
        %v1799 = vadd.f32 0.0, %v1798
        %v1800 = vpop.f32.mrb[0].mxu0
        %1801 = vdwg.mxu0
        %v1802 = vadd.f32 %v1724, %v1799
        %s1803 = sld [smem:[#allocation6]]
        %v1804 = vstv %s1803
        %v1805 = vmul.f32 %v1802, %v1804
        %s1806 = sld [smem:[#allocation6 + $0x1]]
        %v1807 = vstv %s1806
        %v1808 = vadd.f32 %v1805, %v1807
        %v1809 = vxor.u32 %v1808, 2147483648
        %v1810 = vmul.f32 %v1809, 1.442695
        %v1811 = vpow.pop %v1810
        %v1812 = vadd.f32 %v1811, 1.0
        %v1813 = vrcp.pop %v1812
        %v1814 = vmul.f32 1.0, %v1813
        %v1815 = vld [vmem:[%s422] sm:$0xf]
        %v1816 = vmul.f32 %v1815, %v1814
        %1817 = vst.msk [vmem:[#allocation4] sm:$0xf] %vm441, %v1816
        %v1818 = vld [vmem:[%s422] sm:$0xf]
        %1820 = vrot.lane.b32.xlu0 %v1814, 16
        %v1821 = vpop.permute.xlu0 %1820
        %v1823 = vmul.f32 %v1818, %v1821
        %1824 = vst.msk [vmem:[#allocation4] sm:$0xf] %vm459, %v1823
        %v1825 = vld [vmem:[%s422] sm:$0xf]
        %1826 = vrot.lane.b32.xlu0 %v1814, 32
        %v1827 = vpop.permute.xlu0 %1826
        %v1829 = vmul.f32 %v1825, %v1827
        %1830 = vst.msk [vmem:[#allocation4] sm:$0xf] %vm477, %v1829
        %v1831 = vld [vmem:[%s422] sm:$0xf]
        %1832 = vrot.lane.b32.xlu0 %v1814, 48
        %v1833 = vpop.permute.xlu0 %1832
        %v1835 = vmul.f32 %v1831, %v1833
        %1836 = vst.msk [vmem:[#allocation4] sm:$0xf] %vm495, %v1835
        %v1837 = vld [vmem:[%s422] sm:$0xf]
        %1838 = vrot.lane.b32.xlu0 %v1814, 64
        %v1839 = vpop.permute.xlu0 %1838
        %v1841 = vmul.f32 %v1837, %v1839
        %1842 = vst.msk [vmem:[#allocation4] sm:$0xf] %vm513, %v1841
        %v1843 = vld [vmem:[%s422] sm:$0xf]
        %1844 = vrot.lane.b32.xlu0 %v1814, 80
        %v1845 = vpop.permute.xlu0 %1844
        %v1847 = vmul.f32 %v1843, %v1845
        %1848 = vst.msk [vmem:[#allocation4] sm:$0xf] %vm531, %v1847
        %v1849 = vld [vmem:[%s422] sm:$0xf]
        %1850 = vrot.lane.b32.xlu0 %v1814, 96
        %v1851 = vpop.permute.xlu0 %1850
        %v1853 = vmul.f32 %v1849, %v1851
        %1854 = vst.msk [vmem:[#allocation4] sm:$0xf] %vm549, %v1853
        %v1855 = vld [vmem:[%s422] sm:$0xf]
        %1856 = vrot.lane.b32.xlu0 %v1814, 112
        %v1857 = vpop.permute.xlu0 %1856
        %v1859 = vmul.f32 %v1855, %v1857
        %1860 = vst.msk [vmem:[#allocation4] sm:$0xf] %vm567, %v1859
        %v1861 = vld [vmem:[%s422 + $0x4] sm:$0xf]
        %v1862 = vmul.f32 %v1861, %v1814
        %1863 = vst.msk [vmem:[#allocation4 + $0x4] sm:$0xf] %vm441, %v1862
        %v1864 = vld [vmem:[%s422 + $0x4] sm:$0xf]
        %v1865 = vmul.f32 %v1864, %v1821
        %1866 = vst.msk [vmem:[#allocation4 + $0x4] sm:$0xf] %vm459, %v1865
        %v1867 = vld [vmem:[%s422 + $0x4] sm:$0xf]
        %v1868 = vmul.f32 %v1867, %v1827
        %1869 = vst.msk [vmem:[#allocation4 + $0x4] sm:$0xf] %vm477, %v1868
        %v1870 = vld [vmem:[%s422 + $0x4] sm:$0xf]
        %v1871 = vmul.f32 %v1870, %v1833
        %1872 = vst.msk [vmem:[#allocation4 + $0x4] sm:$0xf] %vm495, %v1871
        %v1873 = vld [vmem:[%s422 + $0x4] sm:$0xf]
        %v1874 = vmul.f32 %v1873, %v1839
        %1875 = vst.msk [vmem:[#allocation4 + $0x4] sm:$0xf] %vm513, %v1874
        %v1876 = vld [vmem:[%s422 + $0x4] sm:$0xf]
        %v1877 = vmul.f32 %v1876, %v1845
        %1878 = vst.msk [vmem:[#allocation4 + $0x4] sm:$0xf] %vm531, %v1877
        %v1879 = vld [vmem:[%s422 + $0x4] sm:$0xf]
        %v1880 = vmul.f32 %v1879, %v1851
        %1881 = vst.msk [vmem:[#allocation4 + $0x4] sm:$0xf] %vm549, %v1880
        %v1882 = vld [vmem:[%s422 + $0x4] sm:$0xf]
        %v1883 = vmul.f32 %v1882, %v1857
        %1884 = vst.msk [vmem:[#allocation4 + $0x4] sm:$0xf] %vm567, %v1883
        %v1885 = vld [vmem:[%s2] sm:$0xf]
        %v1886 = vld [vmem:[#allocation4] sm:$0xff]
        %v1888 = vcombine.high %v1886, %v1886
        %v1890 = vpack.c.bf16 %v1886, %v1886
        %v1891 = vpack.c.bf16 %v1888, %v1888
        %vm1892 = vcmask 31744
        %v1894 = vsel %vm1892, %v1885, 0
        %vm1896 = vcmask 1041408
        %v1898 = vsel %vm1896, %v1890, 0
        %v1901 = vsel %vm1896, %v1891, 0
        %1903 = vmatprep.subr.bf16.mxu0 %v1901
        %1904 = vmatpush1.bf16.msra.mxu0 %v1898
        %1905 = vmatprep.subr.bf16.mxu0 0
        %1906 = vmatpush1.bf16.msra.mxu0 0
        %1907 = vmatprep.subr.bf16.mxu0 0
        %1908 = vmatpush1.bf16.msra.mxu0 0
        %1909 = vmatprep.subr.bf16.mxu0 0
        %1910 = vmatpush1.bf16.msra.mxu0 0
        %1911 = vmatprep.subr.bf16.mxu0 0
        %1912 = vmatpush1.bf16.msra.mxu0 0
        %1913 = vmatprep.subr.bf16.mxu0 0
        %1914 = vmatpush1.bf16.msra.mxu0 0
        %1915 = vmatprep.subr.bf16.mxu0 0
        %1916 = vmatpush1.bf16.msra.mxu0 0
        %1917 = vmatprep.subr.bf16.mxu0 0
        %1918 = vmatpush1.bf16.msra.mxu0 0
        %1919 = vmatprep.subr.bf16.mxu0 0
        %1920 = vmatpush1.bf16.msra.mxu0 0
        %1921 = vmatprep.subr.bf16.mxu0 0
        %1922 = vmatpush1.bf16.msra.mxu0 0
        %1923 = vmatprep.subr.bf16.mxu0 0
        %1924 = vmatpush1.bf16.msra.mxu0 0
        %1925 = vmatprep.subr.bf16.mxu0 0
        %1926 = vmatpush1.bf16.msra.mxu0 0
        %1927 = vmatprep.subr.bf16.mxu0 0
        %1928 = vmatpush1.bf16.msra.mxu0 0
        %1929 = vmatprep.subr.bf16.mxu0 0
        %1930 = vmatpush1.bf16.msra.mxu0 0
        %1931 = vmatprep.subr.bf16.mxu0 0
        %1932 = vmatpush1.bf16.msra.mxu0 0
        %1933 = vmatprep.subr.bf16.mxu0 0
        %1934 = vmatpush1.bf16.msra.mxu0 0
        %1935 = vmatprep.mubr.bf16.mxu0 0
        %1936 = vmatmul.mubr.bf16.gmra.mrb[0].mxu0 %v1894
        %v1937 = vpop.f32.mrb[0].mxu0
        %v1938 = vadd.f32 0.0, %v1937
        %v1939 = vpop.f32.mrb[0].mxu0
        %v1940 = vadd.f32 0.0, %v1939
        %v1941 = vpop.f32.mrb[0].mxu0
        %v1942 = vpop.f32.mrb[0].mxu0
        %1943 = vdwg.mxu0
        %v1944 = vld [vmem:[%s5] sm:$0xff]
        %1946 = vset.pattern.permute.xlu0 0
        %1947 = vperm.xlu0 %1946, %v1944
        %v1948 = vpop.permute.xlu0 %1947
        %v1950 = vmul.f32 %v1938, %v1948
        %v1951 = vmul.f32 %v1940, %v1948
        %1952 = vset.pattern.permute.xlu0 1
        %1953 = vperm.xlu0 %1952, %v1944
        %v1954 = vpop.permute.xlu0 %1953
        %v1956 = vadd.f32 %v1950, %v1954
        %v1957 = vadd.f32 %v1951, %v1954
        %v1958 = vxor.u32 %v1956, 2147483648
        %v1959 = vxor.u32 %v1957, 2147483648
        %v1960 = vmul.f32 %v1958, 1.442695
        %v1961 = vpow.pop %v1960
        %v1962 = vmul.f32 %v1959, 1.442695
        %v1963 = vpow.pop %v1962
        %v1964 = vadd.f32 %v1961, 1.0
        %v1965 = vadd.f32 %v1963, 1.0
        %v1966 = vrcp.pop %v1964
        %v1967 = vmul.f32 1.0, %v1966
        %v1968 = vrcp.pop %v1965
        %v1969 = vmul.f32 1.0, %v1968
        %v1970 = vmul.f32 %v1956, %v1967
        %v1971 = vmul.f32 %v1957, %v1969
        %s1972 = sld [smem:[#allocation6 + $0x9]]
        %v1973 = vstv %s1972
        %v1974 = vmul.f32 %v1973, %v1970
        %v1975 = vmul.f32 %v1973, %v1971
        %1976 = vst [vmem:[%s427] sm:$0xff] %v1974
        %1977 = vst [vmem:[%s427 + $0x8] sm:$0xff] %v1975
        %v1978 = vld [vmem:[#allocation3] sm:$0xf]
        %v1979 = vld [vmem:[%s10] sm:$0xff]
        %v1980 = vld [vmem:[%s10 + $0x8] sm:$0xff]
        %v1981 = vld [vmem:[#allocation3 + $0x1] sm:$0xf]
        %s1982 = scalar_lea.vmem %s10, 16
        %v1983 = vld [vmem:[%s1982] sm:$0xff]
        %v1984 = vld [vmem:[%s1982 + $0x8] sm:$0xff]
        %v1986 = vsel %vm720, %v1981, 0
        %1988 = vmatprep.subr.mxu0 0.0
        %1989 = vmatpush1.msra.mxu0 %v1983
        %1990 = vmatprep.subr.mxu0 0.0
        %1991 = vmatpush1.msra.mxu0 %v1984
        %1992 = vmatprep.subr.mxu0 0.0
        %1993 = vmatpush1.msra.mxu0 0.0
        %1994 = vmatprep.subr.mxu0 0.0
        %1995 = vmatpush1.msra.mxu0 0.0
        %1996 = vmatprep.subr.mxu0 0.0
        %1997 = vmatpush1.msra.mxu0 0.0
        %1998 = vmatprep.subr.mxu0 0.0
        %1999 = vmatpush1.msra.mxu0 0.0
        %2000 = vmatprep.subr.mxu0 0.0
        %2001 = vmatpush1.msra.mxu0 0.0
        %2002 = vmatprep.subr.mxu0 0.0
        %2003 = vmatpush1.msra.mxu0 0.0
        %2004 = vmatprep.subr.mxu0 0.0
        %2005 = vmatpush1.msra.mxu0 0.0
        %2006 = vmatprep.subr.mxu0 0.0
        %2007 = vmatpush1.msra.mxu0 0.0
        %2008 = vmatprep.subr.mxu0 0.0
        %2009 = vmatpush1.msra.mxu0 0.0
        %2010 = vmatprep.subr.mxu0 0.0
        %2011 = vmatpush1.msra.mxu0 0.0
        %2012 = vmatprep.subr.mxu0 0.0
        %2013 = vmatpush1.msra.mxu0 0.0
        %2014 = vmatprep.subr.mxu0 0.0
        %2015 = vmatpush1.msra.mxu0 0.0
        %2016 = vmatprep.subr.mxu0 0.0
        %2017 = vmatpush1.msra.mxu0 0.0
        %2018 = vmatprep.subr.mxu0 0.0
        %2019 = vmatpush1.msra.mxu0 0.0
        %2020 = vmatprep.subr.mxu0 0.0
        %2021 = vmatpush1.msra.mxu0 0.0
        %2022 = vmatprep.subr.mxu0 0.0
        %2023 = vmatpush1.msra.mxu0 0.0
        %2024 = vmatprep.subr.mxu0 0.0
        %2025 = vmatpush1.msra.mxu0 0.0
        %2026 = vmatprep.subr.mxu0 0.0
        %2027 = vmatpush1.msra.mxu0 0.0
        %2028 = vmatprep.subr.mxu0 0.0
        %2029 = vmatpush1.msra.mxu0 0.0
        %2030 = vmatprep.subr.mxu0 0.0
        %2031 = vmatpush1.msra.mxu0 0.0
        %2032 = vmatprep.subr.mxu0 0.0
        %2033 = vmatpush1.msra.mxu0 0.0
        %2034 = vmatprep.subr.mxu0 0.0
        %2035 = vmatpush1.msra.mxu0 0.0
        %2036 = vmatprep.subr.mxu0 0.0
        %2037 = vmatpush1.msra.mxu0 0.0
        %2038 = vmatprep.subr.mxu0 0.0
        %2039 = vmatpush1.msra.mxu0 0.0
        %2040 = vmatprep.subr.mxu0 0.0
        %2041 = vmatpush1.msra.mxu0 0.0
        %2042 = vmatprep.subr.mxu0 0.0
        %2043 = vmatpush1.msra.mxu0 0.0
        %2044 = vmatprep.subr.mxu0 0.0
        %2045 = vmatpush1.msra.mxu0 0.0
        %2046 = vmatprep.subr.mxu0 0.0
        %2047 = vmatpush1.msra.mxu0 0.0
        %2048 = vmatprep.subr.mxu0 0.0
        %2049 = vmatpush1.msra.mxu0 0.0
        %2050 = vmatprep.subr.mxu0 0.0
        %2051 = vmatpush1.msra.mxu0 0.0
        %2052 = vmatprep.mubr.f32.mxu0 0.0
        %2053 = vmatmul.mubr.f32.gmra.mrb[0].mxu0 %v1986
        %v2054 = vpop.f32.mrb[0].mxu0
        %v2055 = vadd.f32 0.0, %v2054
        %v2056 = vpop.f32.mrb[0].mxu0
        %2057 = vdwg.mxu0
        %v2059 = vsel %vm720, %v1978, 0
        %2061 = vmatprep.subr.mxu0 0.0
        %2062 = vmatpush1.msra.mxu0 %v1979
        %2063 = vmatprep.subr.mxu0 0.0
        %2064 = vmatpush1.msra.mxu0 %v1980
        %2065 = vmatprep.subr.mxu0 0.0
        %2066 = vmatpush1.msra.mxu0 0.0
        %2067 = vmatprep.subr.mxu0 0.0
        %2068 = vmatpush1.msra.mxu0 0.0
        %2069 = vmatprep.subr.mxu0 0.0
        %2070 = vmatpush1.msra.mxu0 0.0
        %2071 = vmatprep.subr.mxu0 0.0
        %2072 = vmatpush1.msra.mxu0 0.0
        %2073 = vmatprep.subr.mxu0 0.0
        %2074 = vmatpush1.msra.mxu0 0.0
        %2075 = vmatprep.subr.mxu0 0.0
        %2076 = vmatpush1.msra.mxu0 0.0
        %2077 = vmatprep.subr.mxu0 0.0
        %2078 = vmatpush1.msra.mxu0 0.0
        %2079 = vmatprep.subr.mxu0 0.0
        %2080 = vmatpush1.msra.mxu0 0.0
        %2081 = vmatprep.subr.mxu0 0.0
        %2082 = vmatpush1.msra.mxu0 0.0
        %2083 = vmatprep.subr.mxu0 0.0
        %2084 = vmatpush1.msra.mxu0 0.0
        %2085 = vmatprep.subr.mxu0 0.0
        %2086 = vmatpush1.msra.mxu0 0.0
        %2087 = vmatprep.subr.mxu0 0.0
        %2088 = vmatpush1.msra.mxu0 0.0
        %2089 = vmatprep.subr.mxu0 0.0
        %2090 = vmatpush1.msra.mxu0 0.0
        %2091 = vmatprep.subr.mxu0 0.0
        %2092 = vmatpush1.msra.mxu0 0.0
        %2093 = vmatprep.subr.mxu0 0.0
        %2094 = vmatpush1.msra.mxu0 0.0
        %2095 = vmatprep.subr.mxu0 0.0
        %2096 = vmatpush1.msra.mxu0 0.0
        %2097 = vmatprep.subr.mxu0 0.0
        %2098 = vmatpush1.msra.mxu0 0.0
        %2099 = vmatprep.subr.mxu0 0.0
        %2100 = vmatpush1.msra.mxu0 0.0
        %2101 = vmatprep.subr.mxu0 0.0
        %2102 = vmatpush1.msra.mxu0 0.0
        %2103 = vmatprep.subr.mxu0 0.0
        %2104 = vmatpush1.msra.mxu0 0.0
        %2105 = vmatprep.subr.mxu0 0.0
        %2106 = vmatpush1.msra.mxu0 0.0
        %2107 = vmatprep.subr.mxu0 0.0
        %2108 = vmatpush1.msra.mxu0 0.0
        %2109 = vmatprep.subr.mxu0 0.0
        %2110 = vmatpush1.msra.mxu0 0.0
        %2111 = vmatprep.subr.mxu0 0.0
        %2112 = vmatpush1.msra.mxu0 0.0
        %2113 = vmatprep.subr.mxu0 0.0
        %2114 = vmatpush1.msra.mxu0 0.0
        %2115 = vmatprep.subr.mxu0 0.0
        %2116 = vmatpush1.msra.mxu0 0.0
        %2117 = vmatprep.subr.mxu0 0.0
        %2118 = vmatpush1.msra.mxu0 0.0
        %2119 = vmatprep.subr.mxu0 0.0
        %2120 = vmatpush1.msra.mxu0 0.0
        %2121 = vmatprep.subr.mxu0 0.0
        %2122 = vmatpush1.msra.mxu0 0.0
        %2123 = vmatprep.subr.mxu0 0.0
        %2124 = vmatpush1.msra.mxu0 0.0
        %2125 = vmatprep.mubr.f32.mxu0 0.0
        %2126 = vmatmul.mubr.f32.gmra.mrb[0].mxu0 %v2059
        %v2127 = vpop.f32.mrb[0].mxu0
        %v2128 = vadd.f32 %v2055, %v2127
        %v2129 = vpop.f32.mrb[0].mxu0
        %2130 = vdwg.mxu0
        %v2131 = vld [vmem:[#allocation3 + $0x2] sm:$0xf]
        %s2132 = scalar_lea.vmem %s10, 32
        %v2133 = vld [vmem:[%s2132] sm:$0xff]
        %v2134 = vld [vmem:[%s2132 + $0x8] sm:$0xff]
        %v2136 = vsel %vm720, %v2131, 0
        %2138 = vmatprep.subr.mxu0 0.0
        %2139 = vmatpush1.msra.mxu0 %v2133
        %2140 = vmatprep.subr.mxu0 0.0
        %2141 = vmatpush1.msra.mxu0 %v2134
        %2142 = vmatprep.subr.mxu0 0.0
        %2143 = vmatpush1.msra.mxu0 0.0
        %2144 = vmatprep.subr.mxu0 0.0
        %2145 = vmatpush1.msra.mxu0 0.0
        %2146 = vmatprep.subr.mxu0 0.0
        %2147 = vmatpush1.msra.mxu0 0.0
        %2148 = vmatprep.subr.mxu0 0.0
        %2149 = vmatpush1.msra.mxu0 0.0
        %2150 = vmatprep.subr.mxu0 0.0
        %2151 = vmatpush1.msra.mxu0 0.0
        %2152 = vmatprep.subr.mxu0 0.0
        %2153 = vmatpush1.msra.mxu0 0.0
        %2154 = vmatprep.subr.mxu0 0.0
        %2155 = vmatpush1.msra.mxu0 0.0
        %2156 = vmatprep.subr.mxu0 0.0
        %2157 = vmatpush1.msra.mxu0 0.0
        %2158 = vmatprep.subr.mxu0 0.0
        %2159 = vmatpush1.msra.mxu0 0.0
        %2160 = vmatprep.subr.mxu0 0.0
        %2161 = vmatpush1.msra.mxu0 0.0
        %2162 = vmatprep.subr.mxu0 0.0
        %2163 = vmatpush1.msra.mxu0 0.0
        %2164 = vmatprep.subr.mxu0 0.0
        %2165 = vmatpush1.msra.mxu0 0.0
        %2166 = vmatprep.subr.mxu0 0.0
        %2167 = vmatpush1.msra.mxu0 0.0
        %2168 = vmatprep.subr.mxu0 0.0
        %2169 = vmatpush1.msra.mxu0 0.0
        %2170 = vmatprep.subr.mxu0 0.0
        %2171 = vmatpush1.msra.mxu0 0.0
        %2172 = vmatprep.subr.mxu0 0.0
        %2173 = vmatpush1.msra.mxu0 0.0
        %2174 = vmatprep.subr.mxu0 0.0
        %2175 = vmatpush1.msra.mxu0 0.0
        %2176 = vmatprep.subr.mxu0 0.0
        %2177 = vmatpush1.msra.mxu0 0.0
        %2178 = vmatprep.subr.mxu0 0.0
        %2179 = vmatpush1.msra.mxu0 0.0
        %2180 = vmatprep.subr.mxu0 0.0
        %2181 = vmatpush1.msra.mxu0 0.0
        %2182 = vmatprep.subr.mxu0 0.0
        %2183 = vmatpush1.msra.mxu0 0.0
        %2184 = vmatprep.subr.mxu0 0.0
        %2185 = vmatpush1.msra.mxu0 0.0
        %2186 = vmatprep.subr.mxu0 0.0
        %2187 = vmatpush1.msra.mxu0 0.0
        %2188 = vmatprep.subr.mxu0 0.0
        %2189 = vmatpush1.msra.mxu0 0.0
        %2190 = vmatprep.subr.mxu0 0.0
        %2191 = vmatpush1.msra.mxu0 0.0
        %2192 = vmatprep.subr.mxu0 0.0
        %2193 = vmatpush1.msra.mxu0 0.0
        %2194 = vmatprep.subr.mxu0 0.0
        %2195 = vmatpush1.msra.mxu0 0.0
        %2196 = vmatprep.subr.mxu0 0.0
        %2197 = vmatpush1.msra.mxu0 0.0
        %2198 = vmatprep.subr.mxu0 0.0
        %2199 = vmatpush1.msra.mxu0 0.0
        %2200 = vmatprep.subr.mxu0 0.0
        %2201 = vmatpush1.msra.mxu0 0.0
        %2202 = vmatprep.mubr.f32.mxu0 0.0
        %2203 = vmatmul.mubr.f32.gmra.mrb[0].mxu0 %v2136
        %v2204 = vpop.f32.mrb[0].mxu0
        %v2205 = vadd.f32 0.0, %v2204
        %v2206 = vpop.f32.mrb[0].mxu0
        %2207 = vdwg.mxu0
        %v2208 = vadd.f32 %v2128, %v2205
        %v2209 = vld [vmem:[#allocation3 + $0x3] sm:$0xf]
        %s2210 = scalar_lea.vmem %s10, 48
        %v2211 = vld [vmem:[%s2210] sm:$0xff]
        %v2212 = vld [vmem:[%s2210 + $0x8] sm:$0xff]
        %v2214 = vsel %vm720, %v2209, 0
        %2216 = vmatprep.subr.mxu0 0.0
        %2217 = vmatpush1.msra.mxu0 %v2211
        %2218 = vmatprep.subr.mxu0 0.0
        %2219 = vmatpush1.msra.mxu0 %v2212
        %2220 = vmatprep.subr.mxu0 0.0
        %2221 = vmatpush1.msra.mxu0 0.0
        %2222 = vmatprep.subr.mxu0 0.0
        %2223 = vmatpush1.msra.mxu0 0.0
        %2224 = vmatprep.subr.mxu0 0.0
        %2225 = vmatpush1.msra.mxu0 0.0
        %2226 = vmatprep.subr.mxu0 0.0
        %2227 = vmatpush1.msra.mxu0 0.0
        %2228 = vmatprep.subr.mxu0 0.0
        %2229 = vmatpush1.msra.mxu0 0.0
        %2230 = vmatprep.subr.mxu0 0.0
        %2231 = vmatpush1.msra.mxu0 0.0
        %2232 = vmatprep.subr.mxu0 0.0
        %2233 = vmatpush1.msra.mxu0 0.0
        %2234 = vmatprep.subr.mxu0 0.0
        %2235 = vmatpush1.msra.mxu0 0.0
        %2236 = vmatprep.subr.mxu0 0.0
        %2237 = vmatpush1.msra.mxu0 0.0
        %2238 = vmatprep.subr.mxu0 0.0
        %2239 = vmatpush1.msra.mxu0 0.0
        %2240 = vmatprep.subr.mxu0 0.0
        %2241 = vmatpush1.msra.mxu0 0.0
        %2242 = vmatprep.subr.mxu0 0.0
        %2243 = vmatpush1.msra.mxu0 0.0
        %2244 = vmatprep.subr.mxu0 0.0
        %2245 = vmatpush1.msra.mxu0 0.0
        %2246 = vmatprep.subr.mxu0 0.0
        %2247 = vmatpush1.msra.mxu0 0.0
        %2248 = vmatprep.subr.mxu0 0.0
        %2249 = vmatpush1.msra.mxu0 0.0
        %2250 = vmatprep.subr.mxu0 0.0
        %2251 = vmatpush1.msra.mxu0 0.0
        %2252 = vmatprep.subr.mxu0 0.0
        %2253 = vmatpush1.msra.mxu0 0.0
        %2254 = vmatprep.subr.mxu0 0.0
        %2255 = vmatpush1.msra.mxu0 0.0
        %2256 = vmatprep.subr.mxu0 0.0
        %2257 = vmatpush1.msra.mxu0 0.0
        %2258 = vmatprep.subr.mxu0 0.0
        %2259 = vmatpush1.msra.mxu0 0.0
        %2260 = vmatprep.subr.mxu0 0.0
        %2261 = vmatpush1.msra.mxu0 0.0
        %2262 = vmatprep.subr.mxu0 0.0
        %2263 = vmatpush1.msra.mxu0 0.0
        %2264 = vmatprep.subr.mxu0 0.0
        %2265 = vmatpush1.msra.mxu0 0.0
        %2266 = vmatprep.subr.mxu0 0.0
        %2267 = vmatpush1.msra.mxu0 0.0
        %2268 = vmatprep.subr.mxu0 0.0
        %2269 = vmatpush1.msra.mxu0 0.0
        %2270 = vmatprep.subr.mxu0 0.0
        %2271 = vmatpush1.msra.mxu0 0.0
        %2272 = vmatprep.subr.mxu0 0.0
        %2273 = vmatpush1.msra.mxu0 0.0
        %2274 = vmatprep.subr.mxu0 0.0
        %2275 = vmatpush1.msra.mxu0 0.0
        %2276 = vmatprep.subr.mxu0 0.0
        %2277 = vmatpush1.msra.mxu0 0.0
        %2278 = vmatprep.subr.mxu0 0.0
        %2279 = vmatpush1.msra.mxu0 0.0
        %2280 = vmatprep.mubr.f32.mxu0 0.0
        %2281 = vmatmul.mubr.f32.gmra.mrb[0].mxu0 %v2214
        %v2282 = vpop.f32.mrb[0].mxu0
        %v2283 = vadd.f32 0.0, %v2282
        %v2284 = vpop.f32.mrb[0].mxu0
        %2285 = vdwg.mxu0
        %v2286 = vadd.f32 %v2208, %v2283
        %v2287 = vld [vmem:[#allocation3 + $0x4] sm:$0xf]
        %s2288 = scalar_lea.vmem %s10, 64
        %v2289 = vld [vmem:[%s2288] sm:$0xff]
        %v2290 = vld [vmem:[%s2288 + $0x8] sm:$0xff]
        %v2292 = vsel %vm720, %v2287, 0
        %2294 = vmatprep.subr.mxu0 0.0
        %2295 = vmatpush1.msra.mxu0 %v2289
        %2296 = vmatprep.subr.mxu0 0.0
        %2297 = vmatpush1.msra.mxu0 %v2290
        %2298 = vmatprep.subr.mxu0 0.0
        %2299 = vmatpush1.msra.mxu0 0.0
        %2300 = vmatprep.subr.mxu0 0.0
        %2301 = vmatpush1.msra.mxu0 0.0
        %2302 = vmatprep.subr.mxu0 0.0
        %2303 = vmatpush1.msra.mxu0 0.0
        %2304 = vmatprep.subr.mxu0 0.0
        %2305 = vmatpush1.msra.mxu0 0.0
        %2306 = vmatprep.subr.mxu0 0.0
        %2307 = vmatpush1.msra.mxu0 0.0
        %2308 = vmatprep.subr.mxu0 0.0
        %2309 = vmatpush1.msra.mxu0 0.0
        %2310 = vmatprep.subr.mxu0 0.0
        %2311 = vmatpush1.msra.mxu0 0.0
        %2312 = vmatprep.subr.mxu0 0.0
        %2313 = vmatpush1.msra.mxu0 0.0
        %2314 = vmatprep.subr.mxu0 0.0
        %2315 = vmatpush1.msra.mxu0 0.0
        %2316 = vmatprep.subr.mxu0 0.0
        %2317 = vmatpush1.msra.mxu0 0.0
        %2318 = vmatprep.subr.mxu0 0.0
        %2319 = vmatpush1.msra.mxu0 0.0
        %2320 = vmatprep.subr.mxu0 0.0
        %2321 = vmatpush1.msra.mxu0 0.0
        %2322 = vmatprep.subr.mxu0 0.0
        %2323 = vmatpush1.msra.mxu0 0.0
        %2324 = vmatprep.subr.mxu0 0.0
        %2325 = vmatpush1.msra.mxu0 0.0
        %2326 = vmatprep.subr.mxu0 0.0
        %2327 = vmatpush1.msra.mxu0 0.0
        %2328 = vmatprep.subr.mxu0 0.0
        %2329 = vmatpush1.msra.mxu0 0.0
        %2330 = vmatprep.subr.mxu0 0.0
        %2331 = vmatpush1.msra.mxu0 0.0
        %2332 = vmatprep.subr.mxu0 0.0
        %2333 = vmatpush1.msra.mxu0 0.0
        %2334 = vmatprep.subr.mxu0 0.0
        %2335 = vmatpush1.msra.mxu0 0.0
        %2336 = vmatprep.subr.mxu0 0.0
        %2337 = vmatpush1.msra.mxu0 0.0
        %2338 = vmatprep.subr.mxu0 0.0
        %2339 = vmatpush1.msra.mxu0 0.0
        %2340 = vmatprep.subr.mxu0 0.0
        %2341 = vmatpush1.msra.mxu0 0.0
        %2342 = vmatprep.subr.mxu0 0.0
        %2343 = vmatpush1.msra.mxu0 0.0
        %2344 = vmatprep.subr.mxu0 0.0
        %2345 = vmatpush1.msra.mxu0 0.0
        %2346 = vmatprep.subr.mxu0 0.0
        %2347 = vmatpush1.msra.mxu0 0.0
        %2348 = vmatprep.subr.mxu0 0.0
        %2349 = vmatpush1.msra.mxu0 0.0
        %2350 = vmatprep.subr.mxu0 0.0
        %2351 = vmatpush1.msra.mxu0 0.0
        %2352 = vmatprep.subr.mxu0 0.0
        %2353 = vmatpush1.msra.mxu0 0.0
        %2354 = vmatprep.subr.mxu0 0.0
        %2355 = vmatpush1.msra.mxu0 0.0
        %2356 = vmatprep.subr.mxu0 0.0
        %2357 = vmatpush1.msra.mxu0 0.0
        %2358 = vmatprep.mubr.f32.mxu0 0.0
        %2359 = vmatmul.mubr.f32.gmra.mrb[0].mxu0 %v2292
        %v2360 = vpop.f32.mrb[0].mxu0
        %v2361 = vadd.f32 0.0, %v2360
        %v2362 = vpop.f32.mrb[0].mxu0
        %2363 = vdwg.mxu0
        %v2364 = vadd.f32 %v2286, %v2361
        %v2365 = vld [vmem:[#allocation3 + $0x5] sm:$0xf]
        %s2366 = scalar_lea.vmem %s10, 80
        %v2367 = vld [vmem:[%s2366] sm:$0xff]
        %v2368 = vld [vmem:[%s2366 + $0x8] sm:$0xff]
        %v2370 = vsel %vm720, %v2365, 0
        %2372 = vmatprep.subr.mxu0 0.0
        %2373 = vmatpush1.msra.mxu0 %v2367
        %2374 = vmatprep.subr.mxu0 0.0
        %2375 = vmatpush1.msra.mxu0 %v2368
        %2376 = vmatprep.subr.mxu0 0.0
        %2377 = vmatpush1.msra.mxu0 0.0
        %2378 = vmatprep.subr.mxu0 0.0
        %2379 = vmatpush1.msra.mxu0 0.0
        %2380 = vmatprep.subr.mxu0 0.0
        %2381 = vmatpush1.msra.mxu0 0.0
        %2382 = vmatprep.subr.mxu0 0.0
        %2383 = vmatpush1.msra.mxu0 0.0
        %2384 = vmatprep.subr.mxu0 0.0
        %2385 = vmatpush1.msra.mxu0 0.0
        %2386 = vmatprep.subr.mxu0 0.0
        %2387 = vmatpush1.msra.mxu0 0.0
        %2388 = vmatprep.subr.mxu0 0.0
        %2389 = vmatpush1.msra.mxu0 0.0
        %2390 = vmatprep.subr.mxu0 0.0
        %2391 = vmatpush1.msra.mxu0 0.0
        %2392 = vmatprep.subr.mxu0 0.0
        %2393 = vmatpush1.msra.mxu0 0.0
        %2394 = vmatprep.subr.mxu0 0.0
        %2395 = vmatpush1.msra.mxu0 0.0
        %2396 = vmatprep.subr.mxu0 0.0
        %2397 = vmatpush1.msra.mxu0 0.0
        %2398 = vmatprep.subr.mxu0 0.0
        %2399 = vmatpush1.msra.mxu0 0.0
        %2400 = vmatprep.subr.mxu0 0.0
        %2401 = vmatpush1.msra.mxu0 0.0
        %2402 = vmatprep.subr.mxu0 0.0
        %2403 = vmatpush1.msra.mxu0 0.0
        %2404 = vmatprep.subr.mxu0 0.0
        %2405 = vmatpush1.msra.mxu0 0.0
        %2406 = vmatprep.subr.mxu0 0.0
        %2407 = vmatpush1.msra.mxu0 0.0
        %2408 = vmatprep.subr.mxu0 0.0
        %2409 = vmatpush1.msra.mxu0 0.0
        %2410 = vmatprep.subr.mxu0 0.0
        %2411 = vmatpush1.msra.mxu0 0.0
        %2412 = vmatprep.subr.mxu0 0.0
        %2413 = vmatpush1.msra.mxu0 0.0
        %2414 = vmatprep.subr.mxu0 0.0
        %2415 = vmatpush1.msra.mxu0 0.0
        %2416 = vmatprep.subr.mxu0 0.0
        %2417 = vmatpush1.msra.mxu0 0.0
        %2418 = vmatprep.subr.mxu0 0.0
        %2419 = vmatpush1.msra.mxu0 0.0
        %2420 = vmatprep.subr.mxu0 0.0
        %2421 = vmatpush1.msra.mxu0 0.0
        %2422 = vmatprep.subr.mxu0 0.0
        %2423 = vmatpush1.msra.mxu0 0.0
        %2424 = vmatprep.subr.mxu0 0.0
        %2425 = vmatpush1.msra.mxu0 0.0
        %2426 = vmatprep.subr.mxu0 0.0
        %2427 = vmatpush1.msra.mxu0 0.0
        %2428 = vmatprep.subr.mxu0 0.0
        %2429 = vmatpush1.msra.mxu0 0.0
        %2430 = vmatprep.subr.mxu0 0.0
        %2431 = vmatpush1.msra.mxu0 0.0
        %2432 = vmatprep.subr.mxu0 0.0
        %2433 = vmatpush1.msra.mxu0 0.0
        %2434 = vmatprep.subr.mxu0 0.0
        %2435 = vmatpush1.msra.mxu0 0.0
        %2436 = vmatprep.mubr.f32.mxu0 0.0
        %2437 = vmatmul.mubr.f32.gmra.mrb[0].mxu0 %v2370
        %v2438 = vpop.f32.mrb[0].mxu0
        %v2439 = vadd.f32 0.0, %v2438
        %v2440 = vpop.f32.mrb[0].mxu0
        %2441 = vdwg.mxu0
        %v2442 = vadd.f32 %v2364, %v2439
        %v2443 = vld [vmem:[#allocation3 + $0x6] sm:$0xf]
        %s2444 = scalar_lea.vmem %s10, 96
        %v2445 = vld [vmem:[%s2444] sm:$0xff]
        %v2446 = vld [vmem:[%s2444 + $0x8] sm:$0xff]
        %v2448 = vsel %vm720, %v2443, 0
        %2450 = vmatprep.subr.mxu0 0.0
        %2451 = vmatpush1.msra.mxu0 %v2445
        %2452 = vmatprep.subr.mxu0 0.0
        %2453 = vmatpush1.msra.mxu0 %v2446
        %2454 = vmatprep.subr.mxu0 0.0
        %2455 = vmatpush1.msra.mxu0 0.0
        %2456 = vmatprep.subr.mxu0 0.0
        %2457 = vmatpush1.msra.mxu0 0.0
        %2458 = vmatprep.subr.mxu0 0.0
        %2459 = vmatpush1.msra.mxu0 0.0
        %2460 = vmatprep.subr.mxu0 0.0
        %2461 = vmatpush1.msra.mxu0 0.0
        %2462 = vmatprep.subr.mxu0 0.0
        %2463 = vmatpush1.msra.mxu0 0.0
        %2464 = vmatprep.subr.mxu0 0.0
        %2465 = vmatpush1.msra.mxu0 0.0
        %2466 = vmatprep.subr.mxu0 0.0
        %2467 = vmatpush1.msra.mxu0 0.0
        %2468 = vmatprep.subr.mxu0 0.0
        %2469 = vmatpush1.msra.mxu0 0.0
        %2470 = vmatprep.subr.mxu0 0.0
        %2471 = vmatpush1.msra.mxu0 0.0
        %2472 = vmatprep.subr.mxu0 0.0
        %2473 = vmatpush1.msra.mxu0 0.0
        %2474 = vmatprep.subr.mxu0 0.0
        %2475 = vmatpush1.msra.mxu0 0.0
        %2476 = vmatprep.subr.mxu0 0.0
        %2477 = vmatpush1.msra.mxu0 0.0
        %2478 = vmatprep.subr.mxu0 0.0
        %2479 = vmatpush1.msra.mxu0 0.0
        %2480 = vmatprep.subr.mxu0 0.0
        %2481 = vmatpush1.msra.mxu0 0.0
        %2482 = vmatprep.subr.mxu0 0.0
        %2483 = vmatpush1.msra.mxu0 0.0
        %2484 = vmatprep.subr.mxu0 0.0
        %2485 = vmatpush1.msra.mxu0 0.0
        %2486 = vmatprep.subr.mxu0 0.0
        %2487 = vmatpush1.msra.mxu0 0.0
        %2488 = vmatprep.subr.mxu0 0.0
        %2489 = vmatpush1.msra.mxu0 0.0
        %2490 = vmatprep.subr.mxu0 0.0
        %2491 = vmatpush1.msra.mxu0 0.0
        %2492 = vmatprep.subr.mxu0 0.0
        %2493 = vmatpush1.msra.mxu0 0.0
        %2494 = vmatprep.subr.mxu0 0.0
        %2495 = vmatpush1.msra.mxu0 0.0
        %2496 = vmatprep.subr.mxu0 0.0
        %2497 = vmatpush1.msra.mxu0 0.0
        %2498 = vmatprep.subr.mxu0 0.0
        %2499 = vmatpush1.msra.mxu0 0.0
        %2500 = vmatprep.subr.mxu0 0.0
        %2501 = vmatpush1.msra.mxu0 0.0
        %2502 = vmatprep.subr.mxu0 0.0
        %2503 = vmatpush1.msra.mxu0 0.0
        %2504 = vmatprep.subr.mxu0 0.0
        %2505 = vmatpush1.msra.mxu0 0.0
        %2506 = vmatprep.subr.mxu0 0.0
        %2507 = vmatpush1.msra.mxu0 0.0
        %2508 = vmatprep.subr.mxu0 0.0
        %2509 = vmatpush1.msra.mxu0 0.0
        %2510 = vmatprep.subr.mxu0 0.0
        %2511 = vmatpush1.msra.mxu0 0.0
        %2512 = vmatprep.subr.mxu0 0.0
        %2513 = vmatpush1.msra.mxu0 0.0
        %2514 = vmatprep.mubr.f32.mxu0 0.0
        %2515 = vmatmul.mubr.f32.gmra.mrb[0].mxu0 %v2448
        %v2516 = vpop.f32.mrb[0].mxu0
        %v2517 = vadd.f32 0.0, %v2516
        %v2518 = vpop.f32.mrb[0].mxu0
        %2519 = vdwg.mxu0
        %v2520 = vadd.f32 %v2442, %v2517
        %v2521 = vld [vmem:[%s437] sm:$0xf]
        %s2522 = scalar_lea.vmem %s10, 112
        %v2523 = vld [vmem:[%s2522] sm:$0xff]
        %v2524 = vld [vmem:[%s2522 + $0x8] sm:$0xff]
        %v2526 = vsel %vm720, %v2521, 0
        %2528 = vmatprep.subr.mxu0 0.0
        %2529 = vmatpush1.msra.mxu0 %v2523
        %2530 = vmatprep.subr.mxu0 0.0
        %2531 = vmatpush1.msra.mxu0 %v2524
        %2532 = vmatprep.subr.mxu0 0.0
        %2533 = vmatpush1.msra.mxu0 0.0
        %2534 = vmatprep.subr.mxu0 0.0
        %2535 = vmatpush1.msra.mxu0 0.0
        %2536 = vmatprep.subr.mxu0 0.0
        %2537 = vmatpush1.msra.mxu0 0.0
        %2538 = vmatprep.subr.mxu0 0.0
        %2539 = vmatpush1.msra.mxu0 0.0
        %2540 = vmatprep.subr.mxu0 0.0
        %2541 = vmatpush1.msra.mxu0 0.0
        %2542 = vmatprep.subr.mxu0 0.0
        %2543 = vmatpush1.msra.mxu0 0.0
        %2544 = vmatprep.subr.mxu0 0.0
        %2545 = vmatpush1.msra.mxu0 0.0
        %2546 = vmatprep.subr.mxu0 0.0
        %2547 = vmatpush1.msra.mxu0 0.0
        %2548 = vmatprep.subr.mxu0 0.0
        %2549 = vmatpush1.msra.mxu0 0.0
        %2550 = vmatprep.subr.mxu0 0.0
        %2551 = vmatpush1.msra.mxu0 0.0
        %2552 = vmatprep.subr.mxu0 0.0
        %2553 = vmatpush1.msra.mxu0 0.0
        %2554 = vmatprep.subr.mxu0 0.0
        %2555 = vmatpush1.msra.mxu0 0.0
        %2556 = vmatprep.subr.mxu0 0.0
        %2557 = vmatpush1.msra.mxu0 0.0
        %2558 = vmatprep.subr.mxu0 0.0
        %2559 = vmatpush1.msra.mxu0 0.0
        %2560 = vmatprep.subr.mxu0 0.0
        %2561 = vmatpush1.msra.mxu0 0.0
        %2562 = vmatprep.subr.mxu0 0.0
        %2563 = vmatpush1.msra.mxu0 0.0
        %2564 = vmatprep.subr.mxu0 0.0
        %2565 = vmatpush1.msra.mxu0 0.0
        %2566 = vmatprep.subr.mxu0 0.0
        %2567 = vmatpush1.msra.mxu0 0.0
        %2568 = vmatprep.subr.mxu0 0.0
        %2569 = vmatpush1.msra.mxu0 0.0
        %2570 = vmatprep.subr.mxu0 0.0
        %2571 = vmatpush1.msra.mxu0 0.0
        %2572 = vmatprep.subr.mxu0 0.0
        %2573 = vmatpush1.msra.mxu0 0.0
        %2574 = vmatprep.subr.mxu0 0.0
        %2575 = vmatpush1.msra.mxu0 0.0
        %2576 = vmatprep.subr.mxu0 0.0
        %2577 = vmatpush1.msra.mxu0 0.0
        %2578 = vmatprep.subr.mxu0 0.0
        %2579 = vmatpush1.msra.mxu0 0.0
        %2580 = vmatprep.subr.mxu0 0.0
        %2581 = vmatpush1.msra.mxu0 0.0
        %2582 = vmatprep.subr.mxu0 0.0
        %2583 = vmatpush1.msra.mxu0 0.0
        %2584 = vmatprep.subr.mxu0 0.0
        %2585 = vmatpush1.msra.mxu0 0.0
        %2586 = vmatprep.subr.mxu0 0.0
        %2587 = vmatpush1.msra.mxu0 0.0
        %2588 = vmatprep.subr.mxu0 0.0
        %2589 = vmatpush1.msra.mxu0 0.0
        %2590 = vmatprep.subr.mxu0 0.0
        %2591 = vmatpush1.msra.mxu0 0.0
        %2592 = vmatprep.mubr.f32.mxu0 0.0
        %2593 = vmatmul.mubr.f32.gmra.mrb[0].mxu0 %v2526
        %v2594 = vpop.f32.mrb[0].mxu0
        %v2595 = vadd.f32 0.0, %v2594
        %v2596 = vpop.f32.mrb[0].mxu0
        %2597 = vdwg.mxu0
        %v2598 = vadd.f32 %v2520, %v2595
        %v2599 = vld [vmem:[%s437 + $0x1] sm:$0xf]
        %s2600 = scalar_lea.vmem %s10, 128
        %v2601 = vld [vmem:[%s2600] sm:$0xff]
        %v2602 = vld [vmem:[%s2600 + $0x8] sm:$0xff]
        %v2604 = vsel %vm720, %v2599, 0
        %2606 = vmatprep.subr.mxu0 0.0
        %2607 = vmatpush1.msra.mxu0 %v2601
        %2608 = vmatprep.subr.mxu0 0.0
        %2609 = vmatpush1.msra.mxu0 %v2602
        %2610 = vmatprep.subr.mxu0 0.0
        %2611 = vmatpush1.msra.mxu0 0.0
        %2612 = vmatprep.subr.mxu0 0.0
        %2613 = vmatpush1.msra.mxu0 0.0
        %2614 = vmatprep.subr.mxu0 0.0
        %2615 = vmatpush1.msra.mxu0 0.0
        %2616 = vmatprep.subr.mxu0 0.0
        %2617 = vmatpush1.msra.mxu0 0.0
        %2618 = vmatprep.subr.mxu0 0.0
        %2619 = vmatpush1.msra.mxu0 0.0
        %2620 = vmatprep.subr.mxu0 0.0
        %2621 = vmatpush1.msra.mxu0 0.0
        %2622 = vmatprep.subr.mxu0 0.0
        %2623 = vmatpush1.msra.mxu0 0.0
        %2624 = vmatprep.subr.mxu0 0.0
        %2625 = vmatpush1.msra.mxu0 0.0
        %2626 = vmatprep.subr.mxu0 0.0
        %2627 = vmatpush1.msra.mxu0 0.0
        %2628 = vmatprep.subr.mxu0 0.0
        %2629 = vmatpush1.msra.mxu0 0.0
        %2630 = vmatprep.subr.mxu0 0.0
        %2631 = vmatpush1.msra.mxu0 0.0
        %2632 = vmatprep.subr.mxu0 0.0
        %2633 = vmatpush1.msra.mxu0 0.0
        %2634 = vmatprep.subr.mxu0 0.0
        %2635 = vmatpush1.msra.mxu0 0.0
        %2636 = vmatprep.subr.mxu0 0.0
        %2637 = vmatpush1.msra.mxu0 0.0
        %2638 = vmatprep.subr.mxu0 0.0
        %2639 = vmatpush1.msra.mxu0 0.0
        %2640 = vmatprep.subr.mxu0 0.0
        %2641 = vmatpush1.msra.mxu0 0.0
        %2642 = vmatprep.subr.mxu0 0.0
        %2643 = vmatpush1.msra.mxu0 0.0
        %2644 = vmatprep.subr.mxu0 0.0
        %2645 = vmatpush1.msra.mxu0 0.0
        %2646 = vmatprep.subr.mxu0 0.0
        %2647 = vmatpush1.msra.mxu0 0.0
        %2648 = vmatprep.subr.mxu0 0.0
        %2649 = vmatpush1.msra.mxu0 0.0
        %2650 = vmatprep.subr.mxu0 0.0
        %2651 = vmatpush1.msra.mxu0 0.0
        %2652 = vmatprep.subr.mxu0 0.0
        %2653 = vmatpush1.msra.mxu0 0.0
        %2654 = vmatprep.subr.mxu0 0.0
        %2655 = vmatpush1.msra.mxu0 0.0
        %2656 = vmatprep.subr.mxu0 0.0
        %2657 = vmatpush1.msra.mxu0 0.0
        %2658 = vmatprep.subr.mxu0 0.0
        %2659 = vmatpush1.msra.mxu0 0.0
        %2660 = vmatprep.subr.mxu0 0.0
        %2661 = vmatpush1.msra.mxu0 0.0
        %2662 = vmatprep.subr.mxu0 0.0
        %2663 = vmatpush1.msra.mxu0 0.0
        %2664 = vmatprep.subr.mxu0 0.0
        %2665 = vmatpush1.msra.mxu0 0.0
        %2666 = vmatprep.subr.mxu0 0.0
        %2667 = vmatpush1.msra.mxu0 0.0
        %2668 = vmatprep.subr.mxu0 0.0
        %2669 = vmatpush1.msra.mxu0 0.0
        %2670 = vmatprep.mubr.f32.mxu0 0.0
        %2671 = vmatmul.mubr.f32.gmra.mrb[0].mxu0 %v2604
        %v2672 = vpop.f32.mrb[0].mxu0
        %v2673 = vadd.f32 0.0, %v2672
        %v2674 = vpop.f32.mrb[0].mxu0
        %2675 = vdwg.mxu0
        %v2676 = vadd.f32 %v2598, %v2673
        %v2677 = vld [vmem:[%s437 + $0x2] sm:$0xf]
        %s2678 = scalar_lea.vmem %s10, 144
        %v2679 = vld [vmem:[%s2678] sm:$0xff]
        %v2680 = vld [vmem:[%s2678 + $0x8] sm:$0xff]
        %v2682 = vsel %vm720, %v2677, 0
        %2684 = vmatprep.subr.mxu0 0.0
        %2685 = vmatpush1.msra.mxu0 %v2679
        %2686 = vmatprep.subr.mxu0 0.0
        %2687 = vmatpush1.msra.mxu0 %v2680
        %2688 = vmatprep.subr.mxu0 0.0
        %2689 = vmatpush1.msra.mxu0 0.0
        %2690 = vmatprep.subr.mxu0 0.0
        %2691 = vmatpush1.msra.mxu0 0.0
        %2692 = vmatprep.subr.mxu0 0.0
        %2693 = vmatpush1.msra.mxu0 0.0
        %2694 = vmatprep.subr.mxu0 0.0
        %2695 = vmatpush1.msra.mxu0 0.0
        %2696 = vmatprep.subr.mxu0 0.0
        %2697 = vmatpush1.msra.mxu0 0.0
        %2698 = vmatprep.subr.mxu0 0.0
        %2699 = vmatpush1.msra.mxu0 0.0
        %2700 = vmatprep.subr.mxu0 0.0
        %2701 = vmatpush1.msra.mxu0 0.0
        %2702 = vmatprep.subr.mxu0 0.0
        %2703 = vmatpush1.msra.mxu0 0.0
        %2704 = vmatprep.subr.mxu0 0.0
        %2705 = vmatpush1.msra.mxu0 0.0
        %2706 = vmatprep.subr.mxu0 0.0
        %2707 = vmatpush1.msra.mxu0 0.0
        %2708 = vmatprep.subr.mxu0 0.0
        %2709 = vmatpush1.msra.mxu0 0.0
        %2710 = vmatprep.subr.mxu0 0.0
        %2711 = vmatpush1.msra.mxu0 0.0
        %2712 = vmatprep.subr.mxu0 0.0
        %2713 = vmatpush1.msra.mxu0 0.0
        %2714 = vmatprep.subr.mxu0 0.0
        %2715 = vmatpush1.msra.mxu0 0.0
        %2716 = vmatprep.subr.mxu0 0.0
        %2717 = vmatpush1.msra.mxu0 0.0
        %2718 = vmatprep.subr.mxu0 0.0
        %2719 = vmatpush1.msra.mxu0 0.0
        %2720 = vmatprep.subr.mxu0 0.0
        %2721 = vmatpush1.msra.mxu0 0.0
        %2722 = vmatprep.subr.mxu0 0.0
        %2723 = vmatpush1.msra.mxu0 0.0
        %2724 = vmatprep.subr.mxu0 0.0
        %2725 = vmatpush1.msra.mxu0 0.0
        %2726 = vmatprep.subr.mxu0 0.0
        %2727 = vmatpush1.msra.mxu0 0.0
        %2728 = vmatprep.subr.mxu0 0.0
        %2729 = vmatpush1.msra.mxu0 0.0
        %2730 = vmatprep.subr.mxu0 0.0
        %2731 = vmatpush1.msra.mxu0 0.0
        %2732 = vmatprep.subr.mxu0 0.0
        %2733 = vmatpush1.msra.mxu0 0.0
        %2734 = vmatprep.subr.mxu0 0.0
        %2735 = vmatpush1.msra.mxu0 0.0
        %2736 = vmatprep.subr.mxu0 0.0
        %2737 = vmatpush1.msra.mxu0 0.0
        %2738 = vmatprep.subr.mxu0 0.0
        %2739 = vmatpush1.msra.mxu0 0.0
        %2740 = vmatprep.subr.mxu0 0.0
        %2741 = vmatpush1.msra.mxu0 0.0
        %2742 = vmatprep.subr.mxu0 0.0
        %2743 = vmatpush1.msra.mxu0 0.0
        %2744 = vmatprep.subr.mxu0 0.0
        %2745 = vmatpush1.msra.mxu0 0.0
        %2746 = vmatprep.subr.mxu0 0.0
        %2747 = vmatpush1.msra.mxu0 0.0
        %2748 = vmatprep.mubr.f32.mxu0 0.0
        %2749 = vmatmul.mubr.f32.gmra.mrb[0].mxu0 %v2682
        %v2750 = vpop.f32.mrb[0].mxu0
        %v2751 = vadd.f32 0.0, %v2750
        %v2752 = vpop.f32.mrb[0].mxu0
        %2753 = vdwg.mxu0
        %v2754 = vadd.f32 %v2676, %v2751
        %v2755 = vld [vmem:[%s437 + $0x3] sm:$0xf]
        %s2756 = scalar_lea.vmem %s10, 160
        %v2757 = vld [vmem:[%s2756] sm:$0xff]
        %v2758 = vld [vmem:[%s2756 + $0x8] sm:$0xff]
        %v2760 = vsel %vm720, %v2755, 0
        %2762 = vmatprep.subr.mxu0 0.0
        %2763 = vmatpush1.msra.mxu0 %v2757
        %2764 = vmatprep.subr.mxu0 0.0
        %2765 = vmatpush1.msra.mxu0 %v2758
        %2766 = vmatprep.subr.mxu0 0.0
        %2767 = vmatpush1.msra.mxu0 0.0
        %2768 = vmatprep.subr.mxu0 0.0
        %2769 = vmatpush1.msra.mxu0 0.0
        %2770 = vmatprep.subr.mxu0 0.0
        %2771 = vmatpush1.msra.mxu0 0.0
        %2772 = vmatprep.subr.mxu0 0.0
        %2773 = vmatpush1.msra.mxu0 0.0
        %2774 = vmatprep.subr.mxu0 0.0
        %2775 = vmatpush1.msra.mxu0 0.0
        %2776 = vmatprep.subr.mxu0 0.0
        %2777 = vmatpush1.msra.mxu0 0.0
        %2778 = vmatprep.subr.mxu0 0.0
        %2779 = vmatpush1.msra.mxu0 0.0
        %2780 = vmatprep.subr.mxu0 0.0
        %2781 = vmatpush1.msra.mxu0 0.0
        %2782 = vmatprep.subr.mxu0 0.0
        %2783 = vmatpush1.msra.mxu0 0.0
        %2784 = vmatprep.subr.mxu0 0.0
        %2785 = vmatpush1.msra.mxu0 0.0
        %2786 = vmatprep.subr.mxu0 0.0
        %2787 = vmatpush1.msra.mxu0 0.0
        %2788 = vmatprep.subr.mxu0 0.0
        %2789 = vmatpush1.msra.mxu0 0.0
        %2790 = vmatprep.subr.mxu0 0.0
        %2791 = vmatpush1.msra.mxu0 0.0
        %2792 = vmatprep.subr.mxu0 0.0
        %2793 = vmatpush1.msra.mxu0 0.0
        %2794 = vmatprep.subr.mxu0 0.0
        %2795 = vmatpush1.msra.mxu0 0.0
        %2796 = vmatprep.subr.mxu0 0.0
        %2797 = vmatpush1.msra.mxu0 0.0
        %2798 = vmatprep.subr.mxu0 0.0
        %2799 = vmatpush1.msra.mxu0 0.0
        %2800 = vmatprep.subr.mxu0 0.0
        %2801 = vmatpush1.msra.mxu0 0.0
        %2802 = vmatprep.subr.mxu0 0.0
        %2803 = vmatpush1.msra.mxu0 0.0
        %2804 = vmatprep.subr.mxu0 0.0
        %2805 = vmatpush1.msra.mxu0 0.0
        %2806 = vmatprep.subr.mxu0 0.0
        %2807 = vmatpush1.msra.mxu0 0.0
        %2808 = vmatprep.subr.mxu0 0.0
        %2809 = vmatpush1.msra.mxu0 0.0
        %2810 = vmatprep.subr.mxu0 0.0
        %2811 = vmatpush1.msra.mxu0 0.0
        %2812 = vmatprep.subr.mxu0 0.0
        %2813 = vmatpush1.msra.mxu0 0.0
        %2814 = vmatprep.subr.mxu0 0.0
        %2815 = vmatpush1.msra.mxu0 0.0
        %2816 = vmatprep.subr.mxu0 0.0
        %2817 = vmatpush1.msra.mxu0 0.0
        %2818 = vmatprep.subr.mxu0 0.0
        %2819 = vmatpush1.msra.mxu0 0.0
        %2820 = vmatprep.subr.mxu0 0.0
        %2821 = vmatpush1.msra.mxu0 0.0
        %2822 = vmatprep.subr.mxu0 0.0
        %2823 = vmatpush1.msra.mxu0 0.0
        %2824 = vmatprep.subr.mxu0 0.0
        %2825 = vmatpush1.msra.mxu0 0.0
        %2826 = vmatprep.mubr.f32.mxu0 0.0
        %2827 = vmatmul.mubr.f32.gmra.mrb[0].mxu0 %v2760
        %v2828 = vpop.f32.mrb[0].mxu0
        %v2829 = vadd.f32 0.0, %v2828
        %v2830 = vpop.f32.mrb[0].mxu0
        %2831 = vdwg.mxu0
        %v2832 = vadd.f32 %v2754, %v2829
        %v2833 = vld [vmem:[%s437 + $0x4] sm:$0xf]
        %s2834 = scalar_lea.vmem %s10, 176
        %v2835 = vld [vmem:[%s2834] sm:$0xff]
        %v2836 = vld [vmem:[%s2834 + $0x8] sm:$0xff]
        %v2838 = vsel %vm720, %v2833, 0
        %2840 = vmatprep.subr.mxu0 0.0
        %2841 = vmatpush1.msra.mxu0 %v2835
        %2842 = vmatprep.subr.mxu0 0.0
        %2843 = vmatpush1.msra.mxu0 %v2836
        %2844 = vmatprep.subr.mxu0 0.0
        %2845 = vmatpush1.msra.mxu0 0.0
        %2846 = vmatprep.subr.mxu0 0.0
        %2847 = vmatpush1.msra.mxu0 0.0
        %2848 = vmatprep.subr.mxu0 0.0
        %2849 = vmatpush1.msra.mxu0 0.0
        %2850 = vmatprep.subr.mxu0 0.0
        %2851 = vmatpush1.msra.mxu0 0.0
        %2852 = vmatprep.subr.mxu0 0.0
        %2853 = vmatpush1.msra.mxu0 0.0
        %2854 = vmatprep.subr.mxu0 0.0
        %2855 = vmatpush1.msra.mxu0 0.0
        %2856 = vmatprep.subr.mxu0 0.0
        %2857 = vmatpush1.msra.mxu0 0.0
        %2858 = vmatprep.subr.mxu0 0.0
        %2859 = vmatpush1.msra.mxu0 0.0
        %2860 = vmatprep.subr.mxu0 0.0
        %2861 = vmatpush1.msra.mxu0 0.0
        %2862 = vmatprep.subr.mxu0 0.0
        %2863 = vmatpush1.msra.mxu0 0.0
        %2864 = vmatprep.subr.mxu0 0.0
        %2865 = vmatpush1.msra.mxu0 0.0
        %2866 = vmatprep.subr.mxu0 0.0
        %2867 = vmatpush1.msra.mxu0 0.0
        %2868 = vmatprep.subr.mxu0 0.0
        %2869 = vmatpush1.msra.mxu0 0.0
        %2870 = vmatprep.subr.mxu0 0.0
        %2871 = vmatpush1.msra.mxu0 0.0
        %2872 = vmatprep.subr.mxu0 0.0
        %2873 = vmatpush1.msra.mxu0 0.0
        %2874 = vmatprep.subr.mxu0 0.0
        %2875 = vmatpush1.msra.mxu0 0.0
        %2876 = vmatprep.subr.mxu0 0.0
        %2877 = vmatpush1.msra.mxu0 0.0
        %2878 = vmatprep.subr.mxu0 0.0
        %2879 = vmatpush1.msra.mxu0 0.0
        %2880 = vmatprep.subr.mxu0 0.0
        %2881 = vmatpush1.msra.mxu0 0.0
        %2882 = vmatprep.subr.mxu0 0.0
        %2883 = vmatpush1.msra.mxu0 0.0
        %2884 = vmatprep.subr.mxu0 0.0
        %2885 = vmatpush1.msra.mxu0 0.0
        %2886 = vmatprep.subr.mxu0 0.0
        %2887 = vmatpush1.msra.mxu0 0.0
        %2888 = vmatprep.subr.mxu0 0.0
        %2889 = vmatpush1.msra.mxu0 0.0
        %2890 = vmatprep.subr.mxu0 0.0
        %2891 = vmatpush1.msra.mxu0 0.0
        %2892 = vmatprep.subr.mxu0 0.0
        %2893 = vmatpush1.msra.mxu0 0.0
        %2894 = vmatprep.subr.mxu0 0.0
        %2895 = vmatpush1.msra.mxu0 0.0
        %2896 = vmatprep.subr.mxu0 0.0
        %2897 = vmatpush1.msra.mxu0 0.0
        %2898 = vmatprep.subr.mxu0 0.0
        %2899 = vmatpush1.msra.mxu0 0.0
        %2900 = vmatprep.subr.mxu0 0.0
        %2901 = vmatpush1.msra.mxu0 0.0
        %2902 = vmatprep.subr.mxu0 0.0
        %2903 = vmatpush1.msra.mxu0 0.0
        %2904 = vmatprep.mubr.f32.mxu0 0.0
        %2905 = vmatmul.mubr.f32.gmra.mrb[0].mxu0 %v2838
        %v2906 = vpop.f32.mrb[0].mxu0
        %v2907 = vadd.f32 0.0, %v2906
        %v2908 = vpop.f32.mrb[0].mxu0
        %2909 = vdwg.mxu0
        %v2910 = vadd.f32 %v2832, %v2907
        %v2911 = vld [vmem:[%s437 + $0x5] sm:$0xf]
        %s2912 = scalar_lea.vmem %s10, 192
        %v2913 = vld [vmem:[%s2912] sm:$0xff]
        %v2914 = vld [vmem:[%s2912 + $0x8] sm:$0xff]
        %v2916 = vsel %vm720, %v2911, 0
        %2918 = vmatprep.subr.mxu0 0.0
        %2919 = vmatpush1.msra.mxu0 %v2913
        %2920 = vmatprep.subr.mxu0 0.0
        %2921 = vmatpush1.msra.mxu0 %v2914
        %2922 = vmatprep.subr.mxu0 0.0
        %2923 = vmatpush1.msra.mxu0 0.0
        %2924 = vmatprep.subr.mxu0 0.0
        %2925 = vmatpush1.msra.mxu0 0.0
        %2926 = vmatprep.subr.mxu0 0.0
        %2927 = vmatpush1.msra.mxu0 0.0
        %2928 = vmatprep.subr.mxu0 0.0
        %2929 = vmatpush1.msra.mxu0 0.0
        %2930 = vmatprep.subr.mxu0 0.0
        %2931 = vmatpush1.msra.mxu0 0.0
        %2932 = vmatprep.subr.mxu0 0.0
        %2933 = vmatpush1.msra.mxu0 0.0
        %2934 = vmatprep.subr.mxu0 0.0
        %2935 = vmatpush1.msra.mxu0 0.0
        %2936 = vmatprep.subr.mxu0 0.0
        %2937 = vmatpush1.msra.mxu0 0.0
        %2938 = vmatprep.subr.mxu0 0.0
        %2939 = vmatpush1.msra.mxu0 0.0
        %2940 = vmatprep.subr.mxu0 0.0
        %2941 = vmatpush1.msra.mxu0 0.0
        %2942 = vmatprep.subr.mxu0 0.0
        %2943 = vmatpush1.msra.mxu0 0.0
        %2944 = vmatprep.subr.mxu0 0.0
        %2945 = vmatpush1.msra.mxu0 0.0
        %2946 = vmatprep.subr.mxu0 0.0
        %2947 = vmatpush1.msra.mxu0 0.0
        %2948 = vmatprep.subr.mxu0 0.0
        %2949 = vmatpush1.msra.mxu0 0.0
        %2950 = vmatprep.subr.mxu0 0.0
        %2951 = vmatpush1.msra.mxu0 0.0
        %2952 = vmatprep.subr.mxu0 0.0
        %2953 = vmatpush1.msra.mxu0 0.0
        %2954 = vmatprep.subr.mxu0 0.0
        %2955 = vmatpush1.msra.mxu0 0.0
        %2956 = vmatprep.subr.mxu0 0.0
        %2957 = vmatpush1.msra.mxu0 0.0
        %2958 = vmatprep.subr.mxu0 0.0
        %2959 = vmatpush1.msra.mxu0 0.0
        %2960 = vmatprep.subr.mxu0 0.0
        %2961 = vmatpush1.msra.mxu0 0.0
        %2962 = vmatprep.subr.mxu0 0.0
        %2963 = vmatpush1.msra.mxu0 0.0
        %2964 = vmatprep.subr.mxu0 0.0
        %2965 = vmatpush1.msra.mxu0 0.0
        %2966 = vmatprep.subr.mxu0 0.0
        %2967 = vmatpush1.msra.mxu0 0.0
        %2968 = vmatprep.subr.mxu0 0.0
        %2969 = vmatpush1.msra.mxu0 0.0
        %2970 = vmatprep.subr.mxu0 0.0
        %2971 = vmatpush1.msra.mxu0 0.0
        %2972 = vmatprep.subr.mxu0 0.0
        %2973 = vmatpush1.msra.mxu0 0.0
        %2974 = vmatprep.subr.mxu0 0.0
        %2975 = vmatpush1.msra.mxu0 0.0
        %2976 = vmatprep.subr.mxu0 0.0
        %2977 = vmatpush1.msra.mxu0 0.0
        %2978 = vmatprep.subr.mxu0 0.0
        %2979 = vmatpush1.msra.mxu0 0.0
        %2980 = vmatprep.subr.mxu0 0.0
        %2981 = vmatpush1.msra.mxu0 0.0
        %2982 = vmatprep.mubr.f32.mxu0 0.0
        %2983 = vmatmul.mubr.f32.gmra.mrb[0].mxu0 %v2916
        %v2984 = vpop.f32.mrb[0].mxu0
        %v2985 = vadd.f32 0.0, %v2984
        %v2986 = vpop.f32.mrb[0].mxu0
        %2987 = vdwg.mxu0
        %v2988 = vadd.f32 %v2910, %v2985
        %v2989 = vld [vmem:[%s437 + $0x6] sm:$0xf]
        %s2990 = scalar_lea.vmem %s10, 208
        %v2991 = vld [vmem:[%s2990] sm:$0xff]
        %v2992 = vld [vmem:[%s2990 + $0x8] sm:$0xff]
        %v2994 = vsel %vm720, %v2989, 0
        %2996 = vmatprep.subr.mxu0 0.0
        %2997 = vmatpush1.msra.mxu0 %v2991
        %2998 = vmatprep.subr.mxu0 0.0
        %2999 = vmatpush1.msra.mxu0 %v2992
        %3000 = vmatprep.subr.mxu0 0.0
        %3001 = vmatpush1.msra.mxu0 0.0
        %3002 = vmatprep.subr.mxu0 0.0
        %3003 = vmatpush1.msra.mxu0 0.0
        %3004 = vmatprep.subr.mxu0 0.0
        %3005 = vmatpush1.msra.mxu0 0.0
        %3006 = vmatprep.subr.mxu0 0.0
        %3007 = vmatpush1.msra.mxu0 0.0
        %3008 = vmatprep.subr.mxu0 0.0
        %3009 = vmatpush1.msra.mxu0 0.0
        %3010 = vmatprep.subr.mxu0 0.0
        %3011 = vmatpush1.msra.mxu0 0.0
        %3012 = vmatprep.subr.mxu0 0.0
        %3013 = vmatpush1.msra.mxu0 0.0
        %3014 = vmatprep.subr.mxu0 0.0
        %3015 = vmatpush1.msra.mxu0 0.0
        %3016 = vmatprep.subr.mxu0 0.0
        %3017 = vmatpush1.msra.mxu0 0.0
        %3018 = vmatprep.subr.mxu0 0.0
        %3019 = vmatpush1.msra.mxu0 0.0
        %3020 = vmatprep.subr.mxu0 0.0
        %3021 = vmatpush1.msra.mxu0 0.0
        %3022 = vmatprep.subr.mxu0 0.0
        %3023 = vmatpush1.msra.mxu0 0.0
        %3024 = vmatprep.subr.mxu0 0.0
        %3025 = vmatpush1.msra.mxu0 0.0
        %3026 = vmatprep.subr.mxu0 0.0
        %3027 = vmatpush1.msra.mxu0 0.0
        %3028 = vmatprep.subr.mxu0 0.0
        %3029 = vmatpush1.msra.mxu0 0.0
        %3030 = vmatprep.subr.mxu0 0.0
        %3031 = vmatpush1.msra.mxu0 0.0
        %3032 = vmatprep.subr.mxu0 0.0
        %3033 = vmatpush1.msra.mxu0 0.0
        %3034 = vmatprep.subr.mxu0 0.0
        %3035 = vmatpush1.msra.mxu0 0.0
        %3036 = vmatprep.subr.mxu0 0.0
        %3037 = vmatpush1.msra.mxu0 0.0
        %3038 = vmatprep.subr.mxu0 0.0
        %3039 = vmatpush1.msra.mxu0 0.0
        %3040 = vmatprep.subr.mxu0 0.0
        %3041 = vmatpush1.msra.mxu0 0.0
        %3042 = vmatprep.subr.mxu0 0.0
        %3043 = vmatpush1.msra.mxu0 0.0
        %3044 = vmatprep.subr.mxu0 0.0
        %3045 = vmatpush1.msra.mxu0 0.0
        %3046 = vmatprep.subr.mxu0 0.0
        %3047 = vmatpush1.msra.mxu0 0.0
        %3048 = vmatprep.subr.mxu0 0.0
        %3049 = vmatpush1.msra.mxu0 0.0
        %3050 = vmatprep.subr.mxu0 0.0
        %3051 = vmatpush1.msra.mxu0 0.0
        %3052 = vmatprep.subr.mxu0 0.0
        %3053 = vmatpush1.msra.mxu0 0.0
        %3054 = vmatprep.subr.mxu0 0.0
        %3055 = vmatpush1.msra.mxu0 0.0
        %3056 = vmatprep.subr.mxu0 0.0
        %3057 = vmatpush1.msra.mxu0 0.0
        %3058 = vmatprep.subr.mxu0 0.0
        %3059 = vmatpush1.msra.mxu0 0.0
        %3060 = vmatprep.mubr.f32.mxu0 0.0
        %3061 = vmatmul.mubr.f32.gmra.mrb[0].mxu0 %v2994
        %v3062 = vpop.f32.mrb[0].mxu0
        %v3063 = vadd.f32 0.0, %v3062
        %v3064 = vpop.f32.mrb[0].mxu0
        %3065 = vdwg.mxu0
        %v3066 = vadd.f32 %v2988, %v3063
        %s3067 = sld [smem:[#allocation6 + $0x2]]
        %v3068 = vstv %s3067
        %v3069 = vmul.f32 %v3066, %v3068
        %s3070 = sld [smem:[#allocation6 + $0x3]]
        %v3071 = vstv %s3070
        %v3072 = vadd.f32 %v3069, %v3071
        %v3073 = vxor.u32 %v3072, 2147483648
        %v3074 = vmul.f32 %v3073, 1.442695
        %v3075 = vpow.pop %v3074
        %v3076 = vadd.f32 %v3075, 1.0
        %v3077 = vrcp.pop %v3076
        %v3078 = vmul.f32 1.0, %v3077
        %v3079 = vld [vmem:[%s422] sm:$0xf]
        %3081 = vset.pattern.permute.xlu0 0
        %3082 = vperm.xlu0 %3081, %v3078
        %v3083 = vpop.permute.xlu0 %3082
        %v3085 = vmul.f32 %v3079, %v3083
        %3086 = vst.msk [vmem:[#allocation4] sm:$0xf] %vm441, %v3085
        %v3087 = vld [vmem:[%s422] sm:$0xf]
        %3088 = vset.pattern.permute.xlu0 1
        %3089 = vperm.xlu0 %3088, %v3078
        %v3090 = vpop.permute.xlu0 %3089
        %v3092 = vmul.f32 %v3087, %v3090
        %3093 = vst.msk [vmem:[#allocation4] sm:$0xf] %vm459, %v3092
        %v3094 = vld [vmem:[%s422] sm:$0xf]
        %3095 = vset.pattern.permute.xlu0 2
        %3096 = vperm.xlu0 %3095, %v3078
        %v3097 = vpop.permute.xlu0 %3096
        %v3099 = vmul.f32 %v3094, %v3097
        %3100 = vst.msk [vmem:[#allocation4] sm:$0xf] %vm477, %v3099
        %v3101 = vld [vmem:[%s422] sm:$0xf]
        %3102 = vset.pattern.permute.xlu0 3
        %3103 = vperm.xlu0 %3102, %v3078
        %v3104 = vpop.permute.xlu0 %3103
        %v3106 = vmul.f32 %v3101, %v3104
        %3107 = vst.msk [vmem:[#allocation4] sm:$0xf] %vm495, %v3106
        %v3108 = vld [vmem:[%s422] sm:$0xf]
        %3109 = vset.pattern.permute.xlu0 4
        %3110 = vperm.xlu0 %3109, %v3078
        %v3111 = vpop.permute.xlu0 %3110
        %v3113 = vmul.f32 %v3108, %v3111
        %3114 = vst.msk [vmem:[#allocation4] sm:$0xf] %vm513, %v3113
        %v3115 = vld [vmem:[%s422] sm:$0xf]
        %3116 = vset.pattern.permute.xlu0 5
        %3117 = vperm.xlu0 %3116, %v3078
        %v3118 = vpop.permute.xlu0 %3117
        %v3120 = vmul.f32 %v3115, %v3118
        %3121 = vst.msk [vmem:[#allocation4] sm:$0xf] %vm531, %v3120
        %v3122 = vld [vmem:[%s422] sm:$0xf]
        %3123 = vset.pattern.permute.xlu0 6
        %3124 = vperm.xlu0 %3123, %v3078
        %v3125 = vpop.permute.xlu0 %3124
        %v3127 = vmul.f32 %v3122, %v3125
        %3128 = vst.msk [vmem:[#allocation4] sm:$0xf] %vm549, %v3127
        %v3129 = vld [vmem:[%s422] sm:$0xf]
        %3130 = vset.pattern.permute.xlu0 7
        %3131 = vperm.xlu0 %3130, %v3078
        %v3132 = vpop.permute.xlu0 %3131
        %v3134 = vmul.f32 %v3129, %v3132
        %3135 = vst.msk [vmem:[#allocation4] sm:$0xf] %vm567, %v3134
        %v3136 = vld [vmem:[%s422 + $0x4] sm:$0xf]
        %3137 = vset.pattern.permute.xlu0 8
        %3138 = vperm.xlu0 %3137, %v3078
        %v3139 = vpop.permute.xlu0 %3138
        %v3141 = vmul.f32 %v3136, %v3139
        %3142 = vst.msk [vmem:[#allocation4 + $0x4] sm:$0xf] %vm441, %v3141
        %v3143 = vld [vmem:[%s422 + $0x4] sm:$0xf]
        %3144 = vset.pattern.permute.xlu0 9
        %3145 = vperm.xlu0 %3144, %v3078
        %v3146 = vpop.permute.xlu0 %3145
        %v3148 = vmul.f32 %v3143, %v3146
        %3149 = vst.msk [vmem:[#allocation4 + $0x4] sm:$0xf] %vm459, %v3148
        %v3150 = vld [vmem:[%s422 + $0x4] sm:$0xf]
        %3151 = vset.pattern.permute.xlu0 10
        %3152 = vperm.xlu0 %3151, %v3078
        %v3153 = vpop.permute.xlu0 %3152
        %v3155 = vmul.f32 %v3150, %v3153
        %3156 = vst.msk [vmem:[#allocation4 + $0x4] sm:$0xf] %vm477, %v3155
        %v3157 = vld [vmem:[%s422 + $0x4] sm:$0xf]
        %3158 = vset.pattern.permute.xlu0 11
        %3159 = vperm.xlu0 %3158, %v3078
        %v3160 = vpop.permute.xlu0 %3159
        %v3162 = vmul.f32 %v3157, %v3160
        %3163 = vst.msk [vmem:[#allocation4 + $0x4] sm:$0xf] %vm495, %v3162
        %v3164 = vld [vmem:[%s422 + $0x4] sm:$0xf]
        %3165 = vset.pattern.permute.xlu0 12
        %3166 = vperm.xlu0 %3165, %v3078
        %v3167 = vpop.permute.xlu0 %3166
        %v3169 = vmul.f32 %v3164, %v3167
        %3170 = vst.msk [vmem:[#allocation4 + $0x4] sm:$0xf] %vm513, %v3169
        %v3171 = vld [vmem:[%s422 + $0x4] sm:$0xf]
        %3172 = vset.pattern.permute.xlu0 13
        %3173 = vperm.xlu0 %3172, %v3078
        %v3174 = vpop.permute.xlu0 %3173
        %v3176 = vmul.f32 %v3171, %v3174
        %3177 = vst.msk [vmem:[#allocation4 + $0x4] sm:$0xf] %vm531, %v3176
        %v3178 = vld [vmem:[%s422 + $0x4] sm:$0xf]
        %3179 = vset.pattern.permute.xlu0 14
        %3180 = vperm.xlu0 %3179, %v3078
        %v3181 = vpop.permute.xlu0 %3180
        %v3183 = vmul.f32 %v3178, %v3181
        %3184 = vst.msk [vmem:[#allocation4 + $0x4] sm:$0xf] %vm549, %v3183
        %v3185 = vld [vmem:[%s422 + $0x4] sm:$0xf]
        %3186 = vset.pattern.permute.xlu0 15
        %3187 = vperm.xlu0 %3186, %v3078
        %v3188 = vpop.permute.xlu0 %3187
        %v3190 = vmul.f32 %v3185, %v3188
        %3191 = vst.msk [vmem:[#allocation4 + $0x4] sm:$0xf] %vm567, %v3190
        %v3192 = vld [vmem:[#allocation4] sm:$0xff]
        %v3193 = vld [vmem:[%s11] ss:$4 sm:$0x3]
        %s3194 = scalar_lea.vmem %s11, 1
        %v3195 = vld [vmem:[%s3194] ss:$4 sm:$0x3]
        %s3196 = scalar_lea.vmem %s11, 2
        %v3197 = vld [vmem:[%s3196] ss:$4 sm:$0x3]
        %s3198 = scalar_lea.vmem %s11, 3
        %v3199 = vld [vmem:[%s3198] ss:$4 sm:$0x3]
        %v3201 = vcombine.high %v3192, %v3192
        %3203 = vrot.lane.b32.xlu0 %v3192, 17
        %v3204 = vpop.permute.xlu0 %3203
        %3205 = vrot.lane.b32.xlu0 %v3201, 17
        %v3206 = vpop.permute.xlu0 %3205
        %v3207 = vlaneseq
        %v3208 = vand.u32 %v3207, 127
        %vm3209 = vcmp.lt.s32.totalorder %v3208, 17
        %v3210 = vsel %vm3209, %v3204, %v3206
        %v3211 = vsel %vm3209, %v3206, %v3204
        %v3213 = vlaneseq
        %v3214 = vshrl.u32 %v3213, 7
        %v3215 = vsub.s32 0, %v3214
        %v3216 = vrot.slane %v3193, %v3215
        %v3217 = vlaneseq
        %v3218 = vshrl.u32 %v3217, 7
        %v3219 = vsub.s32 1, %v3218
        %v3220 = vrot.slane %v3193, %v3219
        %v3223 = vmul.f32 %v3211, %v3216
        %v3224 = vmul.f32 %v3210, %v3220
        %v3226 = vlaneseq
        %v3227 = vshrl.u32 %v3226, 7
        %v3228 = vsub.s32 0, %v3227
        %v3229 = vrot.slane %v3197, %v3228
        %v3230 = vlaneseq
        %v3231 = vshrl.u32 %v3230, 7
        %v3232 = vsub.s32 1, %v3231
        %v3233 = vrot.slane %v3197, %v3232
        %v3236 = vmul.f32 %v3223, %v3229
        %v3237 = vmul.f32 %v3224, %v3233
        %3238 = vst [vmem:[#allocation5] sm:$0xf] %v3236
        %3239 = vst [vmem:[#allocation5 + $0x8] sm:$0xf] %v3237
        %3240 = vrot.lane.b32.xlu0 %v3192, 16
        %v3241 = vpop.permute.xlu0 %3240
        %3242 = vrot.lane.b32.xlu0 %v3201, 16
        %v3243 = vpop.permute.xlu0 %3242
        %vm3244 = vcmp.lt.s32.totalorder %v3208, 16
        %v3245 = vsel %vm3244, %v3241, %v3243
        %v3246 = vsel %vm3244, %v3243, %v3241
        %v3247 = vmul.f32 %v3246, %v3216
        %v3248 = vmul.f32 %v3245, %v3220
        %v3251 = vrot.slane %v3247, 4
        %v3252 = vrot.slane %v3248, 4
        %3255 = vst [vmem:[#allocation5] sm:$0xf0] %v3251
        %3256 = vst [vmem:[#allocation5 + $0x8] sm:$0xf0] %v3252
        %3257 = vrot.lane.b32.xlu0 %v3192, 15
        %v3258 = vpop.permute.xlu0 %3257
        %3259 = vrot.lane.b32.xlu0 %v3201, 15
        %v3260 = vpop.permute.xlu0 %3259
        %vm3261 = vcmp.lt.s32.totalorder %v3208, 15
        %v3262 = vsel %vm3261, %v3258, %v3260
        %v3263 = vsel %vm3261, %v3260, %v3258
        %v3264 = vmul.f32 %v3263, %v3216
        %v3265 = vmul.f32 %v3262, %v3220
        %v3267 = vlaneseq
        %v3268 = vshrl.u32 %v3267, 7
        %v3269 = vsub.s32 0, %v3268
        %v3270 = vrot.slane %v3199, %v3269
        %v3271 = vlaneseq
        %v3272 = vshrl.u32 %v3271, 7
        %v3273 = vsub.s32 1, %v3272
        %v3274 = vrot.slane %v3199, %v3273
        %v3277 = vmul.f32 %v3264, %v3270
        %v3278 = vmul.f32 %v3265, %v3274
        %3279 = vst [vmem:[#allocation5 + $0x10] sm:$0xf] %v3277
        %3280 = vst [vmem:[#allocation5 + $0x18] sm:$0xf] %v3278
        %3281 = vrot.lane.b32.xlu0 %v3192, 1
        %v3282 = vpop.permute.xlu0 %3281
        %3283 = vrot.lane.b32.xlu0 %v3201, 1
        %v3284 = vpop.permute.xlu0 %3283
        %vm3285 = vcmp.lt.s32.totalorder %v3208, 1
        %v3286 = vsel %vm3285, %v3282, %v3284
        %v3287 = vsel %vm3285, %v3284, %v3282
        %v3288 = vmul.f32 %v3287, %v3229
        %v3289 = vmul.f32 %v3286, %v3233
        %v3292 = vrot.slane %v3288, 4
        %v3293 = vrot.slane %v3289, 4
        %3296 = vst [vmem:[#allocation5 + $0x10] sm:$0xf0] %v3292
        %3297 = vst [vmem:[#allocation5 + $0x18] sm:$0xf0] %v3293
        %3298 = vst [vmem:[#allocation5 + $0x20] sm:$0xf] %v3192
        %3299 = vst [vmem:[#allocation5 + $0x28] sm:$0xf] %v3201
        %3300 = vrot.lane.b32.xlu0 %v3192, 127
        %v3301 = vpop.permute.xlu0 %3300
        %3302 = vrot.lane.b32.xlu0 %v3201, 127
        %v3303 = vpop.permute.xlu0 %3302
        %vm3304 = vcmp.lt.s32.totalorder %v3208, 127
        %v3305 = vsel %vm3304, %v3301, %v3303
        %v3306 = vsel %vm3304, %v3303, %v3301
        %v3307 = vmul.f32 %v3305, %v3270
        %v3308 = vmul.f32 %v3306, %v3274
        %v3311 = vrot.slane %v3307, 4
        %v3312 = vrot.slane %v3308, 4
        %3315 = vst [vmem:[#allocation5 + $0x20] sm:$0xf0] %v3311
        %3316 = vst [vmem:[#allocation5 + $0x28] sm:$0xf0] %v3312
        %3317 = vrot.lane.b32.xlu0 %v3192, 113
        %v3318 = vpop.permute.xlu0 %3317
        %3319 = vrot.lane.b32.xlu0 %v3201, 113
        %v3320 = vpop.permute.xlu0 %3319
        %vm3321 = vcmp.lt.s32.totalorder %v3208, 113
        %v3322 = vsel %vm3321, %v3318, %v3320
        %v3323 = vsel %vm3321, %v3320, %v3318
        %v3325 = vlaneseq
        %v3326 = vshrl.u32 %v3325, 7
        %v3327 = vsub.s32 0, %v3326
        %v3328 = vrot.slane %v3195, %v3327
        %v3329 = vlaneseq
        %v3330 = vshrl.u32 %v3329, 7
        %v3331 = vsub.s32 1, %v3330
        %v3332 = vrot.slane %v3195, %v3331
        %v3335 = vmul.f32 %v3322, %v3328
        %v3336 = vmul.f32 %v3323, %v3332
        %v3337 = vmul.f32 %v3335, %v3229
        %v3338 = vmul.f32 %v3336, %v3233
        %3339 = vst [vmem:[#allocation5 + $0x30] sm:$0xf] %v3337
        %3340 = vst [vmem:[#allocation5 + $0x38] sm:$0xf] %v3338
        %3341 = vrot.lane.b32.xlu0 %v3192, 112
        %v3342 = vpop.permute.xlu0 %3341
        %3343 = vrot.lane.b32.xlu0 %v3201, 112
        %v3344 = vpop.permute.xlu0 %3343
        %vm3345 = vcmp.lt.s32.totalorder %v3208, 112
        %v3346 = vsel %vm3345, %v3342, %v3344
        %v3347 = vsel %vm3345, %v3344, %v3342
        %v3348 = vmul.f32 %v3346, %v3328
        %v3349 = vmul.f32 %v3347, %v3332
        %v3352 = vrot.slane %v3348, 4
        %v3353 = vrot.slane %v3349, 4
        %3356 = vst [vmem:[#allocation5 + $0x30] sm:$0xf0] %v3352
        %3357 = vst [vmem:[#allocation5 + $0x38] sm:$0xf0] %v3353
        %3358 = vrot.lane.b32.xlu0 %v3192, 111
        %v3359 = vpop.permute.xlu0 %3358
        %3360 = vrot.lane.b32.xlu0 %v3201, 111
        %v3361 = vpop.permute.xlu0 %3360
        %vm3362 = vcmp.lt.s32.totalorder %v3208, 111
        %v3363 = vsel %vm3362, %v3359, %v3361
        %v3364 = vsel %vm3362, %v3361, %v3359
        %v3365 = vmul.f32 %v3363, %v3328
        %v3366 = vmul.f32 %v3364, %v3332
        %v3367 = vmul.f32 %v3365, %v3270
        %v3368 = vmul.f32 %v3366, %v3274
        %3369 = vst [vmem:[#allocation5 + $0x40] sm:$0xf] %v3367
        %3370 = vst [vmem:[#allocation5 + $0x48] sm:$0xf] %v3368
        %v3371 = vld [vmem:[%s3] sm:$0xf]
        %v3372 = vld [vmem:[#allocation5] sm:$0xff]
        %v3373 = vld [vmem:[#allocation5 + $0x8] sm:$0xff]
        %v3374 = vld [vmem:[#allocation5 + $0x10] sm:$0xff]
        %v3375 = vld [vmem:[#allocation5 + $0x18] sm:$0xff]
        %v3376 = vld [vmem:[#allocation5 + $0x20] sm:$0xff]
        %v3377 = vld [vmem:[#allocation5 + $0x28] sm:$0xff]
        %v3378 = vld [vmem:[#allocation5 + $0x30] sm:$0xff]
        %v3379 = vld [vmem:[#allocation5 + $0x38] sm:$0xff]
        %v3380 = vld [vmem:[#allocation5 + $0x40] sm:$0xf]
        %v3381 = vld [vmem:[#allocation5 + $0x48] sm:$0xf]
        %v3382 = vpack.c.bf16 %v3374, %v3372
        %v3383 = vpack.c.bf16 %v3375, %v3373
        %v3384 = vpack.c.bf16 %v3378, %v3376
        %v3385 = vpack.c.bf16 %v3379, %v3377
        %v3386 = vpack.c.bf16 %v3380, %v3380
        %v3387 = vpack.c.bf16 %v3381, %v3381
        %vm3388 = vcmask 293888
        %v3390 = vsel %vm3388, %v3371, 0
        %v3393 = vsel %vm1896, %v3386, 0
        %v3396 = vsel %vm1896, %v3387, 0
        %3398 = vmatprep.subr.bf16.mxu0 %v3383
        %3399 = vmatpush1.bf16.msra.mxu0 %v3382
        %3400 = vmatprep.subr.bf16.mxu0 %v3385
        %3401 = vmatpush1.bf16.msra.mxu0 %v3384
        %3402 = vmatprep.subr.bf16.mxu0 %v3396
        %3403 = vmatpush1.bf16.msra.mxu0 %v3393
        %3404 = vmatprep.subr.bf16.mxu0 0
        %3405 = vmatpush1.bf16.msra.mxu0 0
        %3406 = vmatprep.subr.bf16.mxu0 0
        %3407 = vmatpush1.bf16.msra.mxu0 0
        %3408 = vmatprep.subr.bf16.mxu0 0
        %3409 = vmatpush1.bf16.msra.mxu0 0
        %3410 = vmatprep.subr.bf16.mxu0 0
        %3411 = vmatpush1.bf16.msra.mxu0 0
        %3412 = vmatprep.subr.bf16.mxu0 0
        %3413 = vmatpush1.bf16.msra.mxu0 0
        %3414 = vmatprep.subr.bf16.mxu0 0
        %3415 = vmatpush1.bf16.msra.mxu0 0
        %3416 = vmatprep.subr.bf16.mxu0 0
        %3417 = vmatpush1.bf16.msra.mxu0 0
        %3418 = vmatprep.subr.bf16.mxu0 0
        %3419 = vmatpush1.bf16.msra.mxu0 0
        %3420 = vmatprep.subr.bf16.mxu0 0
        %3421 = vmatpush1.bf16.msra.mxu0 0
        %3422 = vmatprep.subr.bf16.mxu0 0
        %3423 = vmatpush1.bf16.msra.mxu0 0
        %3424 = vmatprep.subr.bf16.mxu0 0
        %3425 = vmatpush1.bf16.msra.mxu0 0
        %3426 = vmatprep.subr.bf16.mxu0 0
        %3427 = vmatpush1.bf16.msra.mxu0 0
        %3428 = vmatprep.subr.bf16.mxu0 0
        %3429 = vmatpush1.bf16.msra.mxu0 0
        %3430 = vmatprep.mubr.bf16.mxu0 0
        %3431 = vmatmul.mubr.bf16.gmra.mrb[0].mxu0 %v3390
        %v3432 = vpop.f32.mrb[0].mxu0
        %v3433 = vadd.f32 0.0, %v3432
        %v3434 = vpop.f32.mrb[0].mxu0
        %v3435 = vadd.f32 0.0, %v3434
        %v3436 = vpop.f32.mrb[0].mxu0
        %v3437 = vpop.f32.mrb[0].mxu0
        %3438 = vdwg.mxu0
        %v3439 = vld [vmem:[%s5] sm:$0xff]
        %3441 = vset.pattern.permute.xlu0 2
        %3442 = vperm.xlu0 %3441, %v3439
        %v3443 = vpop.permute.xlu0 %3442
        %v3445 = vmul.f32 %v3433, %v3443
        %v3446 = vmul.f32 %v3435, %v3443
        %3447 = vset.pattern.permute.xlu0 3
        %3448 = vperm.xlu0 %3447, %v3439
        %v3449 = vpop.permute.xlu0 %3448
        %v3451 = vadd.f32 %v3445, %v3449
        %v3452 = vadd.f32 %v3446, %v3449
        %v3453 = vxor.u32 %v3451, 2147483648
        %v3454 = vxor.u32 %v3452, 2147483648
        %v3455 = vmul.f32 %v3453, 1.442695
        %v3456 = vpow.pop %v3455
        %v3457 = vmul.f32 %v3454, 1.442695
        %v3458 = vpow.pop %v3457
        %v3459 = vadd.f32 %v3456, 1.0
        %v3460 = vadd.f32 %v3458, 1.0
        %v3461 = vrcp.pop %v3459
        %v3462 = vmul.f32 1.0, %v3461
        %v3463 = vrcp.pop %v3460
        %v3464 = vmul.f32 1.0, %v3463
        %v3465 = vmul.f32 %v3451, %v3462
        %v3466 = vmul.f32 %v3452, %v3464
        %v3467 = vld [vmem:[%s427] sm:$0xff]
        %v3468 = vld [vmem:[%s427 + $0x8] sm:$0xff]
        %s3469 = sld [smem:[#allocation6 + $0xa]]
        %v3470 = vstv %s3469
        %v3471 = vmul.f32 %v3470, %v3465
        %v3472 = vmul.f32 %v3470, %v3466
        %v3473 = vadd.f32 %v3467, %v3471
        %v3474 = vadd.f32 %v3468, %v3472
        %3475 = vst [vmem:[%s427] sm:$0xff] %v3473
        %3476 = vst [vmem:[%s427 + $0x8] sm:$0xff] %v3474
        %v3477 = vld [vmem:[%s422] sm:$0xff]
        %v3479 = vcombine.high %v3477, %v3477
        %vm3481 = vcmask 1043456
        %v3482 = vsel %vm3481, %v3477, -inf
        %v3483 = vrot.slane %v3482, 4
        %v3484 = vmax.f32 %v3482, %v3483
        %v3485 = vrot.slane %v3484, 2
        %v3486 = vmax.f32 %v3484, %v3485
        %v3487 = vrot.slane %v3486, 1
        %v3488 = vmax.f32 %v3486, %v3487
        %v3489 = vsel %vm3481, %v3479, -inf
        %v3490 = vrot.slane %v3489, 4
        %v3491 = vmax.f32 %v3489, %v3490
        %v3492 = vrot.slane %v3491, 2
        %v3493 = vmax.f32 %v3491, %v3492
        %v3494 = vrot.slane %v3493, 1
        %v3495 = vmax.f32 %v3493, %v3494
        %v3496 = vsel %vm3481, %v3477, 0.0
        %v3497 = vrot.slane %v3496, 4
        %v3498 = vadd.f32 %v3496, %v3497
        %v3499 = vrot.slane %v3498, 2
        %v3500 = vadd.f32 %v3498, %v3499
        %v3501 = vrot.slane %v3500, 1
        %v3502 = vadd.f32 %v3500, %v3501
        %v3503 = vsel %vm3481, %v3479, 0.0
        %v3504 = vrot.slane %v3503, 4
        %v3505 = vadd.f32 %v3503, %v3504
        %v3506 = vrot.slane %v3505, 2
        %v3507 = vadd.f32 %v3505, %v3506
        %v3508 = vrot.slane %v3507, 1
        %v3509 = vadd.f32 %v3507, %v3508
        %v3510 = vmul.f32 %v3502, 0.25
        %v3511 = vmul.f32 %v3509, 0.25
        %s3512 = sld [smem:[#allocation6 + $0x4]]
        %v3513 = vstv %s3512
        %v3514 = vmul.f32 %v3513, %v3488
        %v3515 = vmul.f32 %v3513, %v3495
        %s3516 = sld [smem:[#allocation6 + $0x5]]
        %v3517 = vstv %s3516
        %v3518 = vmul.f32 %v3517, %v3510
        %v3519 = vmul.f32 %v3517, %v3511
        %v3520 = vadd.f32 %v3514, %v3518
        %v3521 = vadd.f32 %v3515, %v3519
        %s3522 = sld [smem:[#allocation6 + $0x6]]
        %v3523 = vstv %s3522
        %v3524 = vmul.f32 %v3520, %v3523
        %v3525 = vmul.f32 %v3521, %v3523
        %s3526 = sld [smem:[#allocation6 + $0x7]]
        %v3527 = vstv %s3526
        %v3528 = vadd.f32 %v3524, %v3527
        %v3529 = vadd.f32 %v3525, %v3527
        %v3530 = vxor.u32 %v3528, 2147483648
        %v3531 = vxor.u32 %v3529, 2147483648
        %v3532 = vmul.f32 %v3530, 1.442695
        %v3533 = vpow.pop %v3532
        %v3534 = vmul.f32 %v3531, 1.442695
        %v3535 = vpow.pop %v3534
        %v3536 = vadd.f32 %v3533, 1.0
        %v3537 = vadd.f32 %v3535, 1.0
        %v3538 = vrcp.pop %v3536
        %v3539 = vmul.f32 1.0, %v3538
        %v3540 = vrcp.pop %v3537
        %v3541 = vmul.f32 1.0, %v3540
        %v3542 = vmul.f32 %v3528, %v3539
        %v3543 = vmul.f32 %v3529, %v3541
        %v3544 = vxor.u32 %v3542, 2147483648
        %v3545 = vxor.u32 %v3543, 2147483648
        %v3546 = vmul.f32 %v3544, 1.442695
        %v3547 = vpow.pop %v3546
        %v3548 = vmul.f32 %v3545, 1.442695
        %v3549 = vpow.pop %v3548
        %v3550 = vadd.f32 %v3547, 1.0
        %v3551 = vadd.f32 %v3549, 1.0
        %v3552 = vrcp.pop %v3550
        %v3553 = vmul.f32 1.0, %v3552
        %v3554 = vrcp.pop %v3551
        %v3555 = vmul.f32 1.0, %v3554
        %v3556 = vld [vmem:[%s4] sm:$0xf]
        %v3557 = vpack.c.bf16 %v3477, %v3477
        %v3558 = vpack.c.bf16 %v3479, %v3479
        %v3560 = vsel %vm1892, %v3556, 0
        %v3563 = vsel %vm1896, %v3557, 0
        %v3566 = vsel %vm1896, %v3558, 0
        %3568 = vmatprep.subr.bf16.mxu0 %v3566
        %3569 = vmatpush1.bf16.msra.mxu0 %v3563
        %3570 = vmatprep.subr.bf16.mxu0 0
        %3571 = vmatpush1.bf16.msra.mxu0 0
        %3572 = vmatprep.subr.bf16.mxu0 0
        %3573 = vmatpush1.bf16.msra.mxu0 0
        %3574 = vmatprep.subr.bf16.mxu0 0
        %3575 = vmatpush1.bf16.msra.mxu0 0
        %3576 = vmatprep.subr.bf16.mxu0 0
        %3577 = vmatpush1.bf16.msra.mxu0 0
        %3578 = vmatprep.subr.bf16.mxu0 0
        %3579 = vmatpush1.bf16.msra.mxu0 0
        %3580 = vmatprep.subr.bf16.mxu0 0
        %3581 = vmatpush1.bf16.msra.mxu0 0
        %3582 = vmatprep.subr.bf16.mxu0 0
        %3583 = vmatpush1.bf16.msra.mxu0 0
        %3584 = vmatprep.subr.bf16.mxu0 0
        %3585 = vmatpush1.bf16.msra.mxu0 0
        %3586 = vmatprep.subr.bf16.mxu0 0
        %3587 = vmatpush1.bf16.msra.mxu0 0
        %3588 = vmatprep.subr.bf16.mxu0 0
        %3589 = vmatpush1.bf16.msra.mxu0 0
        %3590 = vmatprep.subr.bf16.mxu0 0
        %3591 = vmatpush1.bf16.msra.mxu0 0
        %3592 = vmatprep.subr.bf16.mxu0 0
        %3593 = vmatpush1.bf16.msra.mxu0 0
        %3594 = vmatprep.subr.bf16.mxu0 0
        %3595 = vmatpush1.bf16.msra.mxu0 0
        %3596 = vmatprep.subr.bf16.mxu0 0
        %3597 = vmatpush1.bf16.msra.mxu0 0
        %3598 = vmatprep.subr.bf16.mxu0 0
        %3599 = vmatpush1.bf16.msra.mxu0 0
        %3600 = vmatprep.mubr.bf16.mxu0 0
        %3601 = vmatmul.mubr.bf16.gmra.mrb[0].mxu0 %v3560
        %v3602 = vpop.f32.mrb[0].mxu0
        %v3603 = vadd.f32 0.0, %v3602
        %v3604 = vpop.f32.mrb[0].mxu0
        %v3605 = vadd.f32 0.0, %v3604
        %v3606 = vpop.f32.mrb[0].mxu0
        %v3607 = vpop.f32.mrb[0].mxu0
        %3608 = vdwg.mxu0
        %v3609 = vld [vmem:[%s5] sm:$0xff]
        %3611 = vset.pattern.permute.xlu0 4
        %3612 = vperm.xlu0 %3611, %v3609
        %v3613 = vpop.permute.xlu0 %3612
        %v3615 = vmul.f32 %v3603, %v3613
        %v3616 = vmul.f32 %v3605, %v3613
        %3617 = vset.pattern.permute.xlu0 5
        %3618 = vperm.xlu0 %3617, %v3609
        %v3619 = vpop.permute.xlu0 %3618
        %v3621 = vadd.f32 %v3615, %v3619
        %v3622 = vadd.f32 %v3616, %v3619
        %v3623 = vxor.u32 %v3621, 2147483648
        %v3624 = vxor.u32 %v3622, 2147483648
        %v3625 = vmul.f32 %v3623, 1.442695
        %v3626 = vpow.pop %v3625
        %v3627 = vmul.f32 %v3624, 1.442695
        %v3628 = vpow.pop %v3627
        %v3629 = vadd.f32 %v3626, 1.0
        %v3630 = vadd.f32 %v3628, 1.0
        %v3631 = vrcp.pop %v3629
        %v3632 = vmul.f32 1.0, %v3631
        %v3633 = vrcp.pop %v3630
        %v3634 = vmul.f32 1.0, %v3633
        %v3635 = vmul.f32 %v3621, %v3632
        %v3636 = vmul.f32 %v3622, %v3634
        %v3637 = vld [vmem:[%s427] sm:$0xff]
        %v3638 = vld [vmem:[%s427 + $0x8] sm:$0xff]
        %s3639 = sld [smem:[#allocation6 + $0x8]]
        %v3640 = vmul.f32 %v3635, %v3553
        %v3641 = vmul.f32 %v3636, %v3555
        %v3642 = vstv %s3639
        %v3643 = vmul.f32 %v3642, %v3640
        %v3644 = vmul.f32 %v3642, %v3641
        %v3645 = vadd.f32 %v3637, %v3643
        %v3646 = vadd.f32 %v3638, %v3644
        %3647 = vst [vmem:[%s427] sm:$0xff] %v3645
        %3648 = vst [vmem:[%s427 + $0x8] sm:$0xff] %v3646
        %v3649 = vld [vmem:[%s427] sm:$0xff]
        %v3650 = vld [vmem:[%s427 + $0x8] sm:$0xff]
        %v3651 = vld [vmem:[%s6] sm:$0xf]
        %v3652 = vld [vmem:[%s6 + $0x4] sm:$0xf]
        %v3653 = vpack.c.bf16 %v3649, %v3649
        %v3654 = vpack.c.bf16 %v3650, %v3650
        %v3655 = vld [vmem:[%s7] sm:$0xff]
        %v3656 = vld [vmem:[%s7 + $0x8] sm:$0xff]
        %3658 = vset.pattern.permute.xlu0 0
        %3659 = vperm.xlu0 %3658, %v3655
        %v3660 = vpop.permute.xlu0 %3659
        %3663 = vset.pattern.permute.xlu0 0
        %3664 = vperm.xlu0 %3663, %v3656
        %v3665 = vpop.permute.xlu0 %3664
        %v3669 = vunpack.c.l.b16 %v3651
        %v3670 = vunpack.c.l.b16 %v3652
        %v3671 = vpack.c.b16 %v3670, %v3669
        %vm3672 = vcmask 64512
        %v3674 = vsel %vm3672, %v3671, 0
        %v3677 = vsel %vm3481, %v3653, 0
        %v3680 = vsel %vm3481, %v3654, 0
        %3682 = vmatprep.subr.bf16.mxu0 %v3680
        %3683 = vmatpush1.bf16.msra.mxu0 %v3677
        %3684 = vmatprep.subr.bf16.mxu0 0
        %3685 = vmatpush1.bf16.msra.mxu0 0
        %3686 = vmatprep.subr.bf16.mxu0 0
        %3687 = vmatpush1.bf16.msra.mxu0 0
        %3688 = vmatprep.subr.bf16.mxu0 0
        %3689 = vmatpush1.bf16.msra.mxu0 0
        %3690 = vmatprep.subr.bf16.mxu0 0
        %3691 = vmatpush1.bf16.msra.mxu0 0
        %3692 = vmatprep.subr.bf16.mxu0 0
        %3693 = vmatpush1.bf16.msra.mxu0 0
        %3694 = vmatprep.subr.bf16.mxu0 0
        %3695 = vmatpush1.bf16.msra.mxu0 0
        %3696 = vmatprep.subr.bf16.mxu0 0
        %3697 = vmatpush1.bf16.msra.mxu0 0
        %3698 = vmatprep.subr.bf16.mxu0 0
        %3699 = vmatpush1.bf16.msra.mxu0 0
        %3700 = vmatprep.subr.bf16.mxu0 0
        %3701 = vmatpush1.bf16.msra.mxu0 0
        %3702 = vmatprep.subr.bf16.mxu0 0
        %3703 = vmatpush1.bf16.msra.mxu0 0
        %3704 = vmatprep.subr.bf16.mxu0 0
        %3705 = vmatpush1.bf16.msra.mxu0 0
        %3706 = vmatprep.subr.bf16.mxu0 0
        %3707 = vmatpush1.bf16.msra.mxu0 0
        %3708 = vmatprep.subr.bf16.mxu0 0
        %3709 = vmatpush1.bf16.msra.mxu0 0
        %3710 = vmatprep.subr.bf16.mxu0 0
        %3711 = vmatpush1.bf16.msra.mxu0 0
        %3712 = vmatprep.subr.bf16.mxu0 0
        %3713 = vmatpush1.bf16.msra.mxu0 0
        %3714 = vmatprep.mubr.bf16.mxu0 0
        %3715 = vmatmul.mubr.bf16.gmra.mrb[0].mxu0 %v3674
        %v3716 = vpop.f32.mrb[0].mxu0
        %v3717 = vadd.f32 %v3660, %v3716
        %v3718 = vpop.f32.mrb[0].mxu0
        %v3719 = vadd.f32 %v3660, %v3718
        %v3720 = vpop.f32.mrb[0].mxu0
        %v3721 = vadd.f32 %v3665, %v3720
        %v3722 = vpop.f32.mrb[0].mxu0
        %v3723 = vadd.f32 %v3665, %v3722
        %3724 = vdwg.mxu0
        %vm3725 = vcmask 1044484
        %v3726 = vsel %vm3725, %v3721, -inf
        %v3727 = vsel %vm3725, %v3723, -inf
        %v3728 = vmax.f32 %v3726, %v3727
        %3729 = vmax.xlane.f32.xlu0 %v3728
        %v3730 = vpop.xlane.xlu0 %3729
        %v3731 = vsub.f32 %v3721, %v3730
        %v3732 = vsub.f32 %v3723, %v3730
        %v3733 = vmul.f32 %v3731, 1.442695
        %v3734 = vpow.pop %v3733
        %v3735 = vmul.f32 %v3732, 1.442695
        %v3736 = vpow.pop %v3735
        %v3737 = vsel %vm3725, %v3734, 0.0
        %v3738 = vsel %vm3725, %v3736, 0.0
        %v3739 = vadd.f32 %v3737, %v3738
        %3740 = vadd.xlane.f32.xlu0 %v3739
        %v3741 = vpop.xlane.xlu0 %3740
        %v3742 = vrcp.pop %v3741
        %v3743 = vmul.f32 %v3734, %v3742
        %v3744 = vmul.f32 %v3736, %v3742
        %v3745 = vlaneseq
        %v3746 = vshrl.u32 %v3745, 7
        %v3747 = vsub.s32 4, %v3746
        %v3748 = vrot.slane %v3743, %v3747
        %v3749 = vlaneseq
        %v3750 = vshrl.u32 %v3749, 7
        %v3751 = vsub.s32 4, %v3750
        %v3752 = vrot.slane %v3744, %v3751
        %v3753 = vmul.f32 %v3717, %v3748
        %v3754 = vmul.f32 %v3719, %v3752
        %v3755 = vsel %vm3481, %v3753, 0.0
        %v3756 = vsel %vm3481, %v3754, 0.0
        %v3757 = vadd.f32 %v3755, %v3756
        %3758 = vadd.xlane.f32.xlu0 %v3757
        %v3759 = vpop.xlane.xlu0 %3758
        %v3760 = vld [vmem:[%s8] sm:$0xff]
        %v3761 = vld [vmem:[%s5] sm:$0xff]
        %3763 = vrot.lane.b32.xlu0 %v3761, 120
        %v3764 = vpop.permute.xlu0 %3763
        %v3767 = vsel %vm1892, %v3760, 0
        %v3770 = vsel %vm3481, %v3759, 0
        %3772 = vmatprep.subr.mxu0 0.0
        %3773 = vmatpush1.msra.mxu0 %v3770
        %3774 = vmatprep.subr.mxu0 0.0
        %3775 = vmatpush1.msra.mxu0 0.0
        %3776 = vmatprep.subr.mxu0 0.0
        %3777 = vmatpush1.msra.mxu0 0.0
        %3778 = vmatprep.subr.mxu0 0.0
        %3779 = vmatpush1.msra.mxu0 0.0
        %3780 = vmatprep.subr.mxu0 0.0
        %3781 = vmatpush1.msra.mxu0 0.0
        %3782 = vmatprep.subr.mxu0 0.0
        %3783 = vmatpush1.msra.mxu0 0.0
        %3784 = vmatprep.subr.mxu0 0.0
        %3785 = vmatpush1.msra.mxu0 0.0
        %3786 = vmatprep.subr.mxu0 0.0
        %3787 = vmatpush1.msra.mxu0 0.0
        %3788 = vmatprep.subr.mxu0 0.0
        %3789 = vmatpush1.msra.mxu0 0.0
        %3790 = vmatprep.subr.mxu0 0.0
        %3791 = vmatpush1.msra.mxu0 0.0
        %3792 = vmatprep.subr.mxu0 0.0
        %3793 = vmatpush1.msra.mxu0 0.0
        %3794 = vmatprep.subr.mxu0 0.0
        %3795 = vmatpush1.msra.mxu0 0.0
        %3796 = vmatprep.subr.mxu0 0.0
        %3797 = vmatpush1.msra.mxu0 0.0
        %3798 = vmatprep.subr.mxu0 0.0
        %3799 = vmatpush1.msra.mxu0 0.0
        %3800 = vmatprep.subr.mxu0 0.0
        %3801 = vmatpush1.msra.mxu0 0.0
        %3802 = vmatprep.subr.mxu0 0.0
        %3803 = vmatpush1.msra.mxu0 0.0
        %3804 = vmatprep.subr.mxu0 0.0
        %3805 = vmatpush1.msra.mxu0 0.0
        %3806 = vmatprep.subr.mxu0 0.0
        %3807 = vmatpush1.msra.mxu0 0.0
        %3808 = vmatprep.subr.mxu0 0.0
        %3809 = vmatpush1.msra.mxu0 0.0
        %3810 = vmatprep.subr.mxu0 0.0
        %3811 = vmatpush1.msra.mxu0 0.0
        %3812 = vmatprep.subr.mxu0 0.0
        %3813 = vmatpush1.msra.mxu0 0.0
        %3814 = vmatprep.subr.mxu0 0.0
        %3815 = vmatpush1.msra.mxu0 0.0
        %3816 = vmatprep.subr.mxu0 0.0
        %3817 = vmatpush1.msra.mxu0 0.0
        %3818 = vmatprep.subr.mxu0 0.0
        %3819 = vmatpush1.msra.mxu0 0.0
        %3820 = vmatprep.subr.mxu0 0.0
        %3821 = vmatpush1.msra.mxu0 0.0
        %3822 = vmatprep.subr.mxu0 0.0
        %3823 = vmatpush1.msra.mxu0 0.0
        %3824 = vmatprep.subr.mxu0 0.0
        %3825 = vmatpush1.msra.mxu0 0.0
        %3826 = vmatprep.subr.mxu0 0.0
        %3827 = vmatpush1.msra.mxu0 0.0
        %3828 = vmatprep.subr.mxu0 0.0
        %3829 = vmatpush1.msra.mxu0 0.0
        %3830 = vmatprep.subr.mxu0 0.0
        %3831 = vmatpush1.msra.mxu0 0.0
        %3832 = vmatprep.subr.mxu0 0.0
        %3833 = vmatpush1.msra.mxu0 0.0
        %3834 = vmatprep.subr.mxu0 0.0
        %3835 = vmatpush1.msra.mxu0 0.0
        %3836 = vmatprep.mubr.f32.mxu0 0.0
        %3837 = vmatmul.mubr.f32.gmra.mrb[0].mxu0 %v3767
        %v3838 = vpop.f32.mrb[0].mxu0
        %v3839 = vadd.f32 %v3764, %v3838
        %v3840 = vpop.f32.mrb[0].mxu0
        %3841 = vdwg.mxu0
        %vm3842 = vcmask 7168
        %v3843 = vsel %vm3842, %v3839, 0.0
        %v3844 = vrot.slane %v3843, 4
        %v3845 = vadd.f32 %v3843, %v3844
        %v3846 = vrot.slane %v3845, 2
        %v3847 = vadd.f32 %v3845, %v3846
        %v3848 = vrot.slane %v3847, 1
        %v3849 = vadd.f32 %v3847, %v3848
        %v3850 = vrcp.pop 8.0
        %v3851 = vmul.f32 %v3849, %v3850
        %v3852 = vsub.f32 %v3839, %v3851
        %v3853 = vmul.f32 %v3852, %v3852
        %v3854 = vsel %vm3842, %v3853, 0.0
        %v3855 = vrot.slane %v3854, 4
        %v3856 = vadd.f32 %v3854, %v3855
        %v3857 = vrot.slane %v3856, 2
        %v3858 = vadd.f32 %v3856, %v3857
        %v3859 = vrot.slane %v3858, 1
        %v3860 = vadd.f32 %v3858, %v3859
        %v3861 = vmul.f32 %v3860, %v3850
        %v3862 = vadd.f32 %v3861, 1e-05
        %v3863 = vrsqrt.pop %v3862
        %v3864 = vmul.f32 %v3852, %v3863
        %3865 = vrot.lane.b32.xlu0 %v3761, 122
        %v3866 = vpop.permute.xlu0 %3865
        %v3868 = vmul.f32 %v3864, %v3866
        %3869 = vrot.lane.b32.xlu0 %v3761, 121
        %v3870 = vpop.permute.xlu0 %3869
        %v3872 = vadd.f32 %v3868, %v3870
        %v3873 = vxor.u32 %v3872, 2147483648
        %v3874 = vmul.f32 %v3873, 1.442695
        %v3875 = vpow.pop %v3874
        %v3876 = vadd.f32 %v3875, 1.0
        %v3877 = vrcp.pop %v3876
        %v3878 = vmul.f32 1.0, %v3877
        %v3879 = vsel %vm3481, %v3721, 0.0
        %v3880 = vsel %vm3481, %v3723, 0.0
        %v3881 = vadd.f32 %v3879, %v3880
        %3882 = vadd.xlane.f32.xlu0 %v3881
        %v3883 = vpop.xlane.xlu0 %3882
        %v3884 = vmul.f32 %v3883, 0.00390625
        %v3885 = vsel %vm3481, %v3884, -inf
        %v3886 = vrot.slane %v3885, 4
        %v3887 = vmax.f32 %v3885, %v3886
        %v3888 = vrot.slane %v3887, 2
        %v3889 = vmax.f32 %v3887, %v3888
        %v3890 = vrot.slane %v3889, 1
        %v3891 = vmax.f32 %v3889, %v3890
        %v3892 = vsub.f32 %v3884, %v3891
        %v3893 = vmul.f32 %v3892, 1.442695
        %v3894 = vpow.pop %v3893
        %v3895 = vsel %vm3481, %v3894, 0.0
        %v3896 = vrot.slane %v3895, 4
        %v3897 = vadd.f32 %v3895, %v3896
        %v3898 = vrot.slane %v3897, 2
        %v3899 = vadd.f32 %v3897, %v3898
        %v3900 = vrot.slane %v3899, 1
        %v3901 = vadd.f32 %v3899, %v3900
        %v3902 = vrcp.pop %v3901
        %v3903 = vmul.f32 %v3894, %v3902
        %v3905 = vrot.slane %v3903, 4
        %v3907 = vmul.f32 %v3717, %v3905
        %v3908 = vmul.f32 %v3719, %v3905
        %v3911 = vrot.slane %v3907, 4
        %v3912 = vrot.slane %v3908, 4
        %v3915 = vsel %vm3481, %v3911, 0.0
        %v3916 = vrot.slane %v3915, 4
        %v3917 = vadd.f32 %v3915, %v3916
        %v3918 = vrot.slane %v3917, 2
        %v3919 = vadd.f32 %v3917, %v3918
        %v3920 = vrot.slane %v3919, 1
        %v3921 = vadd.f32 %v3919, %v3920
        %v3922 = vsel %vm3481, %v3912, 0.0
        %v3923 = vrot.slane %v3922, 4
        %v3924 = vadd.f32 %v3922, %v3923
        %v3925 = vrot.slane %v3924, 2
        %v3926 = vadd.f32 %v3924, %v3925
        %v3927 = vrot.slane %v3926, 1
        %v3928 = vadd.f32 %v3926, %v3927
        %v3929 = vxor.u32 %v3921, 2147483648
        %v3930 = vxor.u32 %v3928, 2147483648
        %v3931 = vmul.f32 %v3929, 1.442695
        %v3932 = vpow.pop %v3931
        %v3933 = vmul.f32 %v3930, 1.442695
        %v3934 = vpow.pop %v3933
        %v3935 = vadd.f32 %v3932, 1.0
        %v3936 = vadd.f32 %v3934, 1.0
        %v3937 = vrcp.pop %v3935
        %v3938 = vmul.f32 1.0, %v3937
        %v3939 = vrcp.pop %v3936
        %v3940 = vmul.f32 1.0, %v3939
        %3942 = vset.pattern.permute.xlu0 0
        %3943 = vperm.xlu0 %3942, %v3878
        %v3944 = vpop.permute.xlu0 %3943
        %v3946 = vadd.f32 %v3944, %v3938
        %v3947 = vadd.f32 %v3944, %v3940
        %v3948 = vmul.f32 %v3649, %v3946
        %v3949 = vmul.f32 %v3650, %v3947
        %3950 = vst [vmem:[%s427] sm:$0xff] %v3948
        %3951 = vst [vmem:[%s427 + $0x8] sm:$0xff] %v3949
        %p3952 = scmp.lt.s32.totalorder %s24, 1
        %s3953 = scalar_select %p3952, %s24, 1
        %s3954 = smul.addr %s3953, 2
        %s3955 = smul.addr %s3954, 8
        %s3956 = scalar_lea.vmem %s12, %s3955
        // Predicated region
        $region73: #{triplet_attention_conv4.1} parent=67 // pred_check
          %p3957 = pneg %p299
        $region74: #{triplet_attention_conv4.1} parent=67 // pred_check_branch
          %3959 = sbr.rel (%p3957) target = $region76
        $region75: #{triplet_attention_conv4.1} parent=67 // pred_region
          _
        $region76: #{triplet_attention_conv4.1} parent=67 // pred_fallthru
          _
      $region68: #{triplet_attention_conv4.1} parent=5 // pred_fallthru
        _
      %p3960 = scmp.le.s32.totalorder 2, %s19
      // Predicated region
      $region77: #{triplet_attention_conv4.1} parent=5 // pred_check
        %p3961 = pneg %p3960
      $region78: #{triplet_attention_conv4.1} parent=5 // pred_check_branch
        %3963 = sbr.rel (%p3961) target = $region80
      $region79: #{triplet_attention_conv4.1} parent=5 // pred_region
        %s3964 = ssub.s32 %s19, 2
        // Predicated region
        $region81: #{triplet_attention_conv4.1} parent=79 // pred_check
          %p3965 = pneg %p305
        $region82: #{triplet_attention_conv4.1} parent=79 // pred_check_branch
          %3967 = sbr.rel (%p3965) target = $region84
        $region83: #{triplet_attention_conv4.1} parent=79 // pred_region
          %p3968 = scmp.lt.s32.totalorder %s25, 1
          %s3969 = scalar_select %p3968, %s25, 1
          %s3970 = smul.addr %s3969, 2
          %s3971 = smul.addr %s3970, 8
          %s3972 = scalar_lea.vmem %s12, %s3971
        $region84: #{triplet_attention_conv4.1} parent=79 // pred_fallthru
          _
      $region80: #{triplet_attention_conv4.1} parent=5 // pred_fallthru
        _
    $region6: #{triplet_attention_conv4.1} parent=1 // loop_footer
      %s23 = sadd.s32 1, %s19
    $region7: #{triplet_attention_conv4.1} parent=1 // loop_footer_branch
      %18 = sbr.rel target = $region3
    $region8: #{triplet_attention_conv4.1} parent=1 // loop_exit
      _
    %3973 = vsyncpa [#allocation7], 1
    %s3974 = scalar_lea.sflag [#allocation7], 1
    %3975 = vsyncpa %s3974, 1

</llo_original>
